<compile_context>
chip_gen: v7x
topology: tpu7x:2x2x1
jax: 0.10.0
libtpu: 0.0.40
codegen_flags: <defaults>
</compile_context>

<pallas_src>
import functools
import math

import jax
import jax.numpy as jnp
from jax.experimental import pallas as pl
from jax.experimental.pallas import tpu as pltpu


def _round_up(x, m):
    return ((x + m - 1) // m) * m


# ----------------------------------------------------------------------------
# Fused kernel (no grid): whole network in one invocation.
# refs layout: [tok_tm, emb, (wi, wh, bi, bhn) * L, w1, b1, w2row, b2, out, gx_scratch, hseq_scratch]
#
# PyTorch GRU equations (gate order r, z, n):
#   r  = sigmoid(x W_ir^T + b_ir + h W_hr^T + b_hr)
#   z  = sigmoid(x W_iz^T + b_iz + h W_hz^T + b_hz)
#   n  = tanh  (x W_in^T + b_in + r * (h W_hn^T + b_hn))
#   h' = (1 - z) * n + z * h
# b_hr / b_hz are pre-folded into bi; bhn stays separate (lives inside the r-multiply).
# ----------------------------------------------------------------------------
def _fused_gru_net_kernel(*refs, num_layers, T, Bp, Hp, Vp):
    tok_ref, emb_ref = refs[0], refs[1]
    w1_ref, b1_ref, w2_ref, b2_ref = refs[2 + 4 * num_layers: 6 + 4 * num_layers]
    o_ref = refs[6 + 4 * num_layers]
    gx_ref = refs[7 + 4 * num_layers]       # VMEM scratch (T*Bp, 3Hp) f32
    hseq_ref = refs[8 + 4 * num_layers]     # VMEM scratch (T*Bp, Hp)  bf16

    TB = T * Bp

    # --- Embedding gather fused as a one-hot MXU matmul (vocab padded to 128 lanes). ---
    tok = tok_ref[...]                                                   # (TB, 1) int32, time-major
    lane = jax.lax.broadcasted_iota(jnp.int32, (TB, Vp), 1)
    onehot = (lane == tok).astype(jnp.bfloat16)                          # (TB, Vp)
    layer_in = jnp.dot(onehot, emb_ref[...],
                       preferred_element_type=jnp.float32
                       ).astype(jnp.bfloat16)                            # (TB, Dp), exact selection

    h_last = None
    for li in range(num_layers):
        wi_ref, wh_ref, bi_ref, bhn_ref = refs[2 + 4 * li: 6 + 4 * li]
        last_layer = (li == num_layers - 1)

        # Hoisted input projection for ALL timesteps, staged in VMEM (bounds vreg pressure).
        gx_ref[...] = (jnp.dot(layer_in, wi_ref[...],
                               preferred_element_type=jnp.float32)
                       + bi_ref[...])                                     # (TB, 3Hp) f32

        # Hoist the n-gate recurrent bias broadcast above the serial loop.
        bhn_b = jnp.broadcast_to(bhn_ref[...], (Bp, Hp))                  # (Bp, Hp) f32
        h = jnp.zeros((Bp, Hp), jnp.float32)

        # Serial recurrence: only h @ W_h (and the gate VPU/EUP math) per timestep.
        # T is small & static -> fully unrolled; use lax.fori_loop if T grows.
        for t in range(T):
            gx = gx_ref[pl.ds(t * Bp, Bp), :]                             # aligned (Bp, 3Hp) load
            gh = jnp.dot(h.astype(jnp.bfloat16), wh_ref[...],
                         preferred_element_type=jnp.float32)              # (Bp, 3Hp), no bias

            r = jax.nn.sigmoid(gx[:, 0:Hp] + gh[:, 0:Hp])
            z = jax.nn.sigmoid(gx[:, Hp:2 * Hp] + gh[:, Hp:2 * Hp])
            n = jnp.tanh(gx[:, 2 * Hp:] + r * (gh[:, 2 * Hp:] + bhn_b))
            h = (1.0 - z) * n + z * h

            if not last_layer:
                # Unmasked bf16 store (Bp=16 == bf16 sublane tile); feeds next layer's matmul.
                hseq_ref[pl.ds(t * Bp, Bp), :] = h.astype(jnp.bfloat16)

        if not last_layer:
            layer_in = hseq_ref[...]                                      # (TB, Hp) bf16
        h_last = h                                                        # (Bp, Hp) f32

    # --- Classifier epilogue: Linear(H,H) -> Sigmoid -> Linear(H,1) -> Sigmoid (dropout=identity)
    h1 = jax.nn.sigmoid(
        jnp.dot(h_last.astype(jnp.bfloat16), w1_ref[...],
                preferred_element_type=jnp.float32) + b1_ref[...])        # (Bp, Hp)
    # N=1 projection: VPU multiply + lane reduction (no MXU needed).
    logits = jnp.sum(h1 * w2_ref[...], axis=-1, keepdims=True) + b2_ref[...]  # (Bp, 1)
    o_ref[...] = jax.nn.sigmoid(logits).astype(o_ref.dtype)


# ----------------------------------------------------------------------------
# Forward pass (matches GRU_Net.forward, eval mode)
# ----------------------------------------------------------------------------
SUBLANE_PAD = 16   # bf16 packs 16 sublanes per vreg -> unmasked hseq stores, aligned f32 slices


@jax.jit
def gru_net_forward(tokens, params):
    B, T = tokens.shape
    Bp = _round_up(B, SUBLANE_PAD)
    # Pad batch to Bp (padded rows use token 0 and are sliced away) and flatten time-major so
    # each layer's input projection is one wide matmul and per-step slices are contiguous rows.
    tok_p = jnp.pad(tokens.astype(jnp.int32), ((0, Bp - B), (0, 0)))      # (Bp, T)
    tok_tm = jnp.transpose(tok_p, (1, 0)).reshape(T * Bp, 1)              # (T*Bp, 1)

    gru_layers = params["gru"]
    num_layers = len(gru_layers)
    Hp = gru_layers[0]["wh"].shape[0]
    Vp = params["embedding"].shape[0]

    args = [tok_tm, params["embedding"]]
    for lp in gru_layers:
        args += [lp["wi"], lp["wh"], lp["bi"], lp["bhn"]]
    args += [params["cls_w1"], params["cls_b1"], params["cls_w2"], params["cls_b2"]]

    kernel = functools.partial(_fused_gru_net_kernel,
                               num_layers=num_layers, T=T, Bp=Bp, Hp=Hp, Vp=Vp)
    out = pl.pallas_call(
        kernel,
        out_shape=jax.ShapeDtypeStruct((Bp, 1), jnp.float32),
        scratch_shapes=[pltpu.VMEM((T * Bp, 3 * Hp), jnp.float32),   # staged input projections
                        pltpu.VMEM((T * Bp, Hp), jnp.bfloat16)],     # inter-layer hidden sequence
        compiler_params=pltpu.CompilerParams(vmem_limit_bytes=32 * 1024 * 1024),
    )(*args)
    return out[:B]


# ----------------------------------------------------------------------------
# Parameter construction (PyTorch layout) + conversion to kernel layout
# ----------------------------------------------------------------------------
def init_params(key, vocab_size, embed_dim, hidden_dim, num_layers):
    keys = iter(jax.random.split(key, 1 + 4 * num_layers + 4))
    params = {"embedding": jax.random.normal(next(keys), (vocab_size, embed_dim), jnp.float32)}

    k = 1.0 / math.sqrt(hidden_dim)
    gru = []
    for layer in range(num_layers):
        in_dim = embed_dim if layer == 0 else hidden_dim
        gru.append(dict(
            w_ih=jax.random.uniform(next(keys), (3 * hidden_dim, in_dim), jnp.float32, -k, k),
            w_hh=jax.random.uniform(next(keys), (3 * hidden_dim, hidden_dim), jnp.float32, -k, k),
            b_ih=jax.random.uniform(next(keys), (3 * hidden_dim,), jnp.float32, -k, k),
            b_hh=jax.random.uniform(next(keys), (3 * hidden_dim,), jnp.float32, -k, k),
        ))
    params["gru"] = gru

    # classifier hardcodes Linear(200, 200) / Linear(200, 1) in the module
    k1 = 1.0 / math.sqrt(200.0)
    params["cls_w1"] = jax.random.uniform(next(keys), (200, 200), jnp.float32, -k1, k1)
    params["cls_b1"] = jax.random.uniform(next(keys), (200,), jnp.float32, -k1, k1)
    params["cls_w2"] = jax.random.uniform(next(keys), (1, 200), jnp.float32, -k1, k1)
    params["cls_b2"] = jax.random.uniform(next(keys), (1,), jnp.float32, -k1, k1)
    return params


def _prep_gate_matrix(w, H, Hp, in_dim, in_dim_p, dtype):
    """(3H, in_dim) PyTorch weight -> (in_dim_p, 3Hp) fused [r|z|n], zero-padded per gate."""
    gates = []
    for g in range(3):
        wg = w[g * H:(g + 1) * H, :].T                                   # (in_dim, H)
        gates.append(jnp.pad(wg, ((0, in_dim_p - in_dim), (0, Hp - H))))
    return jnp.concatenate(gates, axis=1).astype(dtype)                  # (in_dim_p, 3Hp)


def prepare_params(raw):
    """Pad to (8,128)-friendly shapes, fuse gates, fold recurrent r/z biases, bf16 matmul weights.

    Invariant relied on by the kernel: ALL padding (lanes >= 200 of every GRU/classifier weight
    and bias, rows >= vocab of the embedding, lanes >= 200 of cls_w2) is EXACTLY ZERO, so padded
    hidden lanes stay 0 through the GRU and never leak into the logits.
    """
    H = raw["gru"][0]["w_hh"].shape[1]
    Hp = _round_up(H, 128)
    vocab, D = raw["embedding"].shape
    Vp, Dp = _round_up(vocab, 128), _round_up(D, 128)

    prepped = {"embedding": jnp.pad(raw["embedding"],
                                    ((0, Vp - vocab), (0, Dp - D))).astype(jnp.bfloat16)}

    gru = []
    for li, lp in enumerate(raw["gru"]):
        in_dim = lp["w_ih"].shape[1]
        in_dim_p = Dp if li == 0 else Hp
        b_ih, b_hh = lp["b_ih"], lp["b_hh"]
        # Fold b_hr / b_hz into the input bias (only the n-gate recurrent bias must stay inside
        # the r * (.) term, so it is kept separately as bhn).
        bi_parts = [
            jnp.pad(b_ih[0 * H:1 * H] + b_hh[0 * H:1 * H], (0, Hp - H)),   # r
            jnp.pad(b_ih[1 * H:2 * H] + b_hh[1 * H:2 * H], (0, Hp - H)),   # z
            jnp.pad(b_ih[2 * H:3 * H], (0, Hp - H)),                       # n (input part only)
        ]
        gru.append(dict(
            wi=_prep_gate_matrix(lp["w_ih"], H, Hp, in_dim, in_dim_p, jnp.bfloat16),
            wh=_prep_gate_matrix(lp["w_hh"], H, Hp, H, Hp, jnp.bfloat16),
            bi=jnp.concatenate(bi_parts)[None, :].astype(jnp.float32),     # (1, 3Hp)
            bhn=jnp.pad(b_hh[2 * H:3 * H], (0, Hp - H))[None, :].astype(jnp.float32),  # (1, Hp)
        ))
    prepped["gru"] = gru

    n_out, n_in = raw["cls_w1"].shape                                    # (200, 200)
    prepped["cls_w1"] = jnp.pad(raw["cls_w1"].T,
                                ((0, Hp - n_in), (0, Hp - n_out))).astype(jnp.bfloat16)
    prepped["cls_b1"] = jnp.pad(raw["cls_b1"], (0, Hp - n_out))[None, :].astype(jnp.float32)
    prepped["cls_w2"] = jnp.pad(raw["cls_w2"][0], (0, Hp - n_out))[None, :].astype(jnp.float32)
    prepped["cls_b2"] = raw["cls_b2"][None, :].astype(jnp.float32)       # (1, 1)
    return prepped


# ----------------------------------------------------------------------------
# Pure-JAX reference (f32) for a correctness sanity check
# ----------------------------------------------------------------------------
def gru_net_reference(tokens, raw):
    x = raw["embedding"][tokens]                                          # (B, T, D)
    B, T, _ = x.shape
    H = raw["gru"][0]["w_hh"].shape[1]
    for lp in raw["gru"]:
        h = jnp.zeros((B, H), jnp.float32)
        outs = []
        for t in range(T):
            gi = x[:, t, :] @ lp["w_ih"].T + lp["b_ih"]
            gh = h @ lp["w_hh"].T + lp["b_hh"]
            i_r, i_z, i_n = jnp.split(gi, 3, axis=1)
            h_r, h_z, h_n = jnp.split(gh, 3, axis=1)
            r = jax.nn.sigmoid(i_r + h_r)
            z = jax.nn.sigmoid(i_z + h_z)
            n = jnp.tanh(i_n + r * h_n)
            h = (1.0 - z) * n + z * h
            outs.append(h)
        x = jnp.stack(outs, axis=1)                                       # (B, T, H)
    h_last = x[:, -1, :]
    h1 = jax.nn.sigmoid(h_last @ raw["cls_w1"].T + raw["cls_b1"])
    return jax.nn.sigmoid(h1 @ raw["cls_w2"].T + raw["cls_b2"])


if __name__ == "__main__":
    VOCAB = 50
    EMBED_DIM = 64
    HIDDEN_DIM = 200      # classifier hardcodes Linear(200, 200) in the module
    NUM_LAYERS = 2
    BATCH = 2
    SEQ = 8

    key = jax.random.PRNGKey(0)
    pkey, dkey = jax.random.split(key)
    raw_params = init_params(pkey, VOCAB, EMBED_DIM, HIDDEN_DIM, NUM_LAYERS)
    params = prepare_params(raw_params)

    tokens = jax.random.randint(dkey, (BATCH, SEQ), 0, VOCAB, dtype=jnp.int32)

    out = gru_net_forward(tokens, params)
    out = jax.block_until_ready(out)

    assert out.shape == (BATCH, 1)
    assert bool(jnp.all(jnp.isfinite(out)))

    ref = gru_net_reference(tokens, raw_params)
    max_err = float(jnp.max(jnp.abs(out - ref)))
    assert max_err < 5e-2, f"mismatch vs reference: {max_err}"

    print("KERNEL_OK")
</pallas_src>

<mosaic_0001>
module attributes {stable_mosaic.version = 11 : i64} {
  func.func @_fused_gru_net_kernel(%arg0: memref<128x1xi32, #tpu.memory_space<vmem>>, %arg1: memref<128x128xbf16, #tpu.memory_space<vmem>>, %arg2: memref<128x768xbf16, #tpu.memory_space<vmem>>, %arg3: memref<256x768xbf16, #tpu.memory_space<vmem>>, %arg4: memref<1x768xf32, #tpu.memory_space<vmem>>, %arg5: memref<1x256xf32, #tpu.memory_space<vmem>>, %arg6: memref<256x768xbf16, #tpu.memory_space<vmem>>, %arg7: memref<256x768xbf16, #tpu.memory_space<vmem>>, %arg8: memref<1x768xf32, #tpu.memory_space<vmem>>, %arg9: memref<1x256xf32, #tpu.memory_space<vmem>>, %arg10: memref<256x256xbf16, #tpu.memory_space<vmem>>, %arg11: memref<1x256xf32, #tpu.memory_space<vmem>>, %arg12: memref<1x256xf32, #tpu.memory_space<vmem>>, %arg13: memref<1x1xf32, #tpu.memory_space<vmem>>, %arg14: memref<16x1xf32, #tpu.memory_space<vmem>>, %arg15: memref<128x768xf32, #tpu.memory_space<vmem>>, %arg16: memref<128x256xbf16, #tpu.memory_space<vmem>>) attributes {dimension_semantics = [], scalar_prefetch = 0 : i64, scratch_operands = 2 : i64, tpu.core_type = #tpu.core_type<tc>} {
    %c0 = arith.constant 0 : index
    %c0_0 = arith.constant 0 : index
    %0 = vector.load %arg0[%c0, %c0_0] : memref<128x1xi32, #tpu.memory_space<vmem>>, vector<128x1xi32>
    %1 = tpu.iota {dimensions = array<i32: 1>} : vector<128x128xi32>
    %2 = vector.broadcast %0 : vector<128x1xi32> to vector<128x128xi32>
    %3 = arith.cmpi eq, %1, %2 : vector<128x128xi32>
    %4 = arith.extui %3 : vector<128x128xi1> to vector<128x128xi32>
    %5 = arith.sitofp %4 : vector<128x128xi32> to vector<128x128xf32>
    %6 = arith.truncf %5 : vector<128x128xf32> to vector<128x128xbf16>
    %c0_1 = arith.constant 0 : index
    %c0_2 = arith.constant 0 : index
    %7 = vector.load %arg1[%c0_1, %c0_2] : memref<128x128xbf16, #tpu.memory_space<vmem>>, vector<128x128xbf16>
    %cst = arith.constant dense<0.000000e+00> : vector<128x128xf32>
    %8 = tpu.matmul %6, %7, %cst {dimension_numbers = #tpu.dot_dimension_numbers<[1], [0], [0], [1], [0, 0, 1, 1], [], []>} : vector<128x128xbf16>, vector<128x128xbf16>, vector<128x128xf32> -> vector<128x128xf32>
    %9 = arith.truncf %8 : vector<128x128xf32> to vector<128x128xbf16>
    %c0_3 = arith.constant 0 : index
    %c0_4 = arith.constant 0 : index
    %10 = vector.load %arg2[%c0_3, %c0_4] : memref<128x768xbf16, #tpu.memory_space<vmem>>, vector<128x768xbf16>
    %cst_5 = arith.constant dense<0.000000e+00> : vector<128x768xf32>
    %11 = tpu.matmul %9, %10, %cst_5 {dimension_numbers = #tpu.dot_dimension_numbers<[1], [0], [0], [1], [0, 0, 1, 1], [], []>} : vector<128x128xbf16>, vector<128x768xbf16>, vector<128x768xf32> -> vector<128x768xf32>
    %c0_6 = arith.constant 0 : index
    %c0_7 = arith.constant 0 : index
    %12 = vector.load %arg4[%c0_6, %c0_7] : memref<1x768xf32, #tpu.memory_space<vmem>>, vector<1x768xf32>
    %13 = vector.broadcast %12 : vector<1x768xf32> to vector<128x768xf32>
    %14 = arith.addf %11, %13 : vector<128x768xf32>
    %c0_8 = arith.constant 0 : index
    %c0_9 = arith.constant 0 : index
    %15 = vector.load %arg15[%c0_8, %c0_9] : memref<128x768xf32, #tpu.memory_space<vmem>>, vector<128x768xf32>
    tpu.vector_store %arg15[%c0_8, %c0_9], %14 {strides = array<i32>} : memref<128x768xf32, #tpu.memory_space<vmem>>, vector<128x768xf32>,
    %c0_10 = arith.constant 0 : index
    %c0_11 = arith.constant 0 : index
    %16 = vector.load %arg5[%c0_10, %c0_11] : memref<1x256xf32, #tpu.memory_space<vmem>>, vector<1x256xf32>
    %17 = vector.shape_cast %16 : vector<1x256xf32> to vector<1x256xf32>
    %18 = vector.broadcast %17 : vector<1x256xf32> to vector<16x256xf32>
    %cst_12 = arith.constant 0.000000e+00 : f32
    %19 = vector.broadcast %cst_12 : f32 to vector<16x256xf32>
    %c0_13 = arith.constant 0 : index
    %c0_14 = arith.constant 0 : index
    %20 = vector.load %arg15[%c0_13, %c0_14] : memref<128x768xf32, #tpu.memory_space<vmem>>, vector<16x768xf32>
    %21 = arith.truncf %19 : vector<16x256xf32> to vector<16x256xbf16>
    %c0_15 = arith.constant 0 : index
    %c0_16 = arith.constant 0 : index
    %22 = vector.load %arg3[%c0_15, %c0_16] : memref<256x768xbf16, #tpu.memory_space<vmem>>, vector<256x768xbf16>
    %cst_17 = arith.constant dense<0.000000e+00> : vector<16x768xf32>
    %23 = tpu.matmul %21, %22, %cst_17 {dimension_numbers = #tpu.dot_dimension_numbers<[1], [0], [0], [1], [0, 0, 1, 1], [], []>} : vector<16x256xbf16>, vector<256x768xbf16>, vector<16x768xf32> -> vector<16x768xf32>
    %24 = vector.extract_strided_slice %20 {offsets = [0, 0], sizes = [16, 256], strides = [1, 1]} : vector<16x768xf32> to vector<16x256xf32>
    %25 = vector.extract_strided_slice %23 {offsets = [0, 0], sizes = [16, 256], strides = [1, 1]} : vector<16x768xf32> to vector<16x256xf32>
    %26 = arith.addf %24, %25 : vector<16x256xf32>
    %27 = arith.negf %26 : vector<16x256xf32>
    %28 = math.exp %27 : vector<16x256xf32>
    %cst_18 = arith.constant 1.000000e+00 : f32
    %29 = vector.broadcast %cst_18 : f32 to vector<16x256xf32>
    %30 = arith.addf %29, %28 : vector<16x256xf32>
    %31 = arith.divf %29, %30 : vector<16x256xf32>
    %32 = vector.extract_strided_slice %20 {offsets = [0, 256], sizes = [16, 256], strides = [1, 1]} : vector<16x768xf32> to vector<16x256xf32>
    %33 = vector.extract_strided_slice %23 {offsets = [0, 256], sizes = [16, 256], strides = [1, 1]} : vector<16x768xf32> to vector<16x256xf32>
    %34 = arith.addf %32, %33 : vector<16x256xf32>
    %35 = arith.negf %34 : vector<16x256xf32>
    %36 = math.exp %35 : vector<16x256xf32>
    %cst_19 = arith.constant 1.000000e+00 : f32
    %37 = vector.broadcast %cst_19 : f32 to vector<16x256xf32>
    %38 = arith.addf %37, %36 : vector<16x256xf32>
    %39 = arith.divf %37, %38 : vector<16x256xf32>
    %40 = vector.extract_strided_slice %20 {offsets = [0, 512], sizes = [16, 256], strides = [1, 1]} : vector<16x768xf32> to vector<16x256xf32>
    %41 = vector.extract_strided_slice %23 {offsets = [0, 512], sizes = [16, 256], strides = [1, 1]} : vector<16x768xf32> to vector<16x256xf32>
    %42 = arith.addf %41, %18 : vector<16x256xf32>
    %43 = arith.mulf %31, %42 : vector<16x256xf32>
    %44 = arith.addf %40, %43 : vector<16x256xf32>
    %45 = math.tanh %44 : vector<16x256xf32>
    %cst_20 = arith.constant 1.000000e+00 : f32
    %46 = vector.broadcast %cst_20 : f32 to vector<16x256xf32>
    %47 = arith.subf %46, %39 : vector<16x256xf32>
    %48 = arith.mulf %47, %45 : vector<16x256xf32>
    %49 = arith.mulf %39, %19 : vector<16x256xf32>
    %50 = arith.addf %48, %49 : vector<16x256xf32>
    %51 = arith.truncf %50 : vector<16x256xf32> to vector<16x256xbf16>
    %c0_21 = arith.constant 0 : index
    %c0_22 = arith.constant 0 : index
    %52 = vector.load %arg16[%c0_21, %c0_22] : memref<128x256xbf16, #tpu.memory_space<vmem>>, vector<16x256xbf16>
    tpu.vector_store %arg16[%c0_21, %c0_22], %51 {strides = array<i32>} : memref<128x256xbf16, #tpu.memory_space<vmem>>, vector<16x256xbf16>,
    %c16 = arith.constant 16 : index
    %c0_23 = arith.constant 0 : index
    %53 = vector.load %arg15[%c16, %c0_23] : memref<128x768xf32, #tpu.memory_space<vmem>>, vector<16x768xf32>
    %54 = arith.truncf %50 : vector<16x256xf32> to vector<16x256xbf16>
    %c0_24 = arith.constant 0 : index
    %c0_25 = arith.constant 0 : index
    %55 = vector.load %arg3[%c0_24, %c0_25] : memref<256x768xbf16, #tpu.memory_space<vmem>>, vector<256x768xbf16>
    %cst_26 = arith.constant dense<0.000000e+00> : vector<16x768xf32>
    %56 = tpu.matmul %54, %55, %cst_26 {dimension_numbers = #tpu.dot_dimension_numbers<[1], [0], [0], [1], [0, 0, 1, 1], [], []>} : vector<16x256xbf16>, vector<256x768xbf16>, vector<16x768xf32> -> vector<16x768xf32>
    %57 = vector.extract_strided_slice %53 {offsets = [0, 0], sizes = [16, 256], strides = [1, 1]} : vector<16x768xf32> to vector<16x256xf32>
    %58 = vector.extract_strided_slice %56 {offsets = [0, 0], sizes = [16, 256], strides = [1, 1]} : vector<16x768xf32> to vector<16x256xf32>
    %59 = arith.addf %57, %58 : vector<16x256xf32>
    %60 = arith.negf %59 : vector<16x256xf32>
    %61 = math.exp %60 : vector<16x256xf32>
    %cst_27 = arith.constant 1.000000e+00 : f32
    %62 = vector.broadcast %cst_27 : f32 to vector<16x256xf32>
    %63 = arith.addf %62, %61 : vector<16x256xf32>
    %64 = arith.divf %62, %63 : vector<16x256xf32>
    %65 = vector.extract_strided_slice %53 {offsets = [0, 256], sizes = [16, 256], strides = [1, 1]} : vector<16x768xf32> to vector<16x256xf32>
    %66 = vector.extract_strided_slice %56 {offsets = [0, 256], sizes = [16, 256], strides = [1, 1]} : vector<16x768xf32> to vector<16x256xf32>
    %67 = arith.addf %65, %66 : vector<16x256xf32>
    %68 = arith.negf %67 : vector<16x256xf32>
    %69 = math.exp %68 : vector<16x256xf32>
    %cst_28 = arith.constant 1.000000e+00 : f32
    %70 = vector.broadcast %cst_28 : f32 to vector<16x256xf32>
    %71 = arith.addf %70, %69 : vector<16x256xf32>
    %72 = arith.divf %70, %71 : vector<16x256xf32>
    %73 = vector.extract_strided_slice %53 {offsets = [0, 512], sizes = [16, 256], strides = [1, 1]} : vector<16x768xf32> to vector<16x256xf32>
    %74 = vector.extract_strided_slice %56 {offsets = [0, 512], sizes = [16, 256], strides = [1, 1]} : vector<16x768xf32> to vector<16x256xf32>
    %75 = arith.addf %74, %18 : vector<16x256xf32>
    %76 = arith.mulf %64, %75 : vector<16x256xf32>
    %77 = arith.addf %73, %76 : vector<16x256xf32>
    %78 = math.tanh %77 : vector<16x256xf32>
    %cst_29 = arith.constant 1.000000e+00 : f32
    %79 = vector.broadcast %cst_29 : f32 to vector<16x256xf32>
    %80 = arith.subf %79, %72 : vector<16x256xf32>
    %81 = arith.mulf %80, %78 : vector<16x256xf32>
    %82 = arith.mulf %72, %50 : vector<16x256xf32>
    %83 = arith.addf %81, %82 : vector<16x256xf32>
    %84 = arith.truncf %83 : vector<16x256xf32> to vector<16x256xbf16>
    %c16_30 = arith.constant 16 : index
    %c0_31 = arith.constant 0 : index
    %85 = vector.load %arg16[%c16_30, %c0_31] : memref<128x256xbf16, #tpu.memory_space<vmem>>, vector<16x256xbf16>
    tpu.vector_store %arg16[%c16_30, %c0_31], %84 {strides = array<i32>} : memref<128x256xbf16, #tpu.memory_space<vmem>>, vector<16x256xbf16>,
    %c32 = arith.constant 32 : index
    %c0_32 = arith.constant 0 : index
    %86 = vector.load %arg15[%c32, %c0_32] : memref<128x768xf32, #tpu.memory_space<vmem>>, vector<16x768xf32>
    %87 = arith.truncf %83 : vector<16x256xf32> to vector<16x256xbf16>
    %c0_33 = arith.constant 0 : index
    %c0_34 = arith.constant 0 : index
    %88 = vector.load %arg3[%c0_33, %c0_34] : memref<256x768xbf16, #tpu.memory_space<vmem>>, vector<256x768xbf16>
    %cst_35 = arith.constant dense<0.000000e+00> : vector<16x768xf32>
    %89 = tpu.matmul %87, %88, %cst_35 {dimension_numbers = #tpu.dot_dimension_numbers<[1], [0], [0], [1], [0, 0, 1, 1], [], []>} : vector<16x256xbf16>, vector<256x768xbf16>, vector<16x768xf32> -> vector<16x768xf32>
    %90 = vector.extract_strided_slice %86 {offsets = [0, 0], sizes = [16, 256], strides = [1, 1]} : vector<16x768xf32> to vector<16x256xf32>
    %91 = vector.extract_strided_slice %89 {offsets = [0, 0], sizes = [16, 256], strides = [1, 1]} : vector<16x768xf32> to vector<16x256xf32>
    %92 = arith.addf %90, %91 : vector<16x256xf32>
    %93 = arith.negf %92 : vector<16x256xf32>
    %94 = math.exp %93 : vector<16x256xf32>
    %cst_36 = arith.constant 1.000000e+00 : f32
    %95 = vector.broadcast %cst_36 : f32 to vector<16x256xf32>
    %96 = arith.addf %95, %94 : vector<16x256xf32>
    %97 = arith.divf %95, %96 : vector<16x256xf32>
    %98 = vector.extract_strided_slice %86 {offsets = [0, 256], sizes = [16, 256], strides = [1, 1]} : vector<16x768xf32> to vector<16x256xf32>
    %99 = vector.extract_strided_slice %89 {offsets = [0, 256], sizes = [16, 256], strides = [1, 1]} : vector<16x768xf32> to vector<16x256xf32>
    %100 = arith.addf %98, %99 : vector<16x256xf32>
    %101 = arith.negf %100 : vector<16x256xf32>
    %102 = math.exp %101 : vector<16x256xf32>
    %cst_37 = arith.constant 1.000000e+00 : f32
    %103 = vector.broadcast %cst_37 : f32 to vector<16x256xf32>
    %104 = arith.addf %103, %102 : vector<16x256xf32>
    %105 = arith.divf %103, %104 : vector<16x256xf32>
    %106 = vector.extract_strided_slice %86 {offsets = [0, 512], sizes = [16, 256], strides = [1, 1]} : vector<16x768xf32> to vector<16x256xf32>
    %107 = vector.extract_strided_slice %89 {offsets = [0, 512], sizes = [16, 256], strides = [1, 1]} : vector<16x768xf32> to vector<16x256xf32>
    %108 = arith.addf %107, %18 : vector<16x256xf32>
    %109 = arith.mulf %97, %108 : vector<16x256xf32>
    %110 = arith.addf %106, %109 : vector<16x256xf32>
    %111 = math.tanh %110 : vector<16x256xf32>
    %cst_38 = arith.constant 1.000000e+00 : f32
    %112 = vector.broadcast %cst_38 : f32 to vector<16x256xf32>
    %113 = arith.subf %112, %105 : vector<16x256xf32>
    %114 = arith.mulf %113, %111 : vector<16x256xf32>
    %115 = arith.mulf %105, %83 : vector<16x256xf32>
    %116 = arith.addf %114, %115 : vector<16x256xf32>
    %117 = arith.truncf %116 : vector<16x256xf32> to vector<16x256xbf16>
    %c32_39 = arith.constant 32 : index
    %c0_40 = arith.constant 0 : index
    %118 = vector.load %arg16[%c32_39, %c0_40] : memref<128x256xbf16, #tpu.memory_space<vmem>>, vector<16x256xbf16>
    tpu.vector_store %arg16[%c32_39, %c0_40], %117 {strides = array<i32>} : memref<128x256xbf16, #tpu.memory_space<vmem>>, vector<16x256xbf16>,
    %c48 = arith.constant 48 : index
    %c0_41 = arith.constant 0 : index
    %119 = vector.load %arg15[%c48, %c0_41] : memref<128x768xf32, #tpu.memory_space<vmem>>, vector<16x768xf32>
    %120 = arith.truncf %116 : vector<16x256xf32> to vector<16x256xbf16>
    %c0_42 = arith.constant 0 : index
    %c0_43 = arith.constant 0 : index
    %121 = vector.load %arg3[%c0_42, %c0_43] : memref<256x768xbf16, #tpu.memory_space<vmem>>, vector<256x768xbf16>
    %cst_44 = arith.constant dense<0.000000e+00> : vector<16x768xf32>
    %122 = tpu.matmul %120, %121, %cst_44 {dimension_numbers = #tpu.dot_dimension_numbers<[1], [0], [0], [1], [0, 0, 1, 1], [], []>} : vector<16x256xbf16>, vector<256x768xbf16>, vector<16x768xf32> -> vector<16x768xf32>
    %123 = vector.extract_strided_slice %119 {offsets = [0, 0], sizes = [16, 256], strides = [1, 1]} : vector<16x768xf32> to vector<16x256xf32>
    %124 = vector.extract_strided_slice %122 {offsets = [0, 0], sizes = [16, 256], strides = [1, 1]} : vector<16x768xf32> to vector<16x256xf32>
    %125 = arith.addf %123, %124 : vector<16x256xf32>
    %126 = arith.negf %125 : vector<16x256xf32>
    %127 = math.exp %126 : vector<16x256xf32>
    %cst_45 = arith.constant 1.000000e+00 : f32
    %128 = vector.broadcast %cst_45 : f32 to vector<16x256xf32>
    %129 = arith.addf %128, %127 : vector<16x256xf32>
    %130 = arith.divf %128, %129 : vector<16x256xf32>
    %131 = vector.extract_strided_slice %119 {offsets = [0, 256], sizes = [16, 256], strides = [1, 1]} : vector<16x768xf32> to vector<16x256xf32>
    %132 = vector.extract_strided_slice %122 {offsets = [0, 256], sizes = [16, 256], strides = [1, 1]} : vector<16x768xf32> to vector<16x256xf32>
    %133 = arith.addf %131, %132 : vector<16x256xf32>
    %134 = arith.negf %133 : vector<16x256xf32>
    %135 = math.exp %134 : vector<16x256xf32>
    %cst_46 = arith.constant 1.000000e+00 : f32
    %136 = vector.broadcast %cst_46 : f32 to vector<16x256xf32>
    %137 = arith.addf %136, %135 : vector<16x256xf32>
    %138 = arith.divf %136, %137 : vector<16x256xf32>
    %139 = vector.extract_strided_slice %119 {offsets = [0, 512], sizes = [16, 256], strides = [1, 1]} : vector<16x768xf32> to vector<16x256xf32>
    %140 = vector.extract_strided_slice %122 {offsets = [0, 512], sizes = [16, 256], strides = [1, 1]} : vector<16x768xf32> to vector<16x256xf32>
    %141 = arith.addf %140, %18 : vector<16x256xf32>
    %142 = arith.mulf %130, %141 : vector<16x256xf32>
    %143 = arith.addf %139, %142 : vector<16x256xf32>
    %144 = math.tanh %143 : vector<16x256xf32>
    %cst_47 = arith.constant 1.000000e+00 : f32
    %145 = vector.broadcast %cst_47 : f32 to vector<16x256xf32>
    %146 = arith.subf %145, %138 : vector<16x256xf32>
    %147 = arith.mulf %146, %144 : vector<16x256xf32>
    %148 = arith.mulf %138, %116 : vector<16x256xf32>
    %149 = arith.addf %147, %148 : vector<16x256xf32>
    %150 = arith.truncf %149 : vector<16x256xf32> to vector<16x256xbf16>
    %c48_48 = arith.constant 48 : index
    %c0_49 = arith.constant 0 : index
    %151 = vector.load %arg16[%c48_48, %c0_49] : memref<128x256xbf16, #tpu.memory_space<vmem>>, vector<16x256xbf16>
    tpu.vector_store %arg16[%c48_48, %c0_49], %150 {strides = array<i32>} : memref<128x256xbf16, #tpu.memory_space<vmem>>, vector<16x256xbf16>,
    %c64 = arith.constant 64 : index
    %c0_50 = arith.constant 0 : index
    %152 = vector.load %arg15[%c64, %c0_50] : memref<128x768xf32, #tpu.memory_space<vmem>>, vector<16x768xf32>
    %153 = arith.truncf %149 : vector<16x256xf32> to vector<16x256xbf16>
    %c0_51 = arith.constant 0 : index
    %c0_52 = arith.constant 0 : index
    %154 = vector.load %arg3[%c0_51, %c0_52] : memref<256x768xbf16, #tpu.memory_space<vmem>>, vector<256x768xbf16>
    %cst_53 = arith.constant dense<0.000000e+00> : vector<16x768xf32>
    %155 = tpu.matmul %153, %154, %cst_53 {dimension_numbers = #tpu.dot_dimension_numbers<[1], [0], [0], [1], [0, 0, 1, 1], [], []>} : vector<16x256xbf16>, vector<256x768xbf16>, vector<16x768xf32> -> vector<16x768xf32>
    %156 = vector.extract_strided_slice %152 {offsets = [0, 0], sizes = [16, 256], strides = [1, 1]} : vector<16x768xf32> to vector<16x256xf32>
    %157 = vector.extract_strided_slice %155 {offsets = [0, 0], sizes = [16, 256], strides = [1, 1]} : vector<16x768xf32> to vector<16x256xf32>
    %158 = arith.addf %156, %157 : vector<16x256xf32>
    %159 = arith.negf %158 : vector<16x256xf32>
    %160 = math.exp %159 : vector<16x256xf32>
    %cst_54 = arith.constant 1.000000e+00 : f32
    %161 = vector.broadcast %cst_54 : f32 to vector<16x256xf32>
    %162 = arith.addf %161, %160 : vector<16x256xf32>
    %163 = arith.divf %161, %162 : vector<16x256xf32>
    %164 = vector.extract_strided_slice %152 {offsets = [0, 256], sizes = [16, 256], strides = [1, 1]} : vector<16x768xf32> to vector<16x256xf32>
    %165 = vector.extract_strided_slice %155 {offsets = [0, 256], sizes = [16, 256], strides = [1, 1]} : vector<16x768xf32> to vector<16x256xf32>
    %166 = arith.addf %164, %165 : vector<16x256xf32>
    %167 = arith.negf %166 : vector<16x256xf32>
    %168 = math.exp %167 : vector<16x256xf32>
    %cst_55 = arith.constant 1.000000e+00 : f32
    %169 = vector.broadcast %cst_55 : f32 to vector<16x256xf32>
    %170 = arith.addf %169, %168 : vector<16x256xf32>
    %171 = arith.divf %169, %170 : vector<16x256xf32>
    %172 = vector.extract_strided_slice %152 {offsets = [0, 512], sizes = [16, 256], strides = [1, 1]} : vector<16x768xf32> to vector<16x256xf32>
    %173 = vector.extract_strided_slice %155 {offsets = [0, 512], sizes = [16, 256], strides = [1, 1]} : vector<16x768xf32> to vector<16x256xf32>
    %174 = arith.addf %173, %18 : vector<16x256xf32>
    %175 = arith.mulf %163, %174 : vector<16x256xf32>
    %176 = arith.addf %172, %175 : vector<16x256xf32>
    %177 = math.tanh %176 : vector<16x256xf32>
    %cst_56 = arith.constant 1.000000e+00 : f32
    %178 = vector.broadcast %cst_56 : f32 to vector<16x256xf32>
    %179 = arith.subf %178, %171 : vector<16x256xf32>
    %180 = arith.mulf %179, %177 : vector<16x256xf32>
    %181 = arith.mulf %171, %149 : vector<16x256xf32>
    %182 = arith.addf %180, %181 : vector<16x256xf32>
    %183 = arith.truncf %182 : vector<16x256xf32> to vector<16x256xbf16>
    %c64_57 = arith.constant 64 : index
    %c0_58 = arith.constant 0 : index
    %184 = vector.load %arg16[%c64_57, %c0_58] : memref<128x256xbf16, #tpu.memory_space<vmem>>, vector<16x256xbf16>
    tpu.vector_store %arg16[%c64_57, %c0_58], %183 {strides = array<i32>} : memref<128x256xbf16, #tpu.memory_space<vmem>>, vector<16x256xbf16>,
    %c80 = arith.constant 80 : index
    %c0_59 = arith.constant 0 : index
    %185 = vector.load %arg15[%c80, %c0_59] : memref<128x768xf32, #tpu.memory_space<vmem>>, vector<16x768xf32>
    %186 = arith.truncf %182 : vector<16x256xf32> to vector<16x256xbf16>
    %c0_60 = arith.constant 0 : index
    %c0_61 = arith.constant 0 : index
    %187 = vector.load %arg3[%c0_60, %c0_61] : memref<256x768xbf16, #tpu.memory_space<vmem>>, vector<256x768xbf16>
    %cst_62 = arith.constant dense<0.000000e+00> : vector<16x768xf32>
    %188 = tpu.matmul %186, %187, %cst_62 {dimension_numbers = #tpu.dot_dimension_numbers<[1], [0], [0], [1], [0, 0, 1, 1], [], []>} : vector<16x256xbf16>, vector<256x768xbf16>, vector<16x768xf32> -> vector<16x768xf32>
    %189 = vector.extract_strided_slice %185 {offsets = [0, 0], sizes = [16, 256], strides = [1, 1]} : vector<16x768xf32> to vector<16x256xf32>
    %190 = vector.extract_strided_slice %188 {offsets = [0, 0], sizes = [16, 256], strides = [1, 1]} : vector<16x768xf32> to vector<16x256xf32>
    %191 = arith.addf %189, %190 : vector<16x256xf32>
    %192 = arith.negf %191 : vector<16x256xf32>
    %193 = math.exp %192 : vector<16x256xf32>
    %cst_63 = arith.constant 1.000000e+00 : f32
    %194 = vector.broadcast %cst_63 : f32 to vector<16x256xf32>
    %195 = arith.addf %194, %193 : vector<16x256xf32>
    %196 = arith.divf %194, %195 : vector<16x256xf32>
    %197 = vector.extract_strided_slice %185 {offsets = [0, 256], sizes = [16, 256], strides = [1, 1]} : vector<16x768xf32> to vector<16x256xf32>
    %198 = vector.extract_strided_slice %188 {offsets = [0, 256], sizes = [16, 256], strides = [1, 1]} : vector<16x768xf32> to vector<16x256xf32>
    %199 = arith.addf %197, %198 : vector<16x256xf32>
    %200 = arith.negf %199 : vector<16x256xf32>
    %201 = math.exp %200 : vector<16x256xf32>
    %cst_64 = arith.constant 1.000000e+00 : f32
    %202 = vector.broadcast %cst_64 : f32 to vector<16x256xf32>
    %203 = arith.addf %202, %201 : vector<16x256xf32>
    %204 = arith.divf %202, %203 : vector<16x256xf32>
    %205 = vector.extract_strided_slice %185 {offsets = [0, 512], sizes = [16, 256], strides = [1, 1]} : vector<16x768xf32> to vector<16x256xf32>
    %206 = vector.extract_strided_slice %188 {offsets = [0, 512], sizes = [16, 256], strides = [1, 1]} : vector<16x768xf32> to vector<16x256xf32>
    %207 = arith.addf %206, %18 : vector<16x256xf32>
    %208 = arith.mulf %196, %207 : vector<16x256xf32>
    %209 = arith.addf %205, %208 : vector<16x256xf32>
    %210 = math.tanh %209 : vector<16x256xf32>
    %cst_65 = arith.constant 1.000000e+00 : f32
    %211 = vector.broadcast %cst_65 : f32 to vector<16x256xf32>
    %212 = arith.subf %211, %204 : vector<16x256xf32>
    %213 = arith.mulf %212, %210 : vector<16x256xf32>
    %214 = arith.mulf %204, %182 : vector<16x256xf32>
    %215 = arith.addf %213, %214 : vector<16x256xf32>
    %216 = arith.truncf %215 : vector<16x256xf32> to vector<16x256xbf16>
    %c80_66 = arith.constant 80 : index
    %c0_67 = arith.constant 0 : index
    %217 = vector.load %arg16[%c80_66, %c0_67] : memref<128x256xbf16, #tpu.memory_space<vmem>>, vector<16x256xbf16>
    tpu.vector_store %arg16[%c80_66, %c0_67], %216 {strides = array<i32>} : memref<128x256xbf16, #tpu.memory_space<vmem>>, vector<16x256xbf16>,
    %c96 = arith.constant 96 : index
    %c0_68 = arith.constant 0 : index
    %218 = vector.load %arg15[%c96, %c0_68] : memref<128x768xf32, #tpu.memory_space<vmem>>, vector<16x768xf32>
    %219 = arith.truncf %215 : vector<16x256xf32> to vector<16x256xbf16>
    %c0_69 = arith.constant 0 : index
    %c0_70 = arith.constant 0 : index
    %220 = vector.load %arg3[%c0_69, %c0_70] : memref<256x768xbf16, #tpu.memory_space<vmem>>, vector<256x768xbf16>
    %cst_71 = arith.constant dense<0.000000e+00> : vector<16x768xf32>
    %221 = tpu.matmul %219, %220, %cst_71 {dimension_numbers = #tpu.dot_dimension_numbers<[1], [0], [0], [1], [0, 0, 1, 1], [], []>} : vector<16x256xbf16>, vector<256x768xbf16>, vector<16x768xf32> -> vector<16x768xf32>
    %222 = vector.extract_strided_slice %218 {offsets = [0, 0], sizes = [16, 256], strides = [1, 1]} : vector<16x768xf32> to vector<16x256xf32>
    %223 = vector.extract_strided_slice %221 {offsets = [0, 0], sizes = [16, 256], strides = [1, 1]} : vector<16x768xf32> to vector<16x256xf32>
    %224 = arith.addf %222, %223 : vector<16x256xf32>
    %225 = arith.negf %224 : vector<16x256xf32>
    %226 = math.exp %225 : vector<16x256xf32>
    %cst_72 = arith.constant 1.000000e+00 : f32
    %227 = vector.broadcast %cst_72 : f32 to vector<16x256xf32>
    %228 = arith.addf %227, %226 : vector<16x256xf32>
    %229 = arith.divf %227, %228 : vector<16x256xf32>
    %230 = vector.extract_strided_slice %218 {offsets = [0, 256], sizes = [16, 256], strides = [1, 1]} : vector<16x768xf32> to vector<16x256xf32>
    %231 = vector.extract_strided_slice %221 {offsets = [0, 256], sizes = [16, 256], strides = [1, 1]} : vector<16x768xf32> to vector<16x256xf32>
    %232 = arith.addf %230, %231 : vector<16x256xf32>
    %233 = arith.negf %232 : vector<16x256xf32>
    %234 = math.exp %233 : vector<16x256xf32>
    %cst_73 = arith.constant 1.000000e+00 : f32
    %235 = vector.broadcast %cst_73 : f32 to vector<16x256xf32>
    %236 = arith.addf %235, %234 : vector<16x256xf32>
    %237 = arith.divf %235, %236 : vector<16x256xf32>
    %238 = vector.extract_strided_slice %218 {offsets = [0, 512], sizes = [16, 256], strides = [1, 1]} : vector<16x768xf32> to vector<16x256xf32>
    %239 = vector.extract_strided_slice %221 {offsets = [0, 512], sizes = [16, 256], strides = [1, 1]} : vector<16x768xf32> to vector<16x256xf32>
    %240 = arith.addf %239, %18 : vector<16x256xf32>
    %241 = arith.mulf %229, %240 : vector<16x256xf32>
    %242 = arith.addf %238, %241 : vector<16x256xf32>
    %243 = math.tanh %242 : vector<16x256xf32>
    %cst_74 = arith.constant 1.000000e+00 : f32
    %244 = vector.broadcast %cst_74 : f32 to vector<16x256xf32>
    %245 = arith.subf %244, %237 : vector<16x256xf32>
    %246 = arith.mulf %245, %243 : vector<16x256xf32>
    %247 = arith.mulf %237, %215 : vector<16x256xf32>
    %248 = arith.addf %246, %247 : vector<16x256xf32>
    %249 = arith.truncf %248 : vector<16x256xf32> to vector<16x256xbf16>
    %c96_75 = arith.constant 96 : index
    %c0_76 = arith.constant 0 : index
    %250 = vector.load %arg16[%c96_75, %c0_76] : memref<128x256xbf16, #tpu.memory_space<vmem>>, vector<16x256xbf16>
    tpu.vector_store %arg16[%c96_75, %c0_76], %249 {strides = array<i32>} : memref<128x256xbf16, #tpu.memory_space<vmem>>, vector<16x256xbf16>,
    %c112 = arith.constant 112 : index
    %c0_77 = arith.constant 0 : index
    %251 = vector.load %arg15[%c112, %c0_77] : memref<128x768xf32, #tpu.memory_space<vmem>>, vector<16x768xf32>
    %252 = arith.truncf %248 : vector<16x256xf32> to vector<16x256xbf16>
    %c0_78 = arith.constant 0 : index
    %c0_79 = arith.constant 0 : index
    %253 = vector.load %arg3[%c0_78, %c0_79] : memref<256x768xbf16, #tpu.memory_space<vmem>>, vector<256x768xbf16>
    %cst_80 = arith.constant dense<0.000000e+00> : vector<16x768xf32>
    %254 = tpu.matmul %252, %253, %cst_80 {dimension_numbers = #tpu.dot_dimension_numbers<[1], [0], [0], [1], [0, 0, 1, 1], [], []>} : vector<16x256xbf16>, vector<256x768xbf16>, vector<16x768xf32> -> vector<16x768xf32>
    %255 = vector.extract_strided_slice %251 {offsets = [0, 0], sizes = [16, 256], strides = [1, 1]} : vector<16x768xf32> to vector<16x256xf32>
    %256 = vector.extract_strided_slice %254 {offsets = [0, 0], sizes = [16, 256], strides = [1, 1]} : vector<16x768xf32> to vector<16x256xf32>
    %257 = arith.addf %255, %256 : vector<16x256xf32>
    %258 = arith.negf %257 : vector<16x256xf32>
    %259 = math.exp %258 : vector<16x256xf32>
    %cst_81 = arith.constant 1.000000e+00 : f32
    %260 = vector.broadcast %cst_81 : f32 to vector<16x256xf32>
    %261 = arith.addf %260, %259 : vector<16x256xf32>
    %262 = arith.divf %260, %261 : vector<16x256xf32>
    %263 = vector.extract_strided_slice %251 {offsets = [0, 256], sizes = [16, 256], strides = [1, 1]} : vector<16x768xf32> to vector<16x256xf32>
    %264 = vector.extract_strided_slice %254 {offsets = [0, 256], sizes = [16, 256], strides = [1, 1]} : vector<16x768xf32> to vector<16x256xf32>
    %265 = arith.addf %263, %264 : vector<16x256xf32>
    %266 = arith.negf %265 : vector<16x256xf32>
    %267 = math.exp %266 : vector<16x256xf32>
    %cst_82 = arith.constant 1.000000e+00 : f32
    %268 = vector.broadcast %cst_82 : f32 to vector<16x256xf32>
    %269 = arith.addf %268, %267 : vector<16x256xf32>
    %270 = arith.divf %268, %269 : vector<16x256xf32>
    %271 = vector.extract_strided_slice %251 {offsets = [0, 512], sizes = [16, 256], strides = [1, 1]} : vector<16x768xf32> to vector<16x256xf32>
    %272 = vector.extract_strided_slice %254 {offsets = [0, 512], sizes = [16, 256], strides = [1, 1]} : vector<16x768xf32> to vector<16x256xf32>
    %273 = arith.addf %272, %18 : vector<16x256xf32>
    %274 = arith.mulf %262, %273 : vector<16x256xf32>
    %275 = arith.addf %271, %274 : vector<16x256xf32>
    %276 = math.tanh %275 : vector<16x256xf32>
    %cst_83 = arith.constant 1.000000e+00 : f32
    %277 = vector.broadcast %cst_83 : f32 to vector<16x256xf32>
    %278 = arith.subf %277, %270 : vector<16x256xf32>
    %279 = arith.mulf %278, %276 : vector<16x256xf32>
    %280 = arith.mulf %270, %248 : vector<16x256xf32>
    %281 = arith.addf %279, %280 : vector<16x256xf32>
    %282 = arith.truncf %281 : vector<16x256xf32> to vector<16x256xbf16>
    %c112_84 = arith.constant 112 : index
    %c0_85 = arith.constant 0 : index
    %283 = vector.load %arg16[%c112_84, %c0_85] : memref<128x256xbf16, #tpu.memory_space<vmem>>, vector<16x256xbf16>
    tpu.vector_store %arg16[%c112_84, %c0_85], %282 {strides = array<i32>} : memref<128x256xbf16, #tpu.memory_space<vmem>>, vector<16x256xbf16>,
    %c0_86 = arith.constant 0 : index
    %c0_87 = arith.constant 0 : index
    %284 = vector.load %arg16[%c0_86, %c0_87] : memref<128x256xbf16, #tpu.memory_space<vmem>>, vector<128x256xbf16>
    %c0_88 = arith.constant 0 : index
    %c0_89 = arith.constant 0 : index
    %285 = vector.load %arg6[%c0_88, %c0_89] : memref<256x768xbf16, #tpu.memory_space<vmem>>, vector<256x768xbf16>
    %cst_90 = arith.constant dense<0.000000e+00> : vector<128x768xf32>
    %286 = tpu.matmul %284, %285, %cst_90 {dimension_numbers = #tpu.dot_dimension_numbers<[1], [0], [0], [1], [0, 0, 1, 1], [], []>} : vector<128x256xbf16>, vector<256x768xbf16>, vector<128x768xf32> -> vector<128x768xf32>
    %c0_91 = arith.constant 0 : index
    %c0_92 = arith.constant 0 : index
    %287 = vector.load %arg8[%c0_91, %c0_92] : memref<1x768xf32, #tpu.memory_space<vmem>>, vector<1x768xf32>
    %288 = vector.broadcast %287 : vector<1x768xf32> to vector<128x768xf32>
    %289 = arith.addf %286, %288 : vector<128x768xf32>
    %c0_93 = arith.constant 0 : index
    %c0_94 = arith.constant 0 : index
    %290 = vector.load %arg15[%c0_93, %c0_94] : memref<128x768xf32, #tpu.memory_space<vmem>>, vector<128x768xf32>
    tpu.vector_store %arg15[%c0_93, %c0_94], %289 {strides = array<i32>} : memref<128x768xf32, #tpu.memory_space<vmem>>, vector<128x768xf32>,
    %c0_95 = arith.constant 0 : index
    %c0_96 = arith.constant 0 : index
    %291 = vector.load %arg9[%c0_95, %c0_96] : memref<1x256xf32, #tpu.memory_space<vmem>>, vector<1x256xf32>
    %292 = vector.shape_cast %291 : vector<1x256xf32> to vector<1x256xf32>
    %293 = vector.broadcast %292 : vector<1x256xf32> to vector<16x256xf32>
    %cst_97 = arith.constant 0.000000e+00 : f32
    %294 = vector.broadcast %cst_97 : f32 to vector<16x256xf32>
    %c0_98 = arith.constant 0 : index
    %c0_99 = arith.constant 0 : index
    %295 = vector.load %arg15[%c0_98, %c0_99] : memref<128x768xf32, #tpu.memory_space<vmem>>, vector<16x768xf32>
    %296 = arith.truncf %294 : vector<16x256xf32> to vector<16x256xbf16>
    %c0_100 = arith.constant 0 : index
    %c0_101 = arith.constant 0 : index
    %297 = vector.load %arg7[%c0_100, %c0_101] : memref<256x768xbf16, #tpu.memory_space<vmem>>, vector<256x768xbf16>
    %cst_102 = arith.constant dense<0.000000e+00> : vector<16x768xf32>
    %298 = tpu.matmul %296, %297, %cst_102 {dimension_numbers = #tpu.dot_dimension_numbers<[1], [0], [0], [1], [0, 0, 1, 1], [], []>} : vector<16x256xbf16>, vector<256x768xbf16>, vector<16x768xf32> -> vector<16x768xf32>
    %299 = vector.extract_strided_slice %295 {offsets = [0, 0], sizes = [16, 256], strides = [1, 1]} : vector<16x768xf32> to vector<16x256xf32>
    %300 = vector.extract_strided_slice %298 {offsets = [0, 0], sizes = [16, 256], strides = [1, 1]} : vector<16x768xf32> to vector<16x256xf32>
    %301 = arith.addf %299, %300 : vector<16x256xf32>
    %302 = arith.negf %301 : vector<16x256xf32>
    %303 = math.exp %302 : vector<16x256xf32>
    %cst_103 = arith.constant 1.000000e+00 : f32
    %304 = vector.broadcast %cst_103 : f32 to vector<16x256xf32>
    %305 = arith.addf %304, %303 : vector<16x256xf32>
    %306 = arith.divf %304, %305 : vector<16x256xf32>
    %307 = vector.extract_strided_slice %295 {offsets = [0, 256], sizes = [16, 256], strides = [1, 1]} : vector<16x768xf32> to vector<16x256xf32>
    %308 = vector.extract_strided_slice %298 {offsets = [0, 256], sizes = [16, 256], strides = [1, 1]} : vector<16x768xf32> to vector<16x256xf32>
    %309 = arith.addf %307, %308 : vector<16x256xf32>
    %310 = arith.negf %309 : vector<16x256xf32>
    %311 = math.exp %310 : vector<16x256xf32>
    %cst_104 = arith.constant 1.000000e+00 : f32
    %312 = vector.broadcast %cst_104 : f32 to vector<16x256xf32>
    %313 = arith.addf %312, %311 : vector<16x256xf32>
    %314 = arith.divf %312, %313 : vector<16x256xf32>
    %315 = vector.extract_strided_slice %295 {offsets = [0, 512], sizes = [16, 256], strides = [1, 1]} : vector<16x768xf32> to vector<16x256xf32>
    %316 = vector.extract_strided_slice %298 {offsets = [0, 512], sizes = [16, 256], strides = [1, 1]} : vector<16x768xf32> to vector<16x256xf32>
    %317 = arith.addf %316, %293 : vector<16x256xf32>
    %318 = arith.mulf %306, %317 : vector<16x256xf32>
    %319 = arith.addf %315, %318 : vector<16x256xf32>
    %320 = math.tanh %319 : vector<16x256xf32>
    %cst_105 = arith.constant 1.000000e+00 : f32
    %321 = vector.broadcast %cst_105 : f32 to vector<16x256xf32>
    %322 = arith.subf %321, %314 : vector<16x256xf32>
    %323 = arith.mulf %322, %320 : vector<16x256xf32>
    %324 = arith.mulf %314, %294 : vector<16x256xf32>
    %325 = arith.addf %323, %324 : vector<16x256xf32>
    %c16_106 = arith.constant 16 : index
    %c0_107 = arith.constant 0 : index
    %326 = vector.load %arg15[%c16_106, %c0_107] : memref<128x768xf32, #tpu.memory_space<vmem>>, vector<16x768xf32>
    %327 = arith.truncf %325 : vector<16x256xf32> to vector<16x256xbf16>
    %c0_108 = arith.constant 0 : index
    %c0_109 = arith.constant 0 : index
    %328 = vector.load %arg7[%c0_108, %c0_109] : memref<256x768xbf16, #tpu.memory_space<vmem>>, vector<256x768xbf16>
    %cst_110 = arith.constant dense<0.000000e+00> : vector<16x768xf32>
    %329 = tpu.matmul %327, %328, %cst_110 {dimension_numbers = #tpu.dot_dimension_numbers<[1], [0], [0], [1], [0, 0, 1, 1], [], []>} : vector<16x256xbf16>, vector<256x768xbf16>, vector<16x768xf32> -> vector<16x768xf32>
    %330 = vector.extract_strided_slice %326 {offsets = [0, 0], sizes = [16, 256], strides = [1, 1]} : vector<16x768xf32> to vector<16x256xf32>
    %331 = vector.extract_strided_slice %329 {offsets = [0, 0], sizes = [16, 256], strides = [1, 1]} : vector<16x768xf32> to vector<16x256xf32>
    %332 = arith.addf %330, %331 : vector<16x256xf32>
    %333 = arith.negf %332 : vector<16x256xf32>
    %334 = math.exp %333 : vector<16x256xf32>
    %cst_111 = arith.constant 1.000000e+00 : f32
    %335 = vector.broadcast %cst_111 : f32 to vector<16x256xf32>
    %336 = arith.addf %335, %334 : vector<16x256xf32>
    %337 = arith.divf %335, %336 : vector<16x256xf32>
    %338 = vector.extract_strided_slice %326 {offsets = [0, 256], sizes = [16, 256], strides = [1, 1]} : vector<16x768xf32> to vector<16x256xf32>
    %339 = vector.extract_strided_slice %329 {offsets = [0, 256], sizes = [16, 256], strides = [1, 1]} : vector<16x768xf32> to vector<16x256xf32>
    %340 = arith.addf %338, %339 : vector<16x256xf32>
    %341 = arith.negf %340 : vector<16x256xf32>
    %342 = math.exp %341 : vector<16x256xf32>
    %cst_112 = arith.constant 1.000000e+00 : f32
    %343 = vector.broadcast %cst_112 : f32 to vector<16x256xf32>
    %344 = arith.addf %343, %342 : vector<16x256xf32>
    %345 = arith.divf %343, %344 : vector<16x256xf32>
    %346 = vector.extract_strided_slice %326 {offsets = [0, 512], sizes = [16, 256], strides = [1, 1]} : vector<16x768xf32> to vector<16x256xf32>
    %347 = vector.extract_strided_slice %329 {offsets = [0, 512], sizes = [16, 256], strides = [1, 1]} : vector<16x768xf32> to vector<16x256xf32>
    %348 = arith.addf %347, %293 : vector<16x256xf32>
    %349 = arith.mulf %337, %348 : vector<16x256xf32>
    %350 = arith.addf %346, %349 : vector<16x256xf32>
    %351 = math.tanh %350 : vector<16x256xf32>
    %cst_113 = arith.constant 1.000000e+00 : f32
    %352 = vector.broadcast %cst_113 : f32 to vector<16x256xf32>
    %353 = arith.subf %352, %345 : vector<16x256xf32>
    %354 = arith.mulf %353, %351 : vector<16x256xf32>
    %355 = arith.mulf %345, %325 : vector<16x256xf32>
    %356 = arith.addf %354, %355 : vector<16x256xf32>
    %c32_114 = arith.constant 32 : index
    %c0_115 = arith.constant 0 : index
    %357 = vector.load %arg15[%c32_114, %c0_115] : memref<128x768xf32, #tpu.memory_space<vmem>>, vector<16x768xf32>
    %358 = arith.truncf %356 : vector<16x256xf32> to vector<16x256xbf16>
    %c0_116 = arith.constant 0 : index
    %c0_117 = arith.constant 0 : index
    %359 = vector.load %arg7[%c0_116, %c0_117] : memref<256x768xbf16, #tpu.memory_space<vmem>>, vector<256x768xbf16>
    %cst_118 = arith.constant dense<0.000000e+00> : vector<16x768xf32>
    %360 = tpu.matmul %358, %359, %cst_118 {dimension_numbers = #tpu.dot_dimension_numbers<[1], [0], [0], [1], [0, 0, 1, 1], [], []>} : vector<16x256xbf16>, vector<256x768xbf16>, vector<16x768xf32> -> vector<16x768xf32>
    %361 = vector.extract_strided_slice %357 {offsets = [0, 0], sizes = [16, 256], strides = [1, 1]} : vector<16x768xf32> to vector<16x256xf32>
    %362 = vector.extract_strided_slice %360 {offsets = [0, 0], sizes = [16, 256], strides = [1, 1]} : vector<16x768xf32> to vector<16x256xf32>
    %363 = arith.addf %361, %362 : vector<16x256xf32>
    %364 = arith.negf %363 : vector<16x256xf32>
    %365 = math.exp %364 : vector<16x256xf32>
    %cst_119 = arith.constant 1.000000e+00 : f32
    %366 = vector.broadcast %cst_119 : f32 to vector<16x256xf32>
    %367 = arith.addf %366, %365 : vector<16x256xf32>
    %368 = arith.divf %366, %367 : vector<16x256xf32>
    %369 = vector.extract_strided_slice %357 {offsets = [0, 256], sizes = [16, 256], strides = [1, 1]} : vector<16x768xf32> to vector<16x256xf32>
    %370 = vector.extract_strided_slice %360 {offsets = [0, 256], sizes = [16, 256], strides = [1, 1]} : vector<16x768xf32> to vector<16x256xf32>
    %371 = arith.addf %369, %370 : vector<16x256xf32>
    %372 = arith.negf %371 : vector<16x256xf32>
    %373 = math.exp %372 : vector<16x256xf32>
    %cst_120 = arith.constant 1.000000e+00 : f32
    %374 = vector.broadcast %cst_120 : f32 to vector<16x256xf32>
    %375 = arith.addf %374, %373 : vector<16x256xf32>
    %376 = arith.divf %374, %375 : vector<16x256xf32>
    %377 = vector.extract_strided_slice %357 {offsets = [0, 512], sizes = [16, 256], strides = [1, 1]} : vector<16x768xf32> to vector<16x256xf32>
    %378 = vector.extract_strided_slice %360 {offsets = [0, 512], sizes = [16, 256], strides = [1, 1]} : vector<16x768xf32> to vector<16x256xf32>
    %379 = arith.addf %378, %293 : vector<16x256xf32>
    %380 = arith.mulf %368, %379 : vector<16x256xf32>
    %381 = arith.addf %377, %380 : vector<16x256xf32>
    %382 = math.tanh %381 : vector<16x256xf32>
    %cst_121 = arith.constant 1.000000e+00 : f32
    %383 = vector.broadcast %cst_121 : f32 to vector<16x256xf32>
    %384 = arith.subf %383, %376 : vector<16x256xf32>
    %385 = arith.mulf %384, %382 : vector<16x256xf32>
    %386 = arith.mulf %376, %356 : vector<16x256xf32>
    %387 = arith.addf %385, %386 : vector<16x256xf32>
    %c48_122 = arith.constant 48 : index
    %c0_123 = arith.constant 0 : index
    %388 = vector.load %arg15[%c48_122, %c0_123] : memref<128x768xf32, #tpu.memory_space<vmem>>, vector<16x768xf32>
    %389 = arith.truncf %387 : vector<16x256xf32> to vector<16x256xbf16>
    %c0_124 = arith.constant 0 : index
    %c0_125 = arith.constant 0 : index
    %390 = vector.load %arg7[%c0_124, %c0_125] : memref<256x768xbf16, #tpu.memory_space<vmem>>, vector<256x768xbf16>
    %cst_126 = arith.constant dense<0.000000e+00> : vector<16x768xf32>
    %391 = tpu.matmul %389, %390, %cst_126 {dimension_numbers = #tpu.dot_dimension_numbers<[1], [0], [0], [1], [0, 0, 1, 1], [], []>} : vector<16x256xbf16>, vector<256x768xbf16>, vector<16x768xf32> -> vector<16x768xf32>
    %392 = vector.extract_strided_slice %388 {offsets = [0, 0], sizes = [16, 256], strides = [1, 1]} : vector<16x768xf32> to vector<16x256xf32>
    %393 = vector.extract_strided_slice %391 {offsets = [0, 0], sizes = [16, 256], strides = [1, 1]} : vector<16x768xf32> to vector<16x256xf32>
    %394 = arith.addf %392, %393 : vector<16x256xf32>
    %395 = arith.negf %394 : vector<16x256xf32>
    %396 = math.exp %395 : vector<16x256xf32>
    %cst_127 = arith.constant 1.000000e+00 : f32
    %397 = vector.broadcast %cst_127 : f32 to vector<16x256xf32>
    %398 = arith.addf %397, %396 : vector<16x256xf32>
    %399 = arith.divf %397, %398 : vector<16x256xf32>
    %400 = vector.extract_strided_slice %388 {offsets = [0, 256], sizes = [16, 256], strides = [1, 1]} : vector<16x768xf32> to vector<16x256xf32>
    %401 = vector.extract_strided_slice %391 {offsets = [0, 256], sizes = [16, 256], strides = [1, 1]} : vector<16x768xf32> to vector<16x256xf32>
    %402 = arith.addf %400, %401 : vector<16x256xf32>
    %403 = arith.negf %402 : vector<16x256xf32>
    %404 = math.exp %403 : vector<16x256xf32>
    %cst_128 = arith.constant 1.000000e+00 : f32
    %405 = vector.broadcast %cst_128 : f32 to vector<16x256xf32>
    %406 = arith.addf %405, %404 : vector<16x256xf32>
    %407 = arith.divf %405, %406 : vector<16x256xf32>
    %408 = vector.extract_strided_slice %388 {offsets = [0, 512], sizes = [16, 256], strides = [1, 1]} : vector<16x768xf32> to vector<16x256xf32>
    %409 = vector.extract_strided_slice %391 {offsets = [0, 512], sizes = [16, 256], strides = [1, 1]} : vector<16x768xf32> to vector<16x256xf32>
    %410 = arith.addf %409, %293 : vector<16x256xf32>
    %411 = arith.mulf %399, %410 : vector<16x256xf32>
    %412 = arith.addf %408, %411 : vector<16x256xf32>
    %413 = math.tanh %412 : vector<16x256xf32>
    %cst_129 = arith.constant 1.000000e+00 : f32
    %414 = vector.broadcast %cst_129 : f32 to vector<16x256xf32>
    %415 = arith.subf %414, %407 : vector<16x256xf32>
    %416 = arith.mulf %415, %413 : vector<16x256xf32>
    %417 = arith.mulf %407, %387 : vector<16x256xf32>
    %418 = arith.addf %416, %417 : vector<16x256xf32>
    %c64_130 = arith.constant 64 : index
    %c0_131 = arith.constant 0 : index
    %419 = vector.load %arg15[%c64_130, %c0_131] : memref<128x768xf32, #tpu.memory_space<vmem>>, vector<16x768xf32>
    %420 = arith.truncf %418 : vector<16x256xf32> to vector<16x256xbf16>
    %c0_132 = arith.constant 0 : index
    %c0_133 = arith.constant 0 : index
    %421 = vector.load %arg7[%c0_132, %c0_133] : memref<256x768xbf16, #tpu.memory_space<vmem>>, vector<256x768xbf16>
    %cst_134 = arith.constant dense<0.000000e+00> : vector<16x768xf32>
    %422 = tpu.matmul %420, %421, %cst_134 {dimension_numbers = #tpu.dot_dimension_numbers<[1], [0], [0], [1], [0, 0, 1, 1], [], []>} : vector<16x256xbf16>, vector<256x768xbf16>, vector<16x768xf32> -> vector<16x768xf32>
    %423 = vector.extract_strided_slice %419 {offsets = [0, 0], sizes = [16, 256], strides = [1, 1]} : vector<16x768xf32> to vector<16x256xf32>
    %424 = vector.extract_strided_slice %422 {offsets = [0, 0], sizes = [16, 256], strides = [1, 1]} : vector<16x768xf32> to vector<16x256xf32>
    %425 = arith.addf %423, %424 : vector<16x256xf32>
    %426 = arith.negf %425 : vector<16x256xf32>
    %427 = math.exp %426 : vector<16x256xf32>
    %cst_135 = arith.constant 1.000000e+00 : f32
    %428 = vector.broadcast %cst_135 : f32 to vector<16x256xf32>
    %429 = arith.addf %428, %427 : vector<16x256xf32>
    %430 = arith.divf %428, %429 : vector<16x256xf32>
    %431 = vector.extract_strided_slice %419 {offsets = [0, 256], sizes = [16, 256], strides = [1, 1]} : vector<16x768xf32> to vector<16x256xf32>
    %432 = vector.extract_strided_slice %422 {offsets = [0, 256], sizes = [16, 256], strides = [1, 1]} : vector<16x768xf32> to vector<16x256xf32>
    %433 = arith.addf %431, %432 : vector<16x256xf32>
    %434 = arith.negf %433 : vector<16x256xf32>
    %435 = math.exp %434 : vector<16x256xf32>
    %cst_136 = arith.constant 1.000000e+00 : f32
    %436 = vector.broadcast %cst_136 : f32 to vector<16x256xf32>
    %437 = arith.addf %436, %435 : vector<16x256xf32>
    %438 = arith.divf %436, %437 : vector<16x256xf32>
    %439 = vector.extract_strided_slice %419 {offsets = [0, 512], sizes = [16, 256], strides = [1, 1]} : vector<16x768xf32> to vector<16x256xf32>
    %440 = vector.extract_strided_slice %422 {offsets = [0, 512], sizes = [16, 256], strides = [1, 1]} : vector<16x768xf32> to vector<16x256xf32>
    %441 = arith.addf %440, %293 : vector<16x256xf32>
    %442 = arith.mulf %430, %441 : vector<16x256xf32>
    %443 = arith.addf %439, %442 : vector<16x256xf32>
    %444 = math.tanh %443 : vector<16x256xf32>
    %cst_137 = arith.constant 1.000000e+00 : f32
    %445 = vector.broadcast %cst_137 : f32 to vector<16x256xf32>
    %446 = arith.subf %445, %438 : vector<16x256xf32>
    %447 = arith.mulf %446, %444 : vector<16x256xf32>
    %448 = arith.mulf %438, %418 : vector<16x256xf32>
    %449 = arith.addf %447, %448 : vector<16x256xf32>
    %c80_138 = arith.constant 80 : index
    %c0_139 = arith.constant 0 : index
    %450 = vector.load %arg15[%c80_138, %c0_139] : memref<128x768xf32, #tpu.memory_space<vmem>>, vector<16x768xf32>
    %451 = arith.truncf %449 : vector<16x256xf32> to vector<16x256xbf16>
    %c0_140 = arith.constant 0 : index
    %c0_141 = arith.constant 0 : index
    %452 = vector.load %arg7[%c0_140, %c0_141] : memref<256x768xbf16, #tpu.memory_space<vmem>>, vector<256x768xbf16>
    %cst_142 = arith.constant dense<0.000000e+00> : vector<16x768xf32>
    %453 = tpu.matmul %451, %452, %cst_142 {dimension_numbers = #tpu.dot_dimension_numbers<[1], [0], [0], [1], [0, 0, 1, 1], [], []>} : vector<16x256xbf16>, vector<256x768xbf16>, vector<16x768xf32> -> vector<16x768xf32>
    %454 = vector.extract_strided_slice %450 {offsets = [0, 0], sizes = [16, 256], strides = [1, 1]} : vector<16x768xf32> to vector<16x256xf32>
    %455 = vector.extract_strided_slice %453 {offsets = [0, 0], sizes = [16, 256], strides = [1, 1]} : vector<16x768xf32> to vector<16x256xf32>
    %456 = arith.addf %454, %455 : vector<16x256xf32>
    %457 = arith.negf %456 : vector<16x256xf32>
    %458 = math.exp %457 : vector<16x256xf32>
    %cst_143 = arith.constant 1.000000e+00 : f32
    %459 = vector.broadcast %cst_143 : f32 to vector<16x256xf32>
    %460 = arith.addf %459, %458 : vector<16x256xf32>
    %461 = arith.divf %459, %460 : vector<16x256xf32>
    %462 = vector.extract_strided_slice %450 {offsets = [0, 256], sizes = [16, 256], strides = [1, 1]} : vector<16x768xf32> to vector<16x256xf32>
    %463 = vector.extract_strided_slice %453 {offsets = [0, 256], sizes = [16, 256], strides = [1, 1]} : vector<16x768xf32> to vector<16x256xf32>
    %464 = arith.addf %462, %463 : vector<16x256xf32>
    %465 = arith.negf %464 : vector<16x256xf32>
    %466 = math.exp %465 : vector<16x256xf32>
    %cst_144 = arith.constant 1.000000e+00 : f32
    %467 = vector.broadcast %cst_144 : f32 to vector<16x256xf32>
    %468 = arith.addf %467, %466 : vector<16x256xf32>
    %469 = arith.divf %467, %468 : vector<16x256xf32>
    %470 = vector.extract_strided_slice %450 {offsets = [0, 512], sizes = [16, 256], strides = [1, 1]} : vector<16x768xf32> to vector<16x256xf32>
    %471 = vector.extract_strided_slice %453 {offsets = [0, 512], sizes = [16, 256], strides = [1, 1]} : vector<16x768xf32> to vector<16x256xf32>
    %472 = arith.addf %471, %293 : vector<16x256xf32>
    %473 = arith.mulf %461, %472 : vector<16x256xf32>
    %474 = arith.addf %470, %473 : vector<16x256xf32>
    %475 = math.tanh %474 : vector<16x256xf32>
    %cst_145 = arith.constant 1.000000e+00 : f32
    %476 = vector.broadcast %cst_145 : f32 to vector<16x256xf32>
    %477 = arith.subf %476, %469 : vector<16x256xf32>
    %478 = arith.mulf %477, %475 : vector<16x256xf32>
    %479 = arith.mulf %469, %449 : vector<16x256xf32>
    %480 = arith.addf %478, %479 : vector<16x256xf32>
    %c96_146 = arith.constant 96 : index
    %c0_147 = arith.constant 0 : index
    %481 = vector.load %arg15[%c96_146, %c0_147] : memref<128x768xf32, #tpu.memory_space<vmem>>, vector<16x768xf32>
    %482 = arith.truncf %480 : vector<16x256xf32> to vector<16x256xbf16>
    %c0_148 = arith.constant 0 : index
    %c0_149 = arith.constant 0 : index
    %483 = vector.load %arg7[%c0_148, %c0_149] : memref<256x768xbf16, #tpu.memory_space<vmem>>, vector<256x768xbf16>
    %cst_150 = arith.constant dense<0.000000e+00> : vector<16x768xf32>
    %484 = tpu.matmul %482, %483, %cst_150 {dimension_numbers = #tpu.dot_dimension_numbers<[1], [0], [0], [1], [0, 0, 1, 1], [], []>} : vector<16x256xbf16>, vector<256x768xbf16>, vector<16x768xf32> -> vector<16x768xf32>
    %485 = vector.extract_strided_slice %481 {offsets = [0, 0], sizes = [16, 256], strides = [1, 1]} : vector<16x768xf32> to vector<16x256xf32>
    %486 = vector.extract_strided_slice %484 {offsets = [0, 0], sizes = [16, 256], strides = [1, 1]} : vector<16x768xf32> to vector<16x256xf32>
    %487 = arith.addf %485, %486 : vector<16x256xf32>
    %488 = arith.negf %487 : vector<16x256xf32>
    %489 = math.exp %488 : vector<16x256xf32>
    %cst_151 = arith.constant 1.000000e+00 : f32
    %490 = vector.broadcast %cst_151 : f32 to vector<16x256xf32>
    %491 = arith.addf %490, %489 : vector<16x256xf32>
    %492 = arith.divf %490, %491 : vector<16x256xf32>
    %493 = vector.extract_strided_slice %481 {offsets = [0, 256], sizes = [16, 256], strides = [1, 1]} : vector<16x768xf32> to vector<16x256xf32>
    %494 = vector.extract_strided_slice %484 {offsets = [0, 256], sizes = [16, 256], strides = [1, 1]} : vector<16x768xf32> to vector<16x256xf32>
    %495 = arith.addf %493, %494 : vector<16x256xf32>
    %496 = arith.negf %495 : vector<16x256xf32>
    %497 = math.exp %496 : vector<16x256xf32>
    %cst_152 = arith.constant 1.000000e+00 : f32
    %498 = vector.broadcast %cst_152 : f32 to vector<16x256xf32>
    %499 = arith.addf %498, %497 : vector<16x256xf32>
    %500 = arith.divf %498, %499 : vector<16x256xf32>
    %501 = vector.extract_strided_slice %481 {offsets = [0, 512], sizes = [16, 256], strides = [1, 1]} : vector<16x768xf32> to vector<16x256xf32>
    %502 = vector.extract_strided_slice %484 {offsets = [0, 512], sizes = [16, 256], strides = [1, 1]} : vector<16x768xf32> to vector<16x256xf32>
    %503 = arith.addf %502, %293 : vector<16x256xf32>
    %504 = arith.mulf %492, %503 : vector<16x256xf32>
    %505 = arith.addf %501, %504 : vector<16x256xf32>
    %506 = math.tanh %505 : vector<16x256xf32>
    %cst_153 = arith.constant 1.000000e+00 : f32
    %507 = vector.broadcast %cst_153 : f32 to vector<16x256xf32>
    %508 = arith.subf %507, %500 : vector<16x256xf32>
    %509 = arith.mulf %508, %506 : vector<16x256xf32>
    %510 = arith.mulf %500, %480 : vector<16x256xf32>
    %511 = arith.addf %509, %510 : vector<16x256xf32>
    %c112_154 = arith.constant 112 : index
    %c0_155 = arith.constant 0 : index
    %512 = vector.load %arg15[%c112_154, %c0_155] : memref<128x768xf32, #tpu.memory_space<vmem>>, vector<16x768xf32>
    %513 = arith.truncf %511 : vector<16x256xf32> to vector<16x256xbf16>
    %c0_156 = arith.constant 0 : index
    %c0_157 = arith.constant 0 : index
    %514 = vector.load %arg7[%c0_156, %c0_157] : memref<256x768xbf16, #tpu.memory_space<vmem>>, vector<256x768xbf16>
    %cst_158 = arith.constant dense<0.000000e+00> : vector<16x768xf32>
    %515 = tpu.matmul %513, %514, %cst_158 {dimension_numbers = #tpu.dot_dimension_numbers<[1], [0], [0], [1], [0, 0, 1, 1], [], []>} : vector<16x256xbf16>, vector<256x768xbf16>, vector<16x768xf32> -> vector<16x768xf32>
    %516 = vector.extract_strided_slice %512 {offsets = [0, 0], sizes = [16, 256], strides = [1, 1]} : vector<16x768xf32> to vector<16x256xf32>
    %517 = vector.extract_strided_slice %515 {offsets = [0, 0], sizes = [16, 256], strides = [1, 1]} : vector<16x768xf32> to vector<16x256xf32>
    %518 = arith.addf %516, %517 : vector<16x256xf32>
    %519 = arith.negf %518 : vector<16x256xf32>
    %520 = math.exp %519 : vector<16x256xf32>
    %cst_159 = arith.constant 1.000000e+00 : f32
    %521 = vector.broadcast %cst_159 : f32 to vector<16x256xf32>
    %522 = arith.addf %521, %520 : vector<16x256xf32>
    %523 = arith.divf %521, %522 : vector<16x256xf32>
    %524 = vector.extract_strided_slice %512 {offsets = [0, 256], sizes = [16, 256], strides = [1, 1]} : vector<16x768xf32> to vector<16x256xf32>
    %525 = vector.extract_strided_slice %515 {offsets = [0, 256], sizes = [16, 256], strides = [1, 1]} : vector<16x768xf32> to vector<16x256xf32>
    %526 = arith.addf %524, %525 : vector<16x256xf32>
    %527 = arith.negf %526 : vector<16x256xf32>
    %528 = math.exp %527 : vector<16x256xf32>
    %cst_160 = arith.constant 1.000000e+00 : f32
    %529 = vector.broadcast %cst_160 : f32 to vector<16x256xf32>
    %530 = arith.addf %529, %528 : vector<16x256xf32>
    %531 = arith.divf %529, %530 : vector<16x256xf32>
    %532 = vector.extract_strided_slice %512 {offsets = [0, 512], sizes = [16, 256], strides = [1, 1]} : vector<16x768xf32> to vector<16x256xf32>
    %533 = vector.extract_strided_slice %515 {offsets = [0, 512], sizes = [16, 256], strides = [1, 1]} : vector<16x768xf32> to vector<16x256xf32>
    %534 = arith.addf %533, %293 : vector<16x256xf32>
    %535 = arith.mulf %523, %534 : vector<16x256xf32>
    %536 = arith.addf %532, %535 : vector<16x256xf32>
    %537 = math.tanh %536 : vector<16x256xf32>
    %cst_161 = arith.constant 1.000000e+00 : f32
    %538 = vector.broadcast %cst_161 : f32 to vector<16x256xf32>
    %539 = arith.subf %538, %531 : vector<16x256xf32>
    %540 = arith.mulf %539, %537 : vector<16x256xf32>
    %541 = arith.mulf %531, %511 : vector<16x256xf32>
    %542 = arith.addf %540, %541 : vector<16x256xf32>
    %543 = arith.truncf %542 : vector<16x256xf32> to vector<16x256xbf16>
    %c0_162 = arith.constant 0 : index
    %c0_163 = arith.constant 0 : index
    %544 = vector.load %arg10[%c0_162, %c0_163] : memref<256x256xbf16, #tpu.memory_space<vmem>>, vector<256x256xbf16>
    %cst_164 = arith.constant dense<0.000000e+00> : vector<16x256xf32>
    %545 = tpu.matmul %543, %544, %cst_164 {dimension_numbers = #tpu.dot_dimension_numbers<[1], [0], [0], [1], [0, 0, 1, 1], [], []>} : vector<16x256xbf16>, vector<256x256xbf16>, vector<16x256xf32> -> vector<16x256xf32>
    %c0_165 = arith.constant 0 : index
    %c0_166 = arith.constant 0 : index
    %546 = vector.load %arg11[%c0_165, %c0_166] : memref<1x256xf32, #tpu.memory_space<vmem>>, vector<1x256xf32>
    %547 = vector.broadcast %546 : vector<1x256xf32> to vector<16x256xf32>
    %548 = arith.addf %545, %547 : vector<16x256xf32>
    %549 = arith.negf %548 : vector<16x256xf32>
    %550 = math.exp %549 : vector<16x256xf32>
    %cst_167 = arith.constant 1.000000e+00 : f32
    %551 = vector.broadcast %cst_167 : f32 to vector<16x256xf32>
    %552 = arith.addf %551, %550 : vector<16x256xf32>
    %553 = arith.divf %551, %552 : vector<16x256xf32>
    %c0_168 = arith.constant 0 : index
    %c0_169 = arith.constant 0 : index
    %554 = vector.load %arg12[%c0_168, %c0_169] : memref<1x256xf32, #tpu.memory_space<vmem>>, vector<1x256xf32>
    %555 = vector.broadcast %554 : vector<1x256xf32> to vector<16x256xf32>
    %556 = arith.mulf %553, %555 : vector<16x256xf32>
    %cst_170 = arith.constant dense<0.000000e+00> : vector<16xf32>
    %557 = vector.multi_reduction <add>, %556, %cst_170 [1] : vector<16x256xf32> to vector<16xf32>
    %558 = vector.shape_cast %557 : vector<16xf32> to vector<16x1xf32>
    %c0_171 = arith.constant 0 : index
    %c0_172 = arith.constant 0 : index
    %559 = vector.load %arg13[%c0_171, %c0_172] : memref<1x1xf32, #tpu.memory_space<vmem>>, vector<1x1xf32>
    %560 = vector.broadcast %559 : vector<1x1xf32> to vector<16x1xf32>
    %561 = arith.addf %558, %560 : vector<16x1xf32>
    %562 = arith.negf %561 : vector<16x1xf32>
    %563 = math.exp %562 : vector<16x1xf32>
    %cst_173 = arith.constant 1.000000e+00 : f32
    %564 = vector.broadcast %cst_173 : f32 to vector<16x1xf32>
    %565 = arith.addf %564, %563 : vector<16x1xf32>
    %566 = arith.divf %564, %565 : vector<16x1xf32>
    %c0_174 = arith.constant 0 : index
    %c0_175 = arith.constant 0 : index
    %567 = vector.load %arg14[%c0_174, %c0_175] : memref<16x1xf32, #tpu.memory_space<vmem>>, vector<16x1xf32>
    tpu.vector_store %arg14[%c0_174, %c0_175], %566 {strides = array<i32>} : memref<16x1xf32, #tpu.memory_space<vmem>>, vector<16x1xf32>,
    return
  }
}

</mosaic_0001>

<llo_original>
// kernel: gru_net_forward.1
$region0: #{gru_net_forward.1}
  #allocation0 [shape = 'u32[]', space=smem, size = 0x4, offset = 0x4, fixed_abs, tag = 'smem constant byte address 0x4 - core index']
  #allocation1 [shape = 'u32[144,128]{1,0:T(1,128)}', space=vmem, size = 0x12000, scoped, tag = 'internal scratch']
  #allocation2 [shape = 'f32[128,768]{1,0:T(8,128)}', space=vmem, size = 0x60000, scoped, tag = 'scratch operand']
  #allocation3 [shape = 'bf16[128,256]{1,0:T(16,128)(2,1)}', space=vmem, size = 0x10000, scoped, tag = 'scratch operand']
  #allocation4 [shape = 'f32[1,1]{1,0:T(1,128)S(1)}', space=vmem, size = 0x200, scoped, tag = 'scoped memory for gru_net_forward.1']
  %s0 = inlined_call_operand.vmem [shape: s32[128,1], index: 0, kind: input, shape index: {}]
  %s1 = inlined_call_operand.vmem [shape: bf16[128,128], index: 1, kind: input, shape index: {}]
  %s2 = inlined_call_operand.hbm [shape: bf16[128,768], index: 2, kind: input, shape index: {}]
  %s3 = inlined_call_operand.hbm [shape: bf16[256,768], index: 3, kind: input, shape index: {}]
  %s4 = inlined_call_operand.vmem [shape: f32[1,768], index: 4, kind: input, shape index: {}]
  %s5 = inlined_call_operand.vmem [shape: f32[1,256], index: 5, kind: input, shape index: {}]
  %s6 = inlined_call_operand.hbm [shape: bf16[256,768], index: 6, kind: input, shape index: {}]
  %s7 = inlined_call_operand.hbm [shape: bf16[256,768], index: 7, kind: input, shape index: {}]
  %s8 = inlined_call_operand.vmem [shape: f32[1,768], index: 8, kind: input, shape index: {}]
  %s9 = inlined_call_operand.vmem [shape: f32[1,256], index: 9, kind: input, shape index: {}]
  %s10 = inlined_call_operand.hbm [shape: bf16[256,256], index: 10, kind: input, shape index: {}]
  %s11 = inlined_call_operand.vmem [shape: f32[1,256], index: 11, kind: input, shape index: {}]
  %s12 = inlined_call_operand.vmem [shape: f32[1,256], index: 12, kind: input, shape index: {}]
  %s13 = inlined_call_operand.<no memory space> [shape: f32[1,1], index: 13, kind: input, shape index: {}]
  %s14 = inlined_call_operand.vmem [shape: f32[16,1], index: 14, kind: output, shape index: {}]
  %s15 = sld [smem:[#allocation0]]
  $region86: #{gru_net_forward.1} parent=0
    _
  %s17 = ssub.s32 1, %s15
  %s18 = scalar_select 0, %s17, %s15
  %v19 = vstv %s13
  %20 = vst [vmem:[#allocation4] sm:$0x1] %v19
  $region1: #{gru_net_forward.1} parent=0
    #allocation5 [shape = 'u8[196608]{0}', space=vmem, size = 0x30000, scoped, tag = 'input window, operand 2, single buffered']
    #allocation6 [shape = 's32[1]{0}', space=sflag, size = 0x4, scoped, tag = 'scoped memory for gru_net_forward.1']
    #allocation7 [shape = 'u8[393216]{0}', space=vmem, size = 0x60000, scoped, tag = 'input window, operand 3, single buffered']
    #allocation8 [shape = 's32[1]{0}', space=sflag, size = 0x4, scoped, tag = 'scoped memory for gru_net_forward.1']
    #allocation9 [shape = 'u8[393216]{0}', space=vmem, size = 0x60000, scoped, tag = 'input window, operand 6, single buffered']
    #allocation10 [shape = 'u8[393216]{0}', space=vmem, size = 0x60000, scoped, tag = 'input window, operand 7, single buffered']
    #allocation11 [shape = 's32[1]{0}', space=sflag, size = 0x4, scoped, tag = 'scoped memory for gru_net_forward.1']
    #allocation12 [shape = 'u8[131072]{0}', space=vmem, size = 0x20000, scoped, tag = 'input window, operand 10, single buffered']
    %21 = vsyncpa [#allocation6], 0
    %22 = vsyncpa [#allocation8], 0
    %23 = vsyncpa [#allocation11], 0
    // Predicated region
    $region2: #{gru_net_forward.1} parent=1 // pred_check
      _
    $region3: #{gru_net_forward.1} parent=1 // pred_check_branch
      %25 = sbr.rel (0) target = $region5
    $region4: #{gru_net_forward.1} parent=1 // pred_region
      _
    $region5: #{gru_net_forward.1} parent=1 // pred_fallthru
      _
    // Predicated region
    $region6: #{gru_net_forward.1} parent=1 // pred_check
      _
    $region7: #{gru_net_forward.1} parent=1 // pred_check_branch
      %27 = sbr.rel (0) target = $region9
    $region8: #{gru_net_forward.1} parent=1 // pred_region
      _
    $region9: #{gru_net_forward.1} parent=1 // pred_fallthru
      _
    // Predicated region
    $region10: #{gru_net_forward.1} parent=1 // pred_check
      _
    $region11: #{gru_net_forward.1} parent=1 // pred_check_branch
      %29 = sbr.rel (0) target = $region13
    $region12: #{gru_net_forward.1} parent=1 // pred_region
      %s31 = ssub.s32 6144, 6144
      %32 = vsyncadd [#allocation6], %s31
      %s33 = sshll.u32 [#allocation5], 4
      %s34 = int_to_ptr.vmem [resolvable:$true] %s33
      %39 = dma.hbm_to_vmem [thread:$0]  %s2, 6144, %s34, [#allocation6], 384, 384, 24
    $region13: #{gru_net_forward.1} parent=1 // pred_fallthru
      _
    // Predicated region
    $region14: #{gru_net_forward.1} parent=1 // pred_check
      _
    $region15: #{gru_net_forward.1} parent=1 // pred_check_branch
      %41 = sbr.rel (0) target = $region17
    $region16: #{gru_net_forward.1} parent=1 // pred_region
      %s43 = ssub.s32 12288, 12288
      %44 = vsyncadd [#allocation8], %s43
      %s45 = sshll.u32 [#allocation7], 4
      %s46 = int_to_ptr.vmem [resolvable:$true] %s45
      %51 = dma.hbm_to_vmem [thread:$0]  %s3, 12288, %s46, [#allocation8], 384, 384, 24
    $region17: #{gru_net_forward.1} parent=1 // pred_fallthru
      _
    // Predicated region
    $region18: #{gru_net_forward.1} parent=1 // pred_check
      _
    $region19: #{gru_net_forward.1} parent=1 // pred_check_branch
      %53 = sbr.rel (0) target = $region21
    $region20: #{gru_net_forward.1} parent=1 // pred_region
      _
    $region21: #{gru_net_forward.1} parent=1 // pred_fallthru
      _
    // Predicated region
    $region22: #{gru_net_forward.1} parent=1 // pred_check
      _
    $region23: #{gru_net_forward.1} parent=1 // pred_check_branch
      %55 = sbr.rel (0) target = $region25
    $region24: #{gru_net_forward.1} parent=1 // pred_region
      _
    $region25: #{gru_net_forward.1} parent=1 // pred_fallthru
      _
    // Predicated region
    $region26: #{gru_net_forward.1} parent=1 // pred_check
      _
    $region27: #{gru_net_forward.1} parent=1 // pred_check_branch
      %57 = sbr.rel (0) target = $region29
    $region28: #{gru_net_forward.1} parent=1 // pred_region
      %s59 = ssub.s32 12288, 12288
      %60 = vsyncadd [#allocation8], %s59
      %s61 = sshll.u32 [#allocation9], 4
      %s62 = int_to_ptr.vmem [resolvable:$true] %s61
      %67 = dma.hbm_to_vmem [thread:$0]  %s6, 12288, %s62, [#allocation8], 384, 384, 24
    $region29: #{gru_net_forward.1} parent=1 // pred_fallthru
      _
    // Predicated region
    $region30: #{gru_net_forward.1} parent=1 // pred_check
      _
    $region31: #{gru_net_forward.1} parent=1 // pred_check_branch
      %69 = sbr.rel (0) target = $region33
    $region32: #{gru_net_forward.1} parent=1 // pred_region
      %s71 = ssub.s32 12288, 12288
      %72 = vsyncadd [#allocation11], %s71
      %s73 = sshll.u32 [#allocation10], 4
      %s74 = int_to_ptr.vmem [resolvable:$true] %s73
      %79 = dma.hbm_to_vmem [thread:$0]  %s7, 12288, %s74, [#allocation11], 384, 384, 24
    $region33: #{gru_net_forward.1} parent=1 // pred_fallthru
      _
    // Predicated region
    $region34: #{gru_net_forward.1} parent=1 // pred_check
      _
    $region35: #{gru_net_forward.1} parent=1 // pred_check_branch
      %81 = sbr.rel (0) target = $region37
    $region36: #{gru_net_forward.1} parent=1 // pred_region
      _
    $region37: #{gru_net_forward.1} parent=1 // pred_fallthru
      _
    // Predicated region
    $region38: #{gru_net_forward.1} parent=1 // pred_check
      _
    $region39: #{gru_net_forward.1} parent=1 // pred_check_branch
      %83 = sbr.rel (0) target = $region41
    $region40: #{gru_net_forward.1} parent=1 // pred_region
      _
    $region41: #{gru_net_forward.1} parent=1 // pred_fallthru
      _
    // Predicated region
    $region42: #{gru_net_forward.1} parent=1 // pred_check
      _
    $region43: #{gru_net_forward.1} parent=1 // pred_check_branch
      %85 = sbr.rel (0) target = $region45
    $region44: #{gru_net_forward.1} parent=1 // pred_region
      %s87 = ssub.s32 4096, 4096
      %88 = vsyncadd [#allocation11], %s87
      %s89 = sshll.u32 [#allocation12], 4
      %s90 = int_to_ptr.vmem [resolvable:$true] %s89
      %95 = dma.hbm_to_vmem [thread:$0]  %s10, 4096, %s90, [#allocation11], 128, 128, 8
    $region45: #{gru_net_forward.1} parent=1 // pred_fallthru
      _
    // Predicated region
    $region46: #{gru_net_forward.1} parent=1 // pred_check
      _
    $region47: #{gru_net_forward.1} parent=1 // pred_check_branch
      %97 = sbr.rel (0) target = $region49
    $region48: #{gru_net_forward.1} parent=1 // pred_region
      _
    $region49: #{gru_net_forward.1} parent=1 // pred_fallthru
      _
    // Predicated region
    $region50: #{gru_net_forward.1} parent=1 // pred_check
      _
    $region51: #{gru_net_forward.1} parent=1 // pred_check_branch
      %99 = sbr.rel (0) target = $region53
    $region52: #{gru_net_forward.1} parent=1 // pred_region
      _
    $region53: #{gru_net_forward.1} parent=1 // pred_fallthru
      _
    // Predicated region
    $region54: #{gru_net_forward.1} parent=1 // pred_check
      _
    $region55: #{gru_net_forward.1} parent=1 // pred_check_branch
      %101 = sbr.rel (0) target = $region57
    $region56: #{gru_net_forward.1} parent=1 // pred_region
      _
    $region57: #{gru_net_forward.1} parent=1 // pred_fallthru
      _
    // Predicated region
    $region58: #{gru_net_forward.1} parent=1 // pred_check
      _
    $region59: #{gru_net_forward.1} parent=1 // pred_check_branch
      %103 = sbr.rel (0) target = $region61
    $region60: #{gru_net_forward.1} parent=1 // pred_region
      %104 = dma.done [#allocation6], 6144
    $region61: #{gru_net_forward.1} parent=1 // pred_fallthru
      _
    // Predicated region
    $region62: #{gru_net_forward.1} parent=1 // pred_check
      _
    $region63: #{gru_net_forward.1} parent=1 // pred_check_branch
      %106 = sbr.rel (0) target = $region65
    $region64: #{gru_net_forward.1} parent=1 // pred_region
      %107 = dma.done [#allocation8], 12288
    $region65: #{gru_net_forward.1} parent=1 // pred_fallthru
      _
    // Predicated region
    $region66: #{gru_net_forward.1} parent=1 // pred_check
      _
    $region67: #{gru_net_forward.1} parent=1 // pred_check_branch
      %109 = sbr.rel (0) target = $region69
    $region68: #{gru_net_forward.1} parent=1 // pred_region
      %110 = dma.done [#allocation8], 12288
    $region69: #{gru_net_forward.1} parent=1 // pred_fallthru
      _
    // Predicated region
    $region70: #{gru_net_forward.1} parent=1 // pred_check
      _
    $region71: #{gru_net_forward.1} parent=1 // pred_check_branch
      %112 = sbr.rel (0) target = $region73
    $region72: #{gru_net_forward.1} parent=1 // pred_region
      %113 = dma.done [#allocation11], 12288
    $region73: #{gru_net_forward.1} parent=1 // pred_fallthru
      _
    // Predicated region
    $region74: #{gru_net_forward.1} parent=1 // pred_check
      _
    $region75: #{gru_net_forward.1} parent=1 // pred_check_branch
      %115 = sbr.rel (0) target = $region77
    $region76: #{gru_net_forward.1} parent=1 // pred_region
      %116 = dma.done [#allocation11], 4096
    $region77: #{gru_net_forward.1} parent=1 // pred_fallthru
      _
    %v118 = vld [vmem:[%s0] sm:$0xff]
    %v119 = vld [vmem:[%s0 + $0x8] sm:$0xff]
    %v120 = vld [vmem:[%s0 + $0x10] sm:$0xff]
    %v121 = vld [vmem:[%s0 + $0x18] sm:$0xff]
    %v122 = vld [vmem:[%s0 + $0x20] sm:$0xff]
    %v123 = vld [vmem:[%s0 + $0x28] sm:$0xff]
    %v124 = vld [vmem:[%s0 + $0x30] sm:$0xff]
    %v125 = vld [vmem:[%s0 + $0x38] sm:$0xff]
    %v126 = vld [vmem:[%s0 + $0x40] sm:$0xff]
    %v127 = vld [vmem:[%s0 + $0x48] sm:$0xff]
    %v128 = vld [vmem:[%s0 + $0x50] sm:$0xff]
    %v129 = vld [vmem:[%s0 + $0x58] sm:$0xff]
    %v130 = vld [vmem:[%s0 + $0x60] sm:$0xff]
    %v131 = vld [vmem:[%s0 + $0x68] sm:$0xff]
    %v132 = vld [vmem:[%s0 + $0x70] sm:$0xff]
    %v133 = vld [vmem:[%s0 + $0x78] sm:$0xff]
    %v134 = vlaneseq
    %v135 = vand.u32 %v134, 127
    %136 = vset.pattern.permute.xlu0 0
    %137 = vperm.xlu0 %136, %v118
    %v138 = vpop.permute.xlu0 %137
    %139 = vset.pattern.permute.xlu0 0
    %140 = vperm.xlu0 %139, %v119
    %v141 = vpop.permute.xlu0 %140
    %142 = vset.pattern.permute.xlu0 0
    %143 = vperm.xlu0 %142, %v120
    %v144 = vpop.permute.xlu0 %143
    %145 = vset.pattern.permute.xlu0 0
    %146 = vperm.xlu0 %145, %v121
    %v147 = vpop.permute.xlu0 %146
    %148 = vset.pattern.permute.xlu0 0
    %149 = vperm.xlu0 %148, %v122
    %v150 = vpop.permute.xlu0 %149
    %151 = vset.pattern.permute.xlu0 0
    %152 = vperm.xlu0 %151, %v123
    %v153 = vpop.permute.xlu0 %152
    %154 = vset.pattern.permute.xlu0 0
    %155 = vperm.xlu0 %154, %v124
    %v156 = vpop.permute.xlu0 %155
    %157 = vset.pattern.permute.xlu0 0
    %158 = vperm.xlu0 %157, %v125
    %v159 = vpop.permute.xlu0 %158
    %160 = vset.pattern.permute.xlu0 0
    %161 = vperm.xlu0 %160, %v126
    %v162 = vpop.permute.xlu0 %161
    %163 = vset.pattern.permute.xlu0 0
    %164 = vperm.xlu0 %163, %v127
    %v165 = vpop.permute.xlu0 %164
    %166 = vset.pattern.permute.xlu0 0
    %167 = vperm.xlu0 %166, %v128
    %v168 = vpop.permute.xlu0 %167
    %169 = vset.pattern.permute.xlu0 0
    %170 = vperm.xlu0 %169, %v129
    %v171 = vpop.permute.xlu0 %170
    %172 = vset.pattern.permute.xlu0 0
    %173 = vperm.xlu0 %172, %v130
    %v174 = vpop.permute.xlu0 %173
    %175 = vset.pattern.permute.xlu0 0
    %176 = vperm.xlu0 %175, %v131
    %v177 = vpop.permute.xlu0 %176
    %178 = vset.pattern.permute.xlu0 0
    %179 = vperm.xlu0 %178, %v132
    %v180 = vpop.permute.xlu0 %179
    %181 = vset.pattern.permute.xlu0 0
    %182 = vperm.xlu0 %181, %v133
    %v183 = vpop.permute.xlu0 %182
    %vm184 = vcmp.eq.s32.totalorder %v135, %v138
    %vm185 = vcmp.eq.s32.totalorder %v135, %v141
    %vm186 = vcmp.eq.s32.totalorder %v135, %v144
    %vm187 = vcmp.eq.s32.totalorder %v135, %v147
    %vm188 = vcmp.eq.s32.totalorder %v135, %v150
    %vm189 = vcmp.eq.s32.totalorder %v135, %v153
    %vm190 = vcmp.eq.s32.totalorder %v135, %v156
    %vm191 = vcmp.eq.s32.totalorder %v135, %v159
    %vm192 = vcmp.eq.s32.totalorder %v135, %v162
    %vm193 = vcmp.eq.s32.totalorder %v135, %v165
    %vm194 = vcmp.eq.s32.totalorder %v135, %v168
    %vm195 = vcmp.eq.s32.totalorder %v135, %v171
    %vm196 = vcmp.eq.s32.totalorder %v135, %v174
    %vm197 = vcmp.eq.s32.totalorder %v135, %v177
    %vm198 = vcmp.eq.s32.totalorder %v135, %v180
    %vm199 = vcmp.eq.s32.totalorder %v135, %v183
    %v200 = vsel %vm184, 1, 0
    %v201 = vsel %vm185, 1, 0
    %v202 = vsel %vm186, 1, 0
    %v203 = vsel %vm187, 1, 0
    %v204 = vsel %vm188, 1, 0
    %v205 = vsel %vm189, 1, 0
    %v206 = vsel %vm190, 1, 0
    %v207 = vsel %vm191, 1, 0
    %v208 = vsel %vm192, 1, 0
    %v209 = vsel %vm193, 1, 0
    %v210 = vsel %vm194, 1, 0
    %v211 = vsel %vm195, 1, 0
    %v212 = vsel %vm196, 1, 0
    %v213 = vsel %vm197, 1, 0
    %v214 = vsel %vm198, 1, 0
    %v215 = vsel %vm199, 1, 0
    %v216 = vcvt.s32.f32 %v200
    %v217 = vcvt.s32.f32 %v201
    %v218 = vcvt.s32.f32 %v202
    %v219 = vcvt.s32.f32 %v203
    %v220 = vcvt.s32.f32 %v204
    %v221 = vcvt.s32.f32 %v205
    %v222 = vcvt.s32.f32 %v206
    %v223 = vcvt.s32.f32 %v207
    %v224 = vcvt.s32.f32 %v208
    %v225 = vcvt.s32.f32 %v209
    %v226 = vcvt.s32.f32 %v210
    %v227 = vcvt.s32.f32 %v211
    %v228 = vcvt.s32.f32 %v212
    %v229 = vcvt.s32.f32 %v213
    %v230 = vcvt.s32.f32 %v214
    %v231 = vcvt.s32.f32 %v215
    %v232 = vpack.c.bf16 %v217, %v216
    %v233 = vpack.c.bf16 %v219, %v218
    %v234 = vpack.c.bf16 %v221, %v220
    %v235 = vpack.c.bf16 %v223, %v222
    %v236 = vpack.c.bf16 %v225, %v224
    %v237 = vpack.c.bf16 %v227, %v226
    %v238 = vpack.c.bf16 %v229, %v228
    %v239 = vpack.c.bf16 %v231, %v230
    %v240 = vld [vmem:[%s1] sm:$0xf]
    %v241 = vld [vmem:[%s1 + $0x4] sm:$0xf]
    %v242 = vld [vmem:[%s1 + $0x8] sm:$0xf]
    %v243 = vld [vmem:[%s1 + $0xc] sm:$0xf]
    %v244 = vld [vmem:[%s1 + $0x10] sm:$0xf]
    %v245 = vld [vmem:[%s1 + $0x14] sm:$0xf]
    %v246 = vld [vmem:[%s1 + $0x18] sm:$0xf]
    %v247 = vld [vmem:[%s1 + $0x1c] sm:$0xf]
    %v248 = vld [vmem:[%s1 + $0x20] sm:$0xf]
    %v249 = vld [vmem:[%s1 + $0x24] sm:$0xf]
    %v250 = vld [vmem:[%s1 + $0x28] sm:$0xf]
    %v251 = vld [vmem:[%s1 + $0x2c] sm:$0xf]
    %v252 = vld [vmem:[%s1 + $0x30] sm:$0xf]
    %v253 = vld [vmem:[%s1 + $0x34] sm:$0xf]
    %v254 = vld [vmem:[%s1 + $0x38] sm:$0xf]
    %v255 = vld [vmem:[%s1 + $0x3c] sm:$0xf]
    %v272 = vunpack.c.l.b16 %v240
    %v273 = vunpack.c.l.b16 %v241
    %v274 = vunpack.c.l.b16 %v242
    %v275 = vunpack.c.l.b16 %v243
    %v276 = vunpack.c.l.b16 %v244
    %v277 = vunpack.c.l.b16 %v245
    %v278 = vunpack.c.l.b16 %v246
    %v279 = vunpack.c.l.b16 %v247
    %v280 = vunpack.c.l.b16 %v248
    %v281 = vunpack.c.l.b16 %v249
    %v282 = vunpack.c.l.b16 %v250
    %v283 = vunpack.c.l.b16 %v251
    %v284 = vunpack.c.l.b16 %v252
    %v285 = vunpack.c.l.b16 %v253
    %v286 = vunpack.c.l.b16 %v254
    %v287 = vunpack.c.l.b16 %v255
    %v288 = vpack.c.b16 %v273, %v272
    %v289 = vpack.c.b16 %v275, %v274
    %v290 = vpack.c.b16 %v277, %v276
    %v291 = vpack.c.b16 %v279, %v278
    %v292 = vpack.c.b16 %v281, %v280
    %v293 = vpack.c.b16 %v283, %v282
    %v294 = vpack.c.b16 %v285, %v284
    %v295 = vpack.c.b16 %v287, %v286
    %304 = vmatprep.subr.bf16.mxu0 0
    %305 = vmatpush1.bf16.msra.mxu0 %v288
    %306 = vmatprep.subr.bf16.mxu0 0
    %307 = vmatpush1.bf16.msra.mxu0 %v289
    %308 = vmatprep.subr.bf16.mxu0 0
    %309 = vmatpush1.bf16.msra.mxu0 %v290
    %310 = vmatprep.subr.bf16.mxu0 0
    %311 = vmatpush1.bf16.msra.mxu0 %v291
    %312 = vmatprep.subr.bf16.mxu0 0
    %313 = vmatpush1.bf16.msra.mxu0 %v292
    %314 = vmatprep.subr.bf16.mxu0 0
    %315 = vmatpush1.bf16.msra.mxu0 %v293
    %316 = vmatprep.subr.bf16.mxu0 0
    %317 = vmatpush1.bf16.msra.mxu0 %v294
    %318 = vmatprep.subr.bf16.mxu0 0
    %319 = vmatpush1.bf16.msra.mxu0 %v295
    %320 = vmatprep.subr.bf16.mxu0 0
    %321 = vmatpush1.bf16.msra.mxu0 0
    %322 = vmatprep.subr.bf16.mxu0 0
    %323 = vmatpush1.bf16.msra.mxu0 0
    %324 = vmatprep.subr.bf16.mxu0 0
    %325 = vmatpush1.bf16.msra.mxu0 0
    %326 = vmatprep.subr.bf16.mxu0 0
    %327 = vmatpush1.bf16.msra.mxu0 0
    %328 = vmatprep.subr.bf16.mxu0 0
    %329 = vmatpush1.bf16.msra.mxu0 0
    %330 = vmatprep.subr.bf16.mxu0 0
    %331 = vmatpush1.bf16.msra.mxu0 0
    %332 = vmatprep.subr.bf16.mxu0 0
    %333 = vmatpush1.bf16.msra.mxu0 0
    %334 = vmatprep.subr.bf16.mxu0 0
    %335 = vmatpush1.bf16.msra.mxu0 0
    %336 = vmatprep.mubr.bf16.mxu0 0
    %337 = vmatmul.mubr.bf16.gmra.mrb[0].mxu0 %v232
    %v338 = vpop.f32.mrb[0].mxu0
    %v339 = vadd.f32 0.0, %v338
    %v340 = vpop.f32.mrb[0].mxu0
    %v341 = vpop.f32.mrb[0].mxu0
    %v342 = vadd.f32 0.0, %v341
    %v343 = vpop.f32.mrb[0].mxu0
    %344 = vmatprep.mubr.bf16.mxu0 0
    %345 = vmatmul.mubr.bf16.gmra.mrb[0].mxu0 %v233
    %v346 = vpop.f32.mrb[0].mxu0
    %v347 = vadd.f32 0.0, %v346
    %v348 = vpop.f32.mrb[0].mxu0
    %v349 = vpop.f32.mrb[0].mxu0
    %v350 = vadd.f32 0.0, %v349
    %v351 = vpop.f32.mrb[0].mxu0
    %352 = vmatprep.mubr.bf16.mxu0 0
    %353 = vmatmul.mubr.bf16.gmra.mrb[0].mxu0 %v234
    %v354 = vpop.f32.mrb[0].mxu0
    %v355 = vadd.f32 0.0, %v354
    %v356 = vpop.f32.mrb[0].mxu0
    %v357 = vpop.f32.mrb[0].mxu0
    %v358 = vadd.f32 0.0, %v357
    %v359 = vpop.f32.mrb[0].mxu0
    %360 = vmatprep.mubr.bf16.mxu0 0
    %361 = vmatmul.mubr.bf16.gmra.mrb[0].mxu0 %v235
    %v362 = vpop.f32.mrb[0].mxu0
    %v363 = vadd.f32 0.0, %v362
    %v364 = vpop.f32.mrb[0].mxu0
    %v365 = vpop.f32.mrb[0].mxu0
    %v366 = vadd.f32 0.0, %v365
    %v367 = vpop.f32.mrb[0].mxu0
    %368 = vmatprep.mubr.bf16.mxu0 0
    %369 = vmatmul.mubr.bf16.gmra.mrb[0].mxu0 %v236
    %v370 = vpop.f32.mrb[0].mxu0
    %v371 = vadd.f32 0.0, %v370
    %v372 = vpop.f32.mrb[0].mxu0
    %v373 = vpop.f32.mrb[0].mxu0
    %v374 = vadd.f32 0.0, %v373
    %v375 = vpop.f32.mrb[0].mxu0
    %376 = vmatprep.mubr.bf16.mxu0 0
    %377 = vmatmul.mubr.bf16.gmra.mrb[0].mxu0 %v237
    %v378 = vpop.f32.mrb[0].mxu0
    %v379 = vadd.f32 0.0, %v378
    %v380 = vpop.f32.mrb[0].mxu0
    %v381 = vpop.f32.mrb[0].mxu0
    %v382 = vadd.f32 0.0, %v381
    %v383 = vpop.f32.mrb[0].mxu0
    %384 = vmatprep.mubr.bf16.mxu0 0
    %385 = vmatmul.mubr.bf16.gmra.mrb[0].mxu0 %v238
    %v386 = vpop.f32.mrb[0].mxu0
    %v387 = vadd.f32 0.0, %v386
    %v388 = vpop.f32.mrb[0].mxu0
    %v389 = vpop.f32.mrb[0].mxu0
    %v390 = vadd.f32 0.0, %v389
    %v391 = vpop.f32.mrb[0].mxu0
    %392 = vmatprep.mubr.bf16.mxu0 0
    %393 = vmatmul.mubr.bf16.gmra.mrb[0].mxu0 %v239
    %v394 = vpop.f32.mrb[0].mxu0
    %v395 = vadd.f32 0.0, %v394
    %v396 = vpop.f32.mrb[0].mxu0
    %v397 = vpop.f32.mrb[0].mxu0
    %v398 = vadd.f32 0.0, %v397
    %v399 = vpop.f32.mrb[0].mxu0
    %400 = vdwg.mxu0
    %v401 = vpack.c.bf16 %v342, %v339
    %v402 = vpack.c.bf16 %v350, %v347
    %v403 = vpack.c.bf16 %v358, %v355
    %v404 = vpack.c.bf16 %v366, %v363
    %v405 = vpack.c.bf16 %v374, %v371
    %v406 = vpack.c.bf16 %v382, %v379
    %v407 = vpack.c.bf16 %v390, %v387
    %v408 = vpack.c.bf16 %v398, %v395
    %v409 = vld [vmem:[#allocation5] sm:$0xff]
    %v410 = vld [vmem:[#allocation5 + $0x8] sm:$0xff]
    %v411 = vld [vmem:[#allocation5 + $0x10] sm:$0xff]
    %v412 = vld [vmem:[#allocation5 + $0x18] sm:$0xff]
    %v413 = vld [vmem:[#allocation5 + $0x20] sm:$0xff]
    %v414 = vld [vmem:[#allocation5 + $0x28] sm:$0xff]
    %v415 = vld [vmem:[#allocation5 + $0x30] sm:$0xff]
    %v416 = vld [vmem:[#allocation5 + $0x38] sm:$0xff]
    %v417 = vld [vmem:[#allocation5 + $0x40] sm:$0xff]
    %v418 = vld [vmem:[#allocation5 + $0x48] sm:$0xff]
    %v419 = vld [vmem:[#allocation5 + $0x50] sm:$0xff]
    %v420 = vld [vmem:[#allocation5 + $0x58] sm:$0xff]
    %v421 = vld [vmem:[#allocation5 + $0x60] sm:$0xff]
    %v422 = vld [vmem:[#allocation5 + $0x68] sm:$0xff]
    %v423 = vld [vmem:[#allocation5 + $0x70] sm:$0xff]
    %v424 = vld [vmem:[#allocation5 + $0x78] sm:$0xff]
    %v425 = vld [vmem:[#allocation5 + $0x80] sm:$0xff]
    %v426 = vld [vmem:[#allocation5 + $0x88] sm:$0xff]
    %v427 = vld [vmem:[#allocation5 + $0x90] sm:$0xff]
    %v428 = vld [vmem:[#allocation5 + $0x98] sm:$0xff]
    %v429 = vld [vmem:[#allocation5 + $0xa0] sm:$0xff]
    %v430 = vld [vmem:[#allocation5 + $0xa8] sm:$0xff]
    %v431 = vld [vmem:[#allocation5 + $0xb0] sm:$0xff]
    %v432 = vld [vmem:[#allocation5 + $0xb8] sm:$0xff]
    %v433 = vld [vmem:[#allocation5 + $0xc0] sm:$0xff]
    %v434 = vld [vmem:[#allocation5 + $0xc8] sm:$0xff]
    %v435 = vld [vmem:[#allocation5 + $0xd0] sm:$0xff]
    %v436 = vld [vmem:[#allocation5 + $0xd8] sm:$0xff]
    %v437 = vld [vmem:[#allocation5 + $0xe0] sm:$0xff]
    %v438 = vld [vmem:[#allocation5 + $0xe8] sm:$0xff]
    %v439 = vld [vmem:[#allocation5 + $0xf0] sm:$0xff]
    %v440 = vld [vmem:[#allocation5 + $0xf8] sm:$0xff]
    %v441 = vld [vmem:[#allocation5 + $0x100] sm:$0xff]
    %v442 = vld [vmem:[#allocation5 + $0x108] sm:$0xff]
    %v443 = vld [vmem:[#allocation5 + $0x110] sm:$0xff]
    %v444 = vld [vmem:[#allocation5 + $0x118] sm:$0xff]
    %v445 = vld [vmem:[#allocation5 + $0x120] sm:$0xff]
    %v446 = vld [vmem:[#allocation5 + $0x128] sm:$0xff]
    %v447 = vld [vmem:[#allocation5 + $0x130] sm:$0xff]
    %v448 = vld [vmem:[#allocation5 + $0x138] sm:$0xff]
    %v449 = vld [vmem:[#allocation5 + $0x140] sm:$0xff]
    %v450 = vld [vmem:[#allocation5 + $0x148] sm:$0xff]
    %v451 = vld [vmem:[#allocation5 + $0x150] sm:$0xff]
    %v452 = vld [vmem:[#allocation5 + $0x158] sm:$0xff]
    %v453 = vld [vmem:[#allocation5 + $0x160] sm:$0xff]
    %v454 = vld [vmem:[#allocation5 + $0x168] sm:$0xff]
    %v455 = vld [vmem:[#allocation5 + $0x170] sm:$0xff]
    %v456 = vld [vmem:[#allocation5 + $0x178] sm:$0xff]
    %v457 = vld [vmem:[%s4] sm:$0x3f]
    %v459 = vlaneseq
    %v460 = vshrl.u32 %v459, 7
    %v461 = vsub.s32 0, %v460
    %v462 = vrot.slane %v457, %v461
    %v463 = vlaneseq
    %v464 = vshrl.u32 %v463, 7
    %v465 = vsub.s32 1, %v464
    %v466 = vrot.slane %v457, %v465
    %v467 = vlaneseq
    %v468 = vshrl.u32 %v467, 7
    %v469 = vsub.s32 2, %v468
    %v470 = vrot.slane %v457, %v469
    %v471 = vlaneseq
    %v472 = vshrl.u32 %v471, 7
    %v473 = vsub.s32 3, %v472
    %v474 = vrot.slane %v457, %v473
    %v475 = vlaneseq
    %v476 = vshrl.u32 %v475, 7
    %v477 = vsub.s32 4, %v476
    %v478 = vrot.slane %v457, %v477
    %v479 = vlaneseq
    %v480 = vshrl.u32 %v479, 7
    %v481 = vsub.s32 5, %v480
    %v482 = vrot.slane %v457, %v481
    %v537 = vunpack.c.l.b16 %v409
    %v538 = vunpack.c.h.b16 %v409
    %v539 = vunpack.c.l.b16 %v410
    %v540 = vunpack.c.h.b16 %v410
    %v541 = vunpack.c.l.b16 %v411
    %v542 = vunpack.c.h.b16 %v411
    %v543 = vunpack.c.l.b16 %v412
    %v544 = vunpack.c.h.b16 %v412
    %v545 = vunpack.c.l.b16 %v413
    %v546 = vunpack.c.h.b16 %v413
    %v547 = vunpack.c.l.b16 %v414
    %v548 = vunpack.c.h.b16 %v414
    %v549 = vunpack.c.l.b16 %v415
    %v550 = vunpack.c.h.b16 %v415
    %v551 = vunpack.c.l.b16 %v416
    %v552 = vunpack.c.h.b16 %v416
    %v553 = vunpack.c.l.b16 %v417
    %v554 = vunpack.c.h.b16 %v417
    %v555 = vunpack.c.l.b16 %v418
    %v556 = vunpack.c.h.b16 %v418
    %v557 = vunpack.c.l.b16 %v419
    %v558 = vunpack.c.h.b16 %v419
    %v559 = vunpack.c.l.b16 %v420
    %v560 = vunpack.c.h.b16 %v420
    %v561 = vunpack.c.l.b16 %v421
    %v562 = vunpack.c.h.b16 %v421
    %v563 = vunpack.c.l.b16 %v422
    %v564 = vunpack.c.h.b16 %v422
    %v565 = vunpack.c.l.b16 %v423
    %v566 = vunpack.c.h.b16 %v423
    %v567 = vunpack.c.l.b16 %v424
    %v568 = vunpack.c.h.b16 %v424
    %v569 = vunpack.c.l.b16 %v425
    %v570 = vunpack.c.h.b16 %v425
    %v571 = vunpack.c.l.b16 %v426
    %v572 = vunpack.c.h.b16 %v426
    %v573 = vunpack.c.l.b16 %v427
    %v574 = vunpack.c.h.b16 %v427
    %v575 = vunpack.c.l.b16 %v428
    %v576 = vunpack.c.h.b16 %v428
    %v577 = vunpack.c.l.b16 %v429
    %v578 = vunpack.c.h.b16 %v429
    %v579 = vunpack.c.l.b16 %v430
    %v580 = vunpack.c.h.b16 %v430
    %v581 = vunpack.c.l.b16 %v431
    %v582 = vunpack.c.h.b16 %v431
    %v583 = vunpack.c.l.b16 %v432
    %v584 = vunpack.c.h.b16 %v432
    %v585 = vunpack.c.l.b16 %v433
    %v586 = vunpack.c.h.b16 %v433
    %v587 = vunpack.c.l.b16 %v434
    %v588 = vunpack.c.h.b16 %v434
    %v589 = vunpack.c.l.b16 %v435
    %v590 = vunpack.c.h.b16 %v435
    %v591 = vunpack.c.l.b16 %v436
    %v592 = vunpack.c.h.b16 %v436
    %v593 = vunpack.c.l.b16 %v437
    %v594 = vunpack.c.h.b16 %v437
    %v595 = vunpack.c.l.b16 %v438
    %v596 = vunpack.c.h.b16 %v438
    %v597 = vunpack.c.l.b16 %v439
    %v598 = vunpack.c.h.b16 %v439
    %v599 = vunpack.c.l.b16 %v440
    %v600 = vunpack.c.h.b16 %v440
    %v601 = vunpack.c.l.b16 %v441
    %v602 = vunpack.c.h.b16 %v441
    %v603 = vunpack.c.l.b16 %v442
    %v604 = vunpack.c.h.b16 %v442
    %v605 = vunpack.c.l.b16 %v443
    %v606 = vunpack.c.h.b16 %v443
    %v607 = vunpack.c.l.b16 %v444
    %v608 = vunpack.c.h.b16 %v444
    %v609 = vunpack.c.l.b16 %v445
    %v610 = vunpack.c.h.b16 %v445
    %v611 = vunpack.c.l.b16 %v446
    %v612 = vunpack.c.h.b16 %v446
    %v613 = vunpack.c.l.b16 %v447
    %v614 = vunpack.c.h.b16 %v447
    %v615 = vunpack.c.l.b16 %v448
    %v616 = vunpack.c.h.b16 %v448
    %v617 = vunpack.c.l.b16 %v449
    %v618 = vunpack.c.h.b16 %v449
    %v619 = vunpack.c.l.b16 %v450
    %v620 = vunpack.c.h.b16 %v450
    %v621 = vunpack.c.l.b16 %v451
    %v622 = vunpack.c.h.b16 %v451
    %v623 = vunpack.c.l.b16 %v452
    %v624 = vunpack.c.h.b16 %v452
    %v625 = vunpack.c.l.b16 %v453
    %v626 = vunpack.c.h.b16 %v453
    %v627 = vunpack.c.l.b16 %v454
    %v628 = vunpack.c.h.b16 %v454
    %v629 = vunpack.c.l.b16 %v455
    %v630 = vunpack.c.h.b16 %v455
    %v631 = vunpack.c.l.b16 %v456
    %v632 = vunpack.c.h.b16 %v456
    %v633 = vpack.c.b16 %v543, %v537
    %v634 = vpack.c.b16 %v544, %v538
    %v635 = vpack.c.b16 %v545, %v539
    %v636 = vpack.c.b16 %v546, %v540
    %v637 = vpack.c.b16 %v547, %v541
    %v638 = vpack.c.b16 %v548, %v542
    %v639 = vpack.c.b16 %v555, %v549
    %v640 = vpack.c.b16 %v556, %v550
    %v641 = vpack.c.b16 %v557, %v551
    %v642 = vpack.c.b16 %v558, %v552
    %v643 = vpack.c.b16 %v559, %v553
    %v644 = vpack.c.b16 %v560, %v554
    %v645 = vpack.c.b16 %v567, %v561
    %v646 = vpack.c.b16 %v568, %v562
    %v647 = vpack.c.b16 %v569, %v563
    %v648 = vpack.c.b16 %v570, %v564
    %v649 = vpack.c.b16 %v571, %v565
    %v650 = vpack.c.b16 %v572, %v566
    %v651 = vpack.c.b16 %v579, %v573
    %v652 = vpack.c.b16 %v580, %v574
    %v653 = vpack.c.b16 %v581, %v575
    %v654 = vpack.c.b16 %v582, %v576
    %v655 = vpack.c.b16 %v583, %v577
    %v656 = vpack.c.b16 %v584, %v578
    %v657 = vpack.c.b16 %v591, %v585
    %v658 = vpack.c.b16 %v592, %v586
    %v659 = vpack.c.b16 %v593, %v587
    %v660 = vpack.c.b16 %v594, %v588
    %v661 = vpack.c.b16 %v595, %v589
    %v662 = vpack.c.b16 %v596, %v590
    %v663 = vpack.c.b16 %v603, %v597
    %v664 = vpack.c.b16 %v604, %v598
    %v665 = vpack.c.b16 %v605, %v599
    %v666 = vpack.c.b16 %v606, %v600
    %v667 = vpack.c.b16 %v607, %v601
    %v668 = vpack.c.b16 %v608, %v602
    %v669 = vpack.c.b16 %v615, %v609
    %v670 = vpack.c.b16 %v616, %v610
    %v671 = vpack.c.b16 %v617, %v611
    %v672 = vpack.c.b16 %v618, %v612
    %v673 = vpack.c.b16 %v619, %v613
    %v674 = vpack.c.b16 %v620, %v614
    %v675 = vpack.c.b16 %v627, %v621
    %v676 = vpack.c.b16 %v628, %v622
    %v677 = vpack.c.b16 %v629, %v623
    %v678 = vpack.c.b16 %v630, %v624
    %v679 = vpack.c.b16 %v631, %v625
    %v680 = vpack.c.b16 %v632, %v626
    %729 = vmatprep.subr.bf16.mxu0 %v634
    %730 = vmatpush1.bf16.msra.mxu0 %v633
    %731 = vmatprep.subr.bf16.mxu0 %v640
    %732 = vmatpush1.bf16.msra.mxu0 %v639
    %733 = vmatprep.subr.bf16.mxu0 %v646
    %734 = vmatpush1.bf16.msra.mxu0 %v645
    %735 = vmatprep.subr.bf16.mxu0 %v652
    %736 = vmatpush1.bf16.msra.mxu0 %v651
    %737 = vmatprep.subr.bf16.mxu0 %v658
    %738 = vmatpush1.bf16.msra.mxu0 %v657
    %739 = vmatprep.subr.bf16.mxu0 %v664
    %740 = vmatpush1.bf16.msra.mxu0 %v663
    %741 = vmatprep.subr.bf16.mxu0 %v670
    %742 = vmatpush1.bf16.msra.mxu0 %v669
    %743 = vmatprep.subr.bf16.mxu0 %v676
    %744 = vmatpush1.bf16.msra.mxu0 %v675
    %745 = vmatprep.subr.bf16.mxu0 0
    %746 = vmatpush1.bf16.msra.mxu0 0
    %747 = vmatprep.subr.bf16.mxu0 0
    %748 = vmatpush1.bf16.msra.mxu0 0
    %749 = vmatprep.subr.bf16.mxu0 0
    %750 = vmatpush1.bf16.msra.mxu0 0
    %751 = vmatprep.subr.bf16.mxu0 0
    %752 = vmatpush1.bf16.msra.mxu0 0
    %753 = vmatprep.subr.bf16.mxu0 0
    %754 = vmatpush1.bf16.msra.mxu0 0
    %755 = vmatprep.subr.bf16.mxu0 0
    %756 = vmatpush1.bf16.msra.mxu0 0
    %757 = vmatprep.subr.bf16.mxu0 0
    %758 = vmatpush1.bf16.msra.mxu0 0
    %759 = vmatprep.subr.bf16.mxu0 0
    %760 = vmatpush1.bf16.msra.mxu0 0
    %761 = vmatprep.mubr.bf16.mxu0 0
    %762 = vmatmul.mubr.bf16.gmra.mrb[0].mxu0 %v401
    %v763 = vpop.f32.mrb[0].mxu0
    %v764 = vadd.f32 %v462, %v763
    %v765 = vpop.f32.mrb[0].mxu0
    %v766 = vadd.f32 %v466, %v765
    %v767 = vpop.f32.mrb[0].mxu0
    %v768 = vadd.f32 %v462, %v767
    %v769 = vpop.f32.mrb[0].mxu0
    %v770 = vadd.f32 %v466, %v769
    %771 = vmatprep.mubr.bf16.mxu0 0
    %772 = vmatmul.mubr.bf16.gmra.mrb[0].mxu0 %v402
    %v773 = vpop.f32.mrb[0].mxu0
    %v774 = vadd.f32 %v462, %v773
    %v775 = vpop.f32.mrb[0].mxu0
    %v776 = vadd.f32 %v466, %v775
    %v777 = vpop.f32.mrb[0].mxu0
    %v778 = vadd.f32 %v462, %v777
    %v779 = vpop.f32.mrb[0].mxu0
    %v780 = vadd.f32 %v466, %v779
    %781 = vmatprep.mubr.bf16.mxu0 0
    %782 = vmatmul.mubr.bf16.gmra.mrb[0].mxu0 %v403
    %v783 = vpop.f32.mrb[0].mxu0
    %v784 = vadd.f32 %v462, %v783
    %v785 = vpop.f32.mrb[0].mxu0
    %v786 = vadd.f32 %v466, %v785
    %v787 = vpop.f32.mrb[0].mxu0
    %v788 = vadd.f32 %v462, %v787
    %v789 = vpop.f32.mrb[0].mxu0
    %v790 = vadd.f32 %v466, %v789
    %791 = vmatprep.mubr.bf16.mxu0 0
    %792 = vmatmul.mubr.bf16.gmra.mrb[0].mxu0 %v404
    %v793 = vpop.f32.mrb[0].mxu0
    %v794 = vadd.f32 %v462, %v793
    %v795 = vpop.f32.mrb[0].mxu0
    %v796 = vadd.f32 %v466, %v795
    %v797 = vpop.f32.mrb[0].mxu0
    %v798 = vadd.f32 %v462, %v797
    %v799 = vpop.f32.mrb[0].mxu0
    %v800 = vadd.f32 %v466, %v799
    %801 = vmatprep.mubr.bf16.mxu0 0
    %802 = vmatmul.mubr.bf16.gmra.mrb[0].mxu0 %v405
    %v803 = vpop.f32.mrb[0].mxu0
    %v804 = vadd.f32 %v462, %v803
    %v805 = vpop.f32.mrb[0].mxu0
    %v806 = vadd.f32 %v466, %v805
    %v807 = vpop.f32.mrb[0].mxu0
    %v808 = vadd.f32 %v462, %v807
    %v809 = vpop.f32.mrb[0].mxu0
    %v810 = vadd.f32 %v466, %v809
    %811 = vmatprep.mubr.bf16.mxu0 0
    %812 = vmatmul.mubr.bf16.gmra.mrb[0].mxu0 %v406
    %v813 = vpop.f32.mrb[0].mxu0
    %v814 = vadd.f32 %v462, %v813
    %v815 = vpop.f32.mrb[0].mxu0
    %v816 = vadd.f32 %v466, %v815
    %v817 = vpop.f32.mrb[0].mxu0
    %v818 = vadd.f32 %v462, %v817
    %v819 = vpop.f32.mrb[0].mxu0
    %v820 = vadd.f32 %v466, %v819
    %821 = vmatprep.mubr.bf16.mxu0 0
    %822 = vmatmul.mubr.bf16.gmra.mrb[0].mxu0 %v407
    %v823 = vpop.f32.mrb[0].mxu0
    %v824 = vadd.f32 %v462, %v823
    %v825 = vpop.f32.mrb[0].mxu0
    %v826 = vadd.f32 %v466, %v825
    %v827 = vpop.f32.mrb[0].mxu0
    %v828 = vadd.f32 %v462, %v827
    %v829 = vpop.f32.mrb[0].mxu0
    %v830 = vadd.f32 %v466, %v829
    %831 = vmatprep.mubr.bf16.mxu0 0
    %832 = vmatmul.mubr.bf16.gmra.mrb[0].mxu0 %v408
    %v833 = vpop.f32.mrb[0].mxu0
    %v834 = vadd.f32 %v462, %v833
    %v835 = vpop.f32.mrb[0].mxu0
    %v836 = vadd.f32 %v466, %v835
    %v837 = vpop.f32.mrb[0].mxu0
    %v838 = vadd.f32 %v462, %v837
    %v839 = vpop.f32.mrb[0].mxu0
    %v840 = vadd.f32 %v466, %v839
    %841 = vdwg.mxu0
    %842 = vmatprep.subr.bf16.mxu0 %v636
    %843 = vmatpush1.bf16.msra.mxu0 %v635
    %844 = vmatprep.subr.bf16.mxu0 %v642
    %845 = vmatpush1.bf16.msra.mxu0 %v641
    %846 = vmatprep.subr.bf16.mxu0 %v648
    %847 = vmatpush1.bf16.msra.mxu0 %v647
    %848 = vmatprep.subr.bf16.mxu0 %v654
    %849 = vmatpush1.bf16.msra.mxu0 %v653
    %850 = vmatprep.subr.bf16.mxu0 %v660
    %851 = vmatpush1.bf16.msra.mxu0 %v659
    %852 = vmatprep.subr.bf16.mxu0 %v666
    %853 = vmatpush1.bf16.msra.mxu0 %v665
    %854 = vmatprep.subr.bf16.mxu0 %v672
    %855 = vmatpush1.bf16.msra.mxu0 %v671
    %856 = vmatprep.subr.bf16.mxu0 %v678
    %857 = vmatpush1.bf16.msra.mxu0 %v677
    %858 = vmatprep.subr.bf16.mxu0 0
    %859 = vmatpush1.bf16.msra.mxu0 0
    %860 = vmatprep.subr.bf16.mxu0 0
    %861 = vmatpush1.bf16.msra.mxu0 0
    %862 = vmatprep.subr.bf16.mxu0 0
    %863 = vmatpush1.bf16.msra.mxu0 0
    %864 = vmatprep.subr.bf16.mxu0 0
    %865 = vmatpush1.bf16.msra.mxu0 0
    %866 = vmatprep.subr.bf16.mxu0 0
    %867 = vmatpush1.bf16.msra.mxu0 0
    %868 = vmatprep.subr.bf16.mxu0 0
    %869 = vmatpush1.bf16.msra.mxu0 0
    %870 = vmatprep.subr.bf16.mxu0 0
    %871 = vmatpush1.bf16.msra.mxu0 0
    %872 = vmatprep.subr.bf16.mxu0 0
    %873 = vmatpush1.bf16.msra.mxu0 0
    %874 = vmatprep.mubr.bf16.mxu0 0
    %875 = vmatmul.mubr.bf16.gmra.mrb[0].mxu0 %v401
    %v876 = vpop.f32.mrb[0].mxu0
    %v877 = vadd.f32 %v470, %v876
    %v878 = vpop.f32.mrb[0].mxu0
    %v879 = vadd.f32 %v474, %v878
    %v880 = vpop.f32.mrb[0].mxu0
    %v881 = vadd.f32 %v470, %v880
    %v882 = vpop.f32.mrb[0].mxu0
    %v883 = vadd.f32 %v474, %v882
    %884 = vmatprep.mubr.bf16.mxu0 0
    %885 = vmatmul.mubr.bf16.gmra.mrb[0].mxu0 %v402
    %v886 = vpop.f32.mrb[0].mxu0
    %v887 = vadd.f32 %v470, %v886
    %v888 = vpop.f32.mrb[0].mxu0
    %v889 = vadd.f32 %v474, %v888
    %v890 = vpop.f32.mrb[0].mxu0
    %v891 = vadd.f32 %v470, %v890
    %v892 = vpop.f32.mrb[0].mxu0
    %v893 = vadd.f32 %v474, %v892
    %894 = vmatprep.mubr.bf16.mxu0 0
    %895 = vmatmul.mubr.bf16.gmra.mrb[0].mxu0 %v403
    %v896 = vpop.f32.mrb[0].mxu0
    %v897 = vadd.f32 %v470, %v896
    %v898 = vpop.f32.mrb[0].mxu0
    %v899 = vadd.f32 %v474, %v898
    %v900 = vpop.f32.mrb[0].mxu0
    %v901 = vadd.f32 %v470, %v900
    %v902 = vpop.f32.mrb[0].mxu0
    %v903 = vadd.f32 %v474, %v902
    %904 = vmatprep.mubr.bf16.mxu0 0
    %905 = vmatmul.mubr.bf16.gmra.mrb[0].mxu0 %v404
    %v906 = vpop.f32.mrb[0].mxu0
    %v907 = vadd.f32 %v470, %v906
    %v908 = vpop.f32.mrb[0].mxu0
    %v909 = vadd.f32 %v474, %v908
    %v910 = vpop.f32.mrb[0].mxu0
    %v911 = vadd.f32 %v470, %v910
    %v912 = vpop.f32.mrb[0].mxu0
    %v913 = vadd.f32 %v474, %v912
    %914 = vmatprep.mubr.bf16.mxu0 0
    %915 = vmatmul.mubr.bf16.gmra.mrb[0].mxu0 %v405
    %v916 = vpop.f32.mrb[0].mxu0
    %v917 = vadd.f32 %v470, %v916
    %v918 = vpop.f32.mrb[0].mxu0
    %v919 = vadd.f32 %v474, %v918
    %v920 = vpop.f32.mrb[0].mxu0
    %v921 = vadd.f32 %v470, %v920
    %v922 = vpop.f32.mrb[0].mxu0
    %v923 = vadd.f32 %v474, %v922
    %924 = vmatprep.mubr.bf16.mxu0 0
    %925 = vmatmul.mubr.bf16.gmra.mrb[0].mxu0 %v406
    %v926 = vpop.f32.mrb[0].mxu0
    %v927 = vadd.f32 %v470, %v926
    %v928 = vpop.f32.mrb[0].mxu0
    %v929 = vadd.f32 %v474, %v928
    %v930 = vpop.f32.mrb[0].mxu0
    %v931 = vadd.f32 %v470, %v930
    %v932 = vpop.f32.mrb[0].mxu0
    %v933 = vadd.f32 %v474, %v932
    %934 = vmatprep.mubr.bf16.mxu0 0
    %935 = vmatmul.mubr.bf16.gmra.mrb[0].mxu0 %v407
    %v936 = vpop.f32.mrb[0].mxu0
    %v937 = vadd.f32 %v470, %v936
    %v938 = vpop.f32.mrb[0].mxu0
    %v939 = vadd.f32 %v474, %v938
    %v940 = vpop.f32.mrb[0].mxu0
    %v941 = vadd.f32 %v470, %v940
    %v942 = vpop.f32.mrb[0].mxu0
    %v943 = vadd.f32 %v474, %v942
    %944 = vmatprep.mubr.bf16.mxu0 0
    %945 = vmatmul.mubr.bf16.gmra.mrb[0].mxu0 %v408
    %v946 = vpop.f32.mrb[0].mxu0
    %v947 = vadd.f32 %v470, %v946
    %v948 = vpop.f32.mrb[0].mxu0
    %v949 = vadd.f32 %v474, %v948
    %v950 = vpop.f32.mrb[0].mxu0
    %v951 = vadd.f32 %v470, %v950
    %v952 = vpop.f32.mrb[0].mxu0
    %v953 = vadd.f32 %v474, %v952
    %954 = vdwg.mxu0
    %955 = vmatprep.subr.bf16.mxu0 %v638
    %956 = vmatpush1.bf16.msra.mxu0 %v637
    %957 = vmatprep.subr.bf16.mxu0 %v644
    %958 = vmatpush1.bf16.msra.mxu0 %v643
    %959 = vmatprep.subr.bf16.mxu0 %v650
    %960 = vmatpush1.bf16.msra.mxu0 %v649
    %961 = vmatprep.subr.bf16.mxu0 %v656
    %962 = vmatpush1.bf16.msra.mxu0 %v655
    %963 = vmatprep.subr.bf16.mxu0 %v662
    %964 = vmatpush1.bf16.msra.mxu0 %v661
    %965 = vmatprep.subr.bf16.mxu0 %v668
    %966 = vmatpush1.bf16.msra.mxu0 %v667
    %967 = vmatprep.subr.bf16.mxu0 %v674
    %968 = vmatpush1.bf16.msra.mxu0 %v673
    %969 = vmatprep.subr.bf16.mxu0 %v680
    %970 = vmatpush1.bf16.msra.mxu0 %v679
    %971 = vmatprep.subr.bf16.mxu0 0
    %972 = vmatpush1.bf16.msra.mxu0 0
    %973 = vmatprep.subr.bf16.mxu0 0
    %974 = vmatpush1.bf16.msra.mxu0 0
    %975 = vmatprep.subr.bf16.mxu0 0
    %976 = vmatpush1.bf16.msra.mxu0 0
    %977 = vmatprep.subr.bf16.mxu0 0
    %978 = vmatpush1.bf16.msra.mxu0 0
    %979 = vmatprep.subr.bf16.mxu0 0
    %980 = vmatpush1.bf16.msra.mxu0 0
    %981 = vmatprep.subr.bf16.mxu0 0
    %982 = vmatpush1.bf16.msra.mxu0 0
    %983 = vmatprep.subr.bf16.mxu0 0
    %984 = vmatpush1.bf16.msra.mxu0 0
    %985 = vmatprep.subr.bf16.mxu0 0
    %986 = vmatpush1.bf16.msra.mxu0 0
    %987 = vmatprep.mubr.bf16.mxu0 0
    %988 = vmatmul.mubr.bf16.gmra.mrb[0].mxu0 %v401
    %v989 = vpop.f32.mrb[0].mxu0
    %v990 = vadd.f32 %v478, %v989
    %v991 = vpop.f32.mrb[0].mxu0
    %v992 = vadd.f32 %v482, %v991
    %v993 = vpop.f32.mrb[0].mxu0
    %v994 = vadd.f32 %v478, %v993
    %v995 = vpop.f32.mrb[0].mxu0
    %v996 = vadd.f32 %v482, %v995
    %997 = vmatprep.mubr.bf16.mxu0 0
    %998 = vmatmul.mubr.bf16.gmra.mrb[0].mxu0 %v402
    %v999 = vpop.f32.mrb[0].mxu0
    %v1000 = vadd.f32 %v478, %v999
    %v1001 = vpop.f32.mrb[0].mxu0
    %v1002 = vadd.f32 %v482, %v1001
    %v1003 = vpop.f32.mrb[0].mxu0
    %v1004 = vadd.f32 %v478, %v1003
    %v1005 = vpop.f32.mrb[0].mxu0
    %v1006 = vadd.f32 %v482, %v1005
    %1007 = vmatprep.mubr.bf16.mxu0 0
    %1008 = vmatmul.mubr.bf16.gmra.mrb[0].mxu0 %v403
    %v1009 = vpop.f32.mrb[0].mxu0
    %v1010 = vadd.f32 %v478, %v1009
    %v1011 = vpop.f32.mrb[0].mxu0
    %v1012 = vadd.f32 %v482, %v1011
    %v1013 = vpop.f32.mrb[0].mxu0
    %v1014 = vadd.f32 %v478, %v1013
    %v1015 = vpop.f32.mrb[0].mxu0
    %v1016 = vadd.f32 %v482, %v1015
    %1017 = vmatprep.mubr.bf16.mxu0 0
    %1018 = vmatmul.mubr.bf16.gmra.mrb[0].mxu0 %v404
    %v1019 = vpop.f32.mrb[0].mxu0
    %v1020 = vadd.f32 %v478, %v1019
    %v1021 = vpop.f32.mrb[0].mxu0
    %v1022 = vadd.f32 %v482, %v1021
    %v1023 = vpop.f32.mrb[0].mxu0
    %v1024 = vadd.f32 %v478, %v1023
    %v1025 = vpop.f32.mrb[0].mxu0
    %v1026 = vadd.f32 %v482, %v1025
    %1027 = vmatprep.mubr.bf16.mxu0 0
    %1028 = vmatmul.mubr.bf16.gmra.mrb[0].mxu0 %v405
    %v1029 = vpop.f32.mrb[0].mxu0
    %v1030 = vadd.f32 %v478, %v1029
    %v1031 = vpop.f32.mrb[0].mxu0
    %v1032 = vadd.f32 %v482, %v1031
    %v1033 = vpop.f32.mrb[0].mxu0
    %v1034 = vadd.f32 %v478, %v1033
    %v1035 = vpop.f32.mrb[0].mxu0
    %v1036 = vadd.f32 %v482, %v1035
    %1037 = vmatprep.mubr.bf16.mxu0 0
    %1038 = vmatmul.mubr.bf16.gmra.mrb[0].mxu0 %v406
    %v1039 = vpop.f32.mrb[0].mxu0
    %v1040 = vadd.f32 %v478, %v1039
    %v1041 = vpop.f32.mrb[0].mxu0
    %v1042 = vadd.f32 %v482, %v1041
    %v1043 = vpop.f32.mrb[0].mxu0
    %v1044 = vadd.f32 %v478, %v1043
    %v1045 = vpop.f32.mrb[0].mxu0
    %v1046 = vadd.f32 %v482, %v1045
    %1047 = vmatprep.mubr.bf16.mxu0 0
    %1048 = vmatmul.mubr.bf16.gmra.mrb[0].mxu0 %v407
    %v1049 = vpop.f32.mrb[0].mxu0
    %v1050 = vadd.f32 %v478, %v1049
    %v1051 = vpop.f32.mrb[0].mxu0
    %v1052 = vadd.f32 %v482, %v1051
    %v1053 = vpop.f32.mrb[0].mxu0
    %v1054 = vadd.f32 %v478, %v1053
    %v1055 = vpop.f32.mrb[0].mxu0
    %v1056 = vadd.f32 %v482, %v1055
    %1057 = vmatprep.mubr.bf16.mxu0 0
    %1058 = vmatmul.mubr.bf16.gmra.mrb[0].mxu0 %v408
    %v1059 = vpop.f32.mrb[0].mxu0
    %v1060 = vadd.f32 %v478, %v1059
    %v1061 = vpop.f32.mrb[0].mxu0
    %v1062 = vadd.f32 %v482, %v1061
    %v1063 = vpop.f32.mrb[0].mxu0
    %v1064 = vadd.f32 %v478, %v1063
    %v1065 = vpop.f32.mrb[0].mxu0
    %v1066 = vadd.f32 %v482, %v1065
    %1067 = vdwg.mxu0
    %1068 = vst [vmem:[#allocation2] sm:$0xff] %v764
    %1069 = vst [vmem:[#allocation2 + $0x8] sm:$0xff] %v766
    %1070 = vst [vmem:[#allocation2 + $0x10] sm:$0xff] %v877
    %1071 = vst [vmem:[#allocation2 + $0x18] sm:$0xff] %v879
    %1072 = vst [vmem:[#allocation2 + $0x20] sm:$0xff] %v990
    %1073 = vst [vmem:[#allocation2 + $0x28] sm:$0xff] %v992
    %1074 = vst [vmem:[#allocation2 + $0x30] sm:$0xff] %v768
    %1075 = vst [vmem:[#allocation2 + $0x38] sm:$0xff] %v770
    %1076 = vst [vmem:[#allocation2 + $0x40] sm:$0xff] %v881
    %1077 = vst [vmem:[#allocation2 + $0x48] sm:$0xff] %v883
    %1078 = vst [vmem:[#allocation2 + $0x50] sm:$0xff] %v994
    %1079 = vst [vmem:[#allocation2 + $0x58] sm:$0xff] %v996
    %1080 = vst [vmem:[#allocation2 + $0x60] sm:$0xff] %v774
    %1081 = vst [vmem:[#allocation2 + $0x68] sm:$0xff] %v776
    %1082 = vst [vmem:[#allocation2 + $0x70] sm:$0xff] %v887
    %1083 = vst [vmem:[#allocation2 + $0x78] sm:$0xff] %v889
    %1084 = vst [vmem:[#allocation2 + $0x80] sm:$0xff] %v1000
    %1085 = vst [vmem:[#allocation2 + $0x88] sm:$0xff] %v1002
    %1086 = vst [vmem:[#allocation2 + $0x90] sm:$0xff] %v778
    %1087 = vst [vmem:[#allocation2 + $0x98] sm:$0xff] %v780
    %1088 = vst [vmem:[#allocation2 + $0xa0] sm:$0xff] %v891
    %1089 = vst [vmem:[#allocation2 + $0xa8] sm:$0xff] %v893
    %1090 = vst [vmem:[#allocation2 + $0xb0] sm:$0xff] %v1004
    %1091 = vst [vmem:[#allocation2 + $0xb8] sm:$0xff] %v1006
    %1092 = vst [vmem:[#allocation2 + $0xc0] sm:$0xff] %v784
    %1093 = vst [vmem:[#allocation2 + $0xc8] sm:$0xff] %v786
    %1094 = vst [vmem:[#allocation2 + $0xd0] sm:$0xff] %v897
    %1095 = vst [vmem:[#allocation2 + $0xd8] sm:$0xff] %v899
    %1096 = vst [vmem:[#allocation2 + $0xe0] sm:$0xff] %v1010
    %1097 = vst [vmem:[#allocation2 + $0xe8] sm:$0xff] %v1012
    %1098 = vst [vmem:[#allocation2 + $0xf0] sm:$0xff] %v788
    %1099 = vst [vmem:[#allocation2 + $0xf8] sm:$0xff] %v790
    %1100 = vst [vmem:[#allocation2 + $0x100] sm:$0xff] %v901
    %1101 = vst [vmem:[#allocation2 + $0x108] sm:$0xff] %v903
    %1102 = vst [vmem:[#allocation2 + $0x110] sm:$0xff] %v1014
    %1103 = vst [vmem:[#allocation2 + $0x118] sm:$0xff] %v1016
    %1104 = vst [vmem:[#allocation2 + $0x120] sm:$0xff] %v794
    %1105 = vst [vmem:[#allocation2 + $0x128] sm:$0xff] %v796
    %1106 = vst [vmem:[#allocation2 + $0x130] sm:$0xff] %v907
    %1107 = vst [vmem:[#allocation2 + $0x138] sm:$0xff] %v909
    %1108 = vst [vmem:[#allocation2 + $0x140] sm:$0xff] %v1020
    %1109 = vst [vmem:[#allocation2 + $0x148] sm:$0xff] %v1022
    %1110 = vst [vmem:[#allocation2 + $0x150] sm:$0xff] %v798
    %1111 = vst [vmem:[#allocation2 + $0x158] sm:$0xff] %v800
    %1112 = vst [vmem:[#allocation2 + $0x160] sm:$0xff] %v911
    %1113 = vst [vmem:[#allocation2 + $0x168] sm:$0xff] %v913
    %1114 = vst [vmem:[#allocation2 + $0x170] sm:$0xff] %v1024
    %1115 = vst [vmem:[#allocation2 + $0x178] sm:$0xff] %v1026
    %1116 = vst [vmem:[#allocation2 + $0x180] sm:$0xff] %v804
    %1117 = vst [vmem:[#allocation2 + $0x188] sm:$0xff] %v806
    %1118 = vst [vmem:[#allocation2 + $0x190] sm:$0xff] %v917
    %1119 = vst [vmem:[#allocation2 + $0x198] sm:$0xff] %v919
    %1120 = vst [vmem:[#allocation2 + $0x1a0] sm:$0xff] %v1030
    %1121 = vst [vmem:[#allocation2 + $0x1a8] sm:$0xff] %v1032
    %1122 = vst [vmem:[#allocation2 + $0x1b0] sm:$0xff] %v808
    %1123 = vst [vmem:[#allocation2 + $0x1b8] sm:$0xff] %v810
    %1124 = vst [vmem:[#allocation2 + $0x1c0] sm:$0xff] %v921
    %1125 = vst [vmem:[#allocation2 + $0x1c8] sm:$0xff] %v923
    %1126 = vst [vmem:[#allocation2 + $0x1d0] sm:$0xff] %v1034
    %1127 = vst [vmem:[#allocation2 + $0x1d8] sm:$0xff] %v1036
    %1128 = vst [vmem:[#allocation2 + $0x1e0] sm:$0xff] %v814
    %1129 = vst [vmem:[#allocation2 + $0x1e8] sm:$0xff] %v816
    %1130 = vst [vmem:[#allocation2 + $0x1f0] sm:$0xff] %v927
    %1131 = vst [vmem:[#allocation2 + $0x1f8] sm:$0xff] %v929
    %1132 = vst [vmem:[#allocation2 + $0x200] sm:$0xff] %v1040
    %1133 = vst [vmem:[#allocation2 + $0x208] sm:$0xff] %v1042
    %1134 = vst [vmem:[#allocation2 + $0x210] sm:$0xff] %v818
    %1135 = vst [vmem:[#allocation2 + $0x218] sm:$0xff] %v820
    %1136 = vst [vmem:[#allocation2 + $0x220] sm:$0xff] %v931
    %1137 = vst [vmem:[#allocation2 + $0x228] sm:$0xff] %v933
    %1138 = vst [vmem:[#allocation2 + $0x230] sm:$0xff] %v1044
    %1139 = vst [vmem:[#allocation2 + $0x238] sm:$0xff] %v1046
    %1140 = vst [vmem:[#allocation2 + $0x240] sm:$0xff] %v824
    %1141 = vst [vmem:[#allocation2 + $0x248] sm:$0xff] %v826
    %1142 = vst [vmem:[#allocation2 + $0x250] sm:$0xff] %v937
    %1143 = vst [vmem:[#allocation2 + $0x258] sm:$0xff] %v939
    %1144 = vst [vmem:[#allocation2 + $0x260] sm:$0xff] %v1050
    %1145 = vst [vmem:[#allocation2 + $0x268] sm:$0xff] %v1052
    %1146 = vst [vmem:[#allocation2 + $0x270] sm:$0xff] %v828
    %1147 = vst [vmem:[#allocation2 + $0x278] sm:$0xff] %v830
    %1148 = vst [vmem:[#allocation2 + $0x280] sm:$0xff] %v941
    %1149 = vst [vmem:[#allocation2 + $0x288] sm:$0xff] %v943
    %1150 = vst [vmem:[#allocation2 + $0x290] sm:$0xff] %v1054
    %1151 = vst [vmem:[#allocation2 + $0x298] sm:$0xff] %v1056
    %1152 = vst [vmem:[#allocation2 + $0x2a0] sm:$0xff] %v834
    %1153 = vst [vmem:[#allocation2 + $0x2a8] sm:$0xff] %v836
    %1154 = vst [vmem:[#allocation2 + $0x2b0] sm:$0xff] %v947
    %1155 = vst [vmem:[#allocation2 + $0x2b8] sm:$0xff] %v949
    %1156 = vst [vmem:[#allocation2 + $0x2c0] sm:$0xff] %v1060
    %1157 = vst [vmem:[#allocation2 + $0x2c8] sm:$0xff] %v1062
    %1158 = vst [vmem:[#allocation2 + $0x2d0] sm:$0xff] %v838
    %1159 = vst [vmem:[#allocation2 + $0x2d8] sm:$0xff] %v840
    %1160 = vst [vmem:[#allocation2 + $0x2e0] sm:$0xff] %v951
    %1161 = vst [vmem:[#allocation2 + $0x2e8] sm:$0xff] %v953
    %1162 = vst [vmem:[#allocation2 + $0x2f0] sm:$0xff] %v1064
    %1163 = vst [vmem:[#allocation2 + $0x2f8] sm:$0xff] %v1066
    %v1164 = vld [vmem:[%s5] sm:$0x3]
    %v1166 = vlaneseq
    %v1167 = vshrl.u32 %v1166, 7
    %v1168 = vsub.s32 0, %v1167
    %v1169 = vrot.slane %v1164, %v1168
    %v1170 = vlaneseq
    %v1171 = vshrl.u32 %v1170, 7
    %v1172 = vsub.s32 1, %v1171
    %v1173 = vrot.slane %v1164, %v1172
    %v1176 = vld [vmem:[#allocation2] sm:$0xff]
    %v1177 = vld [vmem:[#allocation2 + $0x8] sm:$0xff]
    %v1178 = vld [vmem:[#allocation2 + $0x10] sm:$0xff]
    %v1179 = vld [vmem:[#allocation2 + $0x18] sm:$0xff]
    %v1180 = vld [vmem:[#allocation2 + $0x20] sm:$0xff]
    %v1181 = vld [vmem:[#allocation2 + $0x28] sm:$0xff]
    %v1182 = vld [vmem:[#allocation2 + $0x30] sm:$0xff]
    %v1183 = vld [vmem:[#allocation2 + $0x38] sm:$0xff]
    %v1184 = vld [vmem:[#allocation2 + $0x40] sm:$0xff]
    %v1185 = vld [vmem:[#allocation2 + $0x48] sm:$0xff]
    %v1186 = vld [vmem:[#allocation2 + $0x50] sm:$0xff]
    %v1187 = vld [vmem:[#allocation2 + $0x58] sm:$0xff]
    %v1188 = vld [vmem:[#allocation7] sm:$0xff]
    %v1189 = vld [vmem:[#allocation7 + $0x8] sm:$0xff]
    %v1190 = vld [vmem:[#allocation7 + $0x10] sm:$0xff]
    %v1191 = vld [vmem:[#allocation7 + $0x18] sm:$0xff]
    %v1192 = vld [vmem:[#allocation7 + $0x20] sm:$0xff]
    %v1193 = vld [vmem:[#allocation7 + $0x28] sm:$0xff]
    %v1194 = vld [vmem:[#allocation7 + $0x30] sm:$0xff]
    %v1195 = vld [vmem:[#allocation7 + $0x38] sm:$0xff]
    %v1196 = vld [vmem:[#allocation7 + $0x40] sm:$0xff]
    %v1197 = vld [vmem:[#allocation7 + $0x48] sm:$0xff]
    %v1198 = vld [vmem:[#allocation7 + $0x50] sm:$0xff]
    %v1199 = vld [vmem:[#allocation7 + $0x58] sm:$0xff]
    %v1200 = vld [vmem:[#allocation7 + $0x60] sm:$0xff]
    %v1201 = vld [vmem:[#allocation7 + $0x68] sm:$0xff]
    %v1202 = vld [vmem:[#allocation7 + $0x70] sm:$0xff]
    %v1203 = vld [vmem:[#allocation7 + $0x78] sm:$0xff]
    %v1204 = vld [vmem:[#allocation7 + $0x80] sm:$0xff]
    %v1205 = vld [vmem:[#allocation7 + $0x88] sm:$0xff]
    %v1206 = vld [vmem:[#allocation7 + $0x90] sm:$0xff]
    %v1207 = vld [vmem:[#allocation7 + $0x98] sm:$0xff]
    %v1208 = vld [vmem:[#allocation7 + $0xa0] sm:$0xff]
    %v1209 = vld [vmem:[#allocation7 + $0xa8] sm:$0xff]
    %v1210 = vld [vmem:[#allocation7 + $0xb0] sm:$0xff]
    %v1211 = vld [vmem:[#allocation7 + $0xb8] sm:$0xff]
    %v1212 = vld [vmem:[#allocation7 + $0xc0] sm:$0xff]
    %v1213 = vld [vmem:[#allocation7 + $0xc8] sm:$0xff]
    %v1214 = vld [vmem:[#allocation7 + $0xd0] sm:$0xff]
    %v1215 = vld [vmem:[#allocation7 + $0xd8] sm:$0xff]
    %v1216 = vld [vmem:[#allocation7 + $0xe0] sm:$0xff]
    %v1217 = vld [vmem:[#allocation7 + $0xe8] sm:$0xff]
    %v1218 = vld [vmem:[#allocation7 + $0xf0] sm:$0xff]
    %v1219 = vld [vmem:[#allocation7 + $0xf8] sm:$0xff]
    %v1220 = vld [vmem:[#allocation7 + $0x100] sm:$0xff]
    %v1221 = vld [vmem:[#allocation7 + $0x108] sm:$0xff]
    %v1222 = vld [vmem:[#allocation7 + $0x110] sm:$0xff]
    %v1223 = vld [vmem:[#allocation7 + $0x118] sm:$0xff]
    %v1224 = vld [vmem:[#allocation7 + $0x120] sm:$0xff]
    %v1225 = vld [vmem:[#allocation7 + $0x128] sm:$0xff]
    %v1226 = vld [vmem:[#allocation7 + $0x130] sm:$0xff]
    %v1227 = vld [vmem:[#allocation7 + $0x138] sm:$0xff]
    %v1228 = vld [vmem:[#allocation7 + $0x140] sm:$0xff]
    %v1229 = vld [vmem:[#allocation7 + $0x148] sm:$0xff]
    %v1230 = vld [vmem:[#allocation7 + $0x150] sm:$0xff]
    %v1231 = vld [vmem:[#allocation7 + $0x158] sm:$0xff]
    %v1232 = vld [vmem:[#allocation7 + $0x160] sm:$0xff]
    %v1233 = vld [vmem:[#allocation7 + $0x168] sm:$0xff]
    %v1234 = vld [vmem:[#allocation7 + $0x170] sm:$0xff]
    %v1235 = vld [vmem:[#allocation7 + $0x178] sm:$0xff]
    %v1236 = vld [vmem:[#allocation7 + $0x180] sm:$0xff]
    %v1237 = vld [vmem:[#allocation7 + $0x188] sm:$0xff]
    %v1238 = vld [vmem:[#allocation7 + $0x190] sm:$0xff]
    %v1239 = vld [vmem:[#allocation7 + $0x198] sm:$0xff]
    %v1240 = vld [vmem:[#allocation7 + $0x1a0] sm:$0xff]
    %v1241 = vld [vmem:[#allocation7 + $0x1a8] sm:$0xff]
    %v1242 = vld [vmem:[#allocation7 + $0x1b0] sm:$0xff]
    %v1243 = vld [vmem:[#allocation7 + $0x1b8] sm:$0xff]
    %v1244 = vld [vmem:[#allocation7 + $0x1c0] sm:$0xff]
    %v1245 = vld [vmem:[#allocation7 + $0x1c8] sm:$0xff]
    %v1246 = vld [vmem:[#allocation7 + $0x1d0] sm:$0xff]
    %v1247 = vld [vmem:[#allocation7 + $0x1d8] sm:$0xff]
    %v1248 = vld [vmem:[#allocation7 + $0x1e0] sm:$0xff]
    %v1249 = vld [vmem:[#allocation7 + $0x1e8] sm:$0xff]
    %v1250 = vld [vmem:[#allocation7 + $0x1f0] sm:$0xff]
    %v1251 = vld [vmem:[#allocation7 + $0x1f8] sm:$0xff]
    %v1252 = vld [vmem:[#allocation7 + $0x200] sm:$0xff]
    %v1253 = vld [vmem:[#allocation7 + $0x208] sm:$0xff]
    %v1254 = vld [vmem:[#allocation7 + $0x210] sm:$0xff]
    %v1255 = vld [vmem:[#allocation7 + $0x218] sm:$0xff]
    %v1256 = vld [vmem:[#allocation7 + $0x220] sm:$0xff]
    %v1257 = vld [vmem:[#allocation7 + $0x228] sm:$0xff]
    %v1258 = vld [vmem:[#allocation7 + $0x230] sm:$0xff]
    %v1259 = vld [vmem:[#allocation7 + $0x238] sm:$0xff]
    %v1260 = vld [vmem:[#allocation7 + $0x240] sm:$0xff]
    %v1261 = vld [vmem:[#allocation7 + $0x248] sm:$0xff]
    %v1262 = vld [vmem:[#allocation7 + $0x250] sm:$0xff]
    %v1263 = vld [vmem:[#allocation7 + $0x258] sm:$0xff]
    %v1264 = vld [vmem:[#allocation7 + $0x260] sm:$0xff]
    %v1265 = vld [vmem:[#allocation7 + $0x268] sm:$0xff]
    %v1266 = vld [vmem:[#allocation7 + $0x270] sm:$0xff]
    %v1267 = vld [vmem:[#allocation7 + $0x278] sm:$0xff]
    %v1268 = vld [vmem:[#allocation7 + $0x280] sm:$0xff]
    %v1269 = vld [vmem:[#allocation7 + $0x288] sm:$0xff]
    %v1270 = vld [vmem:[#allocation7 + $0x290] sm:$0xff]
    %v1271 = vld [vmem:[#allocation7 + $0x298] sm:$0xff]
    %v1272 = vld [vmem:[#allocation7 + $0x2a0] sm:$0xff]
    %v1273 = vld [vmem:[#allocation7 + $0x2a8] sm:$0xff]
    %v1274 = vld [vmem:[#allocation7 + $0x2b0] sm:$0xff]
    %v1275 = vld [vmem:[#allocation7 + $0x2b8] sm:$0xff]
    %v1276 = vld [vmem:[#allocation7 + $0x2c0] sm:$0xff]
    %v1277 = vld [vmem:[#allocation7 + $0x2c8] sm:$0xff]
    %v1278 = vld [vmem:[#allocation7 + $0x2d0] sm:$0xff]
    %v1279 = vld [vmem:[#allocation7 + $0x2d8] sm:$0xff]
    %v1280 = vld [vmem:[#allocation7 + $0x2e0] sm:$0xff]
    %v1281 = vld [vmem:[#allocation7 + $0x2e8] sm:$0xff]
    %v1282 = vld [vmem:[#allocation7 + $0x2f0] sm:$0xff]
    %v1283 = vld [vmem:[#allocation7 + $0x2f8] sm:$0xff]
    %v1380 = vunpack.c.l.b16 %v1188
    %v1381 = vunpack.c.h.b16 %v1188
    %v1382 = vunpack.c.l.b16 %v1189
    %v1383 = vunpack.c.h.b16 %v1189
    %v1384 = vunpack.c.l.b16 %v1190
    %v1385 = vunpack.c.h.b16 %v1190
    %v1386 = vunpack.c.l.b16 %v1191
    %v1387 = vunpack.c.h.b16 %v1191
    %v1388 = vunpack.c.l.b16 %v1192
    %v1389 = vunpack.c.h.b16 %v1192
    %v1390 = vunpack.c.l.b16 %v1193
    %v1391 = vunpack.c.h.b16 %v1193
    %v1392 = vunpack.c.l.b16 %v1194
    %v1393 = vunpack.c.h.b16 %v1194
    %v1394 = vunpack.c.l.b16 %v1195
    %v1395 = vunpack.c.h.b16 %v1195
    %v1396 = vunpack.c.l.b16 %v1196
    %v1397 = vunpack.c.h.b16 %v1196
    %v1398 = vunpack.c.l.b16 %v1197
    %v1399 = vunpack.c.h.b16 %v1197
    %v1400 = vunpack.c.l.b16 %v1198
    %v1401 = vunpack.c.h.b16 %v1198
    %v1402 = vunpack.c.l.b16 %v1199
    %v1403 = vunpack.c.h.b16 %v1199
    %v1404 = vunpack.c.l.b16 %v1200
    %v1405 = vunpack.c.h.b16 %v1200
    %v1406 = vunpack.c.l.b16 %v1201
    %v1407 = vunpack.c.h.b16 %v1201
    %v1408 = vunpack.c.l.b16 %v1202
    %v1409 = vunpack.c.h.b16 %v1202
    %v1410 = vunpack.c.l.b16 %v1203
    %v1411 = vunpack.c.h.b16 %v1203
    %v1412 = vunpack.c.l.b16 %v1204
    %v1413 = vunpack.c.h.b16 %v1204
    %v1414 = vunpack.c.l.b16 %v1205
    %v1415 = vunpack.c.h.b16 %v1205
    %v1416 = vunpack.c.l.b16 %v1206
    %v1417 = vunpack.c.h.b16 %v1206
    %v1418 = vunpack.c.l.b16 %v1207
    %v1419 = vunpack.c.h.b16 %v1207
    %v1420 = vunpack.c.l.b16 %v1208
    %v1421 = vunpack.c.h.b16 %v1208
    %v1422 = vunpack.c.l.b16 %v1209
    %v1423 = vunpack.c.h.b16 %v1209
    %v1424 = vunpack.c.l.b16 %v1210
    %v1425 = vunpack.c.h.b16 %v1210
    %v1426 = vunpack.c.l.b16 %v1211
    %v1427 = vunpack.c.h.b16 %v1211
    %v1428 = vunpack.c.l.b16 %v1212
    %v1429 = vunpack.c.h.b16 %v1212
    %v1430 = vunpack.c.l.b16 %v1213
    %v1431 = vunpack.c.h.b16 %v1213
    %v1432 = vunpack.c.l.b16 %v1214
    %v1433 = vunpack.c.h.b16 %v1214
    %v1434 = vunpack.c.l.b16 %v1215
    %v1435 = vunpack.c.h.b16 %v1215
    %v1436 = vunpack.c.l.b16 %v1216
    %v1437 = vunpack.c.h.b16 %v1216
    %v1438 = vunpack.c.l.b16 %v1217
    %v1439 = vunpack.c.h.b16 %v1217
    %v1440 = vunpack.c.l.b16 %v1218
    %v1441 = vunpack.c.h.b16 %v1218
    %v1442 = vunpack.c.l.b16 %v1219
    %v1443 = vunpack.c.h.b16 %v1219
    %v1444 = vunpack.c.l.b16 %v1220
    %v1445 = vunpack.c.h.b16 %v1220
    %v1446 = vunpack.c.l.b16 %v1221
    %v1447 = vunpack.c.h.b16 %v1221
    %v1448 = vunpack.c.l.b16 %v1222
    %v1449 = vunpack.c.h.b16 %v1222
    %v1450 = vunpack.c.l.b16 %v1223
    %v1451 = vunpack.c.h.b16 %v1223
    %v1452 = vunpack.c.l.b16 %v1224
    %v1453 = vunpack.c.h.b16 %v1224
    %v1454 = vunpack.c.l.b16 %v1225
    %v1455 = vunpack.c.h.b16 %v1225
    %v1456 = vunpack.c.l.b16 %v1226
    %v1457 = vunpack.c.h.b16 %v1226
    %v1458 = vunpack.c.l.b16 %v1227
    %v1459 = vunpack.c.h.b16 %v1227
    %v1460 = vunpack.c.l.b16 %v1228
    %v1461 = vunpack.c.h.b16 %v1228
    %v1462 = vunpack.c.l.b16 %v1229
    %v1463 = vunpack.c.h.b16 %v1229
    %v1464 = vunpack.c.l.b16 %v1230
    %v1465 = vunpack.c.h.b16 %v1230
    %v1466 = vunpack.c.l.b16 %v1231
    %v1467 = vunpack.c.h.b16 %v1231
    %v1468 = vunpack.c.l.b16 %v1232
    %v1469 = vunpack.c.h.b16 %v1232
    %v1470 = vunpack.c.l.b16 %v1233
    %v1471 = vunpack.c.h.b16 %v1233
    %v1472 = vunpack.c.l.b16 %v1234
    %v1473 = vunpack.c.h.b16 %v1234
    %v1474 = vunpack.c.l.b16 %v1235
    %v1475 = vunpack.c.h.b16 %v1235
    %v1476 = vunpack.c.l.b16 %v1236
    %v1477 = vunpack.c.h.b16 %v1236
    %v1478 = vunpack.c.l.b16 %v1237
    %v1479 = vunpack.c.h.b16 %v1237
    %v1480 = vunpack.c.l.b16 %v1238
    %v1481 = vunpack.c.h.b16 %v1238
    %v1482 = vunpack.c.l.b16 %v1239
    %v1483 = vunpack.c.h.b16 %v1239
    %v1484 = vunpack.c.l.b16 %v1240
    %v1485 = vunpack.c.h.b16 %v1240
    %v1486 = vunpack.c.l.b16 %v1241
    %v1487 = vunpack.c.h.b16 %v1241
    %v1488 = vunpack.c.l.b16 %v1242
    %v1489 = vunpack.c.h.b16 %v1242
    %v1490 = vunpack.c.l.b16 %v1243
    %v1491 = vunpack.c.h.b16 %v1243
    %v1492 = vunpack.c.l.b16 %v1244
    %v1493 = vunpack.c.h.b16 %v1244
    %v1494 = vunpack.c.l.b16 %v1245
    %v1495 = vunpack.c.h.b16 %v1245
    %v1496 = vunpack.c.l.b16 %v1246
    %v1497 = vunpack.c.h.b16 %v1246
    %v1498 = vunpack.c.l.b16 %v1247
    %v1499 = vunpack.c.h.b16 %v1247
    %v1500 = vunpack.c.l.b16 %v1248
    %v1501 = vunpack.c.h.b16 %v1248
    %v1502 = vunpack.c.l.b16 %v1249
    %v1503 = vunpack.c.h.b16 %v1249
    %v1504 = vunpack.c.l.b16 %v1250
    %v1505 = vunpack.c.h.b16 %v1250
    %v1506 = vunpack.c.l.b16 %v1251
    %v1507 = vunpack.c.h.b16 %v1251
    %v1508 = vunpack.c.l.b16 %v1252
    %v1509 = vunpack.c.h.b16 %v1252
    %v1510 = vunpack.c.l.b16 %v1253
    %v1511 = vunpack.c.h.b16 %v1253
    %v1512 = vunpack.c.l.b16 %v1254
    %v1513 = vunpack.c.h.b16 %v1254
    %v1514 = vunpack.c.l.b16 %v1255
    %v1515 = vunpack.c.h.b16 %v1255
    %v1516 = vunpack.c.l.b16 %v1256
    %v1517 = vunpack.c.h.b16 %v1256
    %v1518 = vunpack.c.l.b16 %v1257
    %v1519 = vunpack.c.h.b16 %v1257
    %v1520 = vunpack.c.l.b16 %v1258
    %v1521 = vunpack.c.h.b16 %v1258
    %v1522 = vunpack.c.l.b16 %v1259
    %v1523 = vunpack.c.h.b16 %v1259
    %v1524 = vunpack.c.l.b16 %v1260
    %v1525 = vunpack.c.h.b16 %v1260
    %v1526 = vunpack.c.l.b16 %v1261
    %v1527 = vunpack.c.h.b16 %v1261
    %v1528 = vunpack.c.l.b16 %v1262
    %v1529 = vunpack.c.h.b16 %v1262
    %v1530 = vunpack.c.l.b16 %v1263
    %v1531 = vunpack.c.h.b16 %v1263
    %v1532 = vunpack.c.l.b16 %v1264
    %v1533 = vunpack.c.h.b16 %v1264
    %v1534 = vunpack.c.l.b16 %v1265
    %v1535 = vunpack.c.h.b16 %v1265
    %v1536 = vunpack.c.l.b16 %v1266
    %v1537 = vunpack.c.h.b16 %v1266
    %v1538 = vunpack.c.l.b16 %v1267
    %v1539 = vunpack.c.h.b16 %v1267
    %v1540 = vunpack.c.l.b16 %v1268
    %v1541 = vunpack.c.h.b16 %v1268
    %v1542 = vunpack.c.l.b16 %v1269
    %v1543 = vunpack.c.h.b16 %v1269
    %v1544 = vunpack.c.l.b16 %v1270
    %v1545 = vunpack.c.h.b16 %v1270
    %v1546 = vunpack.c.l.b16 %v1271
    %v1547 = vunpack.c.h.b16 %v1271
    %v1548 = vunpack.c.l.b16 %v1272
    %v1549 = vunpack.c.h.b16 %v1272
    %v1550 = vunpack.c.l.b16 %v1273
    %v1551 = vunpack.c.h.b16 %v1273
    %v1552 = vunpack.c.l.b16 %v1274
    %v1553 = vunpack.c.h.b16 %v1274
    %v1554 = vunpack.c.l.b16 %v1275
    %v1555 = vunpack.c.h.b16 %v1275
    %v1556 = vunpack.c.l.b16 %v1276
    %v1557 = vunpack.c.h.b16 %v1276
    %v1558 = vunpack.c.l.b16 %v1277
    %v1559 = vunpack.c.h.b16 %v1277
    %v1560 = vunpack.c.l.b16 %v1278
    %v1561 = vunpack.c.h.b16 %v1278
    %v1562 = vunpack.c.l.b16 %v1279
    %v1563 = vunpack.c.h.b16 %v1279
    %v1564 = vunpack.c.l.b16 %v1280
    %v1565 = vunpack.c.h.b16 %v1280
    %v1566 = vunpack.c.l.b16 %v1281
    %v1567 = vunpack.c.h.b16 %v1281
    %v1568 = vunpack.c.l.b16 %v1282
    %v1569 = vunpack.c.h.b16 %v1282
    %v1570 = vunpack.c.l.b16 %v1283
    %v1571 = vunpack.c.h.b16 %v1283
    %v1572 = vpack.c.b16 %v1386, %v1380
    %v1573 = vpack.c.b16 %v1387, %v1381
    %v1574 = vpack.c.b16 %v1388, %v1382
    %v1575 = vpack.c.b16 %v1389, %v1383
    %v1576 = vpack.c.b16 %v1390, %v1384
    %v1577 = vpack.c.b16 %v1391, %v1385
    %v1578 = vpack.c.b16 %v1398, %v1392
    %v1579 = vpack.c.b16 %v1399, %v1393
    %v1580 = vpack.c.b16 %v1400, %v1394
    %v1581 = vpack.c.b16 %v1401, %v1395
    %v1582 = vpack.c.b16 %v1402, %v1396
    %v1583 = vpack.c.b16 %v1403, %v1397
    %v1584 = vpack.c.b16 %v1410, %v1404
    %v1585 = vpack.c.b16 %v1411, %v1405
    %v1586 = vpack.c.b16 %v1412, %v1406
    %v1587 = vpack.c.b16 %v1413, %v1407
    %v1588 = vpack.c.b16 %v1414, %v1408
    %v1589 = vpack.c.b16 %v1415, %v1409
    %v1590 = vpack.c.b16 %v1422, %v1416
    %v1591 = vpack.c.b16 %v1423, %v1417
    %v1592 = vpack.c.b16 %v1424, %v1418
    %v1593 = vpack.c.b16 %v1425, %v1419
    %v1594 = vpack.c.b16 %v1426, %v1420
    %v1595 = vpack.c.b16 %v1427, %v1421
    %v1596 = vpack.c.b16 %v1434, %v1428
    %v1597 = vpack.c.b16 %v1435, %v1429
    %v1598 = vpack.c.b16 %v1436, %v1430
    %v1599 = vpack.c.b16 %v1437, %v1431
    %v1600 = vpack.c.b16 %v1438, %v1432
    %v1601 = vpack.c.b16 %v1439, %v1433
    %v1602 = vpack.c.b16 %v1446, %v1440
    %v1603 = vpack.c.b16 %v1447, %v1441
    %v1604 = vpack.c.b16 %v1448, %v1442
    %v1605 = vpack.c.b16 %v1449, %v1443
    %v1606 = vpack.c.b16 %v1450, %v1444
    %v1607 = vpack.c.b16 %v1451, %v1445
    %v1608 = vpack.c.b16 %v1458, %v1452
    %v1609 = vpack.c.b16 %v1459, %v1453
    %v1610 = vpack.c.b16 %v1460, %v1454
    %v1611 = vpack.c.b16 %v1461, %v1455
    %v1612 = vpack.c.b16 %v1462, %v1456
    %v1613 = vpack.c.b16 %v1463, %v1457
    %v1614 = vpack.c.b16 %v1470, %v1464
    %v1615 = vpack.c.b16 %v1471, %v1465
    %v1616 = vpack.c.b16 %v1472, %v1466
    %v1617 = vpack.c.b16 %v1473, %v1467
    %v1618 = vpack.c.b16 %v1474, %v1468
    %v1619 = vpack.c.b16 %v1475, %v1469
    %v1620 = vpack.c.b16 %v1482, %v1476
    %v1621 = vpack.c.b16 %v1483, %v1477
    %v1622 = vpack.c.b16 %v1484, %v1478
    %v1623 = vpack.c.b16 %v1485, %v1479
    %v1624 = vpack.c.b16 %v1486, %v1480
    %v1625 = vpack.c.b16 %v1487, %v1481
    %v1626 = vpack.c.b16 %v1494, %v1488
    %v1627 = vpack.c.b16 %v1495, %v1489
    %v1628 = vpack.c.b16 %v1496, %v1490
    %v1629 = vpack.c.b16 %v1497, %v1491
    %v1630 = vpack.c.b16 %v1498, %v1492
    %v1631 = vpack.c.b16 %v1499, %v1493
    %v1632 = vpack.c.b16 %v1506, %v1500
    %v1633 = vpack.c.b16 %v1507, %v1501
    %v1634 = vpack.c.b16 %v1508, %v1502
    %v1635 = vpack.c.b16 %v1509, %v1503
    %v1636 = vpack.c.b16 %v1510, %v1504
    %v1637 = vpack.c.b16 %v1511, %v1505
    %v1638 = vpack.c.b16 %v1518, %v1512
    %v1639 = vpack.c.b16 %v1519, %v1513
    %v1640 = vpack.c.b16 %v1520, %v1514
    %v1641 = vpack.c.b16 %v1521, %v1515
    %v1642 = vpack.c.b16 %v1522, %v1516
    %v1643 = vpack.c.b16 %v1523, %v1517
    %v1644 = vpack.c.b16 %v1530, %v1524
    %v1645 = vpack.c.b16 %v1531, %v1525
    %v1646 = vpack.c.b16 %v1532, %v1526
    %v1647 = vpack.c.b16 %v1533, %v1527
    %v1648 = vpack.c.b16 %v1534, %v1528
    %v1649 = vpack.c.b16 %v1535, %v1529
    %v1650 = vpack.c.b16 %v1542, %v1536
    %v1651 = vpack.c.b16 %v1543, %v1537
    %v1652 = vpack.c.b16 %v1544, %v1538
    %v1653 = vpack.c.b16 %v1545, %v1539
    %v1654 = vpack.c.b16 %v1546, %v1540
    %v1655 = vpack.c.b16 %v1547, %v1541
    %v1656 = vpack.c.b16 %v1554, %v1548
    %v1657 = vpack.c.b16 %v1555, %v1549
    %v1658 = vpack.c.b16 %v1556, %v1550
    %v1659 = vpack.c.b16 %v1557, %v1551
    %v1660 = vpack.c.b16 %v1558, %v1552
    %v1661 = vpack.c.b16 %v1559, %v1553
    %v1662 = vpack.c.b16 %v1566, %v1560
    %v1663 = vpack.c.b16 %v1567, %v1561
    %v1664 = vpack.c.b16 %v1568, %v1562
    %v1665 = vpack.c.b16 %v1569, %v1563
    %v1666 = vpack.c.b16 %v1570, %v1564
    %v1667 = vpack.c.b16 %v1571, %v1565
    %1764 = vmatprep.subr.bf16.mxu0 %v1573
    %1765 = vmatpush1.bf16.msra.mxu0 %v1572
    %1766 = vmatprep.subr.bf16.mxu0 %v1579
    %1767 = vmatpush1.bf16.msra.mxu0 %v1578
    %1768 = vmatprep.subr.bf16.mxu0 %v1585
    %1769 = vmatpush1.bf16.msra.mxu0 %v1584
    %1770 = vmatprep.subr.bf16.mxu0 %v1591
    %1771 = vmatpush1.bf16.msra.mxu0 %v1590
    %1772 = vmatprep.subr.bf16.mxu0 %v1597
    %1773 = vmatpush1.bf16.msra.mxu0 %v1596
    %1774 = vmatprep.subr.bf16.mxu0 %v1603
    %1775 = vmatpush1.bf16.msra.mxu0 %v1602
    %1776 = vmatprep.subr.bf16.mxu0 %v1609
    %1777 = vmatpush1.bf16.msra.mxu0 %v1608
    %1778 = vmatprep.subr.bf16.mxu0 %v1615
    %1779 = vmatpush1.bf16.msra.mxu0 %v1614
    %1780 = vmatprep.subr.bf16.mxu0 %v1621
    %1781 = vmatpush1.bf16.msra.mxu0 %v1620
    %1782 = vmatprep.subr.bf16.mxu0 %v1627
    %1783 = vmatpush1.bf16.msra.mxu0 %v1626
    %1784 = vmatprep.subr.bf16.mxu0 %v1633
    %1785 = vmatpush1.bf16.msra.mxu0 %v1632
    %1786 = vmatprep.subr.bf16.mxu0 %v1639
    %1787 = vmatpush1.bf16.msra.mxu0 %v1638
    %1788 = vmatprep.subr.bf16.mxu0 %v1645
    %1789 = vmatpush1.bf16.msra.mxu0 %v1644
    %1790 = vmatprep.subr.bf16.mxu0 %v1651
    %1791 = vmatpush1.bf16.msra.mxu0 %v1650
    %1792 = vmatprep.subr.bf16.mxu0 %v1657
    %1793 = vmatpush1.bf16.msra.mxu0 %v1656
    %1794 = vmatprep.subr.bf16.mxu0 %v1663
    %1795 = vmatpush1.bf16.msra.mxu0 %v1662
    %1796 = vmatprep.mubr.bf16.mxu0 0
    %1797 = vmatmul.mubr.bf16.gmra.mrb[0].mxu0 0
    %v1798 = vpop.f32.mrb[0].mxu0
    %v1799 = vadd.f32 0.0, %v1798
    %v1800 = vpop.f32.mrb[0].mxu0
    %v1801 = vadd.f32 0.0, %v1800
    %v1802 = vpop.f32.mrb[0].mxu0
    %v1803 = vadd.f32 0.0, %v1802
    %v1804 = vpop.f32.mrb[0].mxu0
    %v1805 = vadd.f32 0.0, %v1804
    %1806 = vdwg.mxu0
    %1807 = vmatprep.subr.bf16.mxu0 %v1575
    %1808 = vmatpush1.bf16.msra.mxu0 %v1574
    %1809 = vmatprep.subr.bf16.mxu0 %v1581
    %1810 = vmatpush1.bf16.msra.mxu0 %v1580
    %1811 = vmatprep.subr.bf16.mxu0 %v1587
    %1812 = vmatpush1.bf16.msra.mxu0 %v1586
    %1813 = vmatprep.subr.bf16.mxu0 %v1593
    %1814 = vmatpush1.bf16.msra.mxu0 %v1592
    %1815 = vmatprep.subr.bf16.mxu0 %v1599
    %1816 = vmatpush1.bf16.msra.mxu0 %v1598
    %1817 = vmatprep.subr.bf16.mxu0 %v1605
    %1818 = vmatpush1.bf16.msra.mxu0 %v1604
    %1819 = vmatprep.subr.bf16.mxu0 %v1611
    %1820 = vmatpush1.bf16.msra.mxu0 %v1610
    %1821 = vmatprep.subr.bf16.mxu0 %v1617
    %1822 = vmatpush1.bf16.msra.mxu0 %v1616
    %1823 = vmatprep.subr.bf16.mxu0 %v1623
    %1824 = vmatpush1.bf16.msra.mxu0 %v1622
    %1825 = vmatprep.subr.bf16.mxu0 %v1629
    %1826 = vmatpush1.bf16.msra.mxu0 %v1628
    %1827 = vmatprep.subr.bf16.mxu0 %v1635
    %1828 = vmatpush1.bf16.msra.mxu0 %v1634
    %1829 = vmatprep.subr.bf16.mxu0 %v1641
    %1830 = vmatpush1.bf16.msra.mxu0 %v1640
    %1831 = vmatprep.subr.bf16.mxu0 %v1647
    %1832 = vmatpush1.bf16.msra.mxu0 %v1646
    %1833 = vmatprep.subr.bf16.mxu0 %v1653
    %1834 = vmatpush1.bf16.msra.mxu0 %v1652
    %1835 = vmatprep.subr.bf16.mxu0 %v1659
    %1836 = vmatpush1.bf16.msra.mxu0 %v1658
    %1837 = vmatprep.subr.bf16.mxu0 %v1665
    %1838 = vmatpush1.bf16.msra.mxu0 %v1664
    %1839 = vmatprep.mubr.bf16.mxu0 0
    %1840 = vmatmul.mubr.bf16.gmra.mrb[0].mxu0 0
    %v1841 = vpop.f32.mrb[0].mxu0
    %v1842 = vadd.f32 0.0, %v1841
    %v1843 = vpop.f32.mrb[0].mxu0
    %v1844 = vadd.f32 0.0, %v1843
    %v1845 = vpop.f32.mrb[0].mxu0
    %v1846 = vadd.f32 0.0, %v1845
    %v1847 = vpop.f32.mrb[0].mxu0
    %v1848 = vadd.f32 0.0, %v1847
    %1849 = vdwg.mxu0
    %1850 = vmatprep.subr.bf16.mxu0 %v1577
    %1851 = vmatpush1.bf16.msra.mxu0 %v1576
    %1852 = vmatprep.subr.bf16.mxu0 %v1583
    %1853 = vmatpush1.bf16.msra.mxu0 %v1582
    %1854 = vmatprep.subr.bf16.mxu0 %v1589
    %1855 = vmatpush1.bf16.msra.mxu0 %v1588
    %1856 = vmatprep.subr.bf16.mxu0 %v1595
    %1857 = vmatpush1.bf16.msra.mxu0 %v1594
    %1858 = vmatprep.subr.bf16.mxu0 %v1601
    %1859 = vmatpush1.bf16.msra.mxu0 %v1600
    %1860 = vmatprep.subr.bf16.mxu0 %v1607
    %1861 = vmatpush1.bf16.msra.mxu0 %v1606
    %1862 = vmatprep.subr.bf16.mxu0 %v1613
    %1863 = vmatpush1.bf16.msra.mxu0 %v1612
    %1864 = vmatprep.subr.bf16.mxu0 %v1619
    %1865 = vmatpush1.bf16.msra.mxu0 %v1618
    %1866 = vmatprep.subr.bf16.mxu0 %v1625
    %1867 = vmatpush1.bf16.msra.mxu0 %v1624
    %1868 = vmatprep.subr.bf16.mxu0 %v1631
    %1869 = vmatpush1.bf16.msra.mxu0 %v1630
    %1870 = vmatprep.subr.bf16.mxu0 %v1637
    %1871 = vmatpush1.bf16.msra.mxu0 %v1636
    %1872 = vmatprep.subr.bf16.mxu0 %v1643
    %1873 = vmatpush1.bf16.msra.mxu0 %v1642
    %1874 = vmatprep.subr.bf16.mxu0 %v1649
    %1875 = vmatpush1.bf16.msra.mxu0 %v1648
    %1876 = vmatprep.subr.bf16.mxu0 %v1655
    %1877 = vmatpush1.bf16.msra.mxu0 %v1654
    %1878 = vmatprep.subr.bf16.mxu0 %v1661
    %1879 = vmatpush1.bf16.msra.mxu0 %v1660
    %1880 = vmatprep.subr.bf16.mxu0 %v1667
    %1881 = vmatpush1.bf16.msra.mxu0 %v1666
    %1882 = vmatprep.mubr.bf16.mxu0 0
    %1883 = vmatmul.mubr.bf16.gmra.mrb[0].mxu0 0
    %v1884 = vpop.f32.mrb[0].mxu0
    %v1885 = vadd.f32 0.0, %v1884
    %v1886 = vpop.f32.mrb[0].mxu0
    %v1887 = vadd.f32 0.0, %v1886
    %v1888 = vpop.f32.mrb[0].mxu0
    %v1889 = vadd.f32 0.0, %v1888
    %v1890 = vpop.f32.mrb[0].mxu0
    %v1891 = vadd.f32 0.0, %v1890
    %1892 = vdwg.mxu0
    %v1893 = vadd.f32 %v1176, %v1799
    %v1894 = vadd.f32 %v1177, %v1801
    %v1895 = vadd.f32 %v1182, %v1803
    %v1896 = vadd.f32 %v1183, %v1805
    %v1897 = vxor.u32 %v1893, 2147483648
    %v1898 = vxor.u32 %v1894, 2147483648
    %v1899 = vxor.u32 %v1895, 2147483648
    %v1900 = vxor.u32 %v1896, 2147483648
    %v1901 = vmul.f32 %v1897, 1.442695
    %v1902 = vpow.pop %v1901
    %v1903 = vmul.f32 %v1898, 1.442695
    %v1904 = vpow.pop %v1903
    %v1905 = vmul.f32 %v1899, 1.442695
    %v1906 = vpow.pop %v1905
    %v1907 = vmul.f32 %v1900, 1.442695
    %v1908 = vpow.pop %v1907
    %v1909 = vadd.f32 %v1902, 1.0
    %v1910 = vadd.f32 %v1904, 1.0
    %v1911 = vadd.f32 %v1906, 1.0
    %v1912 = vadd.f32 %v1908, 1.0
    %v1913 = vrcp.pop %v1909
    %v1914 = vmul.f32 1.0, %v1913
    %v1915 = vrcp.pop %v1910
    %v1916 = vmul.f32 1.0, %v1915
    %v1917 = vrcp.pop %v1911
    %v1918 = vmul.f32 1.0, %v1917
    %v1919 = vrcp.pop %v1912
    %v1920 = vmul.f32 1.0, %v1919
    %v1921 = vadd.f32 %v1178, %v1842
    %v1922 = vadd.f32 %v1179, %v1844
    %v1923 = vadd.f32 %v1184, %v1846
    %v1924 = vadd.f32 %v1185, %v1848
    %v1925 = vxor.u32 %v1921, 2147483648
    %v1926 = vxor.u32 %v1922, 2147483648
    %v1927 = vxor.u32 %v1923, 2147483648
    %v1928 = vxor.u32 %v1924, 2147483648
    %v1929 = vmul.f32 %v1925, 1.442695
    %v1930 = vpow.pop %v1929
    %v1931 = vmul.f32 %v1926, 1.442695
    %v1932 = vpow.pop %v1931
    %v1933 = vmul.f32 %v1927, 1.442695
    %v1934 = vpow.pop %v1933
    %v1935 = vmul.f32 %v1928, 1.442695
    %v1936 = vpow.pop %v1935
    %v1937 = vadd.f32 %v1930, 1.0
    %v1938 = vadd.f32 %v1932, 1.0
    %v1939 = vadd.f32 %v1934, 1.0
    %v1940 = vadd.f32 %v1936, 1.0
    %v1941 = vrcp.pop %v1937
    %v1942 = vmul.f32 1.0, %v1941
    %v1943 = vrcp.pop %v1938
    %v1944 = vmul.f32 1.0, %v1943
    %v1945 = vrcp.pop %v1939
    %v1946 = vmul.f32 1.0, %v1945
    %v1947 = vrcp.pop %v1940
    %v1948 = vmul.f32 1.0, %v1947
    %v1949 = vadd.f32 %v1885, %v1169
    %v1950 = vadd.f32 %v1887, %v1173
    %v1951 = vadd.f32 %v1889, %v1169
    %v1952 = vadd.f32 %v1891, %v1173
    %v1953 = vmul.f32 %v1914, %v1949
    %v1954 = vmul.f32 %v1916, %v1950
    %v1955 = vmul.f32 %v1918, %v1951
    %v1956 = vmul.f32 %v1920, %v1952
    %v1957 = vadd.f32 %v1180, %v1953
    %v1958 = vadd.f32 %v1181, %v1954
    %v1959 = vadd.f32 %v1186, %v1955
    %v1960 = vadd.f32 %v1187, %v1956
    %v1961 = vtanh.pop %v1957
    %v1962 = vtanh.pop %v1958
    %v1963 = vtanh.pop %v1959
    %v1964 = vtanh.pop %v1960
    %v1965 = vsub.f32 1.0, %v1942
    %v1966 = vsub.f32 1.0, %v1944
    %v1967 = vsub.f32 1.0, %v1946
    %v1968 = vsub.f32 1.0, %v1948
    %v1969 = vmul.f32 %v1965, %v1961
    %v1970 = vmul.f32 %v1966, %v1962
    %v1971 = vmul.f32 %v1967, %v1963
    %v1972 = vmul.f32 %v1968, %v1964
    %v1973 = vmul.f32 %v1942, 0.0
    %v1974 = vmul.f32 %v1944, 0.0
    %v1975 = vmul.f32 %v1946, 0.0
    %v1976 = vmul.f32 %v1948, 0.0
    %v1977 = vadd.f32 %v1969, %v1973
    %v1978 = vadd.f32 %v1970, %v1974
    %v1979 = vadd.f32 %v1971, %v1975
    %v1980 = vadd.f32 %v1972, %v1976
    %v1981 = vpack.c.bf16 %v1979, %v1977
    %v1982 = vpack.c.bf16 %v1980, %v1978
    %1983 = vst [vmem:[#allocation3] sm:$0xff] %v1981
    %1984 = vst [vmem:[#allocation3 + $0x8] sm:$0xff] %v1982
    %v1985 = vld [vmem:[#allocation2 + $0x60] sm:$0xff]
    %v1986 = vld [vmem:[#allocation2 + $0x68] sm:$0xff]
    %v1987 = vld [vmem:[#allocation2 + $0x70] sm:$0xff]
    %v1988 = vld [vmem:[#allocation2 + $0x78] sm:$0xff]
    %v1989 = vld [vmem:[#allocation2 + $0x80] sm:$0xff]
    %v1990 = vld [vmem:[#allocation2 + $0x88] sm:$0xff]
    %v1991 = vld [vmem:[#allocation2 + $0x90] sm:$0xff]
    %v1992 = vld [vmem:[#allocation2 + $0x98] sm:$0xff]
    %v1993 = vld [vmem:[#allocation2 + $0xa0] sm:$0xff]
    %v1994 = vld [vmem:[#allocation2 + $0xa8] sm:$0xff]
    %v1995 = vld [vmem:[#allocation2 + $0xb0] sm:$0xff]
    %v1996 = vld [vmem:[#allocation2 + $0xb8] sm:$0xff]
    %v1997 = vld [vmem:[#allocation7] sm:$0xff]
    %v1998 = vld [vmem:[#allocation7 + $0x8] sm:$0xff]
    %v1999 = vld [vmem:[#allocation7 + $0x10] sm:$0xff]
    %v2000 = vld [vmem:[#allocation7 + $0x18] sm:$0xff]
    %v2001 = vld [vmem:[#allocation7 + $0x20] sm:$0xff]
    %v2002 = vld [vmem:[#allocation7 + $0x28] sm:$0xff]
    %v2003 = vld [vmem:[#allocation7 + $0x30] sm:$0xff]
    %v2004 = vld [vmem:[#allocation7 + $0x38] sm:$0xff]
    %v2005 = vld [vmem:[#allocation7 + $0x40] sm:$0xff]
    %v2006 = vld [vmem:[#allocation7 + $0x48] sm:$0xff]
    %v2007 = vld [vmem:[#allocation7 + $0x50] sm:$0xff]
    %v2008 = vld [vmem:[#allocation7 + $0x58] sm:$0xff]
    %v2009 = vld [vmem:[#allocation7 + $0x60] sm:$0xff]
    %v2010 = vld [vmem:[#allocation7 + $0x68] sm:$0xff]
    %v2011 = vld [vmem:[#allocation7 + $0x70] sm:$0xff]
    %v2012 = vld [vmem:[#allocation7 + $0x78] sm:$0xff]
    %v2013 = vld [vmem:[#allocation7 + $0x80] sm:$0xff]
    %v2014 = vld [vmem:[#allocation7 + $0x88] sm:$0xff]
    %v2015 = vld [vmem:[#allocation7 + $0x90] sm:$0xff]
    %v2016 = vld [vmem:[#allocation7 + $0x98] sm:$0xff]
    %v2017 = vld [vmem:[#allocation7 + $0xa0] sm:$0xff]
    %v2018 = vld [vmem:[#allocation7 + $0xa8] sm:$0xff]
    %v2019 = vld [vmem:[#allocation7 + $0xb0] sm:$0xff]
    %v2020 = vld [vmem:[#allocation7 + $0xb8] sm:$0xff]
    %v2021 = vld [vmem:[#allocation7 + $0xc0] sm:$0xff]
    %v2022 = vld [vmem:[#allocation7 + $0xc8] sm:$0xff]
    %v2023 = vld [vmem:[#allocation7 + $0xd0] sm:$0xff]
    %v2024 = vld [vmem:[#allocation7 + $0xd8] sm:$0xff]
    %v2025 = vld [vmem:[#allocation7 + $0xe0] sm:$0xff]
    %v2026 = vld [vmem:[#allocation7 + $0xe8] sm:$0xff]
    %v2027 = vld [vmem:[#allocation7 + $0xf0] sm:$0xff]
    %v2028 = vld [vmem:[#allocation7 + $0xf8] sm:$0xff]
    %v2029 = vld [vmem:[#allocation7 + $0x100] sm:$0xff]
    %v2030 = vld [vmem:[#allocation7 + $0x108] sm:$0xff]
    %v2031 = vld [vmem:[#allocation7 + $0x110] sm:$0xff]
    %v2032 = vld [vmem:[#allocation7 + $0x118] sm:$0xff]
    %v2033 = vld [vmem:[#allocation7 + $0x120] sm:$0xff]
    %v2034 = vld [vmem:[#allocation7 + $0x128] sm:$0xff]
    %v2035 = vld [vmem:[#allocation7 + $0x130] sm:$0xff]
    %v2036 = vld [vmem:[#allocation7 + $0x138] sm:$0xff]
    %v2037 = vld [vmem:[#allocation7 + $0x140] sm:$0xff]
    %v2038 = vld [vmem:[#allocation7 + $0x148] sm:$0xff]
    %v2039 = vld [vmem:[#allocation7 + $0x150] sm:$0xff]
    %v2040 = vld [vmem:[#allocation7 + $0x158] sm:$0xff]
    %v2041 = vld [vmem:[#allocation7 + $0x160] sm:$0xff]
    %v2042 = vld [vmem:[#allocation7 + $0x168] sm:$0xff]
    %v2043 = vld [vmem:[#allocation7 + $0x170] sm:$0xff]
    %v2044 = vld [vmem:[#allocation7 + $0x178] sm:$0xff]
    %v2045 = vld [vmem:[#allocation7 + $0x180] sm:$0xff]
    %v2046 = vld [vmem:[#allocation7 + $0x188] sm:$0xff]
    %v2047 = vld [vmem:[#allocation7 + $0x190] sm:$0xff]
    %v2048 = vld [vmem:[#allocation7 + $0x198] sm:$0xff]
    %v2049 = vld [vmem:[#allocation7 + $0x1a0] sm:$0xff]
    %v2050 = vld [vmem:[#allocation7 + $0x1a8] sm:$0xff]
    %v2051 = vld [vmem:[#allocation7 + $0x1b0] sm:$0xff]
    %v2052 = vld [vmem:[#allocation7 + $0x1b8] sm:$0xff]
    %v2053 = vld [vmem:[#allocation7 + $0x1c0] sm:$0xff]
    %v2054 = vld [vmem:[#allocation7 + $0x1c8] sm:$0xff]
    %v2055 = vld [vmem:[#allocation7 + $0x1d0] sm:$0xff]
    %v2056 = vld [vmem:[#allocation7 + $0x1d8] sm:$0xff]
    %v2057 = vld [vmem:[#allocation7 + $0x1e0] sm:$0xff]
    %v2058 = vld [vmem:[#allocation7 + $0x1e8] sm:$0xff]
    %v2059 = vld [vmem:[#allocation7 + $0x1f0] sm:$0xff]
    %v2060 = vld [vmem:[#allocation7 + $0x1f8] sm:$0xff]
    %v2061 = vld [vmem:[#allocation7 + $0x200] sm:$0xff]
    %v2062 = vld [vmem:[#allocation7 + $0x208] sm:$0xff]
    %v2063 = vld [vmem:[#allocation7 + $0x210] sm:$0xff]
    %v2064 = vld [vmem:[#allocation7 + $0x218] sm:$0xff]
    %v2065 = vld [vmem:[#allocation7 + $0x220] sm:$0xff]
    %v2066 = vld [vmem:[#allocation7 + $0x228] sm:$0xff]
    %v2067 = vld [vmem:[#allocation7 + $0x230] sm:$0xff]
    %v2068 = vld [vmem:[#allocation7 + $0x238] sm:$0xff]
    %v2069 = vld [vmem:[#allocation7 + $0x240] sm:$0xff]
    %v2070 = vld [vmem:[#allocation7 + $0x248] sm:$0xff]
    %v2071 = vld [vmem:[#allocation7 + $0x250] sm:$0xff]
    %v2072 = vld [vmem:[#allocation7 + $0x258] sm:$0xff]
    %v2073 = vld [vmem:[#allocation7 + $0x260] sm:$0xff]
    %v2074 = vld [vmem:[#allocation7 + $0x268] sm:$0xff]
    %v2075 = vld [vmem:[#allocation7 + $0x270] sm:$0xff]
    %v2076 = vld [vmem:[#allocation7 + $0x278] sm:$0xff]
    %v2077 = vld [vmem:[#allocation7 + $0x280] sm:$0xff]
    %v2078 = vld [vmem:[#allocation7 + $0x288] sm:$0xff]
    %v2079 = vld [vmem:[#allocation7 + $0x290] sm:$0xff]
    %v2080 = vld [vmem:[#allocation7 + $0x298] sm:$0xff]
    %v2081 = vld [vmem:[#allocation7 + $0x2a0] sm:$0xff]
    %v2082 = vld [vmem:[#allocation7 + $0x2a8] sm:$0xff]
    %v2083 = vld [vmem:[#allocation7 + $0x2b0] sm:$0xff]
    %v2084 = vld [vmem:[#allocation7 + $0x2b8] sm:$0xff]
    %v2085 = vld [vmem:[#allocation7 + $0x2c0] sm:$0xff]
    %v2086 = vld [vmem:[#allocation7 + $0x2c8] sm:$0xff]
    %v2087 = vld [vmem:[#allocation7 + $0x2d0] sm:$0xff]
    %v2088 = vld [vmem:[#allocation7 + $0x2d8] sm:$0xff]
    %v2089 = vld [vmem:[#allocation7 + $0x2e0] sm:$0xff]
    %v2090 = vld [vmem:[#allocation7 + $0x2e8] sm:$0xff]
    %v2091 = vld [vmem:[#allocation7 + $0x2f0] sm:$0xff]
    %v2092 = vld [vmem:[#allocation7 + $0x2f8] sm:$0xff]
    %v2189 = vunpack.c.l.b16 %v1997
    %v2190 = vunpack.c.h.b16 %v1997
    %v2191 = vunpack.c.l.b16 %v1998
    %v2192 = vunpack.c.h.b16 %v1998
    %v2193 = vunpack.c.l.b16 %v1999
    %v2194 = vunpack.c.h.b16 %v1999
    %v2195 = vunpack.c.l.b16 %v2000
    %v2196 = vunpack.c.h.b16 %v2000
    %v2197 = vunpack.c.l.b16 %v2001
    %v2198 = vunpack.c.h.b16 %v2001
    %v2199 = vunpack.c.l.b16 %v2002
    %v2200 = vunpack.c.h.b16 %v2002
    %v2201 = vunpack.c.l.b16 %v2003
    %v2202 = vunpack.c.h.b16 %v2003
    %v2203 = vunpack.c.l.b16 %v2004
    %v2204 = vunpack.c.h.b16 %v2004
    %v2205 = vunpack.c.l.b16 %v2005
    %v2206 = vunpack.c.h.b16 %v2005
    %v2207 = vunpack.c.l.b16 %v2006
    %v2208 = vunpack.c.h.b16 %v2006
    %v2209 = vunpack.c.l.b16 %v2007
    %v2210 = vunpack.c.h.b16 %v2007
    %v2211 = vunpack.c.l.b16 %v2008
    %v2212 = vunpack.c.h.b16 %v2008
    %v2213 = vunpack.c.l.b16 %v2009
    %v2214 = vunpack.c.h.b16 %v2009
    %v2215 = vunpack.c.l.b16 %v2010
    %v2216 = vunpack.c.h.b16 %v2010
    %v2217 = vunpack.c.l.b16 %v2011
    %v2218 = vunpack.c.h.b16 %v2011
    %v2219 = vunpack.c.l.b16 %v2012
    %v2220 = vunpack.c.h.b16 %v2012
    %v2221 = vunpack.c.l.b16 %v2013
    %v2222 = vunpack.c.h.b16 %v2013
    %v2223 = vunpack.c.l.b16 %v2014
    %v2224 = vunpack.c.h.b16 %v2014
    %v2225 = vunpack.c.l.b16 %v2015
    %v2226 = vunpack.c.h.b16 %v2015
    %v2227 = vunpack.c.l.b16 %v2016
    %v2228 = vunpack.c.h.b16 %v2016
    %v2229 = vunpack.c.l.b16 %v2017
    %v2230 = vunpack.c.h.b16 %v2017
    %v2231 = vunpack.c.l.b16 %v2018
    %v2232 = vunpack.c.h.b16 %v2018
    %v2233 = vunpack.c.l.b16 %v2019
    %v2234 = vunpack.c.h.b16 %v2019
    %v2235 = vunpack.c.l.b16 %v2020
    %v2236 = vunpack.c.h.b16 %v2020
    %v2237 = vunpack.c.l.b16 %v2021
    %v2238 = vunpack.c.h.b16 %v2021
    %v2239 = vunpack.c.l.b16 %v2022
    %v2240 = vunpack.c.h.b16 %v2022
    %v2241 = vunpack.c.l.b16 %v2023
    %v2242 = vunpack.c.h.b16 %v2023
    %v2243 = vunpack.c.l.b16 %v2024
    %v2244 = vunpack.c.h.b16 %v2024
    %v2245 = vunpack.c.l.b16 %v2025
    %v2246 = vunpack.c.h.b16 %v2025
    %v2247 = vunpack.c.l.b16 %v2026
    %v2248 = vunpack.c.h.b16 %v2026
    %v2249 = vunpack.c.l.b16 %v2027
    %v2250 = vunpack.c.h.b16 %v2027
    %v2251 = vunpack.c.l.b16 %v2028
    %v2252 = vunpack.c.h.b16 %v2028
    %v2253 = vunpack.c.l.b16 %v2029
    %v2254 = vunpack.c.h.b16 %v2029
    %v2255 = vunpack.c.l.b16 %v2030
    %v2256 = vunpack.c.h.b16 %v2030
    %v2257 = vunpack.c.l.b16 %v2031
    %v2258 = vunpack.c.h.b16 %v2031
    %v2259 = vunpack.c.l.b16 %v2032
    %v2260 = vunpack.c.h.b16 %v2032
    %v2261 = vunpack.c.l.b16 %v2033
    %v2262 = vunpack.c.h.b16 %v2033
    %v2263 = vunpack.c.l.b16 %v2034
    %v2264 = vunpack.c.h.b16 %v2034
    %v2265 = vunpack.c.l.b16 %v2035
    %v2266 = vunpack.c.h.b16 %v2035
    %v2267 = vunpack.c.l.b16 %v2036
    %v2268 = vunpack.c.h.b16 %v2036
    %v2269 = vunpack.c.l.b16 %v2037
    %v2270 = vunpack.c.h.b16 %v2037
    %v2271 = vunpack.c.l.b16 %v2038
    %v2272 = vunpack.c.h.b16 %v2038
    %v2273 = vunpack.c.l.b16 %v2039
    %v2274 = vunpack.c.h.b16 %v2039
    %v2275 = vunpack.c.l.b16 %v2040
    %v2276 = vunpack.c.h.b16 %v2040
    %v2277 = vunpack.c.l.b16 %v2041
    %v2278 = vunpack.c.h.b16 %v2041
    %v2279 = vunpack.c.l.b16 %v2042
    %v2280 = vunpack.c.h.b16 %v2042
    %v2281 = vunpack.c.l.b16 %v2043
    %v2282 = vunpack.c.h.b16 %v2043
    %v2283 = vunpack.c.l.b16 %v2044
    %v2284 = vunpack.c.h.b16 %v2044
    %v2285 = vunpack.c.l.b16 %v2045
    %v2286 = vunpack.c.h.b16 %v2045
    %v2287 = vunpack.c.l.b16 %v2046
    %v2288 = vunpack.c.h.b16 %v2046
    %v2289 = vunpack.c.l.b16 %v2047
    %v2290 = vunpack.c.h.b16 %v2047
    %v2291 = vunpack.c.l.b16 %v2048
    %v2292 = vunpack.c.h.b16 %v2048
    %v2293 = vunpack.c.l.b16 %v2049
    %v2294 = vunpack.c.h.b16 %v2049
    %v2295 = vunpack.c.l.b16 %v2050
    %v2296 = vunpack.c.h.b16 %v2050
    %v2297 = vunpack.c.l.b16 %v2051
    %v2298 = vunpack.c.h.b16 %v2051
    %v2299 = vunpack.c.l.b16 %v2052
    %v2300 = vunpack.c.h.b16 %v2052
    %v2301 = vunpack.c.l.b16 %v2053
    %v2302 = vunpack.c.h.b16 %v2053
    %v2303 = vunpack.c.l.b16 %v2054
    %v2304 = vunpack.c.h.b16 %v2054
    %v2305 = vunpack.c.l.b16 %v2055
    %v2306 = vunpack.c.h.b16 %v2055
    %v2307 = vunpack.c.l.b16 %v2056
    %v2308 = vunpack.c.h.b16 %v2056
    %v2309 = vunpack.c.l.b16 %v2057
    %v2310 = vunpack.c.h.b16 %v2057
    %v2311 = vunpack.c.l.b16 %v2058
    %v2312 = vunpack.c.h.b16 %v2058
    %v2313 = vunpack.c.l.b16 %v2059
    %v2314 = vunpack.c.h.b16 %v2059
    %v2315 = vunpack.c.l.b16 %v2060
    %v2316 = vunpack.c.h.b16 %v2060
    %v2317 = vunpack.c.l.b16 %v2061
    %v2318 = vunpack.c.h.b16 %v2061
    %v2319 = vunpack.c.l.b16 %v2062
    %v2320 = vunpack.c.h.b16 %v2062
    %v2321 = vunpack.c.l.b16 %v2063
    %v2322 = vunpack.c.h.b16 %v2063
    %v2323 = vunpack.c.l.b16 %v2064
    %v2324 = vunpack.c.h.b16 %v2064
    %v2325 = vunpack.c.l.b16 %v2065
    %v2326 = vunpack.c.h.b16 %v2065
    %v2327 = vunpack.c.l.b16 %v2066
    %v2328 = vunpack.c.h.b16 %v2066
    %v2329 = vunpack.c.l.b16 %v2067
    %v2330 = vunpack.c.h.b16 %v2067
    %v2331 = vunpack.c.l.b16 %v2068
    %v2332 = vunpack.c.h.b16 %v2068
    %v2333 = vunpack.c.l.b16 %v2069
    %v2334 = vunpack.c.h.b16 %v2069
    %v2335 = vunpack.c.l.b16 %v2070
    %v2336 = vunpack.c.h.b16 %v2070
    %v2337 = vunpack.c.l.b16 %v2071
    %v2338 = vunpack.c.h.b16 %v2071
    %v2339 = vunpack.c.l.b16 %v2072
    %v2340 = vunpack.c.h.b16 %v2072
    %v2341 = vunpack.c.l.b16 %v2073
    %v2342 = vunpack.c.h.b16 %v2073
    %v2343 = vunpack.c.l.b16 %v2074
    %v2344 = vunpack.c.h.b16 %v2074
    %v2345 = vunpack.c.l.b16 %v2075
    %v2346 = vunpack.c.h.b16 %v2075
    %v2347 = vunpack.c.l.b16 %v2076
    %v2348 = vunpack.c.h.b16 %v2076
    %v2349 = vunpack.c.l.b16 %v2077
    %v2350 = vunpack.c.h.b16 %v2077
    %v2351 = vunpack.c.l.b16 %v2078
    %v2352 = vunpack.c.h.b16 %v2078
    %v2353 = vunpack.c.l.b16 %v2079
    %v2354 = vunpack.c.h.b16 %v2079
    %v2355 = vunpack.c.l.b16 %v2080
    %v2356 = vunpack.c.h.b16 %v2080
    %v2357 = vunpack.c.l.b16 %v2081
    %v2358 = vunpack.c.h.b16 %v2081
    %v2359 = vunpack.c.l.b16 %v2082
    %v2360 = vunpack.c.h.b16 %v2082
    %v2361 = vunpack.c.l.b16 %v2083
    %v2362 = vunpack.c.h.b16 %v2083
    %v2363 = vunpack.c.l.b16 %v2084
    %v2364 = vunpack.c.h.b16 %v2084
    %v2365 = vunpack.c.l.b16 %v2085
    %v2366 = vunpack.c.h.b16 %v2085
    %v2367 = vunpack.c.l.b16 %v2086
    %v2368 = vunpack.c.h.b16 %v2086
    %v2369 = vunpack.c.l.b16 %v2087
    %v2370 = vunpack.c.h.b16 %v2087
    %v2371 = vunpack.c.l.b16 %v2088
    %v2372 = vunpack.c.h.b16 %v2088
    %v2373 = vunpack.c.l.b16 %v2089
    %v2374 = vunpack.c.h.b16 %v2089
    %v2375 = vunpack.c.l.b16 %v2090
    %v2376 = vunpack.c.h.b16 %v2090
    %v2377 = vunpack.c.l.b16 %v2091
    %v2378 = vunpack.c.h.b16 %v2091
    %v2379 = vunpack.c.l.b16 %v2092
    %v2380 = vunpack.c.h.b16 %v2092
    %v2381 = vpack.c.b16 %v2195, %v2189
    %v2382 = vpack.c.b16 %v2196, %v2190
    %v2383 = vpack.c.b16 %v2197, %v2191
    %v2384 = vpack.c.b16 %v2198, %v2192
    %v2385 = vpack.c.b16 %v2199, %v2193
    %v2386 = vpack.c.b16 %v2200, %v2194
    %v2387 = vpack.c.b16 %v2207, %v2201
    %v2388 = vpack.c.b16 %v2208, %v2202
    %v2389 = vpack.c.b16 %v2209, %v2203
    %v2390 = vpack.c.b16 %v2210, %v2204
    %v2391 = vpack.c.b16 %v2211, %v2205
    %v2392 = vpack.c.b16 %v2212, %v2206
    %v2393 = vpack.c.b16 %v2219, %v2213
    %v2394 = vpack.c.b16 %v2220, %v2214
    %v2395 = vpack.c.b16 %v2221, %v2215
    %v2396 = vpack.c.b16 %v2222, %v2216
    %v2397 = vpack.c.b16 %v2223, %v2217
    %v2398 = vpack.c.b16 %v2224, %v2218
    %v2399 = vpack.c.b16 %v2231, %v2225
    %v2400 = vpack.c.b16 %v2232, %v2226
    %v2401 = vpack.c.b16 %v2233, %v2227
    %v2402 = vpack.c.b16 %v2234, %v2228
    %v2403 = vpack.c.b16 %v2235, %v2229
    %v2404 = vpack.c.b16 %v2236, %v2230
    %v2405 = vpack.c.b16 %v2243, %v2237
    %v2406 = vpack.c.b16 %v2244, %v2238
    %v2407 = vpack.c.b16 %v2245, %v2239
    %v2408 = vpack.c.b16 %v2246, %v2240
    %v2409 = vpack.c.b16 %v2247, %v2241
    %v2410 = vpack.c.b16 %v2248, %v2242
    %v2411 = vpack.c.b16 %v2255, %v2249
    %v2412 = vpack.c.b16 %v2256, %v2250
    %v2413 = vpack.c.b16 %v2257, %v2251
    %v2414 = vpack.c.b16 %v2258, %v2252
    %v2415 = vpack.c.b16 %v2259, %v2253
    %v2416 = vpack.c.b16 %v2260, %v2254
    %v2417 = vpack.c.b16 %v2267, %v2261
    %v2418 = vpack.c.b16 %v2268, %v2262
    %v2419 = vpack.c.b16 %v2269, %v2263
    %v2420 = vpack.c.b16 %v2270, %v2264
    %v2421 = vpack.c.b16 %v2271, %v2265
    %v2422 = vpack.c.b16 %v2272, %v2266
    %v2423 = vpack.c.b16 %v2279, %v2273
    %v2424 = vpack.c.b16 %v2280, %v2274
    %v2425 = vpack.c.b16 %v2281, %v2275
    %v2426 = vpack.c.b16 %v2282, %v2276
    %v2427 = vpack.c.b16 %v2283, %v2277
    %v2428 = vpack.c.b16 %v2284, %v2278
    %v2429 = vpack.c.b16 %v2291, %v2285
    %v2430 = vpack.c.b16 %v2292, %v2286
    %v2431 = vpack.c.b16 %v2293, %v2287
    %v2432 = vpack.c.b16 %v2294, %v2288
    %v2433 = vpack.c.b16 %v2295, %v2289
    %v2434 = vpack.c.b16 %v2296, %v2290
    %v2435 = vpack.c.b16 %v2303, %v2297
    %v2436 = vpack.c.b16 %v2304, %v2298
    %v2437 = vpack.c.b16 %v2305, %v2299
    %v2438 = vpack.c.b16 %v2306, %v2300
    %v2439 = vpack.c.b16 %v2307, %v2301
    %v2440 = vpack.c.b16 %v2308, %v2302
    %v2441 = vpack.c.b16 %v2315, %v2309
    %v2442 = vpack.c.b16 %v2316, %v2310
    %v2443 = vpack.c.b16 %v2317, %v2311
    %v2444 = vpack.c.b16 %v2318, %v2312
    %v2445 = vpack.c.b16 %v2319, %v2313
    %v2446 = vpack.c.b16 %v2320, %v2314
    %v2447 = vpack.c.b16 %v2327, %v2321
    %v2448 = vpack.c.b16 %v2328, %v2322
    %v2449 = vpack.c.b16 %v2329, %v2323
    %v2450 = vpack.c.b16 %v2330, %v2324
    %v2451 = vpack.c.b16 %v2331, %v2325
    %v2452 = vpack.c.b16 %v2332, %v2326
    %v2453 = vpack.c.b16 %v2339, %v2333
    %v2454 = vpack.c.b16 %v2340, %v2334
    %v2455 = vpack.c.b16 %v2341, %v2335
    %v2456 = vpack.c.b16 %v2342, %v2336
    %v2457 = vpack.c.b16 %v2343, %v2337
    %v2458 = vpack.c.b16 %v2344, %v2338
    %v2459 = vpack.c.b16 %v2351, %v2345
    %v2460 = vpack.c.b16 %v2352, %v2346
    %v2461 = vpack.c.b16 %v2353, %v2347
    %v2462 = vpack.c.b16 %v2354, %v2348
    %v2463 = vpack.c.b16 %v2355, %v2349
    %v2464 = vpack.c.b16 %v2356, %v2350
    %v2465 = vpack.c.b16 %v2363, %v2357
    %v2466 = vpack.c.b16 %v2364, %v2358
    %v2467 = vpack.c.b16 %v2365, %v2359
    %v2468 = vpack.c.b16 %v2366, %v2360
    %v2469 = vpack.c.b16 %v2367, %v2361
    %v2470 = vpack.c.b16 %v2368, %v2362
    %v2471 = vpack.c.b16 %v2375, %v2369
    %v2472 = vpack.c.b16 %v2376, %v2370
    %v2473 = vpack.c.b16 %v2377, %v2371
    %v2474 = vpack.c.b16 %v2378, %v2372
    %v2475 = vpack.c.b16 %v2379, %v2373
    %v2476 = vpack.c.b16 %v2380, %v2374
    %2573 = vmatprep.subr.bf16.mxu0 %v2382
    %2574 = vmatpush1.bf16.msra.mxu0 %v2381
    %2575 = vmatprep.subr.bf16.mxu0 %v2388
    %2576 = vmatpush1.bf16.msra.mxu0 %v2387
    %2577 = vmatprep.subr.bf16.mxu0 %v2394
    %2578 = vmatpush1.bf16.msra.mxu0 %v2393
    %2579 = vmatprep.subr.bf16.mxu0 %v2400
    %2580 = vmatpush1.bf16.msra.mxu0 %v2399
    %2581 = vmatprep.subr.bf16.mxu0 %v2406
    %2582 = vmatpush1.bf16.msra.mxu0 %v2405
    %2583 = vmatprep.subr.bf16.mxu0 %v2412
    %2584 = vmatpush1.bf16.msra.mxu0 %v2411
    %2585 = vmatprep.subr.bf16.mxu0 %v2418
    %2586 = vmatpush1.bf16.msra.mxu0 %v2417
    %2587 = vmatprep.subr.bf16.mxu0 %v2424
    %2588 = vmatpush1.bf16.msra.mxu0 %v2423
    %2589 = vmatprep.subr.bf16.mxu0 %v2430
    %2590 = vmatpush1.bf16.msra.mxu0 %v2429
    %2591 = vmatprep.subr.bf16.mxu0 %v2436
    %2592 = vmatpush1.bf16.msra.mxu0 %v2435
    %2593 = vmatprep.subr.bf16.mxu0 %v2442
    %2594 = vmatpush1.bf16.msra.mxu0 %v2441
    %2595 = vmatprep.subr.bf16.mxu0 %v2448
    %2596 = vmatpush1.bf16.msra.mxu0 %v2447
    %2597 = vmatprep.subr.bf16.mxu0 %v2454
    %2598 = vmatpush1.bf16.msra.mxu0 %v2453
    %2599 = vmatprep.subr.bf16.mxu0 %v2460
    %2600 = vmatpush1.bf16.msra.mxu0 %v2459
    %2601 = vmatprep.subr.bf16.mxu0 %v2466
    %2602 = vmatpush1.bf16.msra.mxu0 %v2465
    %2603 = vmatprep.subr.bf16.mxu0 %v2472
    %2604 = vmatpush1.bf16.msra.mxu0 %v2471
    %2605 = vmatprep.mubr.bf16.mxu0 %v1982
    %2606 = vmatmul.mubr.bf16.gmra.mrb[0].mxu0 %v1981
    %v2607 = vpop.f32.mrb[0].mxu0
    %v2608 = vadd.f32 0.0, %v2607
    %v2609 = vpop.f32.mrb[0].mxu0
    %v2610 = vadd.f32 0.0, %v2609
    %v2611 = vpop.f32.mrb[0].mxu0
    %v2612 = vadd.f32 0.0, %v2611
    %v2613 = vpop.f32.mrb[0].mxu0
    %v2614 = vadd.f32 0.0, %v2613
    %2615 = vdwg.mxu0
    %2616 = vmatprep.subr.bf16.mxu0 %v2384
    %2617 = vmatpush1.bf16.msra.mxu0 %v2383
    %2618 = vmatprep.subr.bf16.mxu0 %v2390
    %2619 = vmatpush1.bf16.msra.mxu0 %v2389
    %2620 = vmatprep.subr.bf16.mxu0 %v2396
    %2621 = vmatpush1.bf16.msra.mxu0 %v2395
    %2622 = vmatprep.subr.bf16.mxu0 %v2402
    %2623 = vmatpush1.bf16.msra.mxu0 %v2401
    %2624 = vmatprep.subr.bf16.mxu0 %v2408
    %2625 = vmatpush1.bf16.msra.mxu0 %v2407
    %2626 = vmatprep.subr.bf16.mxu0 %v2414
    %2627 = vmatpush1.bf16.msra.mxu0 %v2413
    %2628 = vmatprep.subr.bf16.mxu0 %v2420
    %2629 = vmatpush1.bf16.msra.mxu0 %v2419
    %2630 = vmatprep.subr.bf16.mxu0 %v2426
    %2631 = vmatpush1.bf16.msra.mxu0 %v2425
    %2632 = vmatprep.subr.bf16.mxu0 %v2432
    %2633 = vmatpush1.bf16.msra.mxu0 %v2431
    %2634 = vmatprep.subr.bf16.mxu0 %v2438
    %2635 = vmatpush1.bf16.msra.mxu0 %v2437
    %2636 = vmatprep.subr.bf16.mxu0 %v2444
    %2637 = vmatpush1.bf16.msra.mxu0 %v2443
    %2638 = vmatprep.subr.bf16.mxu0 %v2450
    %2639 = vmatpush1.bf16.msra.mxu0 %v2449
    %2640 = vmatprep.subr.bf16.mxu0 %v2456
    %2641 = vmatpush1.bf16.msra.mxu0 %v2455
    %2642 = vmatprep.subr.bf16.mxu0 %v2462
    %2643 = vmatpush1.bf16.msra.mxu0 %v2461
    %2644 = vmatprep.subr.bf16.mxu0 %v2468
    %2645 = vmatpush1.bf16.msra.mxu0 %v2467
    %2646 = vmatprep.subr.bf16.mxu0 %v2474
    %2647 = vmatpush1.bf16.msra.mxu0 %v2473
    %2648 = vmatprep.mubr.bf16.mxu0 %v1982
    %2649 = vmatmul.mubr.bf16.gmra.mrb[0].mxu0 %v1981
    %v2650 = vpop.f32.mrb[0].mxu0
    %v2651 = vadd.f32 0.0, %v2650
    %v2652 = vpop.f32.mrb[0].mxu0
    %v2653 = vadd.f32 0.0, %v2652
    %v2654 = vpop.f32.mrb[0].mxu0
    %v2655 = vadd.f32 0.0, %v2654
    %v2656 = vpop.f32.mrb[0].mxu0
    %v2657 = vadd.f32 0.0, %v2656
    %2658 = vdwg.mxu0
    %2659 = vmatprep.subr.bf16.mxu0 %v2386
    %2660 = vmatpush1.bf16.msra.mxu0 %v2385
    %2661 = vmatprep.subr.bf16.mxu0 %v2392
    %2662 = vmatpush1.bf16.msra.mxu0 %v2391
    %2663 = vmatprep.subr.bf16.mxu0 %v2398
    %2664 = vmatpush1.bf16.msra.mxu0 %v2397
    %2665 = vmatprep.subr.bf16.mxu0 %v2404
    %2666 = vmatpush1.bf16.msra.mxu0 %v2403
    %2667 = vmatprep.subr.bf16.mxu0 %v2410
    %2668 = vmatpush1.bf16.msra.mxu0 %v2409
    %2669 = vmatprep.subr.bf16.mxu0 %v2416
    %2670 = vmatpush1.bf16.msra.mxu0 %v2415
    %2671 = vmatprep.subr.bf16.mxu0 %v2422
    %2672 = vmatpush1.bf16.msra.mxu0 %v2421
    %2673 = vmatprep.subr.bf16.mxu0 %v2428
    %2674 = vmatpush1.bf16.msra.mxu0 %v2427
    %2675 = vmatprep.subr.bf16.mxu0 %v2434
    %2676 = vmatpush1.bf16.msra.mxu0 %v2433
    %2677 = vmatprep.subr.bf16.mxu0 %v2440
    %2678 = vmatpush1.bf16.msra.mxu0 %v2439
    %2679 = vmatprep.subr.bf16.mxu0 %v2446
    %2680 = vmatpush1.bf16.msra.mxu0 %v2445
    %2681 = vmatprep.subr.bf16.mxu0 %v2452
    %2682 = vmatpush1.bf16.msra.mxu0 %v2451
    %2683 = vmatprep.subr.bf16.mxu0 %v2458
    %2684 = vmatpush1.bf16.msra.mxu0 %v2457
    %2685 = vmatprep.subr.bf16.mxu0 %v2464
    %2686 = vmatpush1.bf16.msra.mxu0 %v2463
    %2687 = vmatprep.subr.bf16.mxu0 %v2470
    %2688 = vmatpush1.bf16.msra.mxu0 %v2469
    %2689 = vmatprep.subr.bf16.mxu0 %v2476
    %2690 = vmatpush1.bf16.msra.mxu0 %v2475
    %2691 = vmatprep.mubr.bf16.mxu0 %v1982
    %2692 = vmatmul.mubr.bf16.gmra.mrb[0].mxu0 %v1981
    %v2693 = vpop.f32.mrb[0].mxu0
    %v2694 = vadd.f32 0.0, %v2693
    %v2695 = vpop.f32.mrb[0].mxu0
    %v2696 = vadd.f32 0.0, %v2695
    %v2697 = vpop.f32.mrb[0].mxu0
    %v2698 = vadd.f32 0.0, %v2697
    %v2699 = vpop.f32.mrb[0].mxu0
    %v2700 = vadd.f32 0.0, %v2699
    %2701 = vdwg.mxu0
    %v2702 = vadd.f32 %v1985, %v2608
    %v2703 = vadd.f32 %v1986, %v2610
    %v2704 = vadd.f32 %v1991, %v2612
    %v2705 = vadd.f32 %v1992, %v2614
    %v2706 = vxor.u32 %v2702, 2147483648
    %v2707 = vxor.u32 %v2703, 2147483648
    %v2708 = vxor.u32 %v2704, 2147483648
    %v2709 = vxor.u32 %v2705, 2147483648
    %v2710 = vmul.f32 %v2706, 1.442695
    %v2711 = vpow.pop %v2710
    %v2712 = vmul.f32 %v2707, 1.442695
    %v2713 = vpow.pop %v2712
    %v2714 = vmul.f32 %v2708, 1.442695
    %v2715 = vpow.pop %v2714
    %v2716 = vmul.f32 %v2709, 1.442695
    %v2717 = vpow.pop %v2716
    %v2718 = vadd.f32 %v2711, 1.0
    %v2719 = vadd.f32 %v2713, 1.0
    %v2720 = vadd.f32 %v2715, 1.0
    %v2721 = vadd.f32 %v2717, 1.0
    %v2722 = vrcp.pop %v2718
    %v2723 = vmul.f32 1.0, %v2722
    %v2724 = vrcp.pop %v2719
    %v2725 = vmul.f32 1.0, %v2724
    %v2726 = vrcp.pop %v2720
    %v2727 = vmul.f32 1.0, %v2726
    %v2728 = vrcp.pop %v2721
    %v2729 = vmul.f32 1.0, %v2728
    %v2730 = vadd.f32 %v1987, %v2651
    %v2731 = vadd.f32 %v1988, %v2653
    %v2732 = vadd.f32 %v1993, %v2655
    %v2733 = vadd.f32 %v1994, %v2657
    %v2734 = vxor.u32 %v2730, 2147483648
    %v2735 = vxor.u32 %v2731, 2147483648
    %v2736 = vxor.u32 %v2732, 2147483648
    %v2737 = vxor.u32 %v2733, 2147483648
    %v2738 = vmul.f32 %v2734, 1.442695
    %v2739 = vpow.pop %v2738
    %v2740 = vmul.f32 %v2735, 1.442695
    %v2741 = vpow.pop %v2740
    %v2742 = vmul.f32 %v2736, 1.442695
    %v2743 = vpow.pop %v2742
    %v2744 = vmul.f32 %v2737, 1.442695
    %v2745 = vpow.pop %v2744
    %v2746 = vadd.f32 %v2739, 1.0
    %v2747 = vadd.f32 %v2741, 1.0
    %v2748 = vadd.f32 %v2743, 1.0
    %v2749 = vadd.f32 %v2745, 1.0
    %v2750 = vrcp.pop %v2746
    %v2751 = vmul.f32 1.0, %v2750
    %v2752 = vrcp.pop %v2747
    %v2753 = vmul.f32 1.0, %v2752
    %v2754 = vrcp.pop %v2748
    %v2755 = vmul.f32 1.0, %v2754
    %v2756 = vrcp.pop %v2749
    %v2757 = vmul.f32 1.0, %v2756
    %v2758 = vadd.f32 %v2694, %v1169
    %v2759 = vadd.f32 %v2696, %v1173
    %v2760 = vadd.f32 %v2698, %v1169
    %v2761 = vadd.f32 %v2700, %v1173
    %v2762 = vmul.f32 %v2723, %v2758
    %v2763 = vmul.f32 %v2725, %v2759
    %v2764 = vmul.f32 %v2727, %v2760
    %v2765 = vmul.f32 %v2729, %v2761
    %v2766 = vadd.f32 %v1989, %v2762
    %v2767 = vadd.f32 %v1990, %v2763
    %v2768 = vadd.f32 %v1995, %v2764
    %v2769 = vadd.f32 %v1996, %v2765
    %v2770 = vtanh.pop %v2766
    %v2771 = vtanh.pop %v2767
    %v2772 = vtanh.pop %v2768
    %v2773 = vtanh.pop %v2769
    %v2774 = vsub.f32 1.0, %v2751
    %v2775 = vsub.f32 1.0, %v2753
    %v2776 = vsub.f32 1.0, %v2755
    %v2777 = vsub.f32 1.0, %v2757
    %v2778 = vmul.f32 %v2774, %v2770
    %v2779 = vmul.f32 %v2775, %v2771
    %v2780 = vmul.f32 %v2776, %v2772
    %v2781 = vmul.f32 %v2777, %v2773
    %v2782 = vmul.f32 %v2751, %v1977
    %v2783 = vmul.f32 %v2753, %v1978
    %v2784 = vmul.f32 %v2755, %v1979
    %v2785 = vmul.f32 %v2757, %v1980
    %v2786 = vadd.f32 %v2778, %v2782
    %v2787 = vadd.f32 %v2779, %v2783
    %v2788 = vadd.f32 %v2780, %v2784
    %v2789 = vadd.f32 %v2781, %v2785
    %v2790 = vpack.c.bf16 %v2788, %v2786
    %v2791 = vpack.c.bf16 %v2789, %v2787
    %2792 = vst [vmem:[#allocation3 + $0x10] sm:$0xff] %v2790
    %2793 = vst [vmem:[#allocation3 + $0x18] sm:$0xff] %v2791
    %v2794 = vld [vmem:[#allocation2 + $0xc0] sm:$0xff]
    %v2795 = vld [vmem:[#allocation2 + $0xc8] sm:$0xff]
    %v2796 = vld [vmem:[#allocation2 + $0xd0] sm:$0xff]
    %v2797 = vld [vmem:[#allocation2 + $0xd8] sm:$0xff]
    %v2798 = vld [vmem:[#allocation2 + $0xe0] sm:$0xff]
    %v2799 = vld [vmem:[#allocation2 + $0xe8] sm:$0xff]
    %v2800 = vld [vmem:[#allocation2 + $0xf0] sm:$0xff]
    %v2801 = vld [vmem:[#allocation2 + $0xf8] sm:$0xff]
    %v2802 = vld [vmem:[#allocation2 + $0x100] sm:$0xff]
    %v2803 = vld [vmem:[#allocation2 + $0x108] sm:$0xff]
    %v2804 = vld [vmem:[#allocation2 + $0x110] sm:$0xff]
    %v2805 = vld [vmem:[#allocation2 + $0x118] sm:$0xff]
    %v2806 = vld [vmem:[#allocation7] sm:$0xff]
    %v2807 = vld [vmem:[#allocation7 + $0x8] sm:$0xff]
    %v2808 = vld [vmem:[#allocation7 + $0x10] sm:$0xff]
    %v2809 = vld [vmem:[#allocation7 + $0x18] sm:$0xff]
    %v2810 = vld [vmem:[#allocation7 + $0x20] sm:$0xff]
    %v2811 = vld [vmem:[#allocation7 + $0x28] sm:$0xff]
    %v2812 = vld [vmem:[#allocation7 + $0x30] sm:$0xff]
    %v2813 = vld [vmem:[#allocation7 + $0x38] sm:$0xff]
    %v2814 = vld [vmem:[#allocation7 + $0x40] sm:$0xff]
    %v2815 = vld [vmem:[#allocation7 + $0x48] sm:$0xff]
    %v2816 = vld [vmem:[#allocation7 + $0x50] sm:$0xff]
    %v2817 = vld [vmem:[#allocation7 + $0x58] sm:$0xff]
    %v2818 = vld [vmem:[#allocation7 + $0x60] sm:$0xff]
    %v2819 = vld [vmem:[#allocation7 + $0x68] sm:$0xff]
    %v2820 = vld [vmem:[#allocation7 + $0x70] sm:$0xff]
    %v2821 = vld [vmem:[#allocation7 + $0x78] sm:$0xff]
    %v2822 = vld [vmem:[#allocation7 + $0x80] sm:$0xff]
    %v2823 = vld [vmem:[#allocation7 + $0x88] sm:$0xff]
    %v2824 = vld [vmem:[#allocation7 + $0x90] sm:$0xff]
    %v2825 = vld [vmem:[#allocation7 + $0x98] sm:$0xff]
    %v2826 = vld [vmem:[#allocation7 + $0xa0] sm:$0xff]
    %v2827 = vld [vmem:[#allocation7 + $0xa8] sm:$0xff]
    %v2828 = vld [vmem:[#allocation7 + $0xb0] sm:$0xff]
    %v2829 = vld [vmem:[#allocation7 + $0xb8] sm:$0xff]
    %v2830 = vld [vmem:[#allocation7 + $0xc0] sm:$0xff]
    %v2831 = vld [vmem:[#allocation7 + $0xc8] sm:$0xff]
    %v2832 = vld [vmem:[#allocation7 + $0xd0] sm:$0xff]
    %v2833 = vld [vmem:[#allocation7 + $0xd8] sm:$0xff]
    %v2834 = vld [vmem:[#allocation7 + $0xe0] sm:$0xff]
    %v2835 = vld [vmem:[#allocation7 + $0xe8] sm:$0xff]
    %v2836 = vld [vmem:[#allocation7 + $0xf0] sm:$0xff]
    %v2837 = vld [vmem:[#allocation7 + $0xf8] sm:$0xff]
    %v2838 = vld [vmem:[#allocation7 + $0x100] sm:$0xff]
    %v2839 = vld [vmem:[#allocation7 + $0x108] sm:$0xff]
    %v2840 = vld [vmem:[#allocation7 + $0x110] sm:$0xff]
    %v2841 = vld [vmem:[#allocation7 + $0x118] sm:$0xff]
    %v2842 = vld [vmem:[#allocation7 + $0x120] sm:$0xff]
    %v2843 = vld [vmem:[#allocation7 + $0x128] sm:$0xff]
    %v2844 = vld [vmem:[#allocation7 + $0x130] sm:$0xff]
    %v2845 = vld [vmem:[#allocation7 + $0x138] sm:$0xff]
    %v2846 = vld [vmem:[#allocation7 + $0x140] sm:$0xff]
    %v2847 = vld [vmem:[#allocation7 + $0x148] sm:$0xff]
    %v2848 = vld [vmem:[#allocation7 + $0x150] sm:$0xff]
    %v2849 = vld [vmem:[#allocation7 + $0x158] sm:$0xff]
    %v2850 = vld [vmem:[#allocation7 + $0x160] sm:$0xff]
    %v2851 = vld [vmem:[#allocation7 + $0x168] sm:$0xff]
    %v2852 = vld [vmem:[#allocation7 + $0x170] sm:$0xff]
    %v2853 = vld [vmem:[#allocation7 + $0x178] sm:$0xff]
    %v2854 = vld [vmem:[#allocation7 + $0x180] sm:$0xff]
    %v2855 = vld [vmem:[#allocation7 + $0x188] sm:$0xff]
    %v2856 = vld [vmem:[#allocation7 + $0x190] sm:$0xff]
    %v2857 = vld [vmem:[#allocation7 + $0x198] sm:$0xff]
    %v2858 = vld [vmem:[#allocation7 + $0x1a0] sm:$0xff]
    %v2859 = vld [vmem:[#allocation7 + $0x1a8] sm:$0xff]
    %v2860 = vld [vmem:[#allocation7 + $0x1b0] sm:$0xff]
    %v2861 = vld [vmem:[#allocation7 + $0x1b8] sm:$0xff]
    %v2862 = vld [vmem:[#allocation7 + $0x1c0] sm:$0xff]
    %v2863 = vld [vmem:[#allocation7 + $0x1c8] sm:$0xff]
    %v2864 = vld [vmem:[#allocation7 + $0x1d0] sm:$0xff]
    %v2865 = vld [vmem:[#allocation7 + $0x1d8] sm:$0xff]
    %v2866 = vld [vmem:[#allocation7 + $0x1e0] sm:$0xff]
    %v2867 = vld [vmem:[#allocation7 + $0x1e8] sm:$0xff]
    %v2868 = vld [vmem:[#allocation7 + $0x1f0] sm:$0xff]
    %v2869 = vld [vmem:[#allocation7 + $0x1f8] sm:$0xff]
    %v2870 = vld [vmem:[#allocation7 + $0x200] sm:$0xff]
    %v2871 = vld [vmem:[#allocation7 + $0x208] sm:$0xff]
    %v2872 = vld [vmem:[#allocation7 + $0x210] sm:$0xff]
    %v2873 = vld [vmem:[#allocation7 + $0x218] sm:$0xff]
    %v2874 = vld [vmem:[#allocation7 + $0x220] sm:$0xff]
    %v2875 = vld [vmem:[#allocation7 + $0x228] sm:$0xff]
    %v2876 = vld [vmem:[#allocation7 + $0x230] sm:$0xff]
    %v2877 = vld [vmem:[#allocation7 + $0x238] sm:$0xff]
    %v2878 = vld [vmem:[#allocation7 + $0x240] sm:$0xff]
    %v2879 = vld [vmem:[#allocation7 + $0x248] sm:$0xff]
    %v2880 = vld [vmem:[#allocation7 + $0x250] sm:$0xff]
    %v2881 = vld [vmem:[#allocation7 + $0x258] sm:$0xff]
    %v2882 = vld [vmem:[#allocation7 + $0x260] sm:$0xff]
    %v2883 = vld [vmem:[#allocation7 + $0x268] sm:$0xff]
    %v2884 = vld [vmem:[#allocation7 + $0x270] sm:$0xff]
    %v2885 = vld [vmem:[#allocation7 + $0x278] sm:$0xff]
    %v2886 = vld [vmem:[#allocation7 + $0x280] sm:$0xff]
    %v2887 = vld [vmem:[#allocation7 + $0x288] sm:$0xff]
    %v2888 = vld [vmem:[#allocation7 + $0x290] sm:$0xff]
    %v2889 = vld [vmem:[#allocation7 + $0x298] sm:$0xff]
    %v2890 = vld [vmem:[#allocation7 + $0x2a0] sm:$0xff]
    %v2891 = vld [vmem:[#allocation7 + $0x2a8] sm:$0xff]
    %v2892 = vld [vmem:[#allocation7 + $0x2b0] sm:$0xff]
    %v2893 = vld [vmem:[#allocation7 + $0x2b8] sm:$0xff]
    %v2894 = vld [vmem:[#allocation7 + $0x2c0] sm:$0xff]
    %v2895 = vld [vmem:[#allocation7 + $0x2c8] sm:$0xff]
    %v2896 = vld [vmem:[#allocation7 + $0x2d0] sm:$0xff]
    %v2897 = vld [vmem:[#allocation7 + $0x2d8] sm:$0xff]
    %v2898 = vld [vmem:[#allocation7 + $0x2e0] sm:$0xff]
    %v2899 = vld [vmem:[#allocation7 + $0x2e8] sm:$0xff]
    %v2900 = vld [vmem:[#allocation7 + $0x2f0] sm:$0xff]
    %v2901 = vld [vmem:[#allocation7 + $0x2f8] sm:$0xff]
    %v2998 = vunpack.c.l.b16 %v2806
    %v2999 = vunpack.c.h.b16 %v2806
    %v3000 = vunpack.c.l.b16 %v2807
    %v3001 = vunpack.c.h.b16 %v2807
    %v3002 = vunpack.c.l.b16 %v2808
    %v3003 = vunpack.c.h.b16 %v2808
    %v3004 = vunpack.c.l.b16 %v2809
    %v3005 = vunpack.c.h.b16 %v2809
    %v3006 = vunpack.c.l.b16 %v2810
    %v3007 = vunpack.c.h.b16 %v2810
    %v3008 = vunpack.c.l.b16 %v2811
    %v3009 = vunpack.c.h.b16 %v2811
    %v3010 = vunpack.c.l.b16 %v2812
    %v3011 = vunpack.c.h.b16 %v2812
    %v3012 = vunpack.c.l.b16 %v2813
    %v3013 = vunpack.c.h.b16 %v2813
    %v3014 = vunpack.c.l.b16 %v2814
    %v3015 = vunpack.c.h.b16 %v2814
    %v3016 = vunpack.c.l.b16 %v2815
    %v3017 = vunpack.c.h.b16 %v2815
    %v3018 = vunpack.c.l.b16 %v2816
    %v3019 = vunpack.c.h.b16 %v2816
    %v3020 = vunpack.c.l.b16 %v2817
    %v3021 = vunpack.c.h.b16 %v2817
    %v3022 = vunpack.c.l.b16 %v2818
    %v3023 = vunpack.c.h.b16 %v2818
    %v3024 = vunpack.c.l.b16 %v2819
    %v3025 = vunpack.c.h.b16 %v2819
    %v3026 = vunpack.c.l.b16 %v2820
    %v3027 = vunpack.c.h.b16 %v2820
    %v3028 = vunpack.c.l.b16 %v2821
    %v3029 = vunpack.c.h.b16 %v2821
    %v3030 = vunpack.c.l.b16 %v2822
    %v3031 = vunpack.c.h.b16 %v2822
    %v3032 = vunpack.c.l.b16 %v2823
    %v3033 = vunpack.c.h.b16 %v2823
    %v3034 = vunpack.c.l.b16 %v2824
    %v3035 = vunpack.c.h.b16 %v2824
    %v3036 = vunpack.c.l.b16 %v2825
    %v3037 = vunpack.c.h.b16 %v2825
    %v3038 = vunpack.c.l.b16 %v2826
    %v3039 = vunpack.c.h.b16 %v2826
    %v3040 = vunpack.c.l.b16 %v2827
    %v3041 = vunpack.c.h.b16 %v2827
    %v3042 = vunpack.c.l.b16 %v2828
    %v3043 = vunpack.c.h.b16 %v2828
    %v3044 = vunpack.c.l.b16 %v2829
    %v3045 = vunpack.c.h.b16 %v2829
    %v3046 = vunpack.c.l.b16 %v2830
    %v3047 = vunpack.c.h.b16 %v2830
    %v3048 = vunpack.c.l.b16 %v2831
    %v3049 = vunpack.c.h.b16 %v2831
    %v3050 = vunpack.c.l.b16 %v2832
    %v3051 = vunpack.c.h.b16 %v2832
    %v3052 = vunpack.c.l.b16 %v2833
    %v3053 = vunpack.c.h.b16 %v2833
    %v3054 = vunpack.c.l.b16 %v2834
    %v3055 = vunpack.c.h.b16 %v2834
    %v3056 = vunpack.c.l.b16 %v2835
    %v3057 = vunpack.c.h.b16 %v2835
    %v3058 = vunpack.c.l.b16 %v2836
    %v3059 = vunpack.c.h.b16 %v2836
    %v3060 = vunpack.c.l.b16 %v2837
    %v3061 = vunpack.c.h.b16 %v2837
    %v3062 = vunpack.c.l.b16 %v2838
    %v3063 = vunpack.c.h.b16 %v2838
    %v3064 = vunpack.c.l.b16 %v2839
    %v3065 = vunpack.c.h.b16 %v2839
    %v3066 = vunpack.c.l.b16 %v2840
    %v3067 = vunpack.c.h.b16 %v2840
    %v3068 = vunpack.c.l.b16 %v2841
    %v3069 = vunpack.c.h.b16 %v2841
    %v3070 = vunpack.c.l.b16 %v2842
    %v3071 = vunpack.c.h.b16 %v2842
    %v3072 = vunpack.c.l.b16 %v2843
    %v3073 = vunpack.c.h.b16 %v2843
    %v3074 = vunpack.c.l.b16 %v2844
    %v3075 = vunpack.c.h.b16 %v2844
    %v3076 = vunpack.c.l.b16 %v2845
    %v3077 = vunpack.c.h.b16 %v2845
    %v3078 = vunpack.c.l.b16 %v2846
    %v3079 = vunpack.c.h.b16 %v2846
    %v3080 = vunpack.c.l.b16 %v2847
    %v3081 = vunpack.c.h.b16 %v2847
    %v3082 = vunpack.c.l.b16 %v2848
    %v3083 = vunpack.c.h.b16 %v2848
    %v3084 = vunpack.c.l.b16 %v2849
    %v3085 = vunpack.c.h.b16 %v2849
    %v3086 = vunpack.c.l.b16 %v2850
    %v3087 = vunpack.c.h.b16 %v2850
    %v3088 = vunpack.c.l.b16 %v2851
    %v3089 = vunpack.c.h.b16 %v2851
    %v3090 = vunpack.c.l.b16 %v2852
    %v3091 = vunpack.c.h.b16 %v2852
    %v3092 = vunpack.c.l.b16 %v2853
    %v3093 = vunpack.c.h.b16 %v2853
    %v3094 = vunpack.c.l.b16 %v2854
    %v3095 = vunpack.c.h.b16 %v2854
    %v3096 = vunpack.c.l.b16 %v2855
    %v3097 = vunpack.c.h.b16 %v2855
    %v3098 = vunpack.c.l.b16 %v2856
    %v3099 = vunpack.c.h.b16 %v2856
    %v3100 = vunpack.c.l.b16 %v2857
    %v3101 = vunpack.c.h.b16 %v2857
    %v3102 = vunpack.c.l.b16 %v2858
    %v3103 = vunpack.c.h.b16 %v2858
    %v3104 = vunpack.c.l.b16 %v2859
    %v3105 = vunpack.c.h.b16 %v2859
    %v3106 = vunpack.c.l.b16 %v2860
    %v3107 = vunpack.c.h.b16 %v2860
    %v3108 = vunpack.c.l.b16 %v2861
    %v3109 = vunpack.c.h.b16 %v2861
    %v3110 = vunpack.c.l.b16 %v2862
    %v3111 = vunpack.c.h.b16 %v2862
    %v3112 = vunpack.c.l.b16 %v2863
    %v3113 = vunpack.c.h.b16 %v2863
    %v3114 = vunpack.c.l.b16 %v2864
    %v3115 = vunpack.c.h.b16 %v2864
    %v3116 = vunpack.c.l.b16 %v2865
    %v3117 = vunpack.c.h.b16 %v2865
    %v3118 = vunpack.c.l.b16 %v2866
    %v3119 = vunpack.c.h.b16 %v2866
    %v3120 = vunpack.c.l.b16 %v2867
    %v3121 = vunpack.c.h.b16 %v2867
    %v3122 = vunpack.c.l.b16 %v2868
    %v3123 = vunpack.c.h.b16 %v2868
    %v3124 = vunpack.c.l.b16 %v2869
    %v3125 = vunpack.c.h.b16 %v2869
    %v3126 = vunpack.c.l.b16 %v2870
    %v3127 = vunpack.c.h.b16 %v2870
    %v3128 = vunpack.c.l.b16 %v2871
    %v3129 = vunpack.c.h.b16 %v2871
    %v3130 = vunpack.c.l.b16 %v2872
    %v3131 = vunpack.c.h.b16 %v2872
    %v3132 = vunpack.c.l.b16 %v2873
    %v3133 = vunpack.c.h.b16 %v2873
    %v3134 = vunpack.c.l.b16 %v2874
    %v3135 = vunpack.c.h.b16 %v2874
    %v3136 = vunpack.c.l.b16 %v2875
    %v3137 = vunpack.c.h.b16 %v2875
    %v3138 = vunpack.c.l.b16 %v2876
    %v3139 = vunpack.c.h.b16 %v2876
    %v3140 = vunpack.c.l.b16 %v2877
    %v3141 = vunpack.c.h.b16 %v2877
    %v3142 = vunpack.c.l.b16 %v2878
    %v3143 = vunpack.c.h.b16 %v2878
    %v3144 = vunpack.c.l.b16 %v2879
    %v3145 = vunpack.c.h.b16 %v2879
    %v3146 = vunpack.c.l.b16 %v2880
    %v3147 = vunpack.c.h.b16 %v2880
    %v3148 = vunpack.c.l.b16 %v2881
    %v3149 = vunpack.c.h.b16 %v2881
    %v3150 = vunpack.c.l.b16 %v2882
    %v3151 = vunpack.c.h.b16 %v2882
    %v3152 = vunpack.c.l.b16 %v2883
    %v3153 = vunpack.c.h.b16 %v2883
    %v3154 = vunpack.c.l.b16 %v2884
    %v3155 = vunpack.c.h.b16 %v2884
    %v3156 = vunpack.c.l.b16 %v2885
    %v3157 = vunpack.c.h.b16 %v2885
    %v3158 = vunpack.c.l.b16 %v2886
    %v3159 = vunpack.c.h.b16 %v2886
    %v3160 = vunpack.c.l.b16 %v2887
    %v3161 = vunpack.c.h.b16 %v2887
    %v3162 = vunpack.c.l.b16 %v2888
    %v3163 = vunpack.c.h.b16 %v2888
    %v3164 = vunpack.c.l.b16 %v2889
    %v3165 = vunpack.c.h.b16 %v2889
    %v3166 = vunpack.c.l.b16 %v2890
    %v3167 = vunpack.c.h.b16 %v2890
    %v3168 = vunpack.c.l.b16 %v2891
    %v3169 = vunpack.c.h.b16 %v2891
    %v3170 = vunpack.c.l.b16 %v2892
    %v3171 = vunpack.c.h.b16 %v2892
    %v3172 = vunpack.c.l.b16 %v2893
    %v3173 = vunpack.c.h.b16 %v2893
    %v3174 = vunpack.c.l.b16 %v2894
    %v3175 = vunpack.c.h.b16 %v2894
    %v3176 = vunpack.c.l.b16 %v2895
    %v3177 = vunpack.c.h.b16 %v2895
    %v3178 = vunpack.c.l.b16 %v2896
    %v3179 = vunpack.c.h.b16 %v2896
    %v3180 = vunpack.c.l.b16 %v2897
    %v3181 = vunpack.c.h.b16 %v2897
    %v3182 = vunpack.c.l.b16 %v2898
    %v3183 = vunpack.c.h.b16 %v2898
    %v3184 = vunpack.c.l.b16 %v2899
    %v3185 = vunpack.c.h.b16 %v2899
    %v3186 = vunpack.c.l.b16 %v2900
    %v3187 = vunpack.c.h.b16 %v2900
    %v3188 = vunpack.c.l.b16 %v2901
    %v3189 = vunpack.c.h.b16 %v2901
    %v3190 = vpack.c.b16 %v3004, %v2998
    %v3191 = vpack.c.b16 %v3005, %v2999
    %v3192 = vpack.c.b16 %v3006, %v3000
    %v3193 = vpack.c.b16 %v3007, %v3001
    %v3194 = vpack.c.b16 %v3008, %v3002
    %v3195 = vpack.c.b16 %v3009, %v3003
    %v3196 = vpack.c.b16 %v3016, %v3010
    %v3197 = vpack.c.b16 %v3017, %v3011
    %v3198 = vpack.c.b16 %v3018, %v3012
    %v3199 = vpack.c.b16 %v3019, %v3013
    %v3200 = vpack.c.b16 %v3020, %v3014
    %v3201 = vpack.c.b16 %v3021, %v3015
    %v3202 = vpack.c.b16 %v3028, %v3022
    %v3203 = vpack.c.b16 %v3029, %v3023
    %v3204 = vpack.c.b16 %v3030, %v3024
    %v3205 = vpack.c.b16 %v3031, %v3025
    %v3206 = vpack.c.b16 %v3032, %v3026
    %v3207 = vpack.c.b16 %v3033, %v3027
    %v3208 = vpack.c.b16 %v3040, %v3034
    %v3209 = vpack.c.b16 %v3041, %v3035
    %v3210 = vpack.c.b16 %v3042, %v3036
    %v3211 = vpack.c.b16 %v3043, %v3037
    %v3212 = vpack.c.b16 %v3044, %v3038
    %v3213 = vpack.c.b16 %v3045, %v3039
    %v3214 = vpack.c.b16 %v3052, %v3046
    %v3215 = vpack.c.b16 %v3053, %v3047
    %v3216 = vpack.c.b16 %v3054, %v3048
    %v3217 = vpack.c.b16 %v3055, %v3049
    %v3218 = vpack.c.b16 %v3056, %v3050
    %v3219 = vpack.c.b16 %v3057, %v3051
    %v3220 = vpack.c.b16 %v3064, %v3058
    %v3221 = vpack.c.b16 %v3065, %v3059
    %v3222 = vpack.c.b16 %v3066, %v3060
    %v3223 = vpack.c.b16 %v3067, %v3061
    %v3224 = vpack.c.b16 %v3068, %v3062
    %v3225 = vpack.c.b16 %v3069, %v3063
    %v3226 = vpack.c.b16 %v3076, %v3070
    %v3227 = vpack.c.b16 %v3077, %v3071
    %v3228 = vpack.c.b16 %v3078, %v3072
    %v3229 = vpack.c.b16 %v3079, %v3073
    %v3230 = vpack.c.b16 %v3080, %v3074
    %v3231 = vpack.c.b16 %v3081, %v3075
    %v3232 = vpack.c.b16 %v3088, %v3082
    %v3233 = vpack.c.b16 %v3089, %v3083
    %v3234 = vpack.c.b16 %v3090, %v3084
    %v3235 = vpack.c.b16 %v3091, %v3085
    %v3236 = vpack.c.b16 %v3092, %v3086
    %v3237 = vpack.c.b16 %v3093, %v3087
    %v3238 = vpack.c.b16 %v3100, %v3094
    %v3239 = vpack.c.b16 %v3101, %v3095
    %v3240 = vpack.c.b16 %v3102, %v3096
    %v3241 = vpack.c.b16 %v3103, %v3097
    %v3242 = vpack.c.b16 %v3104, %v3098
    %v3243 = vpack.c.b16 %v3105, %v3099
    %v3244 = vpack.c.b16 %v3112, %v3106
    %v3245 = vpack.c.b16 %v3113, %v3107
    %v3246 = vpack.c.b16 %v3114, %v3108
    %v3247 = vpack.c.b16 %v3115, %v3109
    %v3248 = vpack.c.b16 %v3116, %v3110
    %v3249 = vpack.c.b16 %v3117, %v3111
    %v3250 = vpack.c.b16 %v3124, %v3118
    %v3251 = vpack.c.b16 %v3125, %v3119
    %v3252 = vpack.c.b16 %v3126, %v3120
    %v3253 = vpack.c.b16 %v3127, %v3121
    %v3254 = vpack.c.b16 %v3128, %v3122
    %v3255 = vpack.c.b16 %v3129, %v3123
    %v3256 = vpack.c.b16 %v3136, %v3130
    %v3257 = vpack.c.b16 %v3137, %v3131
    %v3258 = vpack.c.b16 %v3138, %v3132
    %v3259 = vpack.c.b16 %v3139, %v3133
    %v3260 = vpack.c.b16 %v3140, %v3134
    %v3261 = vpack.c.b16 %v3141, %v3135
    %v3262 = vpack.c.b16 %v3148, %v3142
    %v3263 = vpack.c.b16 %v3149, %v3143
    %v3264 = vpack.c.b16 %v3150, %v3144
    %v3265 = vpack.c.b16 %v3151, %v3145
    %v3266 = vpack.c.b16 %v3152, %v3146
    %v3267 = vpack.c.b16 %v3153, %v3147
    %v3268 = vpack.c.b16 %v3160, %v3154
    %v3269 = vpack.c.b16 %v3161, %v3155
    %v3270 = vpack.c.b16 %v3162, %v3156
    %v3271 = vpack.c.b16 %v3163, %v3157
    %v3272 = vpack.c.b16 %v3164, %v3158
    %v3273 = vpack.c.b16 %v3165, %v3159
    %v3274 = vpack.c.b16 %v3172, %v3166
    %v3275 = vpack.c.b16 %v3173, %v3167
    %v3276 = vpack.c.b16 %v3174, %v3168
    %v3277 = vpack.c.b16 %v3175, %v3169
    %v3278 = vpack.c.b16 %v3176, %v3170
    %v3279 = vpack.c.b16 %v3177, %v3171
    %v3280 = vpack.c.b16 %v3184, %v3178
    %v3281 = vpack.c.b16 %v3185, %v3179
    %v3282 = vpack.c.b16 %v3186, %v3180
    %v3283 = vpack.c.b16 %v3187, %v3181
    %v3284 = vpack.c.b16 %v3188, %v3182
    %v3285 = vpack.c.b16 %v3189, %v3183
    %3382 = vmatprep.subr.bf16.mxu0 %v3191
    %3383 = vmatpush1.bf16.msra.mxu0 %v3190
    %3384 = vmatprep.subr.bf16.mxu0 %v3197
    %3385 = vmatpush1.bf16.msra.mxu0 %v3196
    %3386 = vmatprep.subr.bf16.mxu0 %v3203
    %3387 = vmatpush1.bf16.msra.mxu0 %v3202
    %3388 = vmatprep.subr.bf16.mxu0 %v3209
    %3389 = vmatpush1.bf16.msra.mxu0 %v3208
    %3390 = vmatprep.subr.bf16.mxu0 %v3215
    %3391 = vmatpush1.bf16.msra.mxu0 %v3214
    %3392 = vmatprep.subr.bf16.mxu0 %v3221
    %3393 = vmatpush1.bf16.msra.mxu0 %v3220
    %3394 = vmatprep.subr.bf16.mxu0 %v3227
    %3395 = vmatpush1.bf16.msra.mxu0 %v3226
    %3396 = vmatprep.subr.bf16.mxu0 %v3233
    %3397 = vmatpush1.bf16.msra.mxu0 %v3232
    %3398 = vmatprep.subr.bf16.mxu0 %v3239
    %3399 = vmatpush1.bf16.msra.mxu0 %v3238
    %3400 = vmatprep.subr.bf16.mxu0 %v3245
    %3401 = vmatpush1.bf16.msra.mxu0 %v3244
    %3402 = vmatprep.subr.bf16.mxu0 %v3251
    %3403 = vmatpush1.bf16.msra.mxu0 %v3250
    %3404 = vmatprep.subr.bf16.mxu0 %v3257
    %3405 = vmatpush1.bf16.msra.mxu0 %v3256
    %3406 = vmatprep.subr.bf16.mxu0 %v3263
    %3407 = vmatpush1.bf16.msra.mxu0 %v3262
    %3408 = vmatprep.subr.bf16.mxu0 %v3269
    %3409 = vmatpush1.bf16.msra.mxu0 %v3268
    %3410 = vmatprep.subr.bf16.mxu0 %v3275
    %3411 = vmatpush1.bf16.msra.mxu0 %v3274
    %3412 = vmatprep.subr.bf16.mxu0 %v3281
    %3413 = vmatpush1.bf16.msra.mxu0 %v3280
    %3414 = vmatprep.mubr.bf16.mxu0 %v2791
    %3415 = vmatmul.mubr.bf16.gmra.mrb[0].mxu0 %v2790
    %v3416 = vpop.f32.mrb[0].mxu0
    %v3417 = vadd.f32 0.0, %v3416
    %v3418 = vpop.f32.mrb[0].mxu0
    %v3419 = vadd.f32 0.0, %v3418
    %v3420 = vpop.f32.mrb[0].mxu0
    %v3421 = vadd.f32 0.0, %v3420
    %v3422 = vpop.f32.mrb[0].mxu0
    %v3423 = vadd.f32 0.0, %v3422
    %3424 = vdwg.mxu0
    %3425 = vmatprep.subr.bf16.mxu0 %v3193
    %3426 = vmatpush1.bf16.msra.mxu0 %v3192
    %3427 = vmatprep.subr.bf16.mxu0 %v3199
    %3428 = vmatpush1.bf16.msra.mxu0 %v3198
    %3429 = vmatprep.subr.bf16.mxu0 %v3205
    %3430 = vmatpush1.bf16.msra.mxu0 %v3204
    %3431 = vmatprep.subr.bf16.mxu0 %v3211
    %3432 = vmatpush1.bf16.msra.mxu0 %v3210
    %3433 = vmatprep.subr.bf16.mxu0 %v3217
    %3434 = vmatpush1.bf16.msra.mxu0 %v3216
    %3435 = vmatprep.subr.bf16.mxu0 %v3223
    %3436 = vmatpush1.bf16.msra.mxu0 %v3222
    %3437 = vmatprep.subr.bf16.mxu0 %v3229
    %3438 = vmatpush1.bf16.msra.mxu0 %v3228
    %3439 = vmatprep.subr.bf16.mxu0 %v3235
    %3440 = vmatpush1.bf16.msra.mxu0 %v3234
    %3441 = vmatprep.subr.bf16.mxu0 %v3241
    %3442 = vmatpush1.bf16.msra.mxu0 %v3240
    %3443 = vmatprep.subr.bf16.mxu0 %v3247
    %3444 = vmatpush1.bf16.msra.mxu0 %v3246
    %3445 = vmatprep.subr.bf16.mxu0 %v3253
    %3446 = vmatpush1.bf16.msra.mxu0 %v3252
    %3447 = vmatprep.subr.bf16.mxu0 %v3259
    %3448 = vmatpush1.bf16.msra.mxu0 %v3258
    %3449 = vmatprep.subr.bf16.mxu0 %v3265
    %3450 = vmatpush1.bf16.msra.mxu0 %v3264
    %3451 = vmatprep.subr.bf16.mxu0 %v3271
    %3452 = vmatpush1.bf16.msra.mxu0 %v3270
    %3453 = vmatprep.subr.bf16.mxu0 %v3277
    %3454 = vmatpush1.bf16.msra.mxu0 %v3276
    %3455 = vmatprep.subr.bf16.mxu0 %v3283
    %3456 = vmatpush1.bf16.msra.mxu0 %v3282
    %3457 = vmatprep.mubr.bf16.mxu0 %v2791
    %3458 = vmatmul.mubr.bf16.gmra.mrb[0].mxu0 %v2790
    %v3459 = vpop.f32.mrb[0].mxu0
    %v3460 = vadd.f32 0.0, %v3459
    %v3461 = vpop.f32.mrb[0].mxu0
    %v3462 = vadd.f32 0.0, %v3461
    %v3463 = vpop.f32.mrb[0].mxu0
    %v3464 = vadd.f32 0.0, %v3463
    %v3465 = vpop.f32.mrb[0].mxu0
    %v3466 = vadd.f32 0.0, %v3465
    %3467 = vdwg.mxu0
    %3468 = vmatprep.subr.bf16.mxu0 %v3195
    %3469 = vmatpush1.bf16.msra.mxu0 %v3194
    %3470 = vmatprep.subr.bf16.mxu0 %v3201
    %3471 = vmatpush1.bf16.msra.mxu0 %v3200
    %3472 = vmatprep.subr.bf16.mxu0 %v3207
    %3473 = vmatpush1.bf16.msra.mxu0 %v3206
    %3474 = vmatprep.subr.bf16.mxu0 %v3213
    %3475 = vmatpush1.bf16.msra.mxu0 %v3212
    %3476 = vmatprep.subr.bf16.mxu0 %v3219
    %3477 = vmatpush1.bf16.msra.mxu0 %v3218
    %3478 = vmatprep.subr.bf16.mxu0 %v3225
    %3479 = vmatpush1.bf16.msra.mxu0 %v3224
    %3480 = vmatprep.subr.bf16.mxu0 %v3231
    %3481 = vmatpush1.bf16.msra.mxu0 %v3230
    %3482 = vmatprep.subr.bf16.mxu0 %v3237
    %3483 = vmatpush1.bf16.msra.mxu0 %v3236
    %3484 = vmatprep.subr.bf16.mxu0 %v3243
    %3485 = vmatpush1.bf16.msra.mxu0 %v3242
    %3486 = vmatprep.subr.bf16.mxu0 %v3249
    %3487 = vmatpush1.bf16.msra.mxu0 %v3248
    %3488 = vmatprep.subr.bf16.mxu0 %v3255
    %3489 = vmatpush1.bf16.msra.mxu0 %v3254
    %3490 = vmatprep.subr.bf16.mxu0 %v3261
    %3491 = vmatpush1.bf16.msra.mxu0 %v3260
    %3492 = vmatprep.subr.bf16.mxu0 %v3267
    %3493 = vmatpush1.bf16.msra.mxu0 %v3266
    %3494 = vmatprep.subr.bf16.mxu0 %v3273
    %3495 = vmatpush1.bf16.msra.mxu0 %v3272
    %3496 = vmatprep.subr.bf16.mxu0 %v3279
    %3497 = vmatpush1.bf16.msra.mxu0 %v3278
    %3498 = vmatprep.subr.bf16.mxu0 %v3285
    %3499 = vmatpush1.bf16.msra.mxu0 %v3284
    %3500 = vmatprep.mubr.bf16.mxu0 %v2791
    %3501 = vmatmul.mubr.bf16.gmra.mrb[0].mxu0 %v2790
    %v3502 = vpop.f32.mrb[0].mxu0
    %v3503 = vadd.f32 0.0, %v3502
    %v3504 = vpop.f32.mrb[0].mxu0
    %v3505 = vadd.f32 0.0, %v3504
    %v3506 = vpop.f32.mrb[0].mxu0
    %v3507 = vadd.f32 0.0, %v3506
    %v3508 = vpop.f32.mrb[0].mxu0
    %v3509 = vadd.f32 0.0, %v3508
    %3510 = vdwg.mxu0
    %v3511 = vadd.f32 %v2794, %v3417
    %v3512 = vadd.f32 %v2795, %v3419
    %v3513 = vadd.f32 %v2800, %v3421
    %v3514 = vadd.f32 %v2801, %v3423
    %v3515 = vxor.u32 %v3511, 2147483648
    %v3516 = vxor.u32 %v3512, 2147483648
    %v3517 = vxor.u32 %v3513, 2147483648
    %v3518 = vxor.u32 %v3514, 2147483648
    %v3519 = vmul.f32 %v3515, 1.442695
    %v3520 = vpow.pop %v3519
    %v3521 = vmul.f32 %v3516, 1.442695
    %v3522 = vpow.pop %v3521
    %v3523 = vmul.f32 %v3517, 1.442695
    %v3524 = vpow.pop %v3523
    %v3525 = vmul.f32 %v3518, 1.442695
    %v3526 = vpow.pop %v3525
    %v3527 = vadd.f32 %v3520, 1.0
    %v3528 = vadd.f32 %v3522, 1.0
    %v3529 = vadd.f32 %v3524, 1.0
    %v3530 = vadd.f32 %v3526, 1.0
    %v3531 = vrcp.pop %v3527
    %v3532 = vmul.f32 1.0, %v3531
    %v3533 = vrcp.pop %v3528
    %v3534 = vmul.f32 1.0, %v3533
    %v3535 = vrcp.pop %v3529
    %v3536 = vmul.f32 1.0, %v3535
    %v3537 = vrcp.pop %v3530
    %v3538 = vmul.f32 1.0, %v3537
    %v3539 = vadd.f32 %v2796, %v3460
    %v3540 = vadd.f32 %v2797, %v3462
    %v3541 = vadd.f32 %v2802, %v3464
    %v3542 = vadd.f32 %v2803, %v3466
    %v3543 = vxor.u32 %v3539, 2147483648
    %v3544 = vxor.u32 %v3540, 2147483648
    %v3545 = vxor.u32 %v3541, 2147483648
    %v3546 = vxor.u32 %v3542, 2147483648
    %v3547 = vmul.f32 %v3543, 1.442695
    %v3548 = vpow.pop %v3547
    %v3549 = vmul.f32 %v3544, 1.442695
    %v3550 = vpow.pop %v3549
    %v3551 = vmul.f32 %v3545, 1.442695
    %v3552 = vpow.pop %v3551
    %v3553 = vmul.f32 %v3546, 1.442695
    %v3554 = vpow.pop %v3553
    %v3555 = vadd.f32 %v3548, 1.0
    %v3556 = vadd.f32 %v3550, 1.0
    %v3557 = vadd.f32 %v3552, 1.0
    %v3558 = vadd.f32 %v3554, 1.0
    %v3559 = vrcp.pop %v3555
    %v3560 = vmul.f32 1.0, %v3559
    %v3561 = vrcp.pop %v3556
    %v3562 = vmul.f32 1.0, %v3561
    %v3563 = vrcp.pop %v3557
    %v3564 = vmul.f32 1.0, %v3563
    %v3565 = vrcp.pop %v3558
    %v3566 = vmul.f32 1.0, %v3565
    %v3567 = vadd.f32 %v3503, %v1169
    %v3568 = vadd.f32 %v3505, %v1173
    %v3569 = vadd.f32 %v3507, %v1169
    %v3570 = vadd.f32 %v3509, %v1173
    %v3571 = vmul.f32 %v3532, %v3567
    %v3572 = vmul.f32 %v3534, %v3568
    %v3573 = vmul.f32 %v3536, %v3569
    %v3574 = vmul.f32 %v3538, %v3570
    %v3575 = vadd.f32 %v2798, %v3571
    %v3576 = vadd.f32 %v2799, %v3572
    %v3577 = vadd.f32 %v2804, %v3573
    %v3578 = vadd.f32 %v2805, %v3574
    %v3579 = vtanh.pop %v3575
    %v3580 = vtanh.pop %v3576
    %v3581 = vtanh.pop %v3577
    %v3582 = vtanh.pop %v3578
    %v3583 = vsub.f32 1.0, %v3560
    %v3584 = vsub.f32 1.0, %v3562
    %v3585 = vsub.f32 1.0, %v3564
    %v3586 = vsub.f32 1.0, %v3566
    %v3587 = vmul.f32 %v3583, %v3579
    %v3588 = vmul.f32 %v3584, %v3580
    %v3589 = vmul.f32 %v3585, %v3581
    %v3590 = vmul.f32 %v3586, %v3582
    %v3591 = vmul.f32 %v3560, %v2786
    %v3592 = vmul.f32 %v3562, %v2787
    %v3593 = vmul.f32 %v3564, %v2788
    %v3594 = vmul.f32 %v3566, %v2789
    %v3595 = vadd.f32 %v3587, %v3591
    %v3596 = vadd.f32 %v3588, %v3592
    %v3597 = vadd.f32 %v3589, %v3593
    %v3598 = vadd.f32 %v3590, %v3594
    %v3599 = vpack.c.bf16 %v3597, %v3595
    %v3600 = vpack.c.bf16 %v3598, %v3596
    %3601 = vst [vmem:[#allocation3 + $0x20] sm:$0xff] %v3599
    %3602 = vst [vmem:[#allocation3 + $0x28] sm:$0xff] %v3600
    %v3603 = vld [vmem:[#allocation2 + $0x120] sm:$0xff]
    %v3604 = vld [vmem:[#allocation2 + $0x128] sm:$0xff]
    %v3605 = vld [vmem:[#allocation2 + $0x130] sm:$0xff]
    %v3606 = vld [vmem:[#allocation2 + $0x138] sm:$0xff]
    %v3607 = vld [vmem:[#allocation2 + $0x140] sm:$0xff]
    %v3608 = vld [vmem:[#allocation2 + $0x148] sm:$0xff]
    %v3609 = vld [vmem:[#allocation2 + $0x150] sm:$0xff]
    %v3610 = vld [vmem:[#allocation2 + $0x158] sm:$0xff]
    %v3611 = vld [vmem:[#allocation2 + $0x160] sm:$0xff]
    %v3612 = vld [vmem:[#allocation2 + $0x168] sm:$0xff]
    %v3613 = vld [vmem:[#allocation2 + $0x170] sm:$0xff]
    %v3614 = vld [vmem:[#allocation2 + $0x178] sm:$0xff]
    %v3615 = vld [vmem:[#allocation7] sm:$0xff]
    %v3616 = vld [vmem:[#allocation7 + $0x8] sm:$0xff]
    %v3617 = vld [vmem:[#allocation7 + $0x10] sm:$0xff]
    %v3618 = vld [vmem:[#allocation7 + $0x18] sm:$0xff]
    %v3619 = vld [vmem:[#allocation7 + $0x20] sm:$0xff]
    %v3620 = vld [vmem:[#allocation7 + $0x28] sm:$0xff]
    %v3621 = vld [vmem:[#allocation7 + $0x30] sm:$0xff]
    %v3622 = vld [vmem:[#allocation7 + $0x38] sm:$0xff]
    %v3623 = vld [vmem:[#allocation7 + $0x40] sm:$0xff]
    %v3624 = vld [vmem:[#allocation7 + $0x48] sm:$0xff]
    %v3625 = vld [vmem:[#allocation7 + $0x50] sm:$0xff]
    %v3626 = vld [vmem:[#allocation7 + $0x58] sm:$0xff]
    %v3627 = vld [vmem:[#allocation7 + $0x60] sm:$0xff]
    %v3628 = vld [vmem:[#allocation7 + $0x68] sm:$0xff]
    %v3629 = vld [vmem:[#allocation7 + $0x70] sm:$0xff]
    %v3630 = vld [vmem:[#allocation7 + $0x78] sm:$0xff]
    %v3631 = vld [vmem:[#allocation7 + $0x80] sm:$0xff]
    %v3632 = vld [vmem:[#allocation7 + $0x88] sm:$0xff]
    %v3633 = vld [vmem:[#allocation7 + $0x90] sm:$0xff]
    %v3634 = vld [vmem:[#allocation7 + $0x98] sm:$0xff]
    %v3635 = vld [vmem:[#allocation7 + $0xa0] sm:$0xff]
    %v3636 = vld [vmem:[#allocation7 + $0xa8] sm:$0xff]
    %v3637 = vld [vmem:[#allocation7 + $0xb0] sm:$0xff]
    %v3638 = vld [vmem:[#allocation7 + $0xb8] sm:$0xff]
    %v3639 = vld [vmem:[#allocation7 + $0xc0] sm:$0xff]
    %v3640 = vld [vmem:[#allocation7 + $0xc8] sm:$0xff]
    %v3641 = vld [vmem:[#allocation7 + $0xd0] sm:$0xff]
    %v3642 = vld [vmem:[#allocation7 + $0xd8] sm:$0xff]
    %v3643 = vld [vmem:[#allocation7 + $0xe0] sm:$0xff]
    %v3644 = vld [vmem:[#allocation7 + $0xe8] sm:$0xff]
    %v3645 = vld [vmem:[#allocation7 + $0xf0] sm:$0xff]
    %v3646 = vld [vmem:[#allocation7 + $0xf8] sm:$0xff]
    %v3647 = vld [vmem:[#allocation7 + $0x100] sm:$0xff]
    %v3648 = vld [vmem:[#allocation7 + $0x108] sm:$0xff]
    %v3649 = vld [vmem:[#allocation7 + $0x110] sm:$0xff]
    %v3650 = vld [vmem:[#allocation7 + $0x118] sm:$0xff]
    %v3651 = vld [vmem:[#allocation7 + $0x120] sm:$0xff]
    %v3652 = vld [vmem:[#allocation7 + $0x128] sm:$0xff]
    %v3653 = vld [vmem:[#allocation7 + $0x130] sm:$0xff]
    %v3654 = vld [vmem:[#allocation7 + $0x138] sm:$0xff]
    %v3655 = vld [vmem:[#allocation7 + $0x140] sm:$0xff]
    %v3656 = vld [vmem:[#allocation7 + $0x148] sm:$0xff]
    %v3657 = vld [vmem:[#allocation7 + $0x150] sm:$0xff]
    %v3658 = vld [vmem:[#allocation7 + $0x158] sm:$0xff]
    %v3659 = vld [vmem:[#allocation7 + $0x160] sm:$0xff]
    %v3660 = vld [vmem:[#allocation7 + $0x168] sm:$0xff]
    %v3661 = vld [vmem:[#allocation7 + $0x170] sm:$0xff]
    %v3662 = vld [vmem:[#allocation7 + $0x178] sm:$0xff]
    %v3663 = vld [vmem:[#allocation7 + $0x180] sm:$0xff]
    %v3664 = vld [vmem:[#allocation7 + $0x188] sm:$0xff]
    %v3665 = vld [vmem:[#allocation7 + $0x190] sm:$0xff]
    %v3666 = vld [vmem:[#allocation7 + $0x198] sm:$0xff]
    %v3667 = vld [vmem:[#allocation7 + $0x1a0] sm:$0xff]
    %v3668 = vld [vmem:[#allocation7 + $0x1a8] sm:$0xff]
    %v3669 = vld [vmem:[#allocation7 + $0x1b0] sm:$0xff]
    %v3670 = vld [vmem:[#allocation7 + $0x1b8] sm:$0xff]
    %v3671 = vld [vmem:[#allocation7 + $0x1c0] sm:$0xff]
    %v3672 = vld [vmem:[#allocation7 + $0x1c8] sm:$0xff]
    %v3673 = vld [vmem:[#allocation7 + $0x1d0] sm:$0xff]
    %v3674 = vld [vmem:[#allocation7 + $0x1d8] sm:$0xff]
    %v3675 = vld [vmem:[#allocation7 + $0x1e0] sm:$0xff]
    %v3676 = vld [vmem:[#allocation7 + $0x1e8] sm:$0xff]
    %v3677 = vld [vmem:[#allocation7 + $0x1f0] sm:$0xff]
    %v3678 = vld [vmem:[#allocation7 + $0x1f8] sm:$0xff]
    %v3679 = vld [vmem:[#allocation7 + $0x200] sm:$0xff]
    %v3680 = vld [vmem:[#allocation7 + $0x208] sm:$0xff]
    %v3681 = vld [vmem:[#allocation7 + $0x210] sm:$0xff]
    %v3682 = vld [vmem:[#allocation7 + $0x218] sm:$0xff]
    %v3683 = vld [vmem:[#allocation7 + $0x220] sm:$0xff]
    %v3684 = vld [vmem:[#allocation7 + $0x228] sm:$0xff]
    %v3685 = vld [vmem:[#allocation7 + $0x230] sm:$0xff]
    %v3686 = vld [vmem:[#allocation7 + $0x238] sm:$0xff]
    %v3687 = vld [vmem:[#allocation7 + $0x240] sm:$0xff]
    %v3688 = vld [vmem:[#allocation7 + $0x248] sm:$0xff]
    %v3689 = vld [vmem:[#allocation7 + $0x250] sm:$0xff]
    %v3690 = vld [vmem:[#allocation7 + $0x258] sm:$0xff]
    %v3691 = vld [vmem:[#allocation7 + $0x260] sm:$0xff]
    %v3692 = vld [vmem:[#allocation7 + $0x268] sm:$0xff]
    %v3693 = vld [vmem:[#allocation7 + $0x270] sm:$0xff]
    %v3694 = vld [vmem:[#allocation7 + $0x278] sm:$0xff]
    %v3695 = vld [vmem:[#allocation7 + $0x280] sm:$0xff]
    %v3696 = vld [vmem:[#allocation7 + $0x288] sm:$0xff]
    %v3697 = vld [vmem:[#allocation7 + $0x290] sm:$0xff]
    %v3698 = vld [vmem:[#allocation7 + $0x298] sm:$0xff]
    %v3699 = vld [vmem:[#allocation7 + $0x2a0] sm:$0xff]
    %v3700 = vld [vmem:[#allocation7 + $0x2a8] sm:$0xff]
    %v3701 = vld [vmem:[#allocation7 + $0x2b0] sm:$0xff]
    %v3702 = vld [vmem:[#allocation7 + $0x2b8] sm:$0xff]
    %v3703 = vld [vmem:[#allocation7 + $0x2c0] sm:$0xff]
    %v3704 = vld [vmem:[#allocation7 + $0x2c8] sm:$0xff]
    %v3705 = vld [vmem:[#allocation7 + $0x2d0] sm:$0xff]
    %v3706 = vld [vmem:[#allocation7 + $0x2d8] sm:$0xff]
    %v3707 = vld [vmem:[#allocation7 + $0x2e0] sm:$0xff]
    %v3708 = vld [vmem:[#allocation7 + $0x2e8] sm:$0xff]
    %v3709 = vld [vmem:[#allocation7 + $0x2f0] sm:$0xff]
    %v3710 = vld [vmem:[#allocation7 + $0x2f8] sm:$0xff]
    %v3807 = vunpack.c.l.b16 %v3615
    %v3808 = vunpack.c.h.b16 %v3615
    %v3809 = vunpack.c.l.b16 %v3616
    %v3810 = vunpack.c.h.b16 %v3616
    %v3811 = vunpack.c.l.b16 %v3617
    %v3812 = vunpack.c.h.b16 %v3617
    %v3813 = vunpack.c.l.b16 %v3618
    %v3814 = vunpack.c.h.b16 %v3618
    %v3815 = vunpack.c.l.b16 %v3619
    %v3816 = vunpack.c.h.b16 %v3619
    %v3817 = vunpack.c.l.b16 %v3620
    %v3818 = vunpack.c.h.b16 %v3620
    %v3819 = vunpack.c.l.b16 %v3621
    %v3820 = vunpack.c.h.b16 %v3621
    %v3821 = vunpack.c.l.b16 %v3622
    %v3822 = vunpack.c.h.b16 %v3622
    %v3823 = vunpack.c.l.b16 %v3623
    %v3824 = vunpack.c.h.b16 %v3623
    %v3825 = vunpack.c.l.b16 %v3624
    %v3826 = vunpack.c.h.b16 %v3624
    %v3827 = vunpack.c.l.b16 %v3625
    %v3828 = vunpack.c.h.b16 %v3625
    %v3829 = vunpack.c.l.b16 %v3626
    %v3830 = vunpack.c.h.b16 %v3626
    %v3831 = vunpack.c.l.b16 %v3627
    %v3832 = vunpack.c.h.b16 %v3627
    %v3833 = vunpack.c.l.b16 %v3628
    %v3834 = vunpack.c.h.b16 %v3628
    %v3835 = vunpack.c.l.b16 %v3629
    %v3836 = vunpack.c.h.b16 %v3629
    %v3837 = vunpack.c.l.b16 %v3630
    %v3838 = vunpack.c.h.b16 %v3630
    %v3839 = vunpack.c.l.b16 %v3631
    %v3840 = vunpack.c.h.b16 %v3631
    %v3841 = vunpack.c.l.b16 %v3632
    %v3842 = vunpack.c.h.b16 %v3632
    %v3843 = vunpack.c.l.b16 %v3633
    %v3844 = vunpack.c.h.b16 %v3633
    %v3845 = vunpack.c.l.b16 %v3634
    %v3846 = vunpack.c.h.b16 %v3634
    %v3847 = vunpack.c.l.b16 %v3635
    %v3848 = vunpack.c.h.b16 %v3635
    %v3849 = vunpack.c.l.b16 %v3636
    %v3850 = vunpack.c.h.b16 %v3636
    %v3851 = vunpack.c.l.b16 %v3637
    %v3852 = vunpack.c.h.b16 %v3637
    %v3853 = vunpack.c.l.b16 %v3638
    %v3854 = vunpack.c.h.b16 %v3638
    %v3855 = vunpack.c.l.b16 %v3639
    %v3856 = vunpack.c.h.b16 %v3639
    %v3857 = vunpack.c.l.b16 %v3640
    %v3858 = vunpack.c.h.b16 %v3640
    %v3859 = vunpack.c.l.b16 %v3641
    %v3860 = vunpack.c.h.b16 %v3641
    %v3861 = vunpack.c.l.b16 %v3642
    %v3862 = vunpack.c.h.b16 %v3642
    %v3863 = vunpack.c.l.b16 %v3643
    %v3864 = vunpack.c.h.b16 %v3643
    %v3865 = vunpack.c.l.b16 %v3644
    %v3866 = vunpack.c.h.b16 %v3644
    %v3867 = vunpack.c.l.b16 %v3645
    %v3868 = vunpack.c.h.b16 %v3645
    %v3869 = vunpack.c.l.b16 %v3646
    %v3870 = vunpack.c.h.b16 %v3646
    %v3871 = vunpack.c.l.b16 %v3647
    %v3872 = vunpack.c.h.b16 %v3647
    %v3873 = vunpack.c.l.b16 %v3648
    %v3874 = vunpack.c.h.b16 %v3648
    %v3875 = vunpack.c.l.b16 %v3649
    %v3876 = vunpack.c.h.b16 %v3649
    %v3877 = vunpack.c.l.b16 %v3650
    %v3878 = vunpack.c.h.b16 %v3650
    %v3879 = vunpack.c.l.b16 %v3651
    %v3880 = vunpack.c.h.b16 %v3651
    %v3881 = vunpack.c.l.b16 %v3652
    %v3882 = vunpack.c.h.b16 %v3652
    %v3883 = vunpack.c.l.b16 %v3653
    %v3884 = vunpack.c.h.b16 %v3653
    %v3885 = vunpack.c.l.b16 %v3654
    %v3886 = vunpack.c.h.b16 %v3654
    %v3887 = vunpack.c.l.b16 %v3655
    %v3888 = vunpack.c.h.b16 %v3655
    %v3889 = vunpack.c.l.b16 %v3656
    %v3890 = vunpack.c.h.b16 %v3656
    %v3891 = vunpack.c.l.b16 %v3657
    %v3892 = vunpack.c.h.b16 %v3657
    %v3893 = vunpack.c.l.b16 %v3658
    %v3894 = vunpack.c.h.b16 %v3658
    %v3895 = vunpack.c.l.b16 %v3659
    %v3896 = vunpack.c.h.b16 %v3659
    %v3897 = vunpack.c.l.b16 %v3660
    %v3898 = vunpack.c.h.b16 %v3660
    %v3899 = vunpack.c.l.b16 %v3661
    %v3900 = vunpack.c.h.b16 %v3661
    %v3901 = vunpack.c.l.b16 %v3662
    %v3902 = vunpack.c.h.b16 %v3662
    %v3903 = vunpack.c.l.b16 %v3663
    %v3904 = vunpack.c.h.b16 %v3663
    %v3905 = vunpack.c.l.b16 %v3664
    %v3906 = vunpack.c.h.b16 %v3664
    %v3907 = vunpack.c.l.b16 %v3665
    %v3908 = vunpack.c.h.b16 %v3665
    %v3909 = vunpack.c.l.b16 %v3666
    %v3910 = vunpack.c.h.b16 %v3666
    %v3911 = vunpack.c.l.b16 %v3667
    %v3912 = vunpack.c.h.b16 %v3667
    %v3913 = vunpack.c.l.b16 %v3668
    %v3914 = vunpack.c.h.b16 %v3668
    %v3915 = vunpack.c.l.b16 %v3669
    %v3916 = vunpack.c.h.b16 %v3669
    %v3917 = vunpack.c.l.b16 %v3670
    %v3918 = vunpack.c.h.b16 %v3670
    %v3919 = vunpack.c.l.b16 %v3671
    %v3920 = vunpack.c.h.b16 %v3671
    %v3921 = vunpack.c.l.b16 %v3672
    %v3922 = vunpack.c.h.b16 %v3672
    %v3923 = vunpack.c.l.b16 %v3673
    %v3924 = vunpack.c.h.b16 %v3673
    %v3925 = vunpack.c.l.b16 %v3674
    %v3926 = vunpack.c.h.b16 %v3674
    %v3927 = vunpack.c.l.b16 %v3675
    %v3928 = vunpack.c.h.b16 %v3675
    %v3929 = vunpack.c.l.b16 %v3676
    %v3930 = vunpack.c.h.b16 %v3676
    %v3931 = vunpack.c.l.b16 %v3677
    %v3932 = vunpack.c.h.b16 %v3677
    %v3933 = vunpack.c.l.b16 %v3678
    %v3934 = vunpack.c.h.b16 %v3678
    %v3935 = vunpack.c.l.b16 %v3679
    %v3936 = vunpack.c.h.b16 %v3679
    %v3937 = vunpack.c.l.b16 %v3680
    %v3938 = vunpack.c.h.b16 %v3680
    %v3939 = vunpack.c.l.b16 %v3681
    %v3940 = vunpack.c.h.b16 %v3681
    %v3941 = vunpack.c.l.b16 %v3682
    %v3942 = vunpack.c.h.b16 %v3682
    %v3943 = vunpack.c.l.b16 %v3683
    %v3944 = vunpack.c.h.b16 %v3683
    %v3945 = vunpack.c.l.b16 %v3684
    %v3946 = vunpack.c.h.b16 %v3684
    %v3947 = vunpack.c.l.b16 %v3685
    %v3948 = vunpack.c.h.b16 %v3685
    %v3949 = vunpack.c.l.b16 %v3686
    %v3950 = vunpack.c.h.b16 %v3686
    %v3951 = vunpack.c.l.b16 %v3687
    %v3952 = vunpack.c.h.b16 %v3687
    %v3953 = vunpack.c.l.b16 %v3688
    %v3954 = vunpack.c.h.b16 %v3688
    %v3955 = vunpack.c.l.b16 %v3689
    %v3956 = vunpack.c.h.b16 %v3689
    %v3957 = vunpack.c.l.b16 %v3690
    %v3958 = vunpack.c.h.b16 %v3690
    %v3959 = vunpack.c.l.b16 %v3691
    %v3960 = vunpack.c.h.b16 %v3691
    %v3961 = vunpack.c.l.b16 %v3692
    %v3962 = vunpack.c.h.b16 %v3692
    %v3963 = vunpack.c.l.b16 %v3693
    %v3964 = vunpack.c.h.b16 %v3693
    %v3965 = vunpack.c.l.b16 %v3694
    %v3966 = vunpack.c.h.b16 %v3694
    %v3967 = vunpack.c.l.b16 %v3695
    %v3968 = vunpack.c.h.b16 %v3695
    %v3969 = vunpack.c.l.b16 %v3696
    %v3970 = vunpack.c.h.b16 %v3696
    %v3971 = vunpack.c.l.b16 %v3697
    %v3972 = vunpack.c.h.b16 %v3697
    %v3973 = vunpack.c.l.b16 %v3698
    %v3974 = vunpack.c.h.b16 %v3698
    %v3975 = vunpack.c.l.b16 %v3699
    %v3976 = vunpack.c.h.b16 %v3699
    %v3977 = vunpack.c.l.b16 %v3700
    %v3978 = vunpack.c.h.b16 %v3700
    %v3979 = vunpack.c.l.b16 %v3701
    %v3980 = vunpack.c.h.b16 %v3701
    %v3981 = vunpack.c.l.b16 %v3702
    %v3982 = vunpack.c.h.b16 %v3702
    %v3983 = vunpack.c.l.b16 %v3703
    %v3984 = vunpack.c.h.b16 %v3703
    %v3985 = vunpack.c.l.b16 %v3704
    %v3986 = vunpack.c.h.b16 %v3704
    %v3987 = vunpack.c.l.b16 %v3705
    %v3988 = vunpack.c.h.b16 %v3705
    %v3989 = vunpack.c.l.b16 %v3706
    %v3990 = vunpack.c.h.b16 %v3706
    %v3991 = vunpack.c.l.b16 %v3707
    %v3992 = vunpack.c.h.b16 %v3707
    %v3993 = vunpack.c.l.b16 %v3708
    %v3994 = vunpack.c.h.b16 %v3708
    %v3995 = vunpack.c.l.b16 %v3709
    %v3996 = vunpack.c.h.b16 %v3709
    %v3997 = vunpack.c.l.b16 %v3710
    %v3998 = vunpack.c.h.b16 %v3710
    %v3999 = vpack.c.b16 %v3813, %v3807
    %v4000 = vpack.c.b16 %v3814, %v3808
    %v4001 = vpack.c.b16 %v3815, %v3809
    %v4002 = vpack.c.b16 %v3816, %v3810
    %v4003 = vpack.c.b16 %v3817, %v3811
    %v4004 = vpack.c.b16 %v3818, %v3812
    %v4005 = vpack.c.b16 %v3825, %v3819
    %v4006 = vpack.c.b16 %v3826, %v3820
    %v4007 = vpack.c.b16 %v3827, %v3821
    %v4008 = vpack.c.b16 %v3828, %v3822
    %v4009 = vpack.c.b16 %v3829, %v3823
    %v4010 = vpack.c.b16 %v3830, %v3824
    %v4011 = vpack.c.b16 %v3837, %v3831
    %v4012 = vpack.c.b16 %v3838, %v3832
    %v4013 = vpack.c.b16 %v3839, %v3833
    %v4014 = vpack.c.b16 %v3840, %v3834
    %v4015 = vpack.c.b16 %v3841, %v3835
    %v4016 = vpack.c.b16 %v3842, %v3836
    %v4017 = vpack.c.b16 %v3849, %v3843
    %v4018 = vpack.c.b16 %v3850, %v3844
    %v4019 = vpack.c.b16 %v3851, %v3845
    %v4020 = vpack.c.b16 %v3852, %v3846
    %v4021 = vpack.c.b16 %v3853, %v3847
    %v4022 = vpack.c.b16 %v3854, %v3848
    %v4023 = vpack.c.b16 %v3861, %v3855
    %v4024 = vpack.c.b16 %v3862, %v3856
    %v4025 = vpack.c.b16 %v3863, %v3857
    %v4026 = vpack.c.b16 %v3864, %v3858
    %v4027 = vpack.c.b16 %v3865, %v3859
    %v4028 = vpack.c.b16 %v3866, %v3860
    %v4029 = vpack.c.b16 %v3873, %v3867
    %v4030 = vpack.c.b16 %v3874, %v3868
    %v4031 = vpack.c.b16 %v3875, %v3869
    %v4032 = vpack.c.b16 %v3876, %v3870
    %v4033 = vpack.c.b16 %v3877, %v3871
    %v4034 = vpack.c.b16 %v3878, %v3872
    %v4035 = vpack.c.b16 %v3885, %v3879
    %v4036 = vpack.c.b16 %v3886, %v3880
    %v4037 = vpack.c.b16 %v3887, %v3881
    %v4038 = vpack.c.b16 %v3888, %v3882
    %v4039 = vpack.c.b16 %v3889, %v3883
    %v4040 = vpack.c.b16 %v3890, %v3884
    %v4041 = vpack.c.b16 %v3897, %v3891
    %v4042 = vpack.c.b16 %v3898, %v3892
    %v4043 = vpack.c.b16 %v3899, %v3893
    %v4044 = vpack.c.b16 %v3900, %v3894
    %v4045 = vpack.c.b16 %v3901, %v3895
    %v4046 = vpack.c.b16 %v3902, %v3896
    %v4047 = vpack.c.b16 %v3909, %v3903
    %v4048 = vpack.c.b16 %v3910, %v3904
    %v4049 = vpack.c.b16 %v3911, %v3905
    %v4050 = vpack.c.b16 %v3912, %v3906
    %v4051 = vpack.c.b16 %v3913, %v3907
    %v4052 = vpack.c.b16 %v3914, %v3908
    %v4053 = vpack.c.b16 %v3921, %v3915
    %v4054 = vpack.c.b16 %v3922, %v3916
    %v4055 = vpack.c.b16 %v3923, %v3917
    %v4056 = vpack.c.b16 %v3924, %v3918
    %v4057 = vpack.c.b16 %v3925, %v3919
    %v4058 = vpack.c.b16 %v3926, %v3920
    %v4059 = vpack.c.b16 %v3933, %v3927
    %v4060 = vpack.c.b16 %v3934, %v3928
    %v4061 = vpack.c.b16 %v3935, %v3929
    %v4062 = vpack.c.b16 %v3936, %v3930
    %v4063 = vpack.c.b16 %v3937, %v3931
    %v4064 = vpack.c.b16 %v3938, %v3932
    %v4065 = vpack.c.b16 %v3945, %v3939
    %v4066 = vpack.c.b16 %v3946, %v3940
    %v4067 = vpack.c.b16 %v3947, %v3941
    %v4068 = vpack.c.b16 %v3948, %v3942
    %v4069 = vpack.c.b16 %v3949, %v3943
    %v4070 = vpack.c.b16 %v3950, %v3944
    %v4071 = vpack.c.b16 %v3957, %v3951
    %v4072 = vpack.c.b16 %v3958, %v3952
    %v4073 = vpack.c.b16 %v3959, %v3953
    %v4074 = vpack.c.b16 %v3960, %v3954
    %v4075 = vpack.c.b16 %v3961, %v3955
    %v4076 = vpack.c.b16 %v3962, %v3956
    %v4077 = vpack.c.b16 %v3969, %v3963
    %v4078 = vpack.c.b16 %v3970, %v3964
    %v4079 = vpack.c.b16 %v3971, %v3965
    %v4080 = vpack.c.b16 %v3972, %v3966
    %v4081 = vpack.c.b16 %v3973, %v3967
    %v4082 = vpack.c.b16 %v3974, %v3968
    %v4083 = vpack.c.b16 %v3981, %v3975
    %v4084 = vpack.c.b16 %v3982, %v3976
    %v4085 = vpack.c.b16 %v3983, %v3977
    %v4086 = vpack.c.b16 %v3984, %v3978
    %v4087 = vpack.c.b16 %v3985, %v3979
    %v4088 = vpack.c.b16 %v3986, %v3980
    %v4089 = vpack.c.b16 %v3993, %v3987
    %v4090 = vpack.c.b16 %v3994, %v3988
    %v4091 = vpack.c.b16 %v3995, %v3989
    %v4092 = vpack.c.b16 %v3996, %v3990
    %v4093 = vpack.c.b16 %v3997, %v3991
    %v4094 = vpack.c.b16 %v3998, %v3992
    %4191 = vmatprep.subr.bf16.mxu0 %v4000
    %4192 = vmatpush1.bf16.msra.mxu0 %v3999
    %4193 = vmatprep.subr.bf16.mxu0 %v4006
    %4194 = vmatpush1.bf16.msra.mxu0 %v4005
    %4195 = vmatprep.subr.bf16.mxu0 %v4012
    %4196 = vmatpush1.bf16.msra.mxu0 %v4011
    %4197 = vmatprep.subr.bf16.mxu0 %v4018
    %4198 = vmatpush1.bf16.msra.mxu0 %v4017
    %4199 = vmatprep.subr.bf16.mxu0 %v4024
    %4200 = vmatpush1.bf16.msra.mxu0 %v4023
    %4201 = vmatprep.subr.bf16.mxu0 %v4030
    %4202 = vmatpush1.bf16.msra.mxu0 %v4029
    %4203 = vmatprep.subr.bf16.mxu0 %v4036
    %4204 = vmatpush1.bf16.msra.mxu0 %v4035
    %4205 = vmatprep.subr.bf16.mxu0 %v4042
    %4206 = vmatpush1.bf16.msra.mxu0 %v4041
    %4207 = vmatprep.subr.bf16.mxu0 %v4048
    %4208 = vmatpush1.bf16.msra.mxu0 %v4047
    %4209 = vmatprep.subr.bf16.mxu0 %v4054
    %4210 = vmatpush1.bf16.msra.mxu0 %v4053
    %4211 = vmatprep.subr.bf16.mxu0 %v4060
    %4212 = vmatpush1.bf16.msra.mxu0 %v4059
    %4213 = vmatprep.subr.bf16.mxu0 %v4066
    %4214 = vmatpush1.bf16.msra.mxu0 %v4065
    %4215 = vmatprep.subr.bf16.mxu0 %v4072
    %4216 = vmatpush1.bf16.msra.mxu0 %v4071
    %4217 = vmatprep.subr.bf16.mxu0 %v4078
    %4218 = vmatpush1.bf16.msra.mxu0 %v4077
    %4219 = vmatprep.subr.bf16.mxu0 %v4084
    %4220 = vmatpush1.bf16.msra.mxu0 %v4083
    %4221 = vmatprep.subr.bf16.mxu0 %v4090
    %4222 = vmatpush1.bf16.msra.mxu0 %v4089
    %4223 = vmatprep.mubr.bf16.mxu0 %v3600
    %4224 = vmatmul.mubr.bf16.gmra.mrb[0].mxu0 %v3599
    %v4225 = vpop.f32.mrb[0].mxu0
    %v4226 = vadd.f32 0.0, %v4225
    %v4227 = vpop.f32.mrb[0].mxu0
    %v4228 = vadd.f32 0.0, %v4227
    %v4229 = vpop.f32.mrb[0].mxu0
    %v4230 = vadd.f32 0.0, %v4229
    %v4231 = vpop.f32.mrb[0].mxu0
    %v4232 = vadd.f32 0.0, %v4231
    %4233 = vdwg.mxu0
    %4234 = vmatprep.subr.bf16.mxu0 %v4002
    %4235 = vmatpush1.bf16.msra.mxu0 %v4001
    %4236 = vmatprep.subr.bf16.mxu0 %v4008
    %4237 = vmatpush1.bf16.msra.mxu0 %v4007
    %4238 = vmatprep.subr.bf16.mxu0 %v4014
    %4239 = vmatpush1.bf16.msra.mxu0 %v4013
    %4240 = vmatprep.subr.bf16.mxu0 %v4020
    %4241 = vmatpush1.bf16.msra.mxu0 %v4019
    %4242 = vmatprep.subr.bf16.mxu0 %v4026
    %4243 = vmatpush1.bf16.msra.mxu0 %v4025
    %4244 = vmatprep.subr.bf16.mxu0 %v4032
    %4245 = vmatpush1.bf16.msra.mxu0 %v4031
    %4246 = vmatprep.subr.bf16.mxu0 %v4038
    %4247 = vmatpush1.bf16.msra.mxu0 %v4037
    %4248 = vmatprep.subr.bf16.mxu0 %v4044
    %4249 = vmatpush1.bf16.msra.mxu0 %v4043
    %4250 = vmatprep.subr.bf16.mxu0 %v4050
    %4251 = vmatpush1.bf16.msra.mxu0 %v4049
    %4252 = vmatprep.subr.bf16.mxu0 %v4056
    %4253 = vmatpush1.bf16.msra.mxu0 %v4055
    %4254 = vmatprep.subr.bf16.mxu0 %v4062
    %4255 = vmatpush1.bf16.msra.mxu0 %v4061
    %4256 = vmatprep.subr.bf16.mxu0 %v4068
    %4257 = vmatpush1.bf16.msra.mxu0 %v4067
    %4258 = vmatprep.subr.bf16.mxu0 %v4074
    %4259 = vmatpush1.bf16.msra.mxu0 %v4073
    %4260 = vmatprep.subr.bf16.mxu0 %v4080
    %4261 = vmatpush1.bf16.msra.mxu0 %v4079
    %4262 = vmatprep.subr.bf16.mxu0 %v4086
    %4263 = vmatpush1.bf16.msra.mxu0 %v4085
    %4264 = vmatprep.subr.bf16.mxu0 %v4092
    %4265 = vmatpush1.bf16.msra.mxu0 %v4091
    %4266 = vmatprep.mubr.bf16.mxu0 %v3600
    %4267 = vmatmul.mubr.bf16.gmra.mrb[0].mxu0 %v3599
    %v4268 = vpop.f32.mrb[0].mxu0
    %v4269 = vadd.f32 0.0, %v4268
    %v4270 = vpop.f32.mrb[0].mxu0
    %v4271 = vadd.f32 0.0, %v4270
    %v4272 = vpop.f32.mrb[0].mxu0
    %v4273 = vadd.f32 0.0, %v4272
    %v4274 = vpop.f32.mrb[0].mxu0
    %v4275 = vadd.f32 0.0, %v4274
    %4276 = vdwg.mxu0
    %4277 = vmatprep.subr.bf16.mxu0 %v4004
    %4278 = vmatpush1.bf16.msra.mxu0 %v4003
    %4279 = vmatprep.subr.bf16.mxu0 %v4010
    %4280 = vmatpush1.bf16.msra.mxu0 %v4009
    %4281 = vmatprep.subr.bf16.mxu0 %v4016
    %4282 = vmatpush1.bf16.msra.mxu0 %v4015
    %4283 = vmatprep.subr.bf16.mxu0 %v4022
    %4284 = vmatpush1.bf16.msra.mxu0 %v4021
    %4285 = vmatprep.subr.bf16.mxu0 %v4028
    %4286 = vmatpush1.bf16.msra.mxu0 %v4027
    %4287 = vmatprep.subr.bf16.mxu0 %v4034
    %4288 = vmatpush1.bf16.msra.mxu0 %v4033
    %4289 = vmatprep.subr.bf16.mxu0 %v4040
    %4290 = vmatpush1.bf16.msra.mxu0 %v4039
    %4291 = vmatprep.subr.bf16.mxu0 %v4046
    %4292 = vmatpush1.bf16.msra.mxu0 %v4045
    %4293 = vmatprep.subr.bf16.mxu0 %v4052
    %4294 = vmatpush1.bf16.msra.mxu0 %v4051
    %4295 = vmatprep.subr.bf16.mxu0 %v4058
    %4296 = vmatpush1.bf16.msra.mxu0 %v4057
    %4297 = vmatprep.subr.bf16.mxu0 %v4064
    %4298 = vmatpush1.bf16.msra.mxu0 %v4063
    %4299 = vmatprep.subr.bf16.mxu0 %v4070
    %4300 = vmatpush1.bf16.msra.mxu0 %v4069
    %4301 = vmatprep.subr.bf16.mxu0 %v4076
    %4302 = vmatpush1.bf16.msra.mxu0 %v4075
    %4303 = vmatprep.subr.bf16.mxu0 %v4082
    %4304 = vmatpush1.bf16.msra.mxu0 %v4081
    %4305 = vmatprep.subr.bf16.mxu0 %v4088
    %4306 = vmatpush1.bf16.msra.mxu0 %v4087
    %4307 = vmatprep.subr.bf16.mxu0 %v4094
    %4308 = vmatpush1.bf16.msra.mxu0 %v4093
    %4309 = vmatprep.mubr.bf16.mxu0 %v3600
    %4310 = vmatmul.mubr.bf16.gmra.mrb[0].mxu0 %v3599
    %v4311 = vpop.f32.mrb[0].mxu0
    %v4312 = vadd.f32 0.0, %v4311
    %v4313 = vpop.f32.mrb[0].mxu0
    %v4314 = vadd.f32 0.0, %v4313
    %v4315 = vpop.f32.mrb[0].mxu0
    %v4316 = vadd.f32 0.0, %v4315
    %v4317 = vpop.f32.mrb[0].mxu0
    %v4318 = vadd.f32 0.0, %v4317
    %4319 = vdwg.mxu0
    %v4320 = vadd.f32 %v3603, %v4226
    %v4321 = vadd.f32 %v3604, %v4228
    %v4322 = vadd.f32 %v3609, %v4230
    %v4323 = vadd.f32 %v3610, %v4232
    %v4324 = vxor.u32 %v4320, 2147483648
    %v4325 = vxor.u32 %v4321, 2147483648
    %v4326 = vxor.u32 %v4322, 2147483648
    %v4327 = vxor.u32 %v4323, 2147483648
    %v4328 = vmul.f32 %v4324, 1.442695
    %v4329 = vpow.pop %v4328
    %v4330 = vmul.f32 %v4325, 1.442695
    %v4331 = vpow.pop %v4330
    %v4332 = vmul.f32 %v4326, 1.442695
    %v4333 = vpow.pop %v4332
    %v4334 = vmul.f32 %v4327, 1.442695
    %v4335 = vpow.pop %v4334
    %v4336 = vadd.f32 %v4329, 1.0
    %v4337 = vadd.f32 %v4331, 1.0
    %v4338 = vadd.f32 %v4333, 1.0
    %v4339 = vadd.f32 %v4335, 1.0
    %v4340 = vrcp.pop %v4336
    %v4341 = vmul.f32 1.0, %v4340
    %v4342 = vrcp.pop %v4337
    %v4343 = vmul.f32 1.0, %v4342
    %v4344 = vrcp.pop %v4338
    %v4345 = vmul.f32 1.0, %v4344
    %v4346 = vrcp.pop %v4339
    %v4347 = vmul.f32 1.0, %v4346
    %v4348 = vadd.f32 %v3605, %v4269
    %v4349 = vadd.f32 %v3606, %v4271
    %v4350 = vadd.f32 %v3611, %v4273
    %v4351 = vadd.f32 %v3612, %v4275
    %v4352 = vxor.u32 %v4348, 2147483648
    %v4353 = vxor.u32 %v4349, 2147483648
    %v4354 = vxor.u32 %v4350, 2147483648
    %v4355 = vxor.u32 %v4351, 2147483648
    %v4356 = vmul.f32 %v4352, 1.442695
    %v4357 = vpow.pop %v4356
    %v4358 = vmul.f32 %v4353, 1.442695
    %v4359 = vpow.pop %v4358
    %v4360 = vmul.f32 %v4354, 1.442695
    %v4361 = vpow.pop %v4360
    %v4362 = vmul.f32 %v4355, 1.442695
    %v4363 = vpow.pop %v4362
    %v4364 = vadd.f32 %v4357, 1.0
    %v4365 = vadd.f32 %v4359, 1.0
    %v4366 = vadd.f32 %v4361, 1.0
    %v4367 = vadd.f32 %v4363, 1.0
    %v4368 = vrcp.pop %v4364
    %v4369 = vmul.f32 1.0, %v4368
    %v4370 = vrcp.pop %v4365
    %v4371 = vmul.f32 1.0, %v4370
    %v4372 = vrcp.pop %v4366
    %v4373 = vmul.f32 1.0, %v4372
    %v4374 = vrcp.pop %v4367
    %v4375 = vmul.f32 1.0, %v4374
    %v4376 = vadd.f32 %v4312, %v1169
    %v4377 = vadd.f32 %v4314, %v1173
    %v4378 = vadd.f32 %v4316, %v1169
    %v4379 = vadd.f32 %v4318, %v1173
    %v4380 = vmul.f32 %v4341, %v4376
    %v4381 = vmul.f32 %v4343, %v4377
    %v4382 = vmul.f32 %v4345, %v4378
    %v4383 = vmul.f32 %v4347, %v4379
    %v4384 = vadd.f32 %v3607, %v4380
    %v4385 = vadd.f32 %v3608, %v4381
    %v4386 = vadd.f32 %v3613, %v4382
    %v4387 = vadd.f32 %v3614, %v4383
    %v4388 = vtanh.pop %v4384
    %v4389 = vtanh.pop %v4385
    %v4390 = vtanh.pop %v4386
    %v4391 = vtanh.pop %v4387
    %v4392 = vsub.f32 1.0, %v4369
    %v4393 = vsub.f32 1.0, %v4371
    %v4394 = vsub.f32 1.0, %v4373
    %v4395 = vsub.f32 1.0, %v4375
    %v4396 = vmul.f32 %v4392, %v4388
    %v4397 = vmul.f32 %v4393, %v4389
    %v4398 = vmul.f32 %v4394, %v4390
    %v4399 = vmul.f32 %v4395, %v4391
    %v4400 = vmul.f32 %v4369, %v3595
    %v4401 = vmul.f32 %v4371, %v3596
    %v4402 = vmul.f32 %v4373, %v3597
    %v4403 = vmul.f32 %v4375, %v3598
    %v4404 = vadd.f32 %v4396, %v4400
    %v4405 = vadd.f32 %v4397, %v4401
    %v4406 = vadd.f32 %v4398, %v4402
    %v4407 = vadd.f32 %v4399, %v4403
    %v4408 = vpack.c.bf16 %v4406, %v4404
    %v4409 = vpack.c.bf16 %v4407, %v4405
    %4410 = vst [vmem:[#allocation3 + $0x30] sm:$0xff] %v4408
    %4411 = vst [vmem:[#allocation3 + $0x38] sm:$0xff] %v4409
    %v4412 = vld [vmem:[#allocation2 + $0x180] sm:$0xff]
    %v4413 = vld [vmem:[#allocation2 + $0x188] sm:$0xff]
    %v4414 = vld [vmem:[#allocation2 + $0x190] sm:$0xff]
    %v4415 = vld [vmem:[#allocation2 + $0x198] sm:$0xff]
    %v4416 = vld [vmem:[#allocation2 + $0x1a0] sm:$0xff]
    %v4417 = vld [vmem:[#allocation2 + $0x1a8] sm:$0xff]
    %v4418 = vld [vmem:[#allocation2 + $0x1b0] sm:$0xff]
    %v4419 = vld [vmem:[#allocation2 + $0x1b8] sm:$0xff]
    %v4420 = vld [vmem:[#allocation2 + $0x1c0] sm:$0xff]
    %v4421 = vld [vmem:[#allocation2 + $0x1c8] sm:$0xff]
    %v4422 = vld [vmem:[#allocation2 + $0x1d0] sm:$0xff]
    %v4423 = vld [vmem:[#allocation2 + $0x1d8] sm:$0xff]
    %v4424 = vld [vmem:[#allocation7] sm:$0xff]
    %v4425 = vld [vmem:[#allocation7 + $0x8] sm:$0xff]
    %v4426 = vld [vmem:[#allocation7 + $0x10] sm:$0xff]
    %v4427 = vld [vmem:[#allocation7 + $0x18] sm:$0xff]
    %v4428 = vld [vmem:[#allocation7 + $0x20] sm:$0xff]
    %v4429 = vld [vmem:[#allocation7 + $0x28] sm:$0xff]
    %v4430 = vld [vmem:[#allocation7 + $0x30] sm:$0xff]
    %v4431 = vld [vmem:[#allocation7 + $0x38] sm:$0xff]
    %v4432 = vld [vmem:[#allocation7 + $0x40] sm:$0xff]
    %v4433 = vld [vmem:[#allocation7 + $0x48] sm:$0xff]
    %v4434 = vld [vmem:[#allocation7 + $0x50] sm:$0xff]
    %v4435 = vld [vmem:[#allocation7 + $0x58] sm:$0xff]
    %v4436 = vld [vmem:[#allocation7 + $0x60] sm:$0xff]
    %v4437 = vld [vmem:[#allocation7 + $0x68] sm:$0xff]
    %v4438 = vld [vmem:[#allocation7 + $0x70] sm:$0xff]
    %v4439 = vld [vmem:[#allocation7 + $0x78] sm:$0xff]
    %v4440 = vld [vmem:[#allocation7 + $0x80] sm:$0xff]
    %v4441 = vld [vmem:[#allocation7 + $0x88] sm:$0xff]
    %v4442 = vld [vmem:[#allocation7 + $0x90] sm:$0xff]
    %v4443 = vld [vmem:[#allocation7 + $0x98] sm:$0xff]
    %v4444 = vld [vmem:[#allocation7 + $0xa0] sm:$0xff]
    %v4445 = vld [vmem:[#allocation7 + $0xa8] sm:$0xff]
    %v4446 = vld [vmem:[#allocation7 + $0xb0] sm:$0xff]
    %v4447 = vld [vmem:[#allocation7 + $0xb8] sm:$0xff]
    %v4448 = vld [vmem:[#allocation7 + $0xc0] sm:$0xff]
    %v4449 = vld [vmem:[#allocation7 + $0xc8] sm:$0xff]
    %v4450 = vld [vmem:[#allocation7 + $0xd0] sm:$0xff]
    %v4451 = vld [vmem:[#allocation7 + $0xd8] sm:$0xff]
    %v4452 = vld [vmem:[#allocation7 + $0xe0] sm:$0xff]
    %v4453 = vld [vmem:[#allocation7 + $0xe8] sm:$0xff]
    %v4454 = vld [vmem:[#allocation7 + $0xf0] sm:$0xff]
    %v4455 = vld [vmem:[#allocation7 + $0xf8] sm:$0xff]
    %v4456 = vld [vmem:[#allocation7 + $0x100] sm:$0xff]
    %v4457 = vld [vmem:[#allocation7 + $0x108] sm:$0xff]
    %v4458 = vld [vmem:[#allocation7 + $0x110] sm:$0xff]
    %v4459 = vld [vmem:[#allocation7 + $0x118] sm:$0xff]
    %v4460 = vld [vmem:[#allocation7 + $0x120] sm:$0xff]
    %v4461 = vld [vmem:[#allocation7 + $0x128] sm:$0xff]
    %v4462 = vld [vmem:[#allocation7 + $0x130] sm:$0xff]
    %v4463 = vld [vmem:[#allocation7 + $0x138] sm:$0xff]
    %v4464 = vld [vmem:[#allocation7 + $0x140] sm:$0xff]
    %v4465 = vld [vmem:[#allocation7 + $0x148] sm:$0xff]
    %v4466 = vld [vmem:[#allocation7 + $0x150] sm:$0xff]
    %v4467 = vld [vmem:[#allocation7 + $0x158] sm:$0xff]
    %v4468 = vld [vmem:[#allocation7 + $0x160] sm:$0xff]
    %v4469 = vld [vmem:[#allocation7 + $0x168] sm:$0xff]
    %v4470 = vld [vmem:[#allocation7 + $0x170] sm:$0xff]
    %v4471 = vld [vmem:[#allocation7 + $0x178] sm:$0xff]
    %v4472 = vld [vmem:[#allocation7 + $0x180] sm:$0xff]
    %v4473 = vld [vmem:[#allocation7 + $0x188] sm:$0xff]
    %v4474 = vld [vmem:[#allocation7 + $0x190] sm:$0xff]
    %v4475 = vld [vmem:[#allocation7 + $0x198] sm:$0xff]
    %v4476 = vld [vmem:[#allocation7 + $0x1a0] sm:$0xff]
    %v4477 = vld [vmem:[#allocation7 + $0x1a8] sm:$0xff]
    %v4478 = vld [vmem:[#allocation7 + $0x1b0] sm:$0xff]
    %v4479 = vld [vmem:[#allocation7 + $0x1b8] sm:$0xff]
    %v4480 = vld [vmem:[#allocation7 + $0x1c0] sm:$0xff]
    %v4481 = vld [vmem:[#allocation7 + $0x1c8] sm:$0xff]
    %v4482 = vld [vmem:[#allocation7 + $0x1d0] sm:$0xff]
    %v4483 = vld [vmem:[#allocation7 + $0x1d8] sm:$0xff]
    %v4484 = vld [vmem:[#allocation7 + $0x1e0] sm:$0xff]
    %v4485 = vld [vmem:[#allocation7 + $0x1e8] sm:$0xff]
    %v4486 = vld [vmem:[#allocation7 + $0x1f0] sm:$0xff]
    %v4487 = vld [vmem:[#allocation7 + $0x1f8] sm:$0xff]
    %v4488 = vld [vmem:[#allocation7 + $0x200] sm:$0xff]
    %v4489 = vld [vmem:[#allocation7 + $0x208] sm:$0xff]
    %v4490 = vld [vmem:[#allocation7 + $0x210] sm:$0xff]
    %v4491 = vld [vmem:[#allocation7 + $0x218] sm:$0xff]
    %v4492 = vld [vmem:[#allocation7 + $0x220] sm:$0xff]
    %v4493 = vld [vmem:[#allocation7 + $0x228] sm:$0xff]
    %v4494 = vld [vmem:[#allocation7 + $0x230] sm:$0xff]
    %v4495 = vld [vmem:[#allocation7 + $0x238] sm:$0xff]
    %v4496 = vld [vmem:[#allocation7 + $0x240] sm:$0xff]
    %v4497 = vld [vmem:[#allocation7 + $0x248] sm:$0xff]
    %v4498 = vld [vmem:[#allocation7 + $0x250] sm:$0xff]
    %v4499 = vld [vmem:[#allocation7 + $0x258] sm:$0xff]
    %v4500 = vld [vmem:[#allocation7 + $0x260] sm:$0xff]
    %v4501 = vld [vmem:[#allocation7 + $0x268] sm:$0xff]
    %v4502 = vld [vmem:[#allocation7 + $0x270] sm:$0xff]
    %v4503 = vld [vmem:[#allocation7 + $0x278] sm:$0xff]
    %v4504 = vld [vmem:[#allocation7 + $0x280] sm:$0xff]
    %v4505 = vld [vmem:[#allocation7 + $0x288] sm:$0xff]
    %v4506 = vld [vmem:[#allocation7 + $0x290] sm:$0xff]
    %v4507 = vld [vmem:[#allocation7 + $0x298] sm:$0xff]
    %v4508 = vld [vmem:[#allocation7 + $0x2a0] sm:$0xff]
    %v4509 = vld [vmem:[#allocation7 + $0x2a8] sm:$0xff]
    %v4510 = vld [vmem:[#allocation7 + $0x2b0] sm:$0xff]
    %v4511 = vld [vmem:[#allocation7 + $0x2b8] sm:$0xff]
    %v4512 = vld [vmem:[#allocation7 + $0x2c0] sm:$0xff]
    %v4513 = vld [vmem:[#allocation7 + $0x2c8] sm:$0xff]
    %v4514 = vld [vmem:[#allocation7 + $0x2d0] sm:$0xff]
    %v4515 = vld [vmem:[#allocation7 + $0x2d8] sm:$0xff]
    %v4516 = vld [vmem:[#allocation7 + $0x2e0] sm:$0xff]
    %v4517 = vld [vmem:[#allocation7 + $0x2e8] sm:$0xff]
    %v4518 = vld [vmem:[#allocation7 + $0x2f0] sm:$0xff]
    %v4519 = vld [vmem:[#allocation7 + $0x2f8] sm:$0xff]
    %v4616 = vunpack.c.l.b16 %v4424
    %v4617 = vunpack.c.h.b16 %v4424
    %v4618 = vunpack.c.l.b16 %v4425
    %v4619 = vunpack.c.h.b16 %v4425
    %v4620 = vunpack.c.l.b16 %v4426
    %v4621 = vunpack.c.h.b16 %v4426
    %v4622 = vunpack.c.l.b16 %v4427
    %v4623 = vunpack.c.h.b16 %v4427
    %v4624 = vunpack.c.l.b16 %v4428
    %v4625 = vunpack.c.h.b16 %v4428
    %v4626 = vunpack.c.l.b16 %v4429
    %v4627 = vunpack.c.h.b16 %v4429
    %v4628 = vunpack.c.l.b16 %v4430
    %v4629 = vunpack.c.h.b16 %v4430
    %v4630 = vunpack.c.l.b16 %v4431
    %v4631 = vunpack.c.h.b16 %v4431
    %v4632 = vunpack.c.l.b16 %v4432
    %v4633 = vunpack.c.h.b16 %v4432
    %v4634 = vunpack.c.l.b16 %v4433
    %v4635 = vunpack.c.h.b16 %v4433
    %v4636 = vunpack.c.l.b16 %v4434
    %v4637 = vunpack.c.h.b16 %v4434
    %v4638 = vunpack.c.l.b16 %v4435
    %v4639 = vunpack.c.h.b16 %v4435
    %v4640 = vunpack.c.l.b16 %v4436
    %v4641 = vunpack.c.h.b16 %v4436
    %v4642 = vunpack.c.l.b16 %v4437
    %v4643 = vunpack.c.h.b16 %v4437
    %v4644 = vunpack.c.l.b16 %v4438
    %v4645 = vunpack.c.h.b16 %v4438
    %v4646 = vunpack.c.l.b16 %v4439
    %v4647 = vunpack.c.h.b16 %v4439
    %v4648 = vunpack.c.l.b16 %v4440
    %v4649 = vunpack.c.h.b16 %v4440
    %v4650 = vunpack.c.l.b16 %v4441
    %v4651 = vunpack.c.h.b16 %v4441
    %v4652 = vunpack.c.l.b16 %v4442
    %v4653 = vunpack.c.h.b16 %v4442
    %v4654 = vunpack.c.l.b16 %v4443
    %v4655 = vunpack.c.h.b16 %v4443
    %v4656 = vunpack.c.l.b16 %v4444
    %v4657 = vunpack.c.h.b16 %v4444
    %v4658 = vunpack.c.l.b16 %v4445
    %v4659 = vunpack.c.h.b16 %v4445
    %v4660 = vunpack.c.l.b16 %v4446
    %v4661 = vunpack.c.h.b16 %v4446
    %v4662 = vunpack.c.l.b16 %v4447
    %v4663 = vunpack.c.h.b16 %v4447
    %v4664 = vunpack.c.l.b16 %v4448
    %v4665 = vunpack.c.h.b16 %v4448
    %v4666 = vunpack.c.l.b16 %v4449
    %v4667 = vunpack.c.h.b16 %v4449
    %v4668 = vunpack.c.l.b16 %v4450
    %v4669 = vunpack.c.h.b16 %v4450
    %v4670 = vunpack.c.l.b16 %v4451
    %v4671 = vunpack.c.h.b16 %v4451
    %v4672 = vunpack.c.l.b16 %v4452
    %v4673 = vunpack.c.h.b16 %v4452
    %v4674 = vunpack.c.l.b16 %v4453
    %v4675 = vunpack.c.h.b16 %v4453
    %v4676 = vunpack.c.l.b16 %v4454
    %v4677 = vunpack.c.h.b16 %v4454
    %v4678 = vunpack.c.l.b16 %v4455
    %v4679 = vunpack.c.h.b16 %v4455
    %v4680 = vunpack.c.l.b16 %v4456
    %v4681 = vunpack.c.h.b16 %v4456
    %v4682 = vunpack.c.l.b16 %v4457
    %v4683 = vunpack.c.h.b16 %v4457
    %v4684 = vunpack.c.l.b16 %v4458
    %v4685 = vunpack.c.h.b16 %v4458
    %v4686 = vunpack.c.l.b16 %v4459
    %v4687 = vunpack.c.h.b16 %v4459
    %v4688 = vunpack.c.l.b16 %v4460
    %v4689 = vunpack.c.h.b16 %v4460
    %v4690 = vunpack.c.l.b16 %v4461
    %v4691 = vunpack.c.h.b16 %v4461
    %v4692 = vunpack.c.l.b16 %v4462
    %v4693 = vunpack.c.h.b16 %v4462
    %v4694 = vunpack.c.l.b16 %v4463
    %v4695 = vunpack.c.h.b16 %v4463
    %v4696 = vunpack.c.l.b16 %v4464
    %v4697 = vunpack.c.h.b16 %v4464
    %v4698 = vunpack.c.l.b16 %v4465
    %v4699 = vunpack.c.h.b16 %v4465
    %v4700 = vunpack.c.l.b16 %v4466
    %v4701 = vunpack.c.h.b16 %v4466
    %v4702 = vunpack.c.l.b16 %v4467
    %v4703 = vunpack.c.h.b16 %v4467
    %v4704 = vunpack.c.l.b16 %v4468
    %v4705 = vunpack.c.h.b16 %v4468
    %v4706 = vunpack.c.l.b16 %v4469
    %v4707 = vunpack.c.h.b16 %v4469
    %v4708 = vunpack.c.l.b16 %v4470
    %v4709 = vunpack.c.h.b16 %v4470
    %v4710 = vunpack.c.l.b16 %v4471
    %v4711 = vunpack.c.h.b16 %v4471
    %v4712 = vunpack.c.l.b16 %v4472
    %v4713 = vunpack.c.h.b16 %v4472
    %v4714 = vunpack.c.l.b16 %v4473
    %v4715 = vunpack.c.h.b16 %v4473
    %v4716 = vunpack.c.l.b16 %v4474
    %v4717 = vunpack.c.h.b16 %v4474
    %v4718 = vunpack.c.l.b16 %v4475
    %v4719 = vunpack.c.h.b16 %v4475
    %v4720 = vunpack.c.l.b16 %v4476
    %v4721 = vunpack.c.h.b16 %v4476
    %v4722 = vunpack.c.l.b16 %v4477
    %v4723 = vunpack.c.h.b16 %v4477
    %v4724 = vunpack.c.l.b16 %v4478
    %v4725 = vunpack.c.h.b16 %v4478
    %v4726 = vunpack.c.l.b16 %v4479
    %v4727 = vunpack.c.h.b16 %v4479
    %v4728 = vunpack.c.l.b16 %v4480
    %v4729 = vunpack.c.h.b16 %v4480
    %v4730 = vunpack.c.l.b16 %v4481
    %v4731 = vunpack.c.h.b16 %v4481
    %v4732 = vunpack.c.l.b16 %v4482
    %v4733 = vunpack.c.h.b16 %v4482
    %v4734 = vunpack.c.l.b16 %v4483
    %v4735 = vunpack.c.h.b16 %v4483
    %v4736 = vunpack.c.l.b16 %v4484
    %v4737 = vunpack.c.h.b16 %v4484
    %v4738 = vunpack.c.l.b16 %v4485
    %v4739 = vunpack.c.h.b16 %v4485
    %v4740 = vunpack.c.l.b16 %v4486
    %v4741 = vunpack.c.h.b16 %v4486
    %v4742 = vunpack.c.l.b16 %v4487
    %v4743 = vunpack.c.h.b16 %v4487
    %v4744 = vunpack.c.l.b16 %v4488
    %v4745 = vunpack.c.h.b16 %v4488
    %v4746 = vunpack.c.l.b16 %v4489
    %v4747 = vunpack.c.h.b16 %v4489
    %v4748 = vunpack.c.l.b16 %v4490
    %v4749 = vunpack.c.h.b16 %v4490
    %v4750 = vunpack.c.l.b16 %v4491
    %v4751 = vunpack.c.h.b16 %v4491
    %v4752 = vunpack.c.l.b16 %v4492
    %v4753 = vunpack.c.h.b16 %v4492
    %v4754 = vunpack.c.l.b16 %v4493
    %v4755 = vunpack.c.h.b16 %v4493
    %v4756 = vunpack.c.l.b16 %v4494
    %v4757 = vunpack.c.h.b16 %v4494
    %v4758 = vunpack.c.l.b16 %v4495
    %v4759 = vunpack.c.h.b16 %v4495
    %v4760 = vunpack.c.l.b16 %v4496
    %v4761 = vunpack.c.h.b16 %v4496
    %v4762 = vunpack.c.l.b16 %v4497
    %v4763 = vunpack.c.h.b16 %v4497
    %v4764 = vunpack.c.l.b16 %v4498
    %v4765 = vunpack.c.h.b16 %v4498
    %v4766 = vunpack.c.l.b16 %v4499
    %v4767 = vunpack.c.h.b16 %v4499
    %v4768 = vunpack.c.l.b16 %v4500
    %v4769 = vunpack.c.h.b16 %v4500
    %v4770 = vunpack.c.l.b16 %v4501
    %v4771 = vunpack.c.h.b16 %v4501
    %v4772 = vunpack.c.l.b16 %v4502
    %v4773 = vunpack.c.h.b16 %v4502
    %v4774 = vunpack.c.l.b16 %v4503
    %v4775 = vunpack.c.h.b16 %v4503
    %v4776 = vunpack.c.l.b16 %v4504
    %v4777 = vunpack.c.h.b16 %v4504
    %v4778 = vunpack.c.l.b16 %v4505
    %v4779 = vunpack.c.h.b16 %v4505
    %v4780 = vunpack.c.l.b16 %v4506
    %v4781 = vunpack.c.h.b16 %v4506
    %v4782 = vunpack.c.l.b16 %v4507
    %v4783 = vunpack.c.h.b16 %v4507
    %v4784 = vunpack.c.l.b16 %v4508
    %v4785 = vunpack.c.h.b16 %v4508
    %v4786 = vunpack.c.l.b16 %v4509
    %v4787 = vunpack.c.h.b16 %v4509
    %v4788 = vunpack.c.l.b16 %v4510
    %v4789 = vunpack.c.h.b16 %v4510
    %v4790 = vunpack.c.l.b16 %v4511
    %v4791 = vunpack.c.h.b16 %v4511
    %v4792 = vunpack.c.l.b16 %v4512
    %v4793 = vunpack.c.h.b16 %v4512
    %v4794 = vunpack.c.l.b16 %v4513
    %v4795 = vunpack.c.h.b16 %v4513
    %v4796 = vunpack.c.l.b16 %v4514
    %v4797 = vunpack.c.h.b16 %v4514
    %v4798 = vunpack.c.l.b16 %v4515
    %v4799 = vunpack.c.h.b16 %v4515
    %v4800 = vunpack.c.l.b16 %v4516
    %v4801 = vunpack.c.h.b16 %v4516
    %v4802 = vunpack.c.l.b16 %v4517
    %v4803 = vunpack.c.h.b16 %v4517
    %v4804 = vunpack.c.l.b16 %v4518
    %v4805 = vunpack.c.h.b16 %v4518
    %v4806 = vunpack.c.l.b16 %v4519
    %v4807 = vunpack.c.h.b16 %v4519
    %v4808 = vpack.c.b16 %v4622, %v4616
    %v4809 = vpack.c.b16 %v4623, %v4617
    %v4810 = vpack.c.b16 %v4624, %v4618
    %v4811 = vpack.c.b16 %v4625, %v4619
    %v4812 = vpack.c.b16 %v4626, %v4620
    %v4813 = vpack.c.b16 %v4627, %v4621
    %v4814 = vpack.c.b16 %v4634, %v4628
    %v4815 = vpack.c.b16 %v4635, %v4629
    %v4816 = vpack.c.b16 %v4636, %v4630
    %v4817 = vpack.c.b16 %v4637, %v4631
    %v4818 = vpack.c.b16 %v4638, %v4632
    %v4819 = vpack.c.b16 %v4639, %v4633
    %v4820 = vpack.c.b16 %v4646, %v4640
    %v4821 = vpack.c.b16 %v4647, %v4641
    %v4822 = vpack.c.b16 %v4648, %v4642
    %v4823 = vpack.c.b16 %v4649, %v4643
    %v4824 = vpack.c.b16 %v4650, %v4644
    %v4825 = vpack.c.b16 %v4651, %v4645
    %v4826 = vpack.c.b16 %v4658, %v4652
    %v4827 = vpack.c.b16 %v4659, %v4653
    %v4828 = vpack.c.b16 %v4660, %v4654
    %v4829 = vpack.c.b16 %v4661, %v4655
    %v4830 = vpack.c.b16 %v4662, %v4656
    %v4831 = vpack.c.b16 %v4663, %v4657
    %v4832 = vpack.c.b16 %v4670, %v4664
    %v4833 = vpack.c.b16 %v4671, %v4665
    %v4834 = vpack.c.b16 %v4672, %v4666
    %v4835 = vpack.c.b16 %v4673, %v4667
    %v4836 = vpack.c.b16 %v4674, %v4668
    %v4837 = vpack.c.b16 %v4675, %v4669
    %v4838 = vpack.c.b16 %v4682, %v4676
    %v4839 = vpack.c.b16 %v4683, %v4677
    %v4840 = vpack.c.b16 %v4684, %v4678
    %v4841 = vpack.c.b16 %v4685, %v4679
    %v4842 = vpack.c.b16 %v4686, %v4680
    %v4843 = vpack.c.b16 %v4687, %v4681
    %v4844 = vpack.c.b16 %v4694, %v4688
    %v4845 = vpack.c.b16 %v4695, %v4689
    %v4846 = vpack.c.b16 %v4696, %v4690
    %v4847 = vpack.c.b16 %v4697, %v4691
    %v4848 = vpack.c.b16 %v4698, %v4692
    %v4849 = vpack.c.b16 %v4699, %v4693
    %v4850 = vpack.c.b16 %v4706, %v4700
    %v4851 = vpack.c.b16 %v4707, %v4701
    %v4852 = vpack.c.b16 %v4708, %v4702
    %v4853 = vpack.c.b16 %v4709, %v4703
    %v4854 = vpack.c.b16 %v4710, %v4704
    %v4855 = vpack.c.b16 %v4711, %v4705
    %v4856 = vpack.c.b16 %v4718, %v4712
    %v4857 = vpack.c.b16 %v4719, %v4713
    %v4858 = vpack.c.b16 %v4720, %v4714
    %v4859 = vpack.c.b16 %v4721, %v4715
    %v4860 = vpack.c.b16 %v4722, %v4716
    %v4861 = vpack.c.b16 %v4723, %v4717
    %v4862 = vpack.c.b16 %v4730, %v4724
    %v4863 = vpack.c.b16 %v4731, %v4725
    %v4864 = vpack.c.b16 %v4732, %v4726
    %v4865 = vpack.c.b16 %v4733, %v4727
    %v4866 = vpack.c.b16 %v4734, %v4728
    %v4867 = vpack.c.b16 %v4735, %v4729
    %v4868 = vpack.c.b16 %v4742, %v4736
    %v4869 = vpack.c.b16 %v4743, %v4737
    %v4870 = vpack.c.b16 %v4744, %v4738
    %v4871 = vpack.c.b16 %v4745, %v4739
    %v4872 = vpack.c.b16 %v4746, %v4740
    %v4873 = vpack.c.b16 %v4747, %v4741
    %v4874 = vpack.c.b16 %v4754, %v4748
    %v4875 = vpack.c.b16 %v4755, %v4749
    %v4876 = vpack.c.b16 %v4756, %v4750
    %v4877 = vpack.c.b16 %v4757, %v4751
    %v4878 = vpack.c.b16 %v4758, %v4752
    %v4879 = vpack.c.b16 %v4759, %v4753
    %v4880 = vpack.c.b16 %v4766, %v4760
    %v4881 = vpack.c.b16 %v4767, %v4761
    %v4882 = vpack.c.b16 %v4768, %v4762
    %v4883 = vpack.c.b16 %v4769, %v4763
    %v4884 = vpack.c.b16 %v4770, %v4764
    %v4885 = vpack.c.b16 %v4771, %v4765
    %v4886 = vpack.c.b16 %v4778, %v4772
    %v4887 = vpack.c.b16 %v4779, %v4773
    %v4888 = vpack.c.b16 %v4780, %v4774
    %v4889 = vpack.c.b16 %v4781, %v4775
    %v4890 = vpack.c.b16 %v4782, %v4776
    %v4891 = vpack.c.b16 %v4783, %v4777
    %v4892 = vpack.c.b16 %v4790, %v4784
    %v4893 = vpack.c.b16 %v4791, %v4785
    %v4894 = vpack.c.b16 %v4792, %v4786
    %v4895 = vpack.c.b16 %v4793, %v4787
    %v4896 = vpack.c.b16 %v4794, %v4788
    %v4897 = vpack.c.b16 %v4795, %v4789
    %v4898 = vpack.c.b16 %v4802, %v4796
    %v4899 = vpack.c.b16 %v4803, %v4797
    %v4900 = vpack.c.b16 %v4804, %v4798
    %v4901 = vpack.c.b16 %v4805, %v4799
    %v4902 = vpack.c.b16 %v4806, %v4800
    %v4903 = vpack.c.b16 %v4807, %v4801
    %5000 = vmatprep.subr.bf16.mxu0 %v4809
    %5001 = vmatpush1.bf16.msra.mxu0 %v4808
    %5002 = vmatprep.subr.bf16.mxu0 %v4815
    %5003 = vmatpush1.bf16.msra.mxu0 %v4814
    %5004 = vmatprep.subr.bf16.mxu0 %v4821
    %5005 = vmatpush1.bf16.msra.mxu0 %v4820
    %5006 = vmatprep.subr.bf16.mxu0 %v4827
    %5007 = vmatpush1.bf16.msra.mxu0 %v4826
    %5008 = vmatprep.subr.bf16.mxu0 %v4833
    %5009 = vmatpush1.bf16.msra.mxu0 %v4832
    %5010 = vmatprep.subr.bf16.mxu0 %v4839
    %5011 = vmatpush1.bf16.msra.mxu0 %v4838
    %5012 = vmatprep.subr.bf16.mxu0 %v4845
    %5013 = vmatpush1.bf16.msra.mxu0 %v4844
    %5014 = vmatprep.subr.bf16.mxu0 %v4851
    %5015 = vmatpush1.bf16.msra.mxu0 %v4850
    %5016 = vmatprep.subr.bf16.mxu0 %v4857
    %5017 = vmatpush1.bf16.msra.mxu0 %v4856
    %5018 = vmatprep.subr.bf16.mxu0 %v4863
    %5019 = vmatpush1.bf16.msra.mxu0 %v4862
    %5020 = vmatprep.subr.bf16.mxu0 %v4869
    %5021 = vmatpush1.bf16.msra.mxu0 %v4868
    %5022 = vmatprep.subr.bf16.mxu0 %v4875
    %5023 = vmatpush1.bf16.msra.mxu0 %v4874
    %5024 = vmatprep.subr.bf16.mxu0 %v4881
    %5025 = vmatpush1.bf16.msra.mxu0 %v4880
    %5026 = vmatprep.subr.bf16.mxu0 %v4887
    %5027 = vmatpush1.bf16.msra.mxu0 %v4886
    %5028 = vmatprep.subr.bf16.mxu0 %v4893
    %5029 = vmatpush1.bf16.msra.mxu0 %v4892
    %5030 = vmatprep.subr.bf16.mxu0 %v4899
    %5031 = vmatpush1.bf16.msra.mxu0 %v4898
    %5032 = vmatprep.mubr.bf16.mxu0 %v4409
    %5033 = vmatmul.mubr.bf16.gmra.mrb[0].mxu0 %v4408
    %v5034 = vpop.f32.mrb[0].mxu0
    %v5035 = vadd.f32 0.0, %v5034
    %v5036 = vpop.f32.mrb[0].mxu0
    %v5037 = vadd.f32 0.0, %v5036
    %v5038 = vpop.f32.mrb[0].mxu0
    %v5039 = vadd.f32 0.0, %v5038
    %v5040 = vpop.f32.mrb[0].mxu0
    %v5041 = vadd.f32 0.0, %v5040
    %5042 = vdwg.mxu0
    %5043 = vmatprep.subr.bf16.mxu0 %v4811
    %5044 = vmatpush1.bf16.msra.mxu0 %v4810
    %5045 = vmatprep.subr.bf16.mxu0 %v4817
    %5046 = vmatpush1.bf16.msra.mxu0 %v4816
    %5047 = vmatprep.subr.bf16.mxu0 %v4823
    %5048 = vmatpush1.bf16.msra.mxu0 %v4822
    %5049 = vmatprep.subr.bf16.mxu0 %v4829
    %5050 = vmatpush1.bf16.msra.mxu0 %v4828
    %5051 = vmatprep.subr.bf16.mxu0 %v4835
    %5052 = vmatpush1.bf16.msra.mxu0 %v4834
    %5053 = vmatprep.subr.bf16.mxu0 %v4841
    %5054 = vmatpush1.bf16.msra.mxu0 %v4840
    %5055 = vmatprep.subr.bf16.mxu0 %v4847
    %5056 = vmatpush1.bf16.msra.mxu0 %v4846
    %5057 = vmatprep.subr.bf16.mxu0 %v4853
    %5058 = vmatpush1.bf16.msra.mxu0 %v4852
    %5059 = vmatprep.subr.bf16.mxu0 %v4859
    %5060 = vmatpush1.bf16.msra.mxu0 %v4858
    %5061 = vmatprep.subr.bf16.mxu0 %v4865
    %5062 = vmatpush1.bf16.msra.mxu0 %v4864
    %5063 = vmatprep.subr.bf16.mxu0 %v4871
    %5064 = vmatpush1.bf16.msra.mxu0 %v4870
    %5065 = vmatprep.subr.bf16.mxu0 %v4877
    %5066 = vmatpush1.bf16.msra.mxu0 %v4876
    %5067 = vmatprep.subr.bf16.mxu0 %v4883
    %5068 = vmatpush1.bf16.msra.mxu0 %v4882
    %5069 = vmatprep.subr.bf16.mxu0 %v4889
    %5070 = vmatpush1.bf16.msra.mxu0 %v4888
    %5071 = vmatprep.subr.bf16.mxu0 %v4895
    %5072 = vmatpush1.bf16.msra.mxu0 %v4894
    %5073 = vmatprep.subr.bf16.mxu0 %v4901
    %5074 = vmatpush1.bf16.msra.mxu0 %v4900
    %5075 = vmatprep.mubr.bf16.mxu0 %v4409
    %5076 = vmatmul.mubr.bf16.gmra.mrb[0].mxu0 %v4408
    %v5077 = vpop.f32.mrb[0].mxu0
    %v5078 = vadd.f32 0.0, %v5077
    %v5079 = vpop.f32.mrb[0].mxu0
    %v5080 = vadd.f32 0.0, %v5079
    %v5081 = vpop.f32.mrb[0].mxu0
    %v5082 = vadd.f32 0.0, %v5081
    %v5083 = vpop.f32.mrb[0].mxu0
    %v5084 = vadd.f32 0.0, %v5083
    %5085 = vdwg.mxu0
    %5086 = vmatprep.subr.bf16.mxu0 %v4813
    %5087 = vmatpush1.bf16.msra.mxu0 %v4812
    %5088 = vmatprep.subr.bf16.mxu0 %v4819
    %5089 = vmatpush1.bf16.msra.mxu0 %v4818
    %5090 = vmatprep.subr.bf16.mxu0 %v4825
    %5091 = vmatpush1.bf16.msra.mxu0 %v4824
    %5092 = vmatprep.subr.bf16.mxu0 %v4831
    %5093 = vmatpush1.bf16.msra.mxu0 %v4830
    %5094 = vmatprep.subr.bf16.mxu0 %v4837
    %5095 = vmatpush1.bf16.msra.mxu0 %v4836
    %5096 = vmatprep.subr.bf16.mxu0 %v4843
    %5097 = vmatpush1.bf16.msra.mxu0 %v4842
    %5098 = vmatprep.subr.bf16.mxu0 %v4849
    %5099 = vmatpush1.bf16.msra.mxu0 %v4848
    %5100 = vmatprep.subr.bf16.mxu0 %v4855
    %5101 = vmatpush1.bf16.msra.mxu0 %v4854
    %5102 = vmatprep.subr.bf16.mxu0 %v4861
    %5103 = vmatpush1.bf16.msra.mxu0 %v4860
    %5104 = vmatprep.subr.bf16.mxu0 %v4867
    %5105 = vmatpush1.bf16.msra.mxu0 %v4866
    %5106 = vmatprep.subr.bf16.mxu0 %v4873
    %5107 = vmatpush1.bf16.msra.mxu0 %v4872
    %5108 = vmatprep.subr.bf16.mxu0 %v4879
    %5109 = vmatpush1.bf16.msra.mxu0 %v4878
    %5110 = vmatprep.subr.bf16.mxu0 %v4885
    %5111 = vmatpush1.bf16.msra.mxu0 %v4884
    %5112 = vmatprep.subr.bf16.mxu0 %v4891
    %5113 = vmatpush1.bf16.msra.mxu0 %v4890
    %5114 = vmatprep.subr.bf16.mxu0 %v4897
    %5115 = vmatpush1.bf16.msra.mxu0 %v4896
    %5116 = vmatprep.subr.bf16.mxu0 %v4903
    %5117 = vmatpush1.bf16.msra.mxu0 %v4902
    %5118 = vmatprep.mubr.bf16.mxu0 %v4409
    %5119 = vmatmul.mubr.bf16.gmra.mrb[0].mxu0 %v4408
    %v5120 = vpop.f32.mrb[0].mxu0
    %v5121 = vadd.f32 0.0, %v5120
    %v5122 = vpop.f32.mrb[0].mxu0
    %v5123 = vadd.f32 0.0, %v5122
    %v5124 = vpop.f32.mrb[0].mxu0
    %v5125 = vadd.f32 0.0, %v5124
    %v5126 = vpop.f32.mrb[0].mxu0
    %v5127 = vadd.f32 0.0, %v5126
    %5128 = vdwg.mxu0
    %v5129 = vadd.f32 %v4412, %v5035
    %v5130 = vadd.f32 %v4413, %v5037
    %v5131 = vadd.f32 %v4418, %v5039
    %v5132 = vadd.f32 %v4419, %v5041
    %v5133 = vxor.u32 %v5129, 2147483648
    %v5134 = vxor.u32 %v5130, 2147483648
    %v5135 = vxor.u32 %v5131, 2147483648
    %v5136 = vxor.u32 %v5132, 2147483648
    %v5137 = vmul.f32 %v5133, 1.442695
    %v5138 = vpow.pop %v5137
    %v5139 = vmul.f32 %v5134, 1.442695
    %v5140 = vpow.pop %v5139
    %v5141 = vmul.f32 %v5135, 1.442695
    %v5142 = vpow.pop %v5141
    %v5143 = vmul.f32 %v5136, 1.442695
    %v5144 = vpow.pop %v5143
    %v5145 = vadd.f32 %v5138, 1.0
    %v5146 = vadd.f32 %v5140, 1.0
    %v5147 = vadd.f32 %v5142, 1.0
    %v5148 = vadd.f32 %v5144, 1.0
    %v5149 = vrcp.pop %v5145
    %v5150 = vmul.f32 1.0, %v5149
    %v5151 = vrcp.pop %v5146
    %v5152 = vmul.f32 1.0, %v5151
    %v5153 = vrcp.pop %v5147
    %v5154 = vmul.f32 1.0, %v5153
    %v5155 = vrcp.pop %v5148
    %v5156 = vmul.f32 1.0, %v5155
    %v5157 = vadd.f32 %v4414, %v5078
    %v5158 = vadd.f32 %v4415, %v5080
    %v5159 = vadd.f32 %v4420, %v5082
    %v5160 = vadd.f32 %v4421, %v5084
    %v5161 = vxor.u32 %v5157, 2147483648
    %v5162 = vxor.u32 %v5158, 2147483648
    %v5163 = vxor.u32 %v5159, 2147483648
    %v5164 = vxor.u32 %v5160, 2147483648
    %v5165 = vmul.f32 %v5161, 1.442695
    %v5166 = vpow.pop %v5165
    %v5167 = vmul.f32 %v5162, 1.442695
    %v5168 = vpow.pop %v5167
    %v5169 = vmul.f32 %v5163, 1.442695
    %v5170 = vpow.pop %v5169
    %v5171 = vmul.f32 %v5164, 1.442695
    %v5172 = vpow.pop %v5171
    %v5173 = vadd.f32 %v5166, 1.0
    %v5174 = vadd.f32 %v5168, 1.0
    %v5175 = vadd.f32 %v5170, 1.0
    %v5176 = vadd.f32 %v5172, 1.0
    %v5177 = vrcp.pop %v5173
    %v5178 = vmul.f32 1.0, %v5177
    %v5179 = vrcp.pop %v5174
    %v5180 = vmul.f32 1.0, %v5179
    %v5181 = vrcp.pop %v5175
    %v5182 = vmul.f32 1.0, %v5181
    %v5183 = vrcp.pop %v5176
    %v5184 = vmul.f32 1.0, %v5183
    %v5185 = vadd.f32 %v5121, %v1169
    %v5186 = vadd.f32 %v5123, %v1173
    %v5187 = vadd.f32 %v5125, %v1169
    %v5188 = vadd.f32 %v5127, %v1173
    %v5189 = vmul.f32 %v5150, %v5185
    %v5190 = vmul.f32 %v5152, %v5186
    %v5191 = vmul.f32 %v5154, %v5187
    %v5192 = vmul.f32 %v5156, %v5188
    %v5193 = vadd.f32 %v4416, %v5189
    %v5194 = vadd.f32 %v4417, %v5190
    %v5195 = vadd.f32 %v4422, %v5191
    %v5196 = vadd.f32 %v4423, %v5192
    %v5197 = vtanh.pop %v5193
    %v5198 = vtanh.pop %v5194
    %v5199 = vtanh.pop %v5195
    %v5200 = vtanh.pop %v5196
    %v5201 = vsub.f32 1.0, %v5178
    %v5202 = vsub.f32 1.0, %v5180
    %v5203 = vsub.f32 1.0, %v5182
    %v5204 = vsub.f32 1.0, %v5184
    %v5205 = vmul.f32 %v5201, %v5197
    %v5206 = vmul.f32 %v5202, %v5198
    %v5207 = vmul.f32 %v5203, %v5199
    %v5208 = vmul.f32 %v5204, %v5200
    %v5209 = vmul.f32 %v5178, %v4404
    %v5210 = vmul.f32 %v5180, %v4405
    %v5211 = vmul.f32 %v5182, %v4406
    %v5212 = vmul.f32 %v5184, %v4407
    %v5213 = vadd.f32 %v5205, %v5209
    %v5214 = vadd.f32 %v5206, %v5210
    %v5215 = vadd.f32 %v5207, %v5211
    %v5216 = vadd.f32 %v5208, %v5212
    %v5217 = vpack.c.bf16 %v5215, %v5213
    %v5218 = vpack.c.bf16 %v5216, %v5214
    %5219 = vst [vmem:[#allocation3 + $0x40] sm:$0xff] %v5217
    %5220 = vst [vmem:[#allocation3 + $0x48] sm:$0xff] %v5218
    %v5221 = vld [vmem:[#allocation2 + $0x1e0] sm:$0xff]
    %v5222 = vld [vmem:[#allocation2 + $0x1e8] sm:$0xff]
    %v5223 = vld [vmem:[#allocation2 + $0x1f0] sm:$0xff]
    %v5224 = vld [vmem:[#allocation2 + $0x1f8] sm:$0xff]
    %v5225 = vld [vmem:[#allocation2 + $0x200] sm:$0xff]
    %v5226 = vld [vmem:[#allocation2 + $0x208] sm:$0xff]
    %v5227 = vld [vmem:[#allocation2 + $0x210] sm:$0xff]
    %v5228 = vld [vmem:[#allocation2 + $0x218] sm:$0xff]
    %v5229 = vld [vmem:[#allocation2 + $0x220] sm:$0xff]
    %v5230 = vld [vmem:[#allocation2 + $0x228] sm:$0xff]
    %v5231 = vld [vmem:[#allocation2 + $0x230] sm:$0xff]
    %v5232 = vld [vmem:[#allocation2 + $0x238] sm:$0xff]
    %v5233 = vld [vmem:[#allocation7] sm:$0xff]
    %v5234 = vld [vmem:[#allocation7 + $0x8] sm:$0xff]
    %v5235 = vld [vmem:[#allocation7 + $0x10] sm:$0xff]
    %v5236 = vld [vmem:[#allocation7 + $0x18] sm:$0xff]
    %v5237 = vld [vmem:[#allocation7 + $0x20] sm:$0xff]
    %v5238 = vld [vmem:[#allocation7 + $0x28] sm:$0xff]
    %v5239 = vld [vmem:[#allocation7 + $0x30] sm:$0xff]
    %v5240 = vld [vmem:[#allocation7 + $0x38] sm:$0xff]
    %v5241 = vld [vmem:[#allocation7 + $0x40] sm:$0xff]
    %v5242 = vld [vmem:[#allocation7 + $0x48] sm:$0xff]
    %v5243 = vld [vmem:[#allocation7 + $0x50] sm:$0xff]
    %v5244 = vld [vmem:[#allocation7 + $0x58] sm:$0xff]
    %v5245 = vld [vmem:[#allocation7 + $0x60] sm:$0xff]
    %v5246 = vld [vmem:[#allocation7 + $0x68] sm:$0xff]
    %v5247 = vld [vmem:[#allocation7 + $0x70] sm:$0xff]
    %v5248 = vld [vmem:[#allocation7 + $0x78] sm:$0xff]
    %v5249 = vld [vmem:[#allocation7 + $0x80] sm:$0xff]
    %v5250 = vld [vmem:[#allocation7 + $0x88] sm:$0xff]
    %v5251 = vld [vmem:[#allocation7 + $0x90] sm:$0xff]
    %v5252 = vld [vmem:[#allocation7 + $0x98] sm:$0xff]
    %v5253 = vld [vmem:[#allocation7 + $0xa0] sm:$0xff]
    %v5254 = vld [vmem:[#allocation7 + $0xa8] sm:$0xff]
    %v5255 = vld [vmem:[#allocation7 + $0xb0] sm:$0xff]
    %v5256 = vld [vmem:[#allocation7 + $0xb8] sm:$0xff]
    %v5257 = vld [vmem:[#allocation7 + $0xc0] sm:$0xff]
    %v5258 = vld [vmem:[#allocation7 + $0xc8] sm:$0xff]
    %v5259 = vld [vmem:[#allocation7 + $0xd0] sm:$0xff]
    %v5260 = vld [vmem:[#allocation7 + $0xd8] sm:$0xff]
    %v5261 = vld [vmem:[#allocation7 + $0xe0] sm:$0xff]
    %v5262 = vld [vmem:[#allocation7 + $0xe8] sm:$0xff]
    %v5263 = vld [vmem:[#allocation7 + $0xf0] sm:$0xff]
    %v5264 = vld [vmem:[#allocation7 + $0xf8] sm:$0xff]
    %v5265 = vld [vmem:[#allocation7 + $0x100] sm:$0xff]
    %v5266 = vld [vmem:[#allocation7 + $0x108] sm:$0xff]
    %v5267 = vld [vmem:[#allocation7 + $0x110] sm:$0xff]
    %v5268 = vld [vmem:[#allocation7 + $0x118] sm:$0xff]
    %v5269 = vld [vmem:[#allocation7 + $0x120] sm:$0xff]
    %v5270 = vld [vmem:[#allocation7 + $0x128] sm:$0xff]
    %v5271 = vld [vmem:[#allocation7 + $0x130] sm:$0xff]
    %v5272 = vld [vmem:[#allocation7 + $0x138] sm:$0xff]
    %v5273 = vld [vmem:[#allocation7 + $0x140] sm:$0xff]
    %v5274 = vld [vmem:[#allocation7 + $0x148] sm:$0xff]
    %v5275 = vld [vmem:[#allocation7 + $0x150] sm:$0xff]
    %v5276 = vld [vmem:[#allocation7 + $0x158] sm:$0xff]
    %v5277 = vld [vmem:[#allocation7 + $0x160] sm:$0xff]
    %v5278 = vld [vmem:[#allocation7 + $0x168] sm:$0xff]
    %v5279 = vld [vmem:[#allocation7 + $0x170] sm:$0xff]
    %v5280 = vld [vmem:[#allocation7 + $0x178] sm:$0xff]
    %v5281 = vld [vmem:[#allocation7 + $0x180] sm:$0xff]
    %v5282 = vld [vmem:[#allocation7 + $0x188] sm:$0xff]
    %v5283 = vld [vmem:[#allocation7 + $0x190] sm:$0xff]
    %v5284 = vld [vmem:[#allocation7 + $0x198] sm:$0xff]
    %v5285 = vld [vmem:[#allocation7 + $0x1a0] sm:$0xff]
    %v5286 = vld [vmem:[#allocation7 + $0x1a8] sm:$0xff]
    %v5287 = vld [vmem:[#allocation7 + $0x1b0] sm:$0xff]
    %v5288 = vld [vmem:[#allocation7 + $0x1b8] sm:$0xff]
    %v5289 = vld [vmem:[#allocation7 + $0x1c0] sm:$0xff]
    %v5290 = vld [vmem:[#allocation7 + $0x1c8] sm:$0xff]
    %v5291 = vld [vmem:[#allocation7 + $0x1d0] sm:$0xff]
    %v5292 = vld [vmem:[#allocation7 + $0x1d8] sm:$0xff]
    %v5293 = vld [vmem:[#allocation7 + $0x1e0] sm:$0xff]
    %v5294 = vld [vmem:[#allocation7 + $0x1e8] sm:$0xff]
    %v5295 = vld [vmem:[#allocation7 + $0x1f0] sm:$0xff]
    %v5296 = vld [vmem:[#allocation7 + $0x1f8] sm:$0xff]
    %v5297 = vld [vmem:[#allocation7 + $0x200] sm:$0xff]
    %v5298 = vld [vmem:[#allocation7 + $0x208] sm:$0xff]
    %v5299 = vld [vmem:[#allocation7 + $0x210] sm:$0xff]
    %v5300 = vld [vmem:[#allocation7 + $0x218] sm:$0xff]
    %v5301 = vld [vmem:[#allocation7 + $0x220] sm:$0xff]
    %v5302 = vld [vmem:[#allocation7 + $0x228] sm:$0xff]
    %v5303 = vld [vmem:[#allocation7 + $0x230] sm:$0xff]
    %v5304 = vld [vmem:[#allocation7 + $0x238] sm:$0xff]
    %v5305 = vld [vmem:[#allocation7 + $0x240] sm:$0xff]
    %v5306 = vld [vmem:[#allocation7 + $0x248] sm:$0xff]
    %v5307 = vld [vmem:[#allocation7 + $0x250] sm:$0xff]
    %v5308 = vld [vmem:[#allocation7 + $0x258] sm:$0xff]
    %v5309 = vld [vmem:[#allocation7 + $0x260] sm:$0xff]
    %v5310 = vld [vmem:[#allocation7 + $0x268] sm:$0xff]
    %v5311 = vld [vmem:[#allocation7 + $0x270] sm:$0xff]
    %v5312 = vld [vmem:[#allocation7 + $0x278] sm:$0xff]
    %v5313 = vld [vmem:[#allocation7 + $0x280] sm:$0xff]
    %v5314 = vld [vmem:[#allocation7 + $0x288] sm:$0xff]
    %v5315 = vld [vmem:[#allocation7 + $0x290] sm:$0xff]
    %v5316 = vld [vmem:[#allocation7 + $0x298] sm:$0xff]
    %v5317 = vld [vmem:[#allocation7 + $0x2a0] sm:$0xff]
    %v5318 = vld [vmem:[#allocation7 + $0x2a8] sm:$0xff]
    %v5319 = vld [vmem:[#allocation7 + $0x2b0] sm:$0xff]
    %v5320 = vld [vmem:[#allocation7 + $0x2b8] sm:$0xff]
    %v5321 = vld [vmem:[#allocation7 + $0x2c0] sm:$0xff]
    %v5322 = vld [vmem:[#allocation7 + $0x2c8] sm:$0xff]
    %v5323 = vld [vmem:[#allocation7 + $0x2d0] sm:$0xff]
    %v5324 = vld [vmem:[#allocation7 + $0x2d8] sm:$0xff]
    %v5325 = vld [vmem:[#allocation7 + $0x2e0] sm:$0xff]
    %v5326 = vld [vmem:[#allocation7 + $0x2e8] sm:$0xff]
    %v5327 = vld [vmem:[#allocation7 + $0x2f0] sm:$0xff]
    %v5328 = vld [vmem:[#allocation7 + $0x2f8] sm:$0xff]
    %v5425 = vunpack.c.l.b16 %v5233
    %v5426 = vunpack.c.h.b16 %v5233
    %v5427 = vunpack.c.l.b16 %v5234
    %v5428 = vunpack.c.h.b16 %v5234
    %v5429 = vunpack.c.l.b16 %v5235
    %v5430 = vunpack.c.h.b16 %v5235
    %v5431 = vunpack.c.l.b16 %v5236
    %v5432 = vunpack.c.h.b16 %v5236
    %v5433 = vunpack.c.l.b16 %v5237
    %v5434 = vunpack.c.h.b16 %v5237
    %v5435 = vunpack.c.l.b16 %v5238
    %v5436 = vunpack.c.h.b16 %v5238
    %v5437 = vunpack.c.l.b16 %v5239
    %v5438 = vunpack.c.h.b16 %v5239
    %v5439 = vunpack.c.l.b16 %v5240
    %v5440 = vunpack.c.h.b16 %v5240
    %v5441 = vunpack.c.l.b16 %v5241
    %v5442 = vunpack.c.h.b16 %v5241
    %v5443 = vunpack.c.l.b16 %v5242
    %v5444 = vunpack.c.h.b16 %v5242
    %v5445 = vunpack.c.l.b16 %v5243
    %v5446 = vunpack.c.h.b16 %v5243
    %v5447 = vunpack.c.l.b16 %v5244
    %v5448 = vunpack.c.h.b16 %v5244
    %v5449 = vunpack.c.l.b16 %v5245
    %v5450 = vunpack.c.h.b16 %v5245
    %v5451 = vunpack.c.l.b16 %v5246
    %v5452 = vunpack.c.h.b16 %v5246
    %v5453 = vunpack.c.l.b16 %v5247
    %v5454 = vunpack.c.h.b16 %v5247
    %v5455 = vunpack.c.l.b16 %v5248
    %v5456 = vunpack.c.h.b16 %v5248
    %v5457 = vunpack.c.l.b16 %v5249
    %v5458 = vunpack.c.h.b16 %v5249
    %v5459 = vunpack.c.l.b16 %v5250
    %v5460 = vunpack.c.h.b16 %v5250
    %v5461 = vunpack.c.l.b16 %v5251
    %v5462 = vunpack.c.h.b16 %v5251
    %v5463 = vunpack.c.l.b16 %v5252
    %v5464 = vunpack.c.h.b16 %v5252
    %v5465 = vunpack.c.l.b16 %v5253
    %v5466 = vunpack.c.h.b16 %v5253
    %v5467 = vunpack.c.l.b16 %v5254
    %v5468 = vunpack.c.h.b16 %v5254
    %v5469 = vunpack.c.l.b16 %v5255
    %v5470 = vunpack.c.h.b16 %v5255
    %v5471 = vunpack.c.l.b16 %v5256
    %v5472 = vunpack.c.h.b16 %v5256
    %v5473 = vunpack.c.l.b16 %v5257
    %v5474 = vunpack.c.h.b16 %v5257
    %v5475 = vunpack.c.l.b16 %v5258
    %v5476 = vunpack.c.h.b16 %v5258
    %v5477 = vunpack.c.l.b16 %v5259
    %v5478 = vunpack.c.h.b16 %v5259
    %v5479 = vunpack.c.l.b16 %v5260
    %v5480 = vunpack.c.h.b16 %v5260
    %v5481 = vunpack.c.l.b16 %v5261
    %v5482 = vunpack.c.h.b16 %v5261
    %v5483 = vunpack.c.l.b16 %v5262
    %v5484 = vunpack.c.h.b16 %v5262
    %v5485 = vunpack.c.l.b16 %v5263
    %v5486 = vunpack.c.h.b16 %v5263
    %v5487 = vunpack.c.l.b16 %v5264
    %v5488 = vunpack.c.h.b16 %v5264
    %v5489 = vunpack.c.l.b16 %v5265
    %v5490 = vunpack.c.h.b16 %v5265
    %v5491 = vunpack.c.l.b16 %v5266
    %v5492 = vunpack.c.h.b16 %v5266
    %v5493 = vunpack.c.l.b16 %v5267
    %v5494 = vunpack.c.h.b16 %v5267
    %v5495 = vunpack.c.l.b16 %v5268
    %v5496 = vunpack.c.h.b16 %v5268
    %v5497 = vunpack.c.l.b16 %v5269
    %v5498 = vunpack.c.h.b16 %v5269
    %v5499 = vunpack.c.l.b16 %v5270
    %v5500 = vunpack.c.h.b16 %v5270
    %v5501 = vunpack.c.l.b16 %v5271
    %v5502 = vunpack.c.h.b16 %v5271
    %v5503 = vunpack.c.l.b16 %v5272
    %v5504 = vunpack.c.h.b16 %v5272
    %v5505 = vunpack.c.l.b16 %v5273
    %v5506 = vunpack.c.h.b16 %v5273
    %v5507 = vunpack.c.l.b16 %v5274
    %v5508 = vunpack.c.h.b16 %v5274
    %v5509 = vunpack.c.l.b16 %v5275
    %v5510 = vunpack.c.h.b16 %v5275
    %v5511 = vunpack.c.l.b16 %v5276
    %v5512 = vunpack.c.h.b16 %v5276
    %v5513 = vunpack.c.l.b16 %v5277
    %v5514 = vunpack.c.h.b16 %v5277
    %v5515 = vunpack.c.l.b16 %v5278
    %v5516 = vunpack.c.h.b16 %v5278
    %v5517 = vunpack.c.l.b16 %v5279
    %v5518 = vunpack.c.h.b16 %v5279
    %v5519 = vunpack.c.l.b16 %v5280
    %v5520 = vunpack.c.h.b16 %v5280
    %v5521 = vunpack.c.l.b16 %v5281
    %v5522 = vunpack.c.h.b16 %v5281
    %v5523 = vunpack.c.l.b16 %v5282
    %v5524 = vunpack.c.h.b16 %v5282
    %v5525 = vunpack.c.l.b16 %v5283
    %v5526 = vunpack.c.h.b16 %v5283
    %v5527 = vunpack.c.l.b16 %v5284
    %v5528 = vunpack.c.h.b16 %v5284
    %v5529 = vunpack.c.l.b16 %v5285
    %v5530 = vunpack.c.h.b16 %v5285
    %v5531 = vunpack.c.l.b16 %v5286
    %v5532 = vunpack.c.h.b16 %v5286
    %v5533 = vunpack.c.l.b16 %v5287
    %v5534 = vunpack.c.h.b16 %v5287
    %v5535 = vunpack.c.l.b16 %v5288
    %v5536 = vunpack.c.h.b16 %v5288
    %v5537 = vunpack.c.l.b16 %v5289
    %v5538 = vunpack.c.h.b16 %v5289
    %v5539 = vunpack.c.l.b16 %v5290
    %v5540 = vunpack.c.h.b16 %v5290
    %v5541 = vunpack.c.l.b16 %v5291
    %v5542 = vunpack.c.h.b16 %v5291
    %v5543 = vunpack.c.l.b16 %v5292
    %v5544 = vunpack.c.h.b16 %v5292
    %v5545 = vunpack.c.l.b16 %v5293
    %v5546 = vunpack.c.h.b16 %v5293
    %v5547 = vunpack.c.l.b16 %v5294
    %v5548 = vunpack.c.h.b16 %v5294
    %v5549 = vunpack.c.l.b16 %v5295
    %v5550 = vunpack.c.h.b16 %v5295
    %v5551 = vunpack.c.l.b16 %v5296
    %v5552 = vunpack.c.h.b16 %v5296
    %v5553 = vunpack.c.l.b16 %v5297
    %v5554 = vunpack.c.h.b16 %v5297
    %v5555 = vunpack.c.l.b16 %v5298
    %v5556 = vunpack.c.h.b16 %v5298
    %v5557 = vunpack.c.l.b16 %v5299
    %v5558 = vunpack.c.h.b16 %v5299
    %v5559 = vunpack.c.l.b16 %v5300
    %v5560 = vunpack.c.h.b16 %v5300
    %v5561 = vunpack.c.l.b16 %v5301
    %v5562 = vunpack.c.h.b16 %v5301
    %v5563 = vunpack.c.l.b16 %v5302
    %v5564 = vunpack.c.h.b16 %v5302
    %v5565 = vunpack.c.l.b16 %v5303
    %v5566 = vunpack.c.h.b16 %v5303
    %v5567 = vunpack.c.l.b16 %v5304
    %v5568 = vunpack.c.h.b16 %v5304
    %v5569 = vunpack.c.l.b16 %v5305
    %v5570 = vunpack.c.h.b16 %v5305
    %v5571 = vunpack.c.l.b16 %v5306
    %v5572 = vunpack.c.h.b16 %v5306
    %v5573 = vunpack.c.l.b16 %v5307
    %v5574 = vunpack.c.h.b16 %v5307
    %v5575 = vunpack.c.l.b16 %v5308
    %v5576 = vunpack.c.h.b16 %v5308
    %v5577 = vunpack.c.l.b16 %v5309
    %v5578 = vunpack.c.h.b16 %v5309
    %v5579 = vunpack.c.l.b16 %v5310
    %v5580 = vunpack.c.h.b16 %v5310
    %v5581 = vunpack.c.l.b16 %v5311
    %v5582 = vunpack.c.h.b16 %v5311
    %v5583 = vunpack.c.l.b16 %v5312
    %v5584 = vunpack.c.h.b16 %v5312
    %v5585 = vunpack.c.l.b16 %v5313
    %v5586 = vunpack.c.h.b16 %v5313
    %v5587 = vunpack.c.l.b16 %v5314
    %v5588 = vunpack.c.h.b16 %v5314
    %v5589 = vunpack.c.l.b16 %v5315
    %v5590 = vunpack.c.h.b16 %v5315
    %v5591 = vunpack.c.l.b16 %v5316
    %v5592 = vunpack.c.h.b16 %v5316
    %v5593 = vunpack.c.l.b16 %v5317
    %v5594 = vunpack.c.h.b16 %v5317
    %v5595 = vunpack.c.l.b16 %v5318
    %v5596 = vunpack.c.h.b16 %v5318
    %v5597 = vunpack.c.l.b16 %v5319
    %v5598 = vunpack.c.h.b16 %v5319
    %v5599 = vunpack.c.l.b16 %v5320
    %v5600 = vunpack.c.h.b16 %v5320
    %v5601 = vunpack.c.l.b16 %v5321
    %v5602 = vunpack.c.h.b16 %v5321
    %v5603 = vunpack.c.l.b16 %v5322
    %v5604 = vunpack.c.h.b16 %v5322
    %v5605 = vunpack.c.l.b16 %v5323
    %v5606 = vunpack.c.h.b16 %v5323
    %v5607 = vunpack.c.l.b16 %v5324
    %v5608 = vunpack.c.h.b16 %v5324
    %v5609 = vunpack.c.l.b16 %v5325
    %v5610 = vunpack.c.h.b16 %v5325
    %v5611 = vunpack.c.l.b16 %v5326
    %v5612 = vunpack.c.h.b16 %v5326
    %v5613 = vunpack.c.l.b16 %v5327
    %v5614 = vunpack.c.h.b16 %v5327
    %v5615 = vunpack.c.l.b16 %v5328
    %v5616 = vunpack.c.h.b16 %v5328
    %v5617 = vpack.c.b16 %v5431, %v5425
    %v5618 = vpack.c.b16 %v5432, %v5426
    %v5619 = vpack.c.b16 %v5433, %v5427
    %v5620 = vpack.c.b16 %v5434, %v5428
    %v5621 = vpack.c.b16 %v5435, %v5429
    %v5622 = vpack.c.b16 %v5436, %v5430
    %v5623 = vpack.c.b16 %v5443, %v5437
    %v5624 = vpack.c.b16 %v5444, %v5438
    %v5625 = vpack.c.b16 %v5445, %v5439
    %v5626 = vpack.c.b16 %v5446, %v5440
    %v5627 = vpack.c.b16 %v5447, %v5441
    %v5628 = vpack.c.b16 %v5448, %v5442
    %v5629 = vpack.c.b16 %v5455, %v5449
    %v5630 = vpack.c.b16 %v5456, %v5450
    %v5631 = vpack.c.b16 %v5457, %v5451
    %v5632 = vpack.c.b16 %v5458, %v5452
    %v5633 = vpack.c.b16 %v5459, %v5453
    %v5634 = vpack.c.b16 %v5460, %v5454
    %v5635 = vpack.c.b16 %v5467, %v5461
    %v5636 = vpack.c.b16 %v5468, %v5462
    %v5637 = vpack.c.b16 %v5469, %v5463
    %v5638 = vpack.c.b16 %v5470, %v5464
    %v5639 = vpack.c.b16 %v5471, %v5465
    %v5640 = vpack.c.b16 %v5472, %v5466
    %v5641 = vpack.c.b16 %v5479, %v5473
    %v5642 = vpack.c.b16 %v5480, %v5474
    %v5643 = vpack.c.b16 %v5481, %v5475
    %v5644 = vpack.c.b16 %v5482, %v5476
    %v5645 = vpack.c.b16 %v5483, %v5477
    %v5646 = vpack.c.b16 %v5484, %v5478
    %v5647 = vpack.c.b16 %v5491, %v5485
    %v5648 = vpack.c.b16 %v5492, %v5486
    %v5649 = vpack.c.b16 %v5493, %v5487
    %v5650 = vpack.c.b16 %v5494, %v5488
    %v5651 = vpack.c.b16 %v5495, %v5489
    %v5652 = vpack.c.b16 %v5496, %v5490
    %v5653 = vpack.c.b16 %v5503, %v5497
    %v5654 = vpack.c.b16 %v5504, %v5498
    %v5655 = vpack.c.b16 %v5505, %v5499
    %v5656 = vpack.c.b16 %v5506, %v5500
    %v5657 = vpack.c.b16 %v5507, %v5501
    %v5658 = vpack.c.b16 %v5508, %v5502
    %v5659 = vpack.c.b16 %v5515, %v5509
    %v5660 = vpack.c.b16 %v5516, %v5510
    %v5661 = vpack.c.b16 %v5517, %v5511
    %v5662 = vpack.c.b16 %v5518, %v5512
    %v5663 = vpack.c.b16 %v5519, %v5513
    %v5664 = vpack.c.b16 %v5520, %v5514
    %v5665 = vpack.c.b16 %v5527, %v5521
    %v5666 = vpack.c.b16 %v5528, %v5522
    %v5667 = vpack.c.b16 %v5529, %v5523
    %v5668 = vpack.c.b16 %v5530, %v5524
    %v5669 = vpack.c.b16 %v5531, %v5525
    %v5670 = vpack.c.b16 %v5532, %v5526
    %v5671 = vpack.c.b16 %v5539, %v5533
    %v5672 = vpack.c.b16 %v5540, %v5534
    %v5673 = vpack.c.b16 %v5541, %v5535
    %v5674 = vpack.c.b16 %v5542, %v5536
    %v5675 = vpack.c.b16 %v5543, %v5537
    %v5676 = vpack.c.b16 %v5544, %v5538
    %v5677 = vpack.c.b16 %v5551, %v5545
    %v5678 = vpack.c.b16 %v5552, %v5546
    %v5679 = vpack.c.b16 %v5553, %v5547
    %v5680 = vpack.c.b16 %v5554, %v5548
    %v5681 = vpack.c.b16 %v5555, %v5549
    %v5682 = vpack.c.b16 %v5556, %v5550
    %v5683 = vpack.c.b16 %v5563, %v5557
    %v5684 = vpack.c.b16 %v5564, %v5558
    %v5685 = vpack.c.b16 %v5565, %v5559
    %v5686 = vpack.c.b16 %v5566, %v5560
    %v5687 = vpack.c.b16 %v5567, %v5561
    %v5688 = vpack.c.b16 %v5568, %v5562
    %v5689 = vpack.c.b16 %v5575, %v5569
    %v5690 = vpack.c.b16 %v5576, %v5570
    %v5691 = vpack.c.b16 %v5577, %v5571
    %v5692 = vpack.c.b16 %v5578, %v5572
    %v5693 = vpack.c.b16 %v5579, %v5573
    %v5694 = vpack.c.b16 %v5580, %v5574
    %v5695 = vpack.c.b16 %v5587, %v5581
    %v5696 = vpack.c.b16 %v5588, %v5582
    %v5697 = vpack.c.b16 %v5589, %v5583
    %v5698 = vpack.c.b16 %v5590, %v5584
    %v5699 = vpack.c.b16 %v5591, %v5585
    %v5700 = vpack.c.b16 %v5592, %v5586
    %v5701 = vpack.c.b16 %v5599, %v5593
    %v5702 = vpack.c.b16 %v5600, %v5594
    %v5703 = vpack.c.b16 %v5601, %v5595
    %v5704 = vpack.c.b16 %v5602, %v5596
    %v5705 = vpack.c.b16 %v5603, %v5597
    %v5706 = vpack.c.b16 %v5604, %v5598
    %v5707 = vpack.c.b16 %v5611, %v5605
    %v5708 = vpack.c.b16 %v5612, %v5606
    %v5709 = vpack.c.b16 %v5613, %v5607
    %v5710 = vpack.c.b16 %v5614, %v5608
    %v5711 = vpack.c.b16 %v5615, %v5609
    %v5712 = vpack.c.b16 %v5616, %v5610
    %5809 = vmatprep.subr.bf16.mxu0 %v5618
    %5810 = vmatpush1.bf16.msra.mxu0 %v5617
    %5811 = vmatprep.subr.bf16.mxu0 %v5624
    %5812 = vmatpush1.bf16.msra.mxu0 %v5623
    %5813 = vmatprep.subr.bf16.mxu0 %v5630
    %5814 = vmatpush1.bf16.msra.mxu0 %v5629
    %5815 = vmatprep.subr.bf16.mxu0 %v5636
    %5816 = vmatpush1.bf16.msra.mxu0 %v5635
    %5817 = vmatprep.subr.bf16.mxu0 %v5642
    %5818 = vmatpush1.bf16.msra.mxu0 %v5641
    %5819 = vmatprep.subr.bf16.mxu0 %v5648
    %5820 = vmatpush1.bf16.msra.mxu0 %v5647
    %5821 = vmatprep.subr.bf16.mxu0 %v5654
    %5822 = vmatpush1.bf16.msra.mxu0 %v5653
    %5823 = vmatprep.subr.bf16.mxu0 %v5660
    %5824 = vmatpush1.bf16.msra.mxu0 %v5659
    %5825 = vmatprep.subr.bf16.mxu0 %v5666
    %5826 = vmatpush1.bf16.msra.mxu0 %v5665
    %5827 = vmatprep.subr.bf16.mxu0 %v5672
    %5828 = vmatpush1.bf16.msra.mxu0 %v5671
    %5829 = vmatprep.subr.bf16.mxu0 %v5678
    %5830 = vmatpush1.bf16.msra.mxu0 %v5677
    %5831 = vmatprep.subr.bf16.mxu0 %v5684
    %5832 = vmatpush1.bf16.msra.mxu0 %v5683
    %5833 = vmatprep.subr.bf16.mxu0 %v5690
    %5834 = vmatpush1.bf16.msra.mxu0 %v5689
    %5835 = vmatprep.subr.bf16.mxu0 %v5696
    %5836 = vmatpush1.bf16.msra.mxu0 %v5695
    %5837 = vmatprep.subr.bf16.mxu0 %v5702
    %5838 = vmatpush1.bf16.msra.mxu0 %v5701
    %5839 = vmatprep.subr.bf16.mxu0 %v5708
    %5840 = vmatpush1.bf16.msra.mxu0 %v5707
    %5841 = vmatprep.mubr.bf16.mxu0 %v5218
    %5842 = vmatmul.mubr.bf16.gmra.mrb[0].mxu0 %v5217
    %v5843 = vpop.f32.mrb[0].mxu0
    %v5844 = vadd.f32 0.0, %v5843
    %v5845 = vpop.f32.mrb[0].mxu0
    %v5846 = vadd.f32 0.0, %v5845
    %v5847 = vpop.f32.mrb[0].mxu0
    %v5848 = vadd.f32 0.0, %v5847
    %v5849 = vpop.f32.mrb[0].mxu0
    %v5850 = vadd.f32 0.0, %v5849
    %5851 = vdwg.mxu0
    %5852 = vmatprep.subr.bf16.mxu0 %v5620
    %5853 = vmatpush1.bf16.msra.mxu0 %v5619
    %5854 = vmatprep.subr.bf16.mxu0 %v5626
    %5855 = vmatpush1.bf16.msra.mxu0 %v5625
    %5856 = vmatprep.subr.bf16.mxu0 %v5632
    %5857 = vmatpush1.bf16.msra.mxu0 %v5631
    %5858 = vmatprep.subr.bf16.mxu0 %v5638
    %5859 = vmatpush1.bf16.msra.mxu0 %v5637
    %5860 = vmatprep.subr.bf16.mxu0 %v5644
    %5861 = vmatpush1.bf16.msra.mxu0 %v5643
    %5862 = vmatprep.subr.bf16.mxu0 %v5650
    %5863 = vmatpush1.bf16.msra.mxu0 %v5649
    %5864 = vmatprep.subr.bf16.mxu0 %v5656
    %5865 = vmatpush1.bf16.msra.mxu0 %v5655
    %5866 = vmatprep.subr.bf16.mxu0 %v5662
    %5867 = vmatpush1.bf16.msra.mxu0 %v5661
    %5868 = vmatprep.subr.bf16.mxu0 %v5668
    %5869 = vmatpush1.bf16.msra.mxu0 %v5667
    %5870 = vmatprep.subr.bf16.mxu0 %v5674
    %5871 = vmatpush1.bf16.msra.mxu0 %v5673
    %5872 = vmatprep.subr.bf16.mxu0 %v5680
    %5873 = vmatpush1.bf16.msra.mxu0 %v5679
    %5874 = vmatprep.subr.bf16.mxu0 %v5686
    %5875 = vmatpush1.bf16.msra.mxu0 %v5685
    %5876 = vmatprep.subr.bf16.mxu0 %v5692
    %5877 = vmatpush1.bf16.msra.mxu0 %v5691
    %5878 = vmatprep.subr.bf16.mxu0 %v5698
    %5879 = vmatpush1.bf16.msra.mxu0 %v5697
    %5880 = vmatprep.subr.bf16.mxu0 %v5704
    %5881 = vmatpush1.bf16.msra.mxu0 %v5703
    %5882 = vmatprep.subr.bf16.mxu0 %v5710
    %5883 = vmatpush1.bf16.msra.mxu0 %v5709
    %5884 = vmatprep.mubr.bf16.mxu0 %v5218
    %5885 = vmatmul.mubr.bf16.gmra.mrb[0].mxu0 %v5217
    %v5886 = vpop.f32.mrb[0].mxu0
    %v5887 = vadd.f32 0.0, %v5886
    %v5888 = vpop.f32.mrb[0].mxu0
    %v5889 = vadd.f32 0.0, %v5888
    %v5890 = vpop.f32.mrb[0].mxu0
    %v5891 = vadd.f32 0.0, %v5890
    %v5892 = vpop.f32.mrb[0].mxu0
    %v5893 = vadd.f32 0.0, %v5892
    %5894 = vdwg.mxu0
    %5895 = vmatprep.subr.bf16.mxu0 %v5622
    %5896 = vmatpush1.bf16.msra.mxu0 %v5621
    %5897 = vmatprep.subr.bf16.mxu0 %v5628
    %5898 = vmatpush1.bf16.msra.mxu0 %v5627
    %5899 = vmatprep.subr.bf16.mxu0 %v5634
    %5900 = vmatpush1.bf16.msra.mxu0 %v5633
    %5901 = vmatprep.subr.bf16.mxu0 %v5640
    %5902 = vmatpush1.bf16.msra.mxu0 %v5639
    %5903 = vmatprep.subr.bf16.mxu0 %v5646
    %5904 = vmatpush1.bf16.msra.mxu0 %v5645
    %5905 = vmatprep.subr.bf16.mxu0 %v5652
    %5906 = vmatpush1.bf16.msra.mxu0 %v5651
    %5907 = vmatprep.subr.bf16.mxu0 %v5658
    %5908 = vmatpush1.bf16.msra.mxu0 %v5657
    %5909 = vmatprep.subr.bf16.mxu0 %v5664
    %5910 = vmatpush1.bf16.msra.mxu0 %v5663
    %5911 = vmatprep.subr.bf16.mxu0 %v5670
    %5912 = vmatpush1.bf16.msra.mxu0 %v5669
    %5913 = vmatprep.subr.bf16.mxu0 %v5676
    %5914 = vmatpush1.bf16.msra.mxu0 %v5675
    %5915 = vmatprep.subr.bf16.mxu0 %v5682
    %5916 = vmatpush1.bf16.msra.mxu0 %v5681
    %5917 = vmatprep.subr.bf16.mxu0 %v5688
    %5918 = vmatpush1.bf16.msra.mxu0 %v5687
    %5919 = vmatprep.subr.bf16.mxu0 %v5694
    %5920 = vmatpush1.bf16.msra.mxu0 %v5693
    %5921 = vmatprep.subr.bf16.mxu0 %v5700
    %5922 = vmatpush1.bf16.msra.mxu0 %v5699
    %5923 = vmatprep.subr.bf16.mxu0 %v5706
    %5924 = vmatpush1.bf16.msra.mxu0 %v5705
    %5925 = vmatprep.subr.bf16.mxu0 %v5712
    %5926 = vmatpush1.bf16.msra.mxu0 %v5711
    %5927 = vmatprep.mubr.bf16.mxu0 %v5218
    %5928 = vmatmul.mubr.bf16.gmra.mrb[0].mxu0 %v5217
    %v5929 = vpop.f32.mrb[0].mxu0
    %v5930 = vadd.f32 0.0, %v5929
    %v5931 = vpop.f32.mrb[0].mxu0
    %v5932 = vadd.f32 0.0, %v5931
    %v5933 = vpop.f32.mrb[0].mxu0
    %v5934 = vadd.f32 0.0, %v5933
    %v5935 = vpop.f32.mrb[0].mxu0
    %v5936 = vadd.f32 0.0, %v5935
    %5937 = vdwg.mxu0
    %v5938 = vadd.f32 %v5221, %v5844
    %v5939 = vadd.f32 %v5222, %v5846
    %v5940 = vadd.f32 %v5227, %v5848
    %v5941 = vadd.f32 %v5228, %v5850
    %v5942 = vxor.u32 %v5938, 2147483648
    %v5943 = vxor.u32 %v5939, 2147483648
    %v5944 = vxor.u32 %v5940, 2147483648
    %v5945 = vxor.u32 %v5941, 2147483648
    %v5946 = vmul.f32 %v5942, 1.442695
    %v5947 = vpow.pop %v5946
    %v5948 = vmul.f32 %v5943, 1.442695
    %v5949 = vpow.pop %v5948
    %v5950 = vmul.f32 %v5944, 1.442695
    %v5951 = vpow.pop %v5950
    %v5952 = vmul.f32 %v5945, 1.442695
    %v5953 = vpow.pop %v5952
    %v5954 = vadd.f32 %v5947, 1.0
    %v5955 = vadd.f32 %v5949, 1.0
    %v5956 = vadd.f32 %v5951, 1.0
    %v5957 = vadd.f32 %v5953, 1.0
    %v5958 = vrcp.pop %v5954
    %v5959 = vmul.f32 1.0, %v5958
    %v5960 = vrcp.pop %v5955
    %v5961 = vmul.f32 1.0, %v5960
    %v5962 = vrcp.pop %v5956
    %v5963 = vmul.f32 1.0, %v5962
    %v5964 = vrcp.pop %v5957
    %v5965 = vmul.f32 1.0, %v5964
    %v5966 = vadd.f32 %v5223, %v5887
    %v5967 = vadd.f32 %v5224, %v5889
    %v5968 = vadd.f32 %v5229, %v5891
    %v5969 = vadd.f32 %v5230, %v5893
    %v5970 = vxor.u32 %v5966, 2147483648
    %v5971 = vxor.u32 %v5967, 2147483648
    %v5972 = vxor.u32 %v5968, 2147483648
    %v5973 = vxor.u32 %v5969, 2147483648
    %v5974 = vmul.f32 %v5970, 1.442695
    %v5975 = vpow.pop %v5974
    %v5976 = vmul.f32 %v5971, 1.442695
    %v5977 = vpow.pop %v5976
    %v5978 = vmul.f32 %v5972, 1.442695
    %v5979 = vpow.pop %v5978
    %v5980 = vmul.f32 %v5973, 1.442695
    %v5981 = vpow.pop %v5980
    %v5982 = vadd.f32 %v5975, 1.0
    %v5983 = vadd.f32 %v5977, 1.0
    %v5984 = vadd.f32 %v5979, 1.0
    %v5985 = vadd.f32 %v5981, 1.0
    %v5986 = vrcp.pop %v5982
    %v5987 = vmul.f32 1.0, %v5986
    %v5988 = vrcp.pop %v5983
    %v5989 = vmul.f32 1.0, %v5988
    %v5990 = vrcp.pop %v5984
    %v5991 = vmul.f32 1.0, %v5990
    %v5992 = vrcp.pop %v5985
    %v5993 = vmul.f32 1.0, %v5992
    %v5994 = vadd.f32 %v5930, %v1169
    %v5995 = vadd.f32 %v5932, %v1173
    %v5996 = vadd.f32 %v5934, %v1169
    %v5997 = vadd.f32 %v5936, %v1173
    %v5998 = vmul.f32 %v5959, %v5994
    %v5999 = vmul.f32 %v5961, %v5995
    %v6000 = vmul.f32 %v5963, %v5996
    %v6001 = vmul.f32 %v5965, %v5997
    %v6002 = vadd.f32 %v5225, %v5998
    %v6003 = vadd.f32 %v5226, %v5999
    %v6004 = vadd.f32 %v5231, %v6000
    %v6005 = vadd.f32 %v5232, %v6001
    %v6006 = vtanh.pop %v6002
    %v6007 = vtanh.pop %v6003
    %v6008 = vtanh.pop %v6004
    %v6009 = vtanh.pop %v6005
    %v6010 = vsub.f32 1.0, %v5987
    %v6011 = vsub.f32 1.0, %v5989
    %v6012 = vsub.f32 1.0, %v5991
    %v6013 = vsub.f32 1.0, %v5993
    %v6014 = vmul.f32 %v6010, %v6006
    %v6015 = vmul.f32 %v6011, %v6007
    %v6016 = vmul.f32 %v6012, %v6008
    %v6017 = vmul.f32 %v6013, %v6009
    %v6018 = vmul.f32 %v5987, %v5213
    %v6019 = vmul.f32 %v5989, %v5214
    %v6020 = vmul.f32 %v5991, %v5215
    %v6021 = vmul.f32 %v5993, %v5216
    %v6022 = vadd.f32 %v6014, %v6018
    %v6023 = vadd.f32 %v6015, %v6019
    %v6024 = vadd.f32 %v6016, %v6020
    %v6025 = vadd.f32 %v6017, %v6021
    %v6026 = vpack.c.bf16 %v6024, %v6022
    %v6027 = vpack.c.bf16 %v6025, %v6023
    %6028 = vst [vmem:[#allocation3 + $0x50] sm:$0xff] %v6026
    %6029 = vst [vmem:[#allocation3 + $0x58] sm:$0xff] %v6027
    %v6030 = vld [vmem:[#allocation2 + $0x240] sm:$0xff]
    %v6031 = vld [vmem:[#allocation2 + $0x248] sm:$0xff]
    %v6032 = vld [vmem:[#allocation2 + $0x250] sm:$0xff]
    %v6033 = vld [vmem:[#allocation2 + $0x258] sm:$0xff]
    %v6034 = vld [vmem:[#allocation2 + $0x260] sm:$0xff]
    %v6035 = vld [vmem:[#allocation2 + $0x268] sm:$0xff]
    %v6036 = vld [vmem:[#allocation2 + $0x270] sm:$0xff]
    %v6037 = vld [vmem:[#allocation2 + $0x278] sm:$0xff]
    %v6038 = vld [vmem:[#allocation2 + $0x280] sm:$0xff]
    %v6039 = vld [vmem:[#allocation2 + $0x288] sm:$0xff]
    %v6040 = vld [vmem:[#allocation2 + $0x290] sm:$0xff]
    %v6041 = vld [vmem:[#allocation2 + $0x298] sm:$0xff]
    %v6042 = vld [vmem:[#allocation7] sm:$0xff]
    %v6043 = vld [vmem:[#allocation7 + $0x8] sm:$0xff]
    %v6044 = vld [vmem:[#allocation7 + $0x10] sm:$0xff]
    %v6045 = vld [vmem:[#allocation7 + $0x18] sm:$0xff]
    %v6046 = vld [vmem:[#allocation7 + $0x20] sm:$0xff]
    %v6047 = vld [vmem:[#allocation7 + $0x28] sm:$0xff]
    %v6048 = vld [vmem:[#allocation7 + $0x30] sm:$0xff]
    %v6049 = vld [vmem:[#allocation7 + $0x38] sm:$0xff]
    %v6050 = vld [vmem:[#allocation7 + $0x40] sm:$0xff]
    %v6051 = vld [vmem:[#allocation7 + $0x48] sm:$0xff]
    %v6052 = vld [vmem:[#allocation7 + $0x50] sm:$0xff]
    %v6053 = vld [vmem:[#allocation7 + $0x58] sm:$0xff]
    %v6054 = vld [vmem:[#allocation7 + $0x60] sm:$0xff]
    %v6055 = vld [vmem:[#allocation7 + $0x68] sm:$0xff]
    %v6056 = vld [vmem:[#allocation7 + $0x70] sm:$0xff]
    %v6057 = vld [vmem:[#allocation7 + $0x78] sm:$0xff]
    %v6058 = vld [vmem:[#allocation7 + $0x80] sm:$0xff]
    %v6059 = vld [vmem:[#allocation7 + $0x88] sm:$0xff]
    %v6060 = vld [vmem:[#allocation7 + $0x90] sm:$0xff]
    %v6061 = vld [vmem:[#allocation7 + $0x98] sm:$0xff]
    %v6062 = vld [vmem:[#allocation7 + $0xa0] sm:$0xff]
    %v6063 = vld [vmem:[#allocation7 + $0xa8] sm:$0xff]
    %v6064 = vld [vmem:[#allocation7 + $0xb0] sm:$0xff]
    %v6065 = vld [vmem:[#allocation7 + $0xb8] sm:$0xff]
    %v6066 = vld [vmem:[#allocation7 + $0xc0] sm:$0xff]
    %v6067 = vld [vmem:[#allocation7 + $0xc8] sm:$0xff]
    %v6068 = vld [vmem:[#allocation7 + $0xd0] sm:$0xff]
    %v6069 = vld [vmem:[#allocation7 + $0xd8] sm:$0xff]
    %v6070 = vld [vmem:[#allocation7 + $0xe0] sm:$0xff]
    %v6071 = vld [vmem:[#allocation7 + $0xe8] sm:$0xff]
    %v6072 = vld [vmem:[#allocation7 + $0xf0] sm:$0xff]
    %v6073 = vld [vmem:[#allocation7 + $0xf8] sm:$0xff]
    %v6074 = vld [vmem:[#allocation7 + $0x100] sm:$0xff]
    %v6075 = vld [vmem:[#allocation7 + $0x108] sm:$0xff]
    %v6076 = vld [vmem:[#allocation7 + $0x110] sm:$0xff]
    %v6077 = vld [vmem:[#allocation7 + $0x118] sm:$0xff]
    %v6078 = vld [vmem:[#allocation7 + $0x120] sm:$0xff]
    %v6079 = vld [vmem:[#allocation7 + $0x128] sm:$0xff]
    %v6080 = vld [vmem:[#allocation7 + $0x130] sm:$0xff]
    %v6081 = vld [vmem:[#allocation7 + $0x138] sm:$0xff]
    %v6082 = vld [vmem:[#allocation7 + $0x140] sm:$0xff]
    %v6083 = vld [vmem:[#allocation7 + $0x148] sm:$0xff]
    %v6084 = vld [vmem:[#allocation7 + $0x150] sm:$0xff]
    %v6085 = vld [vmem:[#allocation7 + $0x158] sm:$0xff]
    %v6086 = vld [vmem:[#allocation7 + $0x160] sm:$0xff]
    %v6087 = vld [vmem:[#allocation7 + $0x168] sm:$0xff]
    %v6088 = vld [vmem:[#allocation7 + $0x170] sm:$0xff]
    %v6089 = vld [vmem:[#allocation7 + $0x178] sm:$0xff]
    %v6090 = vld [vmem:[#allocation7 + $0x180] sm:$0xff]
    %v6091 = vld [vmem:[#allocation7 + $0x188] sm:$0xff]
    %v6092 = vld [vmem:[#allocation7 + $0x190] sm:$0xff]
    %v6093 = vld [vmem:[#allocation7 + $0x198] sm:$0xff]
    %v6094 = vld [vmem:[#allocation7 + $0x1a0] sm:$0xff]
    %v6095 = vld [vmem:[#allocation7 + $0x1a8] sm:$0xff]
    %v6096 = vld [vmem:[#allocation7 + $0x1b0] sm:$0xff]
    %v6097 = vld [vmem:[#allocation7 + $0x1b8] sm:$0xff]
    %v6098 = vld [vmem:[#allocation7 + $0x1c0] sm:$0xff]
    %v6099 = vld [vmem:[#allocation7 + $0x1c8] sm:$0xff]
    %v6100 = vld [vmem:[#allocation7 + $0x1d0] sm:$0xff]
    %v6101 = vld [vmem:[#allocation7 + $0x1d8] sm:$0xff]
    %v6102 = vld [vmem:[#allocation7 + $0x1e0] sm:$0xff]
    %v6103 = vld [vmem:[#allocation7 + $0x1e8] sm:$0xff]
    %v6104 = vld [vmem:[#allocation7 + $0x1f0] sm:$0xff]
    %v6105 = vld [vmem:[#allocation7 + $0x1f8] sm:$0xff]
    %v6106 = vld [vmem:[#allocation7 + $0x200] sm:$0xff]
    %v6107 = vld [vmem:[#allocation7 + $0x208] sm:$0xff]
    %v6108 = vld [vmem:[#allocation7 + $0x210] sm:$0xff]
    %v6109 = vld [vmem:[#allocation7 + $0x218] sm:$0xff]
    %v6110 = vld [vmem:[#allocation7 + $0x220] sm:$0xff]
    %v6111 = vld [vmem:[#allocation7 + $0x228] sm:$0xff]
    %v6112 = vld [vmem:[#allocation7 + $0x230] sm:$0xff]
    %v6113 = vld [vmem:[#allocation7 + $0x238] sm:$0xff]
    %v6114 = vld [vmem:[#allocation7 + $0x240] sm:$0xff]
    %v6115 = vld [vmem:[#allocation7 + $0x248] sm:$0xff]
    %v6116 = vld [vmem:[#allocation7 + $0x250] sm:$0xff]
    %v6117 = vld [vmem:[#allocation7 + $0x258] sm:$0xff]
    %v6118 = vld [vmem:[#allocation7 + $0x260] sm:$0xff]
    %v6119 = vld [vmem:[#allocation7 + $0x268] sm:$0xff]
    %v6120 = vld [vmem:[#allocation7 + $0x270] sm:$0xff]
    %v6121 = vld [vmem:[#allocation7 + $0x278] sm:$0xff]
    %v6122 = vld [vmem:[#allocation7 + $0x280] sm:$0xff]
    %v6123 = vld [vmem:[#allocation7 + $0x288] sm:$0xff]
    %v6124 = vld [vmem:[#allocation7 + $0x290] sm:$0xff]
    %v6125 = vld [vmem:[#allocation7 + $0x298] sm:$0xff]
    %v6126 = vld [vmem:[#allocation7 + $0x2a0] sm:$0xff]
    %v6127 = vld [vmem:[#allocation7 + $0x2a8] sm:$0xff]
    %v6128 = vld [vmem:[#allocation7 + $0x2b0] sm:$0xff]
    %v6129 = vld [vmem:[#allocation7 + $0x2b8] sm:$0xff]
    %v6130 = vld [vmem:[#allocation7 + $0x2c0] sm:$0xff]
    %v6131 = vld [vmem:[#allocation7 + $0x2c8] sm:$0xff]
    %v6132 = vld [vmem:[#allocation7 + $0x2d0] sm:$0xff]
    %v6133 = vld [vmem:[#allocation7 + $0x2d8] sm:$0xff]
    %v6134 = vld [vmem:[#allocation7 + $0x2e0] sm:$0xff]
    %v6135 = vld [vmem:[#allocation7 + $0x2e8] sm:$0xff]
    %v6136 = vld [vmem:[#allocation7 + $0x2f0] sm:$0xff]
    %v6137 = vld [vmem:[#allocation7 + $0x2f8] sm:$0xff]
    %v6234 = vunpack.c.l.b16 %v6042
    %v6235 = vunpack.c.h.b16 %v6042
    %v6236 = vunpack.c.l.b16 %v6043
    %v6237 = vunpack.c.h.b16 %v6043
    %v6238 = vunpack.c.l.b16 %v6044
    %v6239 = vunpack.c.h.b16 %v6044
    %v6240 = vunpack.c.l.b16 %v6045
    %v6241 = vunpack.c.h.b16 %v6045
    %v6242 = vunpack.c.l.b16 %v6046
    %v6243 = vunpack.c.h.b16 %v6046
    %v6244 = vunpack.c.l.b16 %v6047
    %v6245 = vunpack.c.h.b16 %v6047
    %v6246 = vunpack.c.l.b16 %v6048
    %v6247 = vunpack.c.h.b16 %v6048
    %v6248 = vunpack.c.l.b16 %v6049
    %v6249 = vunpack.c.h.b16 %v6049
    %v6250 = vunpack.c.l.b16 %v6050
    %v6251 = vunpack.c.h.b16 %v6050
    %v6252 = vunpack.c.l.b16 %v6051
    %v6253 = vunpack.c.h.b16 %v6051
    %v6254 = vunpack.c.l.b16 %v6052
    %v6255 = vunpack.c.h.b16 %v6052
    %v6256 = vunpack.c.l.b16 %v6053
    %v6257 = vunpack.c.h.b16 %v6053
    %v6258 = vunpack.c.l.b16 %v6054
    %v6259 = vunpack.c.h.b16 %v6054
    %v6260 = vunpack.c.l.b16 %v6055
    %v6261 = vunpack.c.h.b16 %v6055
    %v6262 = vunpack.c.l.b16 %v6056
    %v6263 = vunpack.c.h.b16 %v6056
    %v6264 = vunpack.c.l.b16 %v6057
    %v6265 = vunpack.c.h.b16 %v6057
    %v6266 = vunpack.c.l.b16 %v6058
    %v6267 = vunpack.c.h.b16 %v6058
    %v6268 = vunpack.c.l.b16 %v6059
    %v6269 = vunpack.c.h.b16 %v6059
    %v6270 = vunpack.c.l.b16 %v6060
    %v6271 = vunpack.c.h.b16 %v6060
    %v6272 = vunpack.c.l.b16 %v6061
    %v6273 = vunpack.c.h.b16 %v6061
    %v6274 = vunpack.c.l.b16 %v6062
    %v6275 = vunpack.c.h.b16 %v6062
    %v6276 = vunpack.c.l.b16 %v6063
    %v6277 = vunpack.c.h.b16 %v6063
    %v6278 = vunpack.c.l.b16 %v6064
    %v6279 = vunpack.c.h.b16 %v6064
    %v6280 = vunpack.c.l.b16 %v6065
    %v6281 = vunpack.c.h.b16 %v6065
    %v6282 = vunpack.c.l.b16 %v6066
    %v6283 = vunpack.c.h.b16 %v6066
    %v6284 = vunpack.c.l.b16 %v6067
    %v6285 = vunpack.c.h.b16 %v6067
    %v6286 = vunpack.c.l.b16 %v6068
    %v6287 = vunpack.c.h.b16 %v6068
    %v6288 = vunpack.c.l.b16 %v6069
    %v6289 = vunpack.c.h.b16 %v6069
    %v6290 = vunpack.c.l.b16 %v6070
    %v6291 = vunpack.c.h.b16 %v6070
    %v6292 = vunpack.c.l.b16 %v6071
    %v6293 = vunpack.c.h.b16 %v6071
    %v6294 = vunpack.c.l.b16 %v6072
    %v6295 = vunpack.c.h.b16 %v6072
    %v6296 = vunpack.c.l.b16 %v6073
    %v6297 = vunpack.c.h.b16 %v6073
    %v6298 = vunpack.c.l.b16 %v6074
    %v6299 = vunpack.c.h.b16 %v6074
    %v6300 = vunpack.c.l.b16 %v6075
    %v6301 = vunpack.c.h.b16 %v6075
    %v6302 = vunpack.c.l.b16 %v6076
    %v6303 = vunpack.c.h.b16 %v6076
    %v6304 = vunpack.c.l.b16 %v6077
    %v6305 = vunpack.c.h.b16 %v6077
    %v6306 = vunpack.c.l.b16 %v6078
    %v6307 = vunpack.c.h.b16 %v6078
    %v6308 = vunpack.c.l.b16 %v6079
    %v6309 = vunpack.c.h.b16 %v6079
    %v6310 = vunpack.c.l.b16 %v6080
    %v6311 = vunpack.c.h.b16 %v6080
    %v6312 = vunpack.c.l.b16 %v6081
    %v6313 = vunpack.c.h.b16 %v6081
    %v6314 = vunpack.c.l.b16 %v6082
    %v6315 = vunpack.c.h.b16 %v6082
    %v6316 = vunpack.c.l.b16 %v6083
    %v6317 = vunpack.c.h.b16 %v6083
    %v6318 = vunpack.c.l.b16 %v6084
    %v6319 = vunpack.c.h.b16 %v6084
    %v6320 = vunpack.c.l.b16 %v6085
    %v6321 = vunpack.c.h.b16 %v6085
    %v6322 = vunpack.c.l.b16 %v6086
    %v6323 = vunpack.c.h.b16 %v6086
    %v6324 = vunpack.c.l.b16 %v6087
    %v6325 = vunpack.c.h.b16 %v6087
    %v6326 = vunpack.c.l.b16 %v6088
    %v6327 = vunpack.c.h.b16 %v6088
    %v6328 = vunpack.c.l.b16 %v6089
    %v6329 = vunpack.c.h.b16 %v6089
    %v6330 = vunpack.c.l.b16 %v6090
    %v6331 = vunpack.c.h.b16 %v6090
    %v6332 = vunpack.c.l.b16 %v6091
    %v6333 = vunpack.c.h.b16 %v6091
    %v6334 = vunpack.c.l.b16 %v6092
    %v6335 = vunpack.c.h.b16 %v6092
    %v6336 = vunpack.c.l.b16 %v6093
    %v6337 = vunpack.c.h.b16 %v6093
    %v6338 = vunpack.c.l.b16 %v6094
    %v6339 = vunpack.c.h.b16 %v6094
    %v6340 = vunpack.c.l.b16 %v6095
    %v6341 = vunpack.c.h.b16 %v6095
    %v6342 = vunpack.c.l.b16 %v6096
    %v6343 = vunpack.c.h.b16 %v6096
    %v6344 = vunpack.c.l.b16 %v6097
    %v6345 = vunpack.c.h.b16 %v6097
    %v6346 = vunpack.c.l.b16 %v6098
    %v6347 = vunpack.c.h.b16 %v6098
    %v6348 = vunpack.c.l.b16 %v6099
    %v6349 = vunpack.c.h.b16 %v6099
    %v6350 = vunpack.c.l.b16 %v6100
    %v6351 = vunpack.c.h.b16 %v6100
    %v6352 = vunpack.c.l.b16 %v6101
    %v6353 = vunpack.c.h.b16 %v6101
    %v6354 = vunpack.c.l.b16 %v6102
    %v6355 = vunpack.c.h.b16 %v6102
    %v6356 = vunpack.c.l.b16 %v6103
    %v6357 = vunpack.c.h.b16 %v6103
    %v6358 = vunpack.c.l.b16 %v6104
    %v6359 = vunpack.c.h.b16 %v6104
    %v6360 = vunpack.c.l.b16 %v6105
    %v6361 = vunpack.c.h.b16 %v6105
    %v6362 = vunpack.c.l.b16 %v6106
    %v6363 = vunpack.c.h.b16 %v6106
    %v6364 = vunpack.c.l.b16 %v6107
    %v6365 = vunpack.c.h.b16 %v6107
    %v6366 = vunpack.c.l.b16 %v6108
    %v6367 = vunpack.c.h.b16 %v6108
    %v6368 = vunpack.c.l.b16 %v6109
    %v6369 = vunpack.c.h.b16 %v6109
    %v6370 = vunpack.c.l.b16 %v6110
    %v6371 = vunpack.c.h.b16 %v6110
    %v6372 = vunpack.c.l.b16 %v6111
    %v6373 = vunpack.c.h.b16 %v6111
    %v6374 = vunpack.c.l.b16 %v6112
    %v6375 = vunpack.c.h.b16 %v6112
    %v6376 = vunpack.c.l.b16 %v6113
    %v6377 = vunpack.c.h.b16 %v6113
    %v6378 = vunpack.c.l.b16 %v6114
    %v6379 = vunpack.c.h.b16 %v6114
    %v6380 = vunpack.c.l.b16 %v6115
    %v6381 = vunpack.c.h.b16 %v6115
    %v6382 = vunpack.c.l.b16 %v6116
    %v6383 = vunpack.c.h.b16 %v6116
    %v6384 = vunpack.c.l.b16 %v6117
    %v6385 = vunpack.c.h.b16 %v6117
    %v6386 = vunpack.c.l.b16 %v6118
    %v6387 = vunpack.c.h.b16 %v6118
    %v6388 = vunpack.c.l.b16 %v6119
    %v6389 = vunpack.c.h.b16 %v6119
    %v6390 = vunpack.c.l.b16 %v6120
    %v6391 = vunpack.c.h.b16 %v6120
    %v6392 = vunpack.c.l.b16 %v6121
    %v6393 = vunpack.c.h.b16 %v6121
    %v6394 = vunpack.c.l.b16 %v6122
    %v6395 = vunpack.c.h.b16 %v6122
    %v6396 = vunpack.c.l.b16 %v6123
    %v6397 = vunpack.c.h.b16 %v6123
    %v6398 = vunpack.c.l.b16 %v6124
    %v6399 = vunpack.c.h.b16 %v6124
    %v6400 = vunpack.c.l.b16 %v6125
    %v6401 = vunpack.c.h.b16 %v6125
    %v6402 = vunpack.c.l.b16 %v6126
    %v6403 = vunpack.c.h.b16 %v6126
    %v6404 = vunpack.c.l.b16 %v6127
    %v6405 = vunpack.c.h.b16 %v6127
    %v6406 = vunpack.c.l.b16 %v6128
    %v6407 = vunpack.c.h.b16 %v6128
    %v6408 = vunpack.c.l.b16 %v6129
    %v6409 = vunpack.c.h.b16 %v6129
    %v6410 = vunpack.c.l.b16 %v6130
    %v6411 = vunpack.c.h.b16 %v6130
    %v6412 = vunpack.c.l.b16 %v6131
    %v6413 = vunpack.c.h.b16 %v6131
    %v6414 = vunpack.c.l.b16 %v6132
    %v6415 = vunpack.c.h.b16 %v6132
    %v6416 = vunpack.c.l.b16 %v6133
    %v6417 = vunpack.c.h.b16 %v6133
    %v6418 = vunpack.c.l.b16 %v6134
    %v6419 = vunpack.c.h.b16 %v6134
    %v6420 = vunpack.c.l.b16 %v6135
    %v6421 = vunpack.c.h.b16 %v6135
    %v6422 = vunpack.c.l.b16 %v6136
    %v6423 = vunpack.c.h.b16 %v6136
    %v6424 = vunpack.c.l.b16 %v6137
    %v6425 = vunpack.c.h.b16 %v6137
    %v6426 = vpack.c.b16 %v6240, %v6234
    %v6427 = vpack.c.b16 %v6241, %v6235
    %v6428 = vpack.c.b16 %v6242, %v6236
    %v6429 = vpack.c.b16 %v6243, %v6237
    %v6430 = vpack.c.b16 %v6244, %v6238
    %v6431 = vpack.c.b16 %v6245, %v6239
    %v6432 = vpack.c.b16 %v6252, %v6246
    %v6433 = vpack.c.b16 %v6253, %v6247
    %v6434 = vpack.c.b16 %v6254, %v6248
    %v6435 = vpack.c.b16 %v6255, %v6249
    %v6436 = vpack.c.b16 %v6256, %v6250
    %v6437 = vpack.c.b16 %v6257, %v6251
    %v6438 = vpack.c.b16 %v6264, %v6258
    %v6439 = vpack.c.b16 %v6265, %v6259
    %v6440 = vpack.c.b16 %v6266, %v6260
    %v6441 = vpack.c.b16 %v6267, %v6261
    %v6442 = vpack.c.b16 %v6268, %v6262
    %v6443 = vpack.c.b16 %v6269, %v6263
    %v6444 = vpack.c.b16 %v6276, %v6270
    %v6445 = vpack.c.b16 %v6277, %v6271
    %v6446 = vpack.c.b16 %v6278, %v6272
    %v6447 = vpack.c.b16 %v6279, %v6273
    %v6448 = vpack.c.b16 %v6280, %v6274
    %v6449 = vpack.c.b16 %v6281, %v6275
    %v6450 = vpack.c.b16 %v6288, %v6282
    %v6451 = vpack.c.b16 %v6289, %v6283
    %v6452 = vpack.c.b16 %v6290, %v6284
    %v6453 = vpack.c.b16 %v6291, %v6285
    %v6454 = vpack.c.b16 %v6292, %v6286
    %v6455 = vpack.c.b16 %v6293, %v6287
    %v6456 = vpack.c.b16 %v6300, %v6294
    %v6457 = vpack.c.b16 %v6301, %v6295
    %v6458 = vpack.c.b16 %v6302, %v6296
    %v6459 = vpack.c.b16 %v6303, %v6297
    %v6460 = vpack.c.b16 %v6304, %v6298
    %v6461 = vpack.c.b16 %v6305, %v6299
    %v6462 = vpack.c.b16 %v6312, %v6306
    %v6463 = vpack.c.b16 %v6313, %v6307
    %v6464 = vpack.c.b16 %v6314, %v6308
    %v6465 = vpack.c.b16 %v6315, %v6309
    %v6466 = vpack.c.b16 %v6316, %v6310
    %v6467 = vpack.c.b16 %v6317, %v6311
    %v6468 = vpack.c.b16 %v6324, %v6318
    %v6469 = vpack.c.b16 %v6325, %v6319
    %v6470 = vpack.c.b16 %v6326, %v6320
    %v6471 = vpack.c.b16 %v6327, %v6321
    %v6472 = vpack.c.b16 %v6328, %v6322
    %v6473 = vpack.c.b16 %v6329, %v6323
    %v6474 = vpack.c.b16 %v6336, %v6330
    %v6475 = vpack.c.b16 %v6337, %v6331
    %v6476 = vpack.c.b16 %v6338, %v6332
    %v6477 = vpack.c.b16 %v6339, %v6333
    %v6478 = vpack.c.b16 %v6340, %v6334
    %v6479 = vpack.c.b16 %v6341, %v6335
    %v6480 = vpack.c.b16 %v6348, %v6342
    %v6481 = vpack.c.b16 %v6349, %v6343
    %v6482 = vpack.c.b16 %v6350, %v6344
    %v6483 = vpack.c.b16 %v6351, %v6345
    %v6484 = vpack.c.b16 %v6352, %v6346
    %v6485 = vpack.c.b16 %v6353, %v6347
    %v6486 = vpack.c.b16 %v6360, %v6354
    %v6487 = vpack.c.b16 %v6361, %v6355
    %v6488 = vpack.c.b16 %v6362, %v6356
    %v6489 = vpack.c.b16 %v6363, %v6357
    %v6490 = vpack.c.b16 %v6364, %v6358
    %v6491 = vpack.c.b16 %v6365, %v6359
    %v6492 = vpack.c.b16 %v6372, %v6366
    %v6493 = vpack.c.b16 %v6373, %v6367
    %v6494 = vpack.c.b16 %v6374, %v6368
    %v6495 = vpack.c.b16 %v6375, %v6369
    %v6496 = vpack.c.b16 %v6376, %v6370
    %v6497 = vpack.c.b16 %v6377, %v6371
    %v6498 = vpack.c.b16 %v6384, %v6378
    %v6499 = vpack.c.b16 %v6385, %v6379
    %v6500 = vpack.c.b16 %v6386, %v6380
    %v6501 = vpack.c.b16 %v6387, %v6381
    %v6502 = vpack.c.b16 %v6388, %v6382
    %v6503 = vpack.c.b16 %v6389, %v6383
    %v6504 = vpack.c.b16 %v6396, %v6390
    %v6505 = vpack.c.b16 %v6397, %v6391
    %v6506 = vpack.c.b16 %v6398, %v6392
    %v6507 = vpack.c.b16 %v6399, %v6393
    %v6508 = vpack.c.b16 %v6400, %v6394
    %v6509 = vpack.c.b16 %v6401, %v6395
    %v6510 = vpack.c.b16 %v6408, %v6402
    %v6511 = vpack.c.b16 %v6409, %v6403
    %v6512 = vpack.c.b16 %v6410, %v6404
    %v6513 = vpack.c.b16 %v6411, %v6405
    %v6514 = vpack.c.b16 %v6412, %v6406
    %v6515 = vpack.c.b16 %v6413, %v6407
    %v6516 = vpack.c.b16 %v6420, %v6414
    %v6517 = vpack.c.b16 %v6421, %v6415
    %v6518 = vpack.c.b16 %v6422, %v6416
    %v6519 = vpack.c.b16 %v6423, %v6417
    %v6520 = vpack.c.b16 %v6424, %v6418
    %v6521 = vpack.c.b16 %v6425, %v6419
    %6618 = vmatprep.subr.bf16.mxu0 %v6427
    %6619 = vmatpush1.bf16.msra.mxu0 %v6426
    %6620 = vmatprep.subr.bf16.mxu0 %v6433
    %6621 = vmatpush1.bf16.msra.mxu0 %v6432
    %6622 = vmatprep.subr.bf16.mxu0 %v6439
    %6623 = vmatpush1.bf16.msra.mxu0 %v6438
    %6624 = vmatprep.subr.bf16.mxu0 %v6445
    %6625 = vmatpush1.bf16.msra.mxu0 %v6444
    %6626 = vmatprep.subr.bf16.mxu0 %v6451
    %6627 = vmatpush1.bf16.msra.mxu0 %v6450
    %6628 = vmatprep.subr.bf16.mxu0 %v6457
    %6629 = vmatpush1.bf16.msra.mxu0 %v6456
    %6630 = vmatprep.subr.bf16.mxu0 %v6463
    %6631 = vmatpush1.bf16.msra.mxu0 %v6462
    %6632 = vmatprep.subr.bf16.mxu0 %v6469
    %6633 = vmatpush1.bf16.msra.mxu0 %v6468
    %6634 = vmatprep.subr.bf16.mxu0 %v6475
    %6635 = vmatpush1.bf16.msra.mxu0 %v6474
    %6636 = vmatprep.subr.bf16.mxu0 %v6481
    %6637 = vmatpush1.bf16.msra.mxu0 %v6480
    %6638 = vmatprep.subr.bf16.mxu0 %v6487
    %6639 = vmatpush1.bf16.msra.mxu0 %v6486
    %6640 = vmatprep.subr.bf16.mxu0 %v6493
    %6641 = vmatpush1.bf16.msra.mxu0 %v6492
    %6642 = vmatprep.subr.bf16.mxu0 %v6499
    %6643 = vmatpush1.bf16.msra.mxu0 %v6498
    %6644 = vmatprep.subr.bf16.mxu0 %v6505
    %6645 = vmatpush1.bf16.msra.mxu0 %v6504
    %6646 = vmatprep.subr.bf16.mxu0 %v6511
    %6647 = vmatpush1.bf16.msra.mxu0 %v6510
    %6648 = vmatprep.subr.bf16.mxu0 %v6517
    %6649 = vmatpush1.bf16.msra.mxu0 %v6516
    %6650 = vmatprep.mubr.bf16.mxu0 %v6027
    %6651 = vmatmul.mubr.bf16.gmra.mrb[0].mxu0 %v6026
    %v6652 = vpop.f32.mrb[0].mxu0
    %v6653 = vadd.f32 0.0, %v6652
    %v6654 = vpop.f32.mrb[0].mxu0
    %v6655 = vadd.f32 0.0, %v6654
    %v6656 = vpop.f32.mrb[0].mxu0
    %v6657 = vadd.f32 0.0, %v6656
    %v6658 = vpop.f32.mrb[0].mxu0
    %v6659 = vadd.f32 0.0, %v6658
    %6660 = vdwg.mxu0
    %6661 = vmatprep.subr.bf16.mxu0 %v6429
    %6662 = vmatpush1.bf16.msra.mxu0 %v6428
    %6663 = vmatprep.subr.bf16.mxu0 %v6435
    %6664 = vmatpush1.bf16.msra.mxu0 %v6434
    %6665 = vmatprep.subr.bf16.mxu0 %v6441
    %6666 = vmatpush1.bf16.msra.mxu0 %v6440
    %6667 = vmatprep.subr.bf16.mxu0 %v6447
    %6668 = vmatpush1.bf16.msra.mxu0 %v6446
    %6669 = vmatprep.subr.bf16.mxu0 %v6453
    %6670 = vmatpush1.bf16.msra.mxu0 %v6452
    %6671 = vmatprep.subr.bf16.mxu0 %v6459
    %6672 = vmatpush1.bf16.msra.mxu0 %v6458
    %6673 = vmatprep.subr.bf16.mxu0 %v6465
    %6674 = vmatpush1.bf16.msra.mxu0 %v6464
    %6675 = vmatprep.subr.bf16.mxu0 %v6471
    %6676 = vmatpush1.bf16.msra.mxu0 %v6470
    %6677 = vmatprep.subr.bf16.mxu0 %v6477
    %6678 = vmatpush1.bf16.msra.mxu0 %v6476
    %6679 = vmatprep.subr.bf16.mxu0 %v6483
    %6680 = vmatpush1.bf16.msra.mxu0 %v6482
    %6681 = vmatprep.subr.bf16.mxu0 %v6489
    %6682 = vmatpush1.bf16.msra.mxu0 %v6488
    %6683 = vmatprep.subr.bf16.mxu0 %v6495
    %6684 = vmatpush1.bf16.msra.mxu0 %v6494
    %6685 = vmatprep.subr.bf16.mxu0 %v6501
    %6686 = vmatpush1.bf16.msra.mxu0 %v6500
    %6687 = vmatprep.subr.bf16.mxu0 %v6507
    %6688 = vmatpush1.bf16.msra.mxu0 %v6506
    %6689 = vmatprep.subr.bf16.mxu0 %v6513
    %6690 = vmatpush1.bf16.msra.mxu0 %v6512
    %6691 = vmatprep.subr.bf16.mxu0 %v6519
    %6692 = vmatpush1.bf16.msra.mxu0 %v6518
    %6693 = vmatprep.mubr.bf16.mxu0 %v6027
    %6694 = vmatmul.mubr.bf16.gmra.mrb[0].mxu0 %v6026
    %v6695 = vpop.f32.mrb[0].mxu0
    %v6696 = vadd.f32 0.0, %v6695
    %v6697 = vpop.f32.mrb[0].mxu0
    %v6698 = vadd.f32 0.0, %v6697
    %v6699 = vpop.f32.mrb[0].mxu0
    %v6700 = vadd.f32 0.0, %v6699
    %v6701 = vpop.f32.mrb[0].mxu0
    %v6702 = vadd.f32 0.0, %v6701
    %6703 = vdwg.mxu0
    %6704 = vmatprep.subr.bf16.mxu0 %v6431
    %6705 = vmatpush1.bf16.msra.mxu0 %v6430
    %6706 = vmatprep.subr.bf16.mxu0 %v6437
    %6707 = vmatpush1.bf16.msra.mxu0 %v6436
    %6708 = vmatprep.subr.bf16.mxu0 %v6443
    %6709 = vmatpush1.bf16.msra.mxu0 %v6442
    %6710 = vmatprep.subr.bf16.mxu0 %v6449
    %6711 = vmatpush1.bf16.msra.mxu0 %v6448
    %6712 = vmatprep.subr.bf16.mxu0 %v6455
    %6713 = vmatpush1.bf16.msra.mxu0 %v6454
    %6714 = vmatprep.subr.bf16.mxu0 %v6461
    %6715 = vmatpush1.bf16.msra.mxu0 %v6460
    %6716 = vmatprep.subr.bf16.mxu0 %v6467
    %6717 = vmatpush1.bf16.msra.mxu0 %v6466
    %6718 = vmatprep.subr.bf16.mxu0 %v6473
    %6719 = vmatpush1.bf16.msra.mxu0 %v6472
    %6720 = vmatprep.subr.bf16.mxu0 %v6479
    %6721 = vmatpush1.bf16.msra.mxu0 %v6478
    %6722 = vmatprep.subr.bf16.mxu0 %v6485
    %6723 = vmatpush1.bf16.msra.mxu0 %v6484
    %6724 = vmatprep.subr.bf16.mxu0 %v6491
    %6725 = vmatpush1.bf16.msra.mxu0 %v6490
    %6726 = vmatprep.subr.bf16.mxu0 %v6497
    %6727 = vmatpush1.bf16.msra.mxu0 %v6496
    %6728 = vmatprep.subr.bf16.mxu0 %v6503
    %6729 = vmatpush1.bf16.msra.mxu0 %v6502
    %6730 = vmatprep.subr.bf16.mxu0 %v6509
    %6731 = vmatpush1.bf16.msra.mxu0 %v6508
    %6732 = vmatprep.subr.bf16.mxu0 %v6515
    %6733 = vmatpush1.bf16.msra.mxu0 %v6514
    %6734 = vmatprep.subr.bf16.mxu0 %v6521
    %6735 = vmatpush1.bf16.msra.mxu0 %v6520
    %6736 = vmatprep.mubr.bf16.mxu0 %v6027
    %6737 = vmatmul.mubr.bf16.gmra.mrb[0].mxu0 %v6026
    %v6738 = vpop.f32.mrb[0].mxu0
    %v6739 = vadd.f32 0.0, %v6738
    %v6740 = vpop.f32.mrb[0].mxu0
    %v6741 = vadd.f32 0.0, %v6740
    %v6742 = vpop.f32.mrb[0].mxu0
    %v6743 = vadd.f32 0.0, %v6742
    %v6744 = vpop.f32.mrb[0].mxu0
    %v6745 = vadd.f32 0.0, %v6744
    %6746 = vdwg.mxu0
    %v6747 = vadd.f32 %v6030, %v6653
    %v6748 = vadd.f32 %v6031, %v6655
    %v6749 = vadd.f32 %v6036, %v6657
    %v6750 = vadd.f32 %v6037, %v6659
    %v6751 = vxor.u32 %v6747, 2147483648
    %v6752 = vxor.u32 %v6748, 2147483648
    %v6753 = vxor.u32 %v6749, 2147483648
    %v6754 = vxor.u32 %v6750, 2147483648
    %v6755 = vmul.f32 %v6751, 1.442695
    %v6756 = vpow.pop %v6755
    %v6757 = vmul.f32 %v6752, 1.442695
    %v6758 = vpow.pop %v6757
    %v6759 = vmul.f32 %v6753, 1.442695
    %v6760 = vpow.pop %v6759
    %v6761 = vmul.f32 %v6754, 1.442695
    %v6762 = vpow.pop %v6761
    %v6763 = vadd.f32 %v6756, 1.0
    %v6764 = vadd.f32 %v6758, 1.0
    %v6765 = vadd.f32 %v6760, 1.0
    %v6766 = vadd.f32 %v6762, 1.0
    %v6767 = vrcp.pop %v6763
    %v6768 = vmul.f32 1.0, %v6767
    %v6769 = vrcp.pop %v6764
    %v6770 = vmul.f32 1.0, %v6769
    %v6771 = vrcp.pop %v6765
    %v6772 = vmul.f32 1.0, %v6771
    %v6773 = vrcp.pop %v6766
    %v6774 = vmul.f32 1.0, %v6773
    %v6775 = vadd.f32 %v6032, %v6696
    %v6776 = vadd.f32 %v6033, %v6698
    %v6777 = vadd.f32 %v6038, %v6700
    %v6778 = vadd.f32 %v6039, %v6702
    %v6779 = vxor.u32 %v6775, 2147483648
    %v6780 = vxor.u32 %v6776, 2147483648
    %v6781 = vxor.u32 %v6777, 2147483648
    %v6782 = vxor.u32 %v6778, 2147483648
    %v6783 = vmul.f32 %v6779, 1.442695
    %v6784 = vpow.pop %v6783
    %v6785 = vmul.f32 %v6780, 1.442695
    %v6786 = vpow.pop %v6785
    %v6787 = vmul.f32 %v6781, 1.442695
    %v6788 = vpow.pop %v6787
    %v6789 = vmul.f32 %v6782, 1.442695
    %v6790 = vpow.pop %v6789
    %v6791 = vadd.f32 %v6784, 1.0
    %v6792 = vadd.f32 %v6786, 1.0
    %v6793 = vadd.f32 %v6788, 1.0
    %v6794 = vadd.f32 %v6790, 1.0
    %v6795 = vrcp.pop %v6791
    %v6796 = vmul.f32 1.0, %v6795
    %v6797 = vrcp.pop %v6792
    %v6798 = vmul.f32 1.0, %v6797
    %v6799 = vrcp.pop %v6793
    %v6800 = vmul.f32 1.0, %v6799
    %v6801 = vrcp.pop %v6794
    %v6802 = vmul.f32 1.0, %v6801
    %v6803 = vadd.f32 %v6739, %v1169
    %v6804 = vadd.f32 %v6741, %v1173
    %v6805 = vadd.f32 %v6743, %v1169
    %v6806 = vadd.f32 %v6745, %v1173
    %v6807 = vmul.f32 %v6768, %v6803
    %v6808 = vmul.f32 %v6770, %v6804
    %v6809 = vmul.f32 %v6772, %v6805
    %v6810 = vmul.f32 %v6774, %v6806
    %v6811 = vadd.f32 %v6034, %v6807
    %v6812 = vadd.f32 %v6035, %v6808
    %v6813 = vadd.f32 %v6040, %v6809
    %v6814 = vadd.f32 %v6041, %v6810
    %v6815 = vtanh.pop %v6811
    %v6816 = vtanh.pop %v6812
    %v6817 = vtanh.pop %v6813
    %v6818 = vtanh.pop %v6814
    %v6819 = vsub.f32 1.0, %v6796
    %v6820 = vsub.f32 1.0, %v6798
    %v6821 = vsub.f32 1.0, %v6800
    %v6822 = vsub.f32 1.0, %v6802
    %v6823 = vmul.f32 %v6819, %v6815
    %v6824 = vmul.f32 %v6820, %v6816
    %v6825 = vmul.f32 %v6821, %v6817
    %v6826 = vmul.f32 %v6822, %v6818
    %v6827 = vmul.f32 %v6796, %v6022
    %v6828 = vmul.f32 %v6798, %v6023
    %v6829 = vmul.f32 %v6800, %v6024
    %v6830 = vmul.f32 %v6802, %v6025
    %v6831 = vadd.f32 %v6823, %v6827
    %v6832 = vadd.f32 %v6824, %v6828
    %v6833 = vadd.f32 %v6825, %v6829
    %v6834 = vadd.f32 %v6826, %v6830
    %v6835 = vpack.c.bf16 %v6833, %v6831
    %v6836 = vpack.c.bf16 %v6834, %v6832
    %6837 = vst [vmem:[#allocation3 + $0x60] sm:$0xff] %v6835
    %6838 = vst [vmem:[#allocation3 + $0x68] sm:$0xff] %v6836
    %v6839 = vld [vmem:[#allocation2 + $0x2a0] sm:$0xff]
    %v6840 = vld [vmem:[#allocation2 + $0x2a8] sm:$0xff]
    %v6841 = vld [vmem:[#allocation2 + $0x2b0] sm:$0xff]
    %v6842 = vld [vmem:[#allocation2 + $0x2b8] sm:$0xff]
    %v6843 = vld [vmem:[#allocation2 + $0x2c0] sm:$0xff]
    %v6844 = vld [vmem:[#allocation2 + $0x2c8] sm:$0xff]
    %v6845 = vld [vmem:[#allocation2 + $0x2d0] sm:$0xff]
    %v6846 = vld [vmem:[#allocation2 + $0x2d8] sm:$0xff]
    %v6847 = vld [vmem:[#allocation2 + $0x2e0] sm:$0xff]
    %v6848 = vld [vmem:[#allocation2 + $0x2e8] sm:$0xff]
    %v6849 = vld [vmem:[#allocation2 + $0x2f0] sm:$0xff]
    %v6850 = vld [vmem:[#allocation2 + $0x2f8] sm:$0xff]
    %v6851 = vld [vmem:[#allocation7] sm:$0xff]
    %v6852 = vld [vmem:[#allocation7 + $0x8] sm:$0xff]
    %v6853 = vld [vmem:[#allocation7 + $0x10] sm:$0xff]
    %v6854 = vld [vmem:[#allocation7 + $0x18] sm:$0xff]
    %v6855 = vld [vmem:[#allocation7 + $0x20] sm:$0xff]
    %v6856 = vld [vmem:[#allocation7 + $0x28] sm:$0xff]
    %v6857 = vld [vmem:[#allocation7 + $0x30] sm:$0xff]
    %v6858 = vld [vmem:[#allocation7 + $0x38] sm:$0xff]
    %v6859 = vld [vmem:[#allocation7 + $0x40] sm:$0xff]
    %v6860 = vld [vmem:[#allocation7 + $0x48] sm:$0xff]
    %v6861 = vld [vmem:[#allocation7 + $0x50] sm:$0xff]
    %v6862 = vld [vmem:[#allocation7 + $0x58] sm:$0xff]
    %v6863 = vld [vmem:[#allocation7 + $0x60] sm:$0xff]
    %v6864 = vld [vmem:[#allocation7 + $0x68] sm:$0xff]
    %v6865 = vld [vmem:[#allocation7 + $0x70] sm:$0xff]
    %v6866 = vld [vmem:[#allocation7 + $0x78] sm:$0xff]
    %v6867 = vld [vmem:[#allocation7 + $0x80] sm:$0xff]
    %v6868 = vld [vmem:[#allocation7 + $0x88] sm:$0xff]
    %v6869 = vld [vmem:[#allocation7 + $0x90] sm:$0xff]
    %v6870 = vld [vmem:[#allocation7 + $0x98] sm:$0xff]
    %v6871 = vld [vmem:[#allocation7 + $0xa0] sm:$0xff]
    %v6872 = vld [vmem:[#allocation7 + $0xa8] sm:$0xff]
    %v6873 = vld [vmem:[#allocation7 + $0xb0] sm:$0xff]
    %v6874 = vld [vmem:[#allocation7 + $0xb8] sm:$0xff]
    %v6875 = vld [vmem:[#allocation7 + $0xc0] sm:$0xff]
    %v6876 = vld [vmem:[#allocation7 + $0xc8] sm:$0xff]
    %v6877 = vld [vmem:[#allocation7 + $0xd0] sm:$0xff]
    %v6878 = vld [vmem:[#allocation7 + $0xd8] sm:$0xff]
    %v6879 = vld [vmem:[#allocation7 + $0xe0] sm:$0xff]
    %v6880 = vld [vmem:[#allocation7 + $0xe8] sm:$0xff]
    %v6881 = vld [vmem:[#allocation7 + $0xf0] sm:$0xff]
    %v6882 = vld [vmem:[#allocation7 + $0xf8] sm:$0xff]
    %v6883 = vld [vmem:[#allocation7 + $0x100] sm:$0xff]
    %v6884 = vld [vmem:[#allocation7 + $0x108] sm:$0xff]
    %v6885 = vld [vmem:[#allocation7 + $0x110] sm:$0xff]
    %v6886 = vld [vmem:[#allocation7 + $0x118] sm:$0xff]
    %v6887 = vld [vmem:[#allocation7 + $0x120] sm:$0xff]
    %v6888 = vld [vmem:[#allocation7 + $0x128] sm:$0xff]
    %v6889 = vld [vmem:[#allocation7 + $0x130] sm:$0xff]
    %v6890 = vld [vmem:[#allocation7 + $0x138] sm:$0xff]
    %v6891 = vld [vmem:[#allocation7 + $0x140] sm:$0xff]
    %v6892 = vld [vmem:[#allocation7 + $0x148] sm:$0xff]
    %v6893 = vld [vmem:[#allocation7 + $0x150] sm:$0xff]
    %v6894 = vld [vmem:[#allocation7 + $0x158] sm:$0xff]
    %v6895 = vld [vmem:[#allocation7 + $0x160] sm:$0xff]
    %v6896 = vld [vmem:[#allocation7 + $0x168] sm:$0xff]
    %v6897 = vld [vmem:[#allocation7 + $0x170] sm:$0xff]
    %v6898 = vld [vmem:[#allocation7 + $0x178] sm:$0xff]
    %v6899 = vld [vmem:[#allocation7 + $0x180] sm:$0xff]
    %v6900 = vld [vmem:[#allocation7 + $0x188] sm:$0xff]
    %v6901 = vld [vmem:[#allocation7 + $0x190] sm:$0xff]
    %v6902 = vld [vmem:[#allocation7 + $0x198] sm:$0xff]
    %v6903 = vld [vmem:[#allocation7 + $0x1a0] sm:$0xff]
    %v6904 = vld [vmem:[#allocation7 + $0x1a8] sm:$0xff]
    %v6905 = vld [vmem:[#allocation7 + $0x1b0] sm:$0xff]
    %v6906 = vld [vmem:[#allocation7 + $0x1b8] sm:$0xff]
    %v6907 = vld [vmem:[#allocation7 + $0x1c0] sm:$0xff]
    %v6908 = vld [vmem:[#allocation7 + $0x1c8] sm:$0xff]
    %v6909 = vld [vmem:[#allocation7 + $0x1d0] sm:$0xff]
    %v6910 = vld [vmem:[#allocation7 + $0x1d8] sm:$0xff]
    %v6911 = vld [vmem:[#allocation7 + $0x1e0] sm:$0xff]
    %v6912 = vld [vmem:[#allocation7 + $0x1e8] sm:$0xff]
    %v6913 = vld [vmem:[#allocation7 + $0x1f0] sm:$0xff]
    %v6914 = vld [vmem:[#allocation7 + $0x1f8] sm:$0xff]
    %v6915 = vld [vmem:[#allocation7 + $0x200] sm:$0xff]
    %v6916 = vld [vmem:[#allocation7 + $0x208] sm:$0xff]
    %v6917 = vld [vmem:[#allocation7 + $0x210] sm:$0xff]
    %v6918 = vld [vmem:[#allocation7 + $0x218] sm:$0xff]
    %v6919 = vld [vmem:[#allocation7 + $0x220] sm:$0xff]
    %v6920 = vld [vmem:[#allocation7 + $0x228] sm:$0xff]
    %v6921 = vld [vmem:[#allocation7 + $0x230] sm:$0xff]
    %v6922 = vld [vmem:[#allocation7 + $0x238] sm:$0xff]
    %v6923 = vld [vmem:[#allocation7 + $0x240] sm:$0xff]
    %v6924 = vld [vmem:[#allocation7 + $0x248] sm:$0xff]
    %v6925 = vld [vmem:[#allocation7 + $0x250] sm:$0xff]
    %v6926 = vld [vmem:[#allocation7 + $0x258] sm:$0xff]
    %v6927 = vld [vmem:[#allocation7 + $0x260] sm:$0xff]
    %v6928 = vld [vmem:[#allocation7 + $0x268] sm:$0xff]
    %v6929 = vld [vmem:[#allocation7 + $0x270] sm:$0xff]
    %v6930 = vld [vmem:[#allocation7 + $0x278] sm:$0xff]
    %v6931 = vld [vmem:[#allocation7 + $0x280] sm:$0xff]
    %v6932 = vld [vmem:[#allocation7 + $0x288] sm:$0xff]
    %v6933 = vld [vmem:[#allocation7 + $0x290] sm:$0xff]
    %v6934 = vld [vmem:[#allocation7 + $0x298] sm:$0xff]
    %v6935 = vld [vmem:[#allocation7 + $0x2a0] sm:$0xff]
    %v6936 = vld [vmem:[#allocation7 + $0x2a8] sm:$0xff]
    %v6937 = vld [vmem:[#allocation7 + $0x2b0] sm:$0xff]
    %v6938 = vld [vmem:[#allocation7 + $0x2b8] sm:$0xff]
    %v6939 = vld [vmem:[#allocation7 + $0x2c0] sm:$0xff]
    %v6940 = vld [vmem:[#allocation7 + $0x2c8] sm:$0xff]
    %v6941 = vld [vmem:[#allocation7 + $0x2d0] sm:$0xff]
    %v6942 = vld [vmem:[#allocation7 + $0x2d8] sm:$0xff]
    %v6943 = vld [vmem:[#allocation7 + $0x2e0] sm:$0xff]
    %v6944 = vld [vmem:[#allocation7 + $0x2e8] sm:$0xff]
    %v6945 = vld [vmem:[#allocation7 + $0x2f0] sm:$0xff]
    %v6946 = vld [vmem:[#allocation7 + $0x2f8] sm:$0xff]
    %v7043 = vunpack.c.l.b16 %v6851
    %v7044 = vunpack.c.h.b16 %v6851
    %v7045 = vunpack.c.l.b16 %v6852
    %v7046 = vunpack.c.h.b16 %v6852
    %v7047 = vunpack.c.l.b16 %v6853
    %v7048 = vunpack.c.h.b16 %v6853
    %v7049 = vunpack.c.l.b16 %v6854
    %v7050 = vunpack.c.h.b16 %v6854
    %v7051 = vunpack.c.l.b16 %v6855
    %v7052 = vunpack.c.h.b16 %v6855
    %v7053 = vunpack.c.l.b16 %v6856
    %v7054 = vunpack.c.h.b16 %v6856
    %v7055 = vunpack.c.l.b16 %v6857
    %v7056 = vunpack.c.h.b16 %v6857
    %v7057 = vunpack.c.l.b16 %v6858
    %v7058 = vunpack.c.h.b16 %v6858
    %v7059 = vunpack.c.l.b16 %v6859
    %v7060 = vunpack.c.h.b16 %v6859
    %v7061 = vunpack.c.l.b16 %v6860
    %v7062 = vunpack.c.h.b16 %v6860
    %v7063 = vunpack.c.l.b16 %v6861
    %v7064 = vunpack.c.h.b16 %v6861
    %v7065 = vunpack.c.l.b16 %v6862
    %v7066 = vunpack.c.h.b16 %v6862
    %v7067 = vunpack.c.l.b16 %v6863
    %v7068 = vunpack.c.h.b16 %v6863
    %v7069 = vunpack.c.l.b16 %v6864
    %v7070 = vunpack.c.h.b16 %v6864
    %v7071 = vunpack.c.l.b16 %v6865
    %v7072 = vunpack.c.h.b16 %v6865
    %v7073 = vunpack.c.l.b16 %v6866
    %v7074 = vunpack.c.h.b16 %v6866
    %v7075 = vunpack.c.l.b16 %v6867
    %v7076 = vunpack.c.h.b16 %v6867
    %v7077 = vunpack.c.l.b16 %v6868
    %v7078 = vunpack.c.h.b16 %v6868
    %v7079 = vunpack.c.l.b16 %v6869
    %v7080 = vunpack.c.h.b16 %v6869
    %v7081 = vunpack.c.l.b16 %v6870
    %v7082 = vunpack.c.h.b16 %v6870
    %v7083 = vunpack.c.l.b16 %v6871
    %v7084 = vunpack.c.h.b16 %v6871
    %v7085 = vunpack.c.l.b16 %v6872
    %v7086 = vunpack.c.h.b16 %v6872
    %v7087 = vunpack.c.l.b16 %v6873
    %v7088 = vunpack.c.h.b16 %v6873
    %v7089 = vunpack.c.l.b16 %v6874
    %v7090 = vunpack.c.h.b16 %v6874
    %v7091 = vunpack.c.l.b16 %v6875
    %v7092 = vunpack.c.h.b16 %v6875
    %v7093 = vunpack.c.l.b16 %v6876
    %v7094 = vunpack.c.h.b16 %v6876
    %v7095 = vunpack.c.l.b16 %v6877
    %v7096 = vunpack.c.h.b16 %v6877
    %v7097 = vunpack.c.l.b16 %v6878
    %v7098 = vunpack.c.h.b16 %v6878
    %v7099 = vunpack.c.l.b16 %v6879
    %v7100 = vunpack.c.h.b16 %v6879
    %v7101 = vunpack.c.l.b16 %v6880
    %v7102 = vunpack.c.h.b16 %v6880
    %v7103 = vunpack.c.l.b16 %v6881
    %v7104 = vunpack.c.h.b16 %v6881
    %v7105 = vunpack.c.l.b16 %v6882
    %v7106 = vunpack.c.h.b16 %v6882
    %v7107 = vunpack.c.l.b16 %v6883
    %v7108 = vunpack.c.h.b16 %v6883
    %v7109 = vunpack.c.l.b16 %v6884
    %v7110 = vunpack.c.h.b16 %v6884
    %v7111 = vunpack.c.l.b16 %v6885
    %v7112 = vunpack.c.h.b16 %v6885
    %v7113 = vunpack.c.l.b16 %v6886
    %v7114 = vunpack.c.h.b16 %v6886
    %v7115 = vunpack.c.l.b16 %v6887
    %v7116 = vunpack.c.h.b16 %v6887
    %v7117 = vunpack.c.l.b16 %v6888
    %v7118 = vunpack.c.h.b16 %v6888
    %v7119 = vunpack.c.l.b16 %v6889
    %v7120 = vunpack.c.h.b16 %v6889
    %v7121 = vunpack.c.l.b16 %v6890
    %v7122 = vunpack.c.h.b16 %v6890
    %v7123 = vunpack.c.l.b16 %v6891
    %v7124 = vunpack.c.h.b16 %v6891
    %v7125 = vunpack.c.l.b16 %v6892
    %v7126 = vunpack.c.h.b16 %v6892
    %v7127 = vunpack.c.l.b16 %v6893
    %v7128 = vunpack.c.h.b16 %v6893
    %v7129 = vunpack.c.l.b16 %v6894
    %v7130 = vunpack.c.h.b16 %v6894
    %v7131 = vunpack.c.l.b16 %v6895
    %v7132 = vunpack.c.h.b16 %v6895
    %v7133 = vunpack.c.l.b16 %v6896
    %v7134 = vunpack.c.h.b16 %v6896
    %v7135 = vunpack.c.l.b16 %v6897
    %v7136 = vunpack.c.h.b16 %v6897
    %v7137 = vunpack.c.l.b16 %v6898
    %v7138 = vunpack.c.h.b16 %v6898
    %v7139 = vunpack.c.l.b16 %v6899
    %v7140 = vunpack.c.h.b16 %v6899
    %v7141 = vunpack.c.l.b16 %v6900
    %v7142 = vunpack.c.h.b16 %v6900
    %v7143 = vunpack.c.l.b16 %v6901
    %v7144 = vunpack.c.h.b16 %v6901
    %v7145 = vunpack.c.l.b16 %v6902
    %v7146 = vunpack.c.h.b16 %v6902
    %v7147 = vunpack.c.l.b16 %v6903
    %v7148 = vunpack.c.h.b16 %v6903
    %v7149 = vunpack.c.l.b16 %v6904
    %v7150 = vunpack.c.h.b16 %v6904
    %v7151 = vunpack.c.l.b16 %v6905
    %v7152 = vunpack.c.h.b16 %v6905
    %v7153 = vunpack.c.l.b16 %v6906
    %v7154 = vunpack.c.h.b16 %v6906
    %v7155 = vunpack.c.l.b16 %v6907
    %v7156 = vunpack.c.h.b16 %v6907
    %v7157 = vunpack.c.l.b16 %v6908
    %v7158 = vunpack.c.h.b16 %v6908
    %v7159 = vunpack.c.l.b16 %v6909
    %v7160 = vunpack.c.h.b16 %v6909
    %v7161 = vunpack.c.l.b16 %v6910
    %v7162 = vunpack.c.h.b16 %v6910
    %v7163 = vunpack.c.l.b16 %v6911
    %v7164 = vunpack.c.h.b16 %v6911
    %v7165 = vunpack.c.l.b16 %v6912
    %v7166 = vunpack.c.h.b16 %v6912
    %v7167 = vunpack.c.l.b16 %v6913
    %v7168 = vunpack.c.h.b16 %v6913
    %v7169 = vunpack.c.l.b16 %v6914
    %v7170 = vunpack.c.h.b16 %v6914
    %v7171 = vunpack.c.l.b16 %v6915
    %v7172 = vunpack.c.h.b16 %v6915
    %v7173 = vunpack.c.l.b16 %v6916
    %v7174 = vunpack.c.h.b16 %v6916
    %v7175 = vunpack.c.l.b16 %v6917
    %v7176 = vunpack.c.h.b16 %v6917
    %v7177 = vunpack.c.l.b16 %v6918
    %v7178 = vunpack.c.h.b16 %v6918
    %v7179 = vunpack.c.l.b16 %v6919
    %v7180 = vunpack.c.h.b16 %v6919
    %v7181 = vunpack.c.l.b16 %v6920
    %v7182 = vunpack.c.h.b16 %v6920
    %v7183 = vunpack.c.l.b16 %v6921
    %v7184 = vunpack.c.h.b16 %v6921
    %v7185 = vunpack.c.l.b16 %v6922
    %v7186 = vunpack.c.h.b16 %v6922
    %v7187 = vunpack.c.l.b16 %v6923
    %v7188 = vunpack.c.h.b16 %v6923
    %v7189 = vunpack.c.l.b16 %v6924
    %v7190 = vunpack.c.h.b16 %v6924
    %v7191 = vunpack.c.l.b16 %v6925
    %v7192 = vunpack.c.h.b16 %v6925
    %v7193 = vunpack.c.l.b16 %v6926
    %v7194 = vunpack.c.h.b16 %v6926
    %v7195 = vunpack.c.l.b16 %v6927
    %v7196 = vunpack.c.h.b16 %v6927
    %v7197 = vunpack.c.l.b16 %v6928
    %v7198 = vunpack.c.h.b16 %v6928
    %v7199 = vunpack.c.l.b16 %v6929
    %v7200 = vunpack.c.h.b16 %v6929
    %v7201 = vunpack.c.l.b16 %v6930
    %v7202 = vunpack.c.h.b16 %v6930
    %v7203 = vunpack.c.l.b16 %v6931
    %v7204 = vunpack.c.h.b16 %v6931
    %v7205 = vunpack.c.l.b16 %v6932
    %v7206 = vunpack.c.h.b16 %v6932
    %v7207 = vunpack.c.l.b16 %v6933
    %v7208 = vunpack.c.h.b16 %v6933
    %v7209 = vunpack.c.l.b16 %v6934
    %v7210 = vunpack.c.h.b16 %v6934
    %v7211 = vunpack.c.l.b16 %v6935
    %v7212 = vunpack.c.h.b16 %v6935
    %v7213 = vunpack.c.l.b16 %v6936
    %v7214 = vunpack.c.h.b16 %v6936
    %v7215 = vunpack.c.l.b16 %v6937
    %v7216 = vunpack.c.h.b16 %v6937
    %v7217 = vunpack.c.l.b16 %v6938
    %v7218 = vunpack.c.h.b16 %v6938
    %v7219 = vunpack.c.l.b16 %v6939
    %v7220 = vunpack.c.h.b16 %v6939
    %v7221 = vunpack.c.l.b16 %v6940
    %v7222 = vunpack.c.h.b16 %v6940
    %v7223 = vunpack.c.l.b16 %v6941
    %v7224 = vunpack.c.h.b16 %v6941
    %v7225 = vunpack.c.l.b16 %v6942
    %v7226 = vunpack.c.h.b16 %v6942
    %v7227 = vunpack.c.l.b16 %v6943
    %v7228 = vunpack.c.h.b16 %v6943
    %v7229 = vunpack.c.l.b16 %v6944
    %v7230 = vunpack.c.h.b16 %v6944
    %v7231 = vunpack.c.l.b16 %v6945
    %v7232 = vunpack.c.h.b16 %v6945
    %v7233 = vunpack.c.l.b16 %v6946
    %v7234 = vunpack.c.h.b16 %v6946
    %v7235 = vpack.c.b16 %v7049, %v7043
    %v7236 = vpack.c.b16 %v7050, %v7044
    %v7237 = vpack.c.b16 %v7051, %v7045
    %v7238 = vpack.c.b16 %v7052, %v7046
    %v7239 = vpack.c.b16 %v7053, %v7047
    %v7240 = vpack.c.b16 %v7054, %v7048
    %v7241 = vpack.c.b16 %v7061, %v7055
    %v7242 = vpack.c.b16 %v7062, %v7056
    %v7243 = vpack.c.b16 %v7063, %v7057
    %v7244 = vpack.c.b16 %v7064, %v7058
    %v7245 = vpack.c.b16 %v7065, %v7059
    %v7246 = vpack.c.b16 %v7066, %v7060
    %v7247 = vpack.c.b16 %v7073, %v7067
    %v7248 = vpack.c.b16 %v7074, %v7068
    %v7249 = vpack.c.b16 %v7075, %v7069
    %v7250 = vpack.c.b16 %v7076, %v7070
    %v7251 = vpack.c.b16 %v7077, %v7071
    %v7252 = vpack.c.b16 %v7078, %v7072
    %v7253 = vpack.c.b16 %v7085, %v7079
    %v7254 = vpack.c.b16 %v7086, %v7080
    %v7255 = vpack.c.b16 %v7087, %v7081
    %v7256 = vpack.c.b16 %v7088, %v7082
    %v7257 = vpack.c.b16 %v7089, %v7083
    %v7258 = vpack.c.b16 %v7090, %v7084
    %v7259 = vpack.c.b16 %v7097, %v7091
    %v7260 = vpack.c.b16 %v7098, %v7092
    %v7261 = vpack.c.b16 %v7099, %v7093
    %v7262 = vpack.c.b16 %v7100, %v7094
    %v7263 = vpack.c.b16 %v7101, %v7095
    %v7264 = vpack.c.b16 %v7102, %v7096
    %v7265 = vpack.c.b16 %v7109, %v7103
    %v7266 = vpack.c.b16 %v7110, %v7104
    %v7267 = vpack.c.b16 %v7111, %v7105
    %v7268 = vpack.c.b16 %v7112, %v7106
    %v7269 = vpack.c.b16 %v7113, %v7107
    %v7270 = vpack.c.b16 %v7114, %v7108
    %v7271 = vpack.c.b16 %v7121, %v7115
    %v7272 = vpack.c.b16 %v7122, %v7116
    %v7273 = vpack.c.b16 %v7123, %v7117
    %v7274 = vpack.c.b16 %v7124, %v7118
    %v7275 = vpack.c.b16 %v7125, %v7119
    %v7276 = vpack.c.b16 %v7126, %v7120
    %v7277 = vpack.c.b16 %v7133, %v7127
    %v7278 = vpack.c.b16 %v7134, %v7128
    %v7279 = vpack.c.b16 %v7135, %v7129
    %v7280 = vpack.c.b16 %v7136, %v7130
    %v7281 = vpack.c.b16 %v7137, %v7131
    %v7282 = vpack.c.b16 %v7138, %v7132
    %v7283 = vpack.c.b16 %v7145, %v7139
    %v7284 = vpack.c.b16 %v7146, %v7140
    %v7285 = vpack.c.b16 %v7147, %v7141
    %v7286 = vpack.c.b16 %v7148, %v7142
    %v7287 = vpack.c.b16 %v7149, %v7143
    %v7288 = vpack.c.b16 %v7150, %v7144
    %v7289 = vpack.c.b16 %v7157, %v7151
    %v7290 = vpack.c.b16 %v7158, %v7152
    %v7291 = vpack.c.b16 %v7159, %v7153
    %v7292 = vpack.c.b16 %v7160, %v7154
    %v7293 = vpack.c.b16 %v7161, %v7155
    %v7294 = vpack.c.b16 %v7162, %v7156
    %v7295 = vpack.c.b16 %v7169, %v7163
    %v7296 = vpack.c.b16 %v7170, %v7164
    %v7297 = vpack.c.b16 %v7171, %v7165
    %v7298 = vpack.c.b16 %v7172, %v7166
    %v7299 = vpack.c.b16 %v7173, %v7167
    %v7300 = vpack.c.b16 %v7174, %v7168
    %v7301 = vpack.c.b16 %v7181, %v7175
    %v7302 = vpack.c.b16 %v7182, %v7176
    %v7303 = vpack.c.b16 %v7183, %v7177
    %v7304 = vpack.c.b16 %v7184, %v7178
    %v7305 = vpack.c.b16 %v7185, %v7179
    %v7306 = vpack.c.b16 %v7186, %v7180
    %v7307 = vpack.c.b16 %v7193, %v7187
    %v7308 = vpack.c.b16 %v7194, %v7188
    %v7309 = vpack.c.b16 %v7195, %v7189
    %v7310 = vpack.c.b16 %v7196, %v7190
    %v7311 = vpack.c.b16 %v7197, %v7191
    %v7312 = vpack.c.b16 %v7198, %v7192
    %v7313 = vpack.c.b16 %v7205, %v7199
    %v7314 = vpack.c.b16 %v7206, %v7200
    %v7315 = vpack.c.b16 %v7207, %v7201
    %v7316 = vpack.c.b16 %v7208, %v7202
    %v7317 = vpack.c.b16 %v7209, %v7203
    %v7318 = vpack.c.b16 %v7210, %v7204
    %v7319 = vpack.c.b16 %v7217, %v7211
    %v7320 = vpack.c.b16 %v7218, %v7212
    %v7321 = vpack.c.b16 %v7219, %v7213
    %v7322 = vpack.c.b16 %v7220, %v7214
    %v7323 = vpack.c.b16 %v7221, %v7215
    %v7324 = vpack.c.b16 %v7222, %v7216
    %v7325 = vpack.c.b16 %v7229, %v7223
    %v7326 = vpack.c.b16 %v7230, %v7224
    %v7327 = vpack.c.b16 %v7231, %v7225
    %v7328 = vpack.c.b16 %v7232, %v7226
    %v7329 = vpack.c.b16 %v7233, %v7227
    %v7330 = vpack.c.b16 %v7234, %v7228
    %7427 = vmatprep.subr.bf16.mxu0 %v7236
    %7428 = vmatpush1.bf16.msra.mxu0 %v7235
    %7429 = vmatprep.subr.bf16.mxu0 %v7242
    %7430 = vmatpush1.bf16.msra.mxu0 %v7241
    %7431 = vmatprep.subr.bf16.mxu0 %v7248
    %7432 = vmatpush1.bf16.msra.mxu0 %v7247
    %7433 = vmatprep.subr.bf16.mxu0 %v7254
    %7434 = vmatpush1.bf16.msra.mxu0 %v7253
    %7435 = vmatprep.subr.bf16.mxu0 %v7260
    %7436 = vmatpush1.bf16.msra.mxu0 %v7259
    %7437 = vmatprep.subr.bf16.mxu0 %v7266
    %7438 = vmatpush1.bf16.msra.mxu0 %v7265
    %7439 = vmatprep.subr.bf16.mxu0 %v7272
    %7440 = vmatpush1.bf16.msra.mxu0 %v7271
    %7441 = vmatprep.subr.bf16.mxu0 %v7278
    %7442 = vmatpush1.bf16.msra.mxu0 %v7277
    %7443 = vmatprep.subr.bf16.mxu0 %v7284
    %7444 = vmatpush1.bf16.msra.mxu0 %v7283
    %7445 = vmatprep.subr.bf16.mxu0 %v7290
    %7446 = vmatpush1.bf16.msra.mxu0 %v7289
    %7447 = vmatprep.subr.bf16.mxu0 %v7296
    %7448 = vmatpush1.bf16.msra.mxu0 %v7295
    %7449 = vmatprep.subr.bf16.mxu0 %v7302
    %7450 = vmatpush1.bf16.msra.mxu0 %v7301
    %7451 = vmatprep.subr.bf16.mxu0 %v7308
    %7452 = vmatpush1.bf16.msra.mxu0 %v7307
    %7453 = vmatprep.subr.bf16.mxu0 %v7314
    %7454 = vmatpush1.bf16.msra.mxu0 %v7313
    %7455 = vmatprep.subr.bf16.mxu0 %v7320
    %7456 = vmatpush1.bf16.msra.mxu0 %v7319
    %7457 = vmatprep.subr.bf16.mxu0 %v7326
    %7458 = vmatpush1.bf16.msra.mxu0 %v7325
    %7459 = vmatprep.mubr.bf16.mxu0 %v6836
    %7460 = vmatmul.mubr.bf16.gmra.mrb[0].mxu0 %v6835
    %v7461 = vpop.f32.mrb[0].mxu0
    %v7462 = vadd.f32 0.0, %v7461
    %v7463 = vpop.f32.mrb[0].mxu0
    %v7464 = vadd.f32 0.0, %v7463
    %v7465 = vpop.f32.mrb[0].mxu0
    %v7466 = vadd.f32 0.0, %v7465
    %v7467 = vpop.f32.mrb[0].mxu0
    %v7468 = vadd.f32 0.0, %v7467
    %7469 = vdwg.mxu0
    %7470 = vmatprep.subr.bf16.mxu0 %v7238
    %7471 = vmatpush1.bf16.msra.mxu0 %v7237
    %7472 = vmatprep.subr.bf16.mxu0 %v7244
    %7473 = vmatpush1.bf16.msra.mxu0 %v7243
    %7474 = vmatprep.subr.bf16.mxu0 %v7250
    %7475 = vmatpush1.bf16.msra.mxu0 %v7249
    %7476 = vmatprep.subr.bf16.mxu0 %v7256
    %7477 = vmatpush1.bf16.msra.mxu0 %v7255
    %7478 = vmatprep.subr.bf16.mxu0 %v7262
    %7479 = vmatpush1.bf16.msra.mxu0 %v7261
    %7480 = vmatprep.subr.bf16.mxu0 %v7268
    %7481 = vmatpush1.bf16.msra.mxu0 %v7267
    %7482 = vmatprep.subr.bf16.mxu0 %v7274
    %7483 = vmatpush1.bf16.msra.mxu0 %v7273
    %7484 = vmatprep.subr.bf16.mxu0 %v7280
    %7485 = vmatpush1.bf16.msra.mxu0 %v7279
    %7486 = vmatprep.subr.bf16.mxu0 %v7286
    %7487 = vmatpush1.bf16.msra.mxu0 %v7285
    %7488 = vmatprep.subr.bf16.mxu0 %v7292
    %7489 = vmatpush1.bf16.msra.mxu0 %v7291
    %7490 = vmatprep.subr.bf16.mxu0 %v7298
    %7491 = vmatpush1.bf16.msra.mxu0 %v7297
    %7492 = vmatprep.subr.bf16.mxu0 %v7304
    %7493 = vmatpush1.bf16.msra.mxu0 %v7303
    %7494 = vmatprep.subr.bf16.mxu0 %v7310
    %7495 = vmatpush1.bf16.msra.mxu0 %v7309
    %7496 = vmatprep.subr.bf16.mxu0 %v7316
    %7497 = vmatpush1.bf16.msra.mxu0 %v7315
    %7498 = vmatprep.subr.bf16.mxu0 %v7322
    %7499 = vmatpush1.bf16.msra.mxu0 %v7321
    %7500 = vmatprep.subr.bf16.mxu0 %v7328
    %7501 = vmatpush1.bf16.msra.mxu0 %v7327
    %7502 = vmatprep.mubr.bf16.mxu0 %v6836
    %7503 = vmatmul.mubr.bf16.gmra.mrb[0].mxu0 %v6835
    %v7504 = vpop.f32.mrb[0].mxu0
    %v7505 = vadd.f32 0.0, %v7504
    %v7506 = vpop.f32.mrb[0].mxu0
    %v7507 = vadd.f32 0.0, %v7506
    %v7508 = vpop.f32.mrb[0].mxu0
    %v7509 = vadd.f32 0.0, %v7508
    %v7510 = vpop.f32.mrb[0].mxu0
    %v7511 = vadd.f32 0.0, %v7510
    %7512 = vdwg.mxu0
    %7513 = vmatprep.subr.bf16.mxu0 %v7240
    %7514 = vmatpush1.bf16.msra.mxu0 %v7239
    %7515 = vmatprep.subr.bf16.mxu0 %v7246
    %7516 = vmatpush1.bf16.msra.mxu0 %v7245
    %7517 = vmatprep.subr.bf16.mxu0 %v7252
    %7518 = vmatpush1.bf16.msra.mxu0 %v7251
    %7519 = vmatprep.subr.bf16.mxu0 %v7258
    %7520 = vmatpush1.bf16.msra.mxu0 %v7257
    %7521 = vmatprep.subr.bf16.mxu0 %v7264
    %7522 = vmatpush1.bf16.msra.mxu0 %v7263
    %7523 = vmatprep.subr.bf16.mxu0 %v7270
    %7524 = vmatpush1.bf16.msra.mxu0 %v7269
    %7525 = vmatprep.subr.bf16.mxu0 %v7276
    %7526 = vmatpush1.bf16.msra.mxu0 %v7275
    %7527 = vmatprep.subr.bf16.mxu0 %v7282
    %7528 = vmatpush1.bf16.msra.mxu0 %v7281
    %7529 = vmatprep.subr.bf16.mxu0 %v7288
    %7530 = vmatpush1.bf16.msra.mxu0 %v7287
    %7531 = vmatprep.subr.bf16.mxu0 %v7294
    %7532 = vmatpush1.bf16.msra.mxu0 %v7293
    %7533 = vmatprep.subr.bf16.mxu0 %v7300
    %7534 = vmatpush1.bf16.msra.mxu0 %v7299
    %7535 = vmatprep.subr.bf16.mxu0 %v7306
    %7536 = vmatpush1.bf16.msra.mxu0 %v7305
    %7537 = vmatprep.subr.bf16.mxu0 %v7312
    %7538 = vmatpush1.bf16.msra.mxu0 %v7311
    %7539 = vmatprep.subr.bf16.mxu0 %v7318
    %7540 = vmatpush1.bf16.msra.mxu0 %v7317
    %7541 = vmatprep.subr.bf16.mxu0 %v7324
    %7542 = vmatpush1.bf16.msra.mxu0 %v7323
    %7543 = vmatprep.subr.bf16.mxu0 %v7330
    %7544 = vmatpush1.bf16.msra.mxu0 %v7329
    %7545 = vmatprep.mubr.bf16.mxu0 %v6836
    %7546 = vmatmul.mubr.bf16.gmra.mrb[0].mxu0 %v6835
    %v7547 = vpop.f32.mrb[0].mxu0
    %v7548 = vadd.f32 0.0, %v7547
    %v7549 = vpop.f32.mrb[0].mxu0
    %v7550 = vadd.f32 0.0, %v7549
    %v7551 = vpop.f32.mrb[0].mxu0
    %v7552 = vadd.f32 0.0, %v7551
    %v7553 = vpop.f32.mrb[0].mxu0
    %v7554 = vadd.f32 0.0, %v7553
    %7555 = vdwg.mxu0
    %v7556 = vadd.f32 %v6839, %v7462
    %v7557 = vadd.f32 %v6840, %v7464
    %v7558 = vadd.f32 %v6845, %v7466
    %v7559 = vadd.f32 %v6846, %v7468
    %v7560 = vxor.u32 %v7556, 2147483648
    %v7561 = vxor.u32 %v7557, 2147483648
    %v7562 = vxor.u32 %v7558, 2147483648
    %v7563 = vxor.u32 %v7559, 2147483648
    %v7564 = vmul.f32 %v7560, 1.442695
    %v7565 = vpow.pop %v7564
    %v7566 = vmul.f32 %v7561, 1.442695
    %v7567 = vpow.pop %v7566
    %v7568 = vmul.f32 %v7562, 1.442695
    %v7569 = vpow.pop %v7568
    %v7570 = vmul.f32 %v7563, 1.442695
    %v7571 = vpow.pop %v7570
    %v7572 = vadd.f32 %v7565, 1.0
    %v7573 = vadd.f32 %v7567, 1.0
    %v7574 = vadd.f32 %v7569, 1.0
    %v7575 = vadd.f32 %v7571, 1.0
    %v7576 = vrcp.pop %v7572
    %v7577 = vmul.f32 1.0, %v7576
    %v7578 = vrcp.pop %v7573
    %v7579 = vmul.f32 1.0, %v7578
    %v7580 = vrcp.pop %v7574
    %v7581 = vmul.f32 1.0, %v7580
    %v7582 = vrcp.pop %v7575
    %v7583 = vmul.f32 1.0, %v7582
    %v7584 = vadd.f32 %v6841, %v7505
    %v7585 = vadd.f32 %v6842, %v7507
    %v7586 = vadd.f32 %v6847, %v7509
    %v7587 = vadd.f32 %v6848, %v7511
    %v7588 = vxor.u32 %v7584, 2147483648
    %v7589 = vxor.u32 %v7585, 2147483648
    %v7590 = vxor.u32 %v7586, 2147483648
    %v7591 = vxor.u32 %v7587, 2147483648
    %v7592 = vmul.f32 %v7588, 1.442695
    %v7593 = vpow.pop %v7592
    %v7594 = vmul.f32 %v7589, 1.442695
    %v7595 = vpow.pop %v7594
    %v7596 = vmul.f32 %v7590, 1.442695
    %v7597 = vpow.pop %v7596
    %v7598 = vmul.f32 %v7591, 1.442695
    %v7599 = vpow.pop %v7598
    %v7600 = vadd.f32 %v7593, 1.0
    %v7601 = vadd.f32 %v7595, 1.0
    %v7602 = vadd.f32 %v7597, 1.0
    %v7603 = vadd.f32 %v7599, 1.0
    %v7604 = vrcp.pop %v7600
    %v7605 = vmul.f32 1.0, %v7604
    %v7606 = vrcp.pop %v7601
    %v7607 = vmul.f32 1.0, %v7606
    %v7608 = vrcp.pop %v7602
    %v7609 = vmul.f32 1.0, %v7608
    %v7610 = vrcp.pop %v7603
    %v7611 = vmul.f32 1.0, %v7610
    %v7612 = vadd.f32 %v7548, %v1169
    %v7613 = vadd.f32 %v7550, %v1173
    %v7614 = vadd.f32 %v7552, %v1169
    %v7615 = vadd.f32 %v7554, %v1173
    %v7616 = vmul.f32 %v7577, %v7612
    %v7617 = vmul.f32 %v7579, %v7613
    %v7618 = vmul.f32 %v7581, %v7614
    %v7619 = vmul.f32 %v7583, %v7615
    %v7620 = vadd.f32 %v6843, %v7616
    %v7621 = vadd.f32 %v6844, %v7617
    %v7622 = vadd.f32 %v6849, %v7618
    %v7623 = vadd.f32 %v6850, %v7619
    %v7624 = vtanh.pop %v7620
    %v7625 = vtanh.pop %v7621
    %v7626 = vtanh.pop %v7622
    %v7627 = vtanh.pop %v7623
    %v7628 = vsub.f32 1.0, %v7605
    %v7629 = vsub.f32 1.0, %v7607
    %v7630 = vsub.f32 1.0, %v7609
    %v7631 = vsub.f32 1.0, %v7611
    %v7632 = vmul.f32 %v7628, %v7624
    %v7633 = vmul.f32 %v7629, %v7625
    %v7634 = vmul.f32 %v7630, %v7626
    %v7635 = vmul.f32 %v7631, %v7627
    %v7636 = vmul.f32 %v7605, %v6831
    %v7637 = vmul.f32 %v7607, %v6832
    %v7638 = vmul.f32 %v7609, %v6833
    %v7639 = vmul.f32 %v7611, %v6834
    %v7640 = vadd.f32 %v7632, %v7636
    %v7641 = vadd.f32 %v7633, %v7637
    %v7642 = vadd.f32 %v7634, %v7638
    %v7643 = vadd.f32 %v7635, %v7639
    %v7644 = vpack.c.bf16 %v7642, %v7640
    %v7645 = vpack.c.bf16 %v7643, %v7641
    %7646 = vst [vmem:[#allocation3 + $0x70] sm:$0xff] %v7644
    %7647 = vst [vmem:[#allocation3 + $0x78] sm:$0xff] %v7645
    %v7648 = vld [vmem:[#allocation3] sm:$0xff]
    %v7649 = vld [vmem:[#allocation3 + $0x8] sm:$0xff]
    %v7650 = vld [vmem:[#allocation3 + $0x10] sm:$0xff]
    %v7651 = vld [vmem:[#allocation3 + $0x18] sm:$0xff]
    %v7652 = vld [vmem:[#allocation3 + $0x20] sm:$0xff]
    %v7653 = vld [vmem:[#allocation3 + $0x28] sm:$0xff]
    %v7654 = vld [vmem:[#allocation3 + $0x30] sm:$0xff]
    %v7655 = vld [vmem:[#allocation3 + $0x38] sm:$0xff]
    %v7656 = vld [vmem:[#allocation3 + $0x40] sm:$0xff]
    %v7657 = vld [vmem:[#allocation3 + $0x48] sm:$0xff]
    %v7658 = vld [vmem:[#allocation3 + $0x50] sm:$0xff]
    %v7659 = vld [vmem:[#allocation3 + $0x58] sm:$0xff]
    %v7660 = vld [vmem:[#allocation3 + $0x60] sm:$0xff]
    %v7661 = vld [vmem:[#allocation3 + $0x68] sm:$0xff]
    %v7662 = vld [vmem:[#allocation3 + $0x70] sm:$0xff]
    %v7663 = vld [vmem:[#allocation3 + $0x78] sm:$0xff]
    %v7664 = vld [vmem:[#allocation9] sm:$0xff]
    %v7665 = vld [vmem:[#allocation9 + $0x8] sm:$0xff]
    %v7666 = vld [vmem:[#allocation9 + $0x10] sm:$0xff]
    %v7667 = vld [vmem:[#allocation9 + $0x18] sm:$0xff]
    %v7668 = vld [vmem:[#allocation9 + $0x20] sm:$0xff]
    %v7669 = vld [vmem:[#allocation9 + $0x28] sm:$0xff]
    %v7670 = vld [vmem:[#allocation9 + $0x30] sm:$0xff]
    %v7671 = vld [vmem:[#allocation9 + $0x38] sm:$0xff]
    %v7672 = vld [vmem:[#allocation9 + $0x40] sm:$0xff]
    %v7673 = vld [vmem:[#allocation9 + $0x48] sm:$0xff]
    %v7674 = vld [vmem:[#allocation9 + $0x50] sm:$0xff]
    %v7675 = vld [vmem:[#allocation9 + $0x58] sm:$0xff]
    %v7676 = vld [vmem:[#allocation9 + $0x60] sm:$0xff]
    %v7677 = vld [vmem:[#allocation9 + $0x68] sm:$0xff]
    %v7678 = vld [vmem:[#allocation9 + $0x70] sm:$0xff]
    %v7679 = vld [vmem:[#allocation9 + $0x78] sm:$0xff]
    %v7680 = vld [vmem:[#allocation9 + $0x80] sm:$0xff]
    %v7681 = vld [vmem:[#allocation9 + $0x88] sm:$0xff]
    %v7682 = vld [vmem:[#allocation9 + $0x90] sm:$0xff]
    %v7683 = vld [vmem:[#allocation9 + $0x98] sm:$0xff]
    %v7684 = vld [vmem:[#allocation9 + $0xa0] sm:$0xff]
    %v7685 = vld [vmem:[#allocation9 + $0xa8] sm:$0xff]
    %v7686 = vld [vmem:[#allocation9 + $0xb0] sm:$0xff]
    %v7687 = vld [vmem:[#allocation9 + $0xb8] sm:$0xff]
    %v7688 = vld [vmem:[#allocation9 + $0xc0] sm:$0xff]
    %v7689 = vld [vmem:[#allocation9 + $0xc8] sm:$0xff]
    %v7690 = vld [vmem:[#allocation9 + $0xd0] sm:$0xff]
    %v7691 = vld [vmem:[#allocation9 + $0xd8] sm:$0xff]
    %v7692 = vld [vmem:[#allocation9 + $0xe0] sm:$0xff]
    %v7693 = vld [vmem:[#allocation9 + $0xe8] sm:$0xff]
    %v7694 = vld [vmem:[#allocation9 + $0xf0] sm:$0xff]
    %v7695 = vld [vmem:[#allocation9 + $0xf8] sm:$0xff]
    %v7696 = vld [vmem:[#allocation9 + $0x100] sm:$0xff]
    %v7697 = vld [vmem:[#allocation9 + $0x108] sm:$0xff]
    %v7698 = vld [vmem:[#allocation9 + $0x110] sm:$0xff]
    %v7699 = vld [vmem:[#allocation9 + $0x118] sm:$0xff]
    %v7700 = vld [vmem:[#allocation9 + $0x120] sm:$0xff]
    %v7701 = vld [vmem:[#allocation9 + $0x128] sm:$0xff]
    %v7702 = vld [vmem:[#allocation9 + $0x130] sm:$0xff]
    %v7703 = vld [vmem:[#allocation9 + $0x138] sm:$0xff]
    %v7704 = vld [vmem:[#allocation9 + $0x140] sm:$0xff]
    %v7705 = vld [vmem:[#allocation9 + $0x148] sm:$0xff]
    %v7706 = vld [vmem:[#allocation9 + $0x150] sm:$0xff]
    %v7707 = vld [vmem:[#allocation9 + $0x158] sm:$0xff]
    %v7708 = vld [vmem:[#allocation9 + $0x160] sm:$0xff]
    %v7709 = vld [vmem:[#allocation9 + $0x168] sm:$0xff]
    %v7710 = vld [vmem:[#allocation9 + $0x170] sm:$0xff]
    %v7711 = vld [vmem:[#allocation9 + $0x178] sm:$0xff]
    %v7712 = vld [vmem:[#allocation9 + $0x180] sm:$0xff]
    %v7713 = vld [vmem:[#allocation9 + $0x188] sm:$0xff]
    %v7714 = vld [vmem:[#allocation9 + $0x190] sm:$0xff]
    %v7715 = vld [vmem:[#allocation9 + $0x198] sm:$0xff]
    %v7716 = vld [vmem:[#allocation9 + $0x1a0] sm:$0xff]
    %v7717 = vld [vmem:[#allocation9 + $0x1a8] sm:$0xff]
    %v7718 = vld [vmem:[#allocation9 + $0x1b0] sm:$0xff]
    %v7719 = vld [vmem:[#allocation9 + $0x1b8] sm:$0xff]
    %v7720 = vld [vmem:[#allocation9 + $0x1c0] sm:$0xff]
    %v7721 = vld [vmem:[#allocation9 + $0x1c8] sm:$0xff]
    %v7722 = vld [vmem:[#allocation9 + $0x1d0] sm:$0xff]
    %v7723 = vld [vmem:[#allocation9 + $0x1d8] sm:$0xff]
    %v7724 = vld [vmem:[#allocation9 + $0x1e0] sm:$0xff]
    %v7725 = vld [vmem:[#allocation9 + $0x1e8] sm:$0xff]
    %v7726 = vld [vmem:[#allocation9 + $0x1f0] sm:$0xff]
    %v7727 = vld [vmem:[#allocation9 + $0x1f8] sm:$0xff]
    %v7728 = vld [vmem:[#allocation9 + $0x200] sm:$0xff]
    %v7729 = vld [vmem:[#allocation9 + $0x208] sm:$0xff]
    %v7730 = vld [vmem:[#allocation9 + $0x210] sm:$0xff]
    %v7731 = vld [vmem:[#allocation9 + $0x218] sm:$0xff]
    %v7732 = vld [vmem:[#allocation9 + $0x220] sm:$0xff]
    %v7733 = vld [vmem:[#allocation9 + $0x228] sm:$0xff]
    %v7734 = vld [vmem:[#allocation9 + $0x230] sm:$0xff]
    %v7735 = vld [vmem:[#allocation9 + $0x238] sm:$0xff]
    %v7736 = vld [vmem:[#allocation9 + $0x240] sm:$0xff]
    %v7737 = vld [vmem:[#allocation9 + $0x248] sm:$0xff]
    %v7738 = vld [vmem:[#allocation9 + $0x250] sm:$0xff]
    %v7739 = vld [vmem:[#allocation9 + $0x258] sm:$0xff]
    %v7740 = vld [vmem:[#allocation9 + $0x260] sm:$0xff]
    %v7741 = vld [vmem:[#allocation9 + $0x268] sm:$0xff]
    %v7742 = vld [vmem:[#allocation9 + $0x270] sm:$0xff]
    %v7743 = vld [vmem:[#allocation9 + $0x278] sm:$0xff]
    %v7744 = vld [vmem:[#allocation9 + $0x280] sm:$0xff]
    %v7745 = vld [vmem:[#allocation9 + $0x288] sm:$0xff]
    %v7746 = vld [vmem:[#allocation9 + $0x290] sm:$0xff]
    %v7747 = vld [vmem:[#allocation9 + $0x298] sm:$0xff]
    %v7748 = vld [vmem:[#allocation9 + $0x2a0] sm:$0xff]
    %v7749 = vld [vmem:[#allocation9 + $0x2a8] sm:$0xff]
    %v7750 = vld [vmem:[#allocation9 + $0x2b0] sm:$0xff]
    %v7751 = vld [vmem:[#allocation9 + $0x2b8] sm:$0xff]
    %v7752 = vld [vmem:[#allocation9 + $0x2c0] sm:$0xff]
    %v7753 = vld [vmem:[#allocation9 + $0x2c8] sm:$0xff]
    %v7754 = vld [vmem:[#allocation9 + $0x2d0] sm:$0xff]
    %v7755 = vld [vmem:[#allocation9 + $0x2d8] sm:$0xff]
    %v7756 = vld [vmem:[#allocation9 + $0x2e0] sm:$0xff]
    %v7757 = vld [vmem:[#allocation9 + $0x2e8] sm:$0xff]
    %v7758 = vld [vmem:[#allocation9 + $0x2f0] sm:$0xff]
    %v7759 = vld [vmem:[#allocation9 + $0x2f8] sm:$0xff]
    %v7760 = vld [vmem:[%s8] sm:$0x3f]
    %v7762 = vlaneseq
    %v7763 = vshrl.u32 %v7762, 7
    %v7764 = vsub.s32 0, %v7763
    %v7765 = vrot.slane %v7760, %v7764
    %v7766 = vlaneseq
    %v7767 = vshrl.u32 %v7766, 7
    %v7768 = vsub.s32 1, %v7767
    %v7769 = vrot.slane %v7760, %v7768
    %v7770 = vlaneseq
    %v7771 = vshrl.u32 %v7770, 7
    %v7772 = vsub.s32 2, %v7771
    %v7773 = vrot.slane %v7760, %v7772
    %v7774 = vlaneseq
    %v7775 = vshrl.u32 %v7774, 7
    %v7776 = vsub.s32 3, %v7775
    %v7777 = vrot.slane %v7760, %v7776
    %v7778 = vlaneseq
    %v7779 = vshrl.u32 %v7778, 7
    %v7780 = vsub.s32 4, %v7779
    %v7781 = vrot.slane %v7760, %v7780
    %v7782 = vlaneseq
    %v7783 = vshrl.u32 %v7782, 7
    %v7784 = vsub.s32 5, %v7783
    %v7785 = vrot.slane %v7760, %v7784
    %v7888 = vunpack.c.l.b16 %v7664
    %v7889 = vunpack.c.h.b16 %v7664
    %v7890 = vunpack.c.l.b16 %v7665
    %v7891 = vunpack.c.h.b16 %v7665
    %v7892 = vunpack.c.l.b16 %v7666
    %v7893 = vunpack.c.h.b16 %v7666
    %v7894 = vunpack.c.l.b16 %v7667
    %v7895 = vunpack.c.h.b16 %v7667
    %v7896 = vunpack.c.l.b16 %v7668
    %v7897 = vunpack.c.h.b16 %v7668
    %v7898 = vunpack.c.l.b16 %v7669
    %v7899 = vunpack.c.h.b16 %v7669
    %v7900 = vunpack.c.l.b16 %v7670
    %v7901 = vunpack.c.h.b16 %v7670
    %v7902 = vunpack.c.l.b16 %v7671
    %v7903 = vunpack.c.h.b16 %v7671
    %v7904 = vunpack.c.l.b16 %v7672
    %v7905 = vunpack.c.h.b16 %v7672
    %v7906 = vunpack.c.l.b16 %v7673
    %v7907 = vunpack.c.h.b16 %v7673
    %v7908 = vunpack.c.l.b16 %v7674
    %v7909 = vunpack.c.h.b16 %v7674
    %v7910 = vunpack.c.l.b16 %v7675
    %v7911 = vunpack.c.h.b16 %v7675
    %v7912 = vunpack.c.l.b16 %v7676
    %v7913 = vunpack.c.h.b16 %v7676
    %v7914 = vunpack.c.l.b16 %v7677
    %v7915 = vunpack.c.h.b16 %v7677
    %v7916 = vunpack.c.l.b16 %v7678
    %v7917 = vunpack.c.h.b16 %v7678
    %v7918 = vunpack.c.l.b16 %v7679
    %v7919 = vunpack.c.h.b16 %v7679
    %v7920 = vunpack.c.l.b16 %v7680
    %v7921 = vunpack.c.h.b16 %v7680
    %v7922 = vunpack.c.l.b16 %v7681
    %v7923 = vunpack.c.h.b16 %v7681
    %v7924 = vunpack.c.l.b16 %v7682
    %v7925 = vunpack.c.h.b16 %v7682
    %v7926 = vunpack.c.l.b16 %v7683
    %v7927 = vunpack.c.h.b16 %v7683
    %v7928 = vunpack.c.l.b16 %v7684
    %v7929 = vunpack.c.h.b16 %v7684
    %v7930 = vunpack.c.l.b16 %v7685
    %v7931 = vunpack.c.h.b16 %v7685
    %v7932 = vunpack.c.l.b16 %v7686
    %v7933 = vunpack.c.h.b16 %v7686
    %v7934 = vunpack.c.l.b16 %v7687
    %v7935 = vunpack.c.h.b16 %v7687
    %v7936 = vunpack.c.l.b16 %v7688
    %v7937 = vunpack.c.h.b16 %v7688
    %v7938 = vunpack.c.l.b16 %v7689
    %v7939 = vunpack.c.h.b16 %v7689
    %v7940 = vunpack.c.l.b16 %v7690
    %v7941 = vunpack.c.h.b16 %v7690
    %v7942 = vunpack.c.l.b16 %v7691
    %v7943 = vunpack.c.h.b16 %v7691
    %v7944 = vunpack.c.l.b16 %v7692
    %v7945 = vunpack.c.h.b16 %v7692
    %v7946 = vunpack.c.l.b16 %v7693
    %v7947 = vunpack.c.h.b16 %v7693
    %v7948 = vunpack.c.l.b16 %v7694
    %v7949 = vunpack.c.h.b16 %v7694
    %v7950 = vunpack.c.l.b16 %v7695
    %v7951 = vunpack.c.h.b16 %v7695
    %v7952 = vunpack.c.l.b16 %v7696
    %v7953 = vunpack.c.h.b16 %v7696
    %v7954 = vunpack.c.l.b16 %v7697
    %v7955 = vunpack.c.h.b16 %v7697
    %v7956 = vunpack.c.l.b16 %v7698
    %v7957 = vunpack.c.h.b16 %v7698
    %v7958 = vunpack.c.l.b16 %v7699
    %v7959 = vunpack.c.h.b16 %v7699
    %v7960 = vunpack.c.l.b16 %v7700
    %v7961 = vunpack.c.h.b16 %v7700
    %v7962 = vunpack.c.l.b16 %v7701
    %v7963 = vunpack.c.h.b16 %v7701
    %v7964 = vunpack.c.l.b16 %v7702
    %v7965 = vunpack.c.h.b16 %v7702
    %v7966 = vunpack.c.l.b16 %v7703
    %v7967 = vunpack.c.h.b16 %v7703
    %v7968 = vunpack.c.l.b16 %v7704
    %v7969 = vunpack.c.h.b16 %v7704
    %v7970 = vunpack.c.l.b16 %v7705
    %v7971 = vunpack.c.h.b16 %v7705
    %v7972 = vunpack.c.l.b16 %v7706
    %v7973 = vunpack.c.h.b16 %v7706
    %v7974 = vunpack.c.l.b16 %v7707
    %v7975 = vunpack.c.h.b16 %v7707
    %v7976 = vunpack.c.l.b16 %v7708
    %v7977 = vunpack.c.h.b16 %v7708
    %v7978 = vunpack.c.l.b16 %v7709
    %v7979 = vunpack.c.h.b16 %v7709
    %v7980 = vunpack.c.l.b16 %v7710
    %v7981 = vunpack.c.h.b16 %v7710
    %v7982 = vunpack.c.l.b16 %v7711
    %v7983 = vunpack.c.h.b16 %v7711
    %v7984 = vunpack.c.l.b16 %v7712
    %v7985 = vunpack.c.h.b16 %v7712
    %v7986 = vunpack.c.l.b16 %v7713
    %v7987 = vunpack.c.h.b16 %v7713
    %v7988 = vunpack.c.l.b16 %v7714
    %v7989 = vunpack.c.h.b16 %v7714
    %v7990 = vunpack.c.l.b16 %v7715
    %v7991 = vunpack.c.h.b16 %v7715
    %v7992 = vunpack.c.l.b16 %v7716
    %v7993 = vunpack.c.h.b16 %v7716
    %v7994 = vunpack.c.l.b16 %v7717
    %v7995 = vunpack.c.h.b16 %v7717
    %v7996 = vunpack.c.l.b16 %v7718
    %v7997 = vunpack.c.h.b16 %v7718
    %v7998 = vunpack.c.l.b16 %v7719
    %v7999 = vunpack.c.h.b16 %v7719
    %v8000 = vunpack.c.l.b16 %v7720
    %v8001 = vunpack.c.h.b16 %v7720
    %v8002 = vunpack.c.l.b16 %v7721
    %v8003 = vunpack.c.h.b16 %v7721
    %v8004 = vunpack.c.l.b16 %v7722
    %v8005 = vunpack.c.h.b16 %v7722
    %v8006 = vunpack.c.l.b16 %v7723
    %v8007 = vunpack.c.h.b16 %v7723
    %v8008 = vunpack.c.l.b16 %v7724
    %v8009 = vunpack.c.h.b16 %v7724
    %v8010 = vunpack.c.l.b16 %v7725
    %v8011 = vunpack.c.h.b16 %v7725
    %v8012 = vunpack.c.l.b16 %v7726
    %v8013 = vunpack.c.h.b16 %v7726
    %v8014 = vunpack.c.l.b16 %v7727
    %v8015 = vunpack.c.h.b16 %v7727
    %v8016 = vunpack.c.l.b16 %v7728
    %v8017 = vunpack.c.h.b16 %v7728
    %v8018 = vunpack.c.l.b16 %v7729
    %v8019 = vunpack.c.h.b16 %v7729
    %v8020 = vunpack.c.l.b16 %v7730
    %v8021 = vunpack.c.h.b16 %v7730
    %v8022 = vunpack.c.l.b16 %v7731
    %v8023 = vunpack.c.h.b16 %v7731
    %v8024 = vunpack.c.l.b16 %v7732
    %v8025 = vunpack.c.h.b16 %v7732
    %v8026 = vunpack.c.l.b16 %v7733
    %v8027 = vunpack.c.h.b16 %v7733
    %v8028 = vunpack.c.l.b16 %v7734
    %v8029 = vunpack.c.h.b16 %v7734
    %v8030 = vunpack.c.l.b16 %v7735
    %v8031 = vunpack.c.h.b16 %v7735
    %v8032 = vunpack.c.l.b16 %v7736
    %v8033 = vunpack.c.h.b16 %v7736
    %v8034 = vunpack.c.l.b16 %v7737
    %v8035 = vunpack.c.h.b16 %v7737
    %v8036 = vunpack.c.l.b16 %v7738
    %v8037 = vunpack.c.h.b16 %v7738
    %v8038 = vunpack.c.l.b16 %v7739
    %v8039 = vunpack.c.h.b16 %v7739
    %v8040 = vunpack.c.l.b16 %v7740
    %v8041 = vunpack.c.h.b16 %v7740
    %v8042 = vunpack.c.l.b16 %v7741
    %v8043 = vunpack.c.h.b16 %v7741
    %v8044 = vunpack.c.l.b16 %v7742
    %v8045 = vunpack.c.h.b16 %v7742
    %v8046 = vunpack.c.l.b16 %v7743
    %v8047 = vunpack.c.h.b16 %v7743
    %v8048 = vunpack.c.l.b16 %v7744
    %v8049 = vunpack.c.h.b16 %v7744
    %v8050 = vunpack.c.l.b16 %v7745
    %v8051 = vunpack.c.h.b16 %v7745
    %v8052 = vunpack.c.l.b16 %v7746
    %v8053 = vunpack.c.h.b16 %v7746
    %v8054 = vunpack.c.l.b16 %v7747
    %v8055 = vunpack.c.h.b16 %v7747
    %v8056 = vunpack.c.l.b16 %v7748
    %v8057 = vunpack.c.h.b16 %v7748
    %v8058 = vunpack.c.l.b16 %v7749
    %v8059 = vunpack.c.h.b16 %v7749
    %v8060 = vunpack.c.l.b16 %v7750
    %v8061 = vunpack.c.h.b16 %v7750
    %v8062 = vunpack.c.l.b16 %v7751
    %v8063 = vunpack.c.h.b16 %v7751
    %v8064 = vunpack.c.l.b16 %v7752
    %v8065 = vunpack.c.h.b16 %v7752
    %v8066 = vunpack.c.l.b16 %v7753
    %v8067 = vunpack.c.h.b16 %v7753
    %v8068 = vunpack.c.l.b16 %v7754
    %v8069 = vunpack.c.h.b16 %v7754
    %v8070 = vunpack.c.l.b16 %v7755
    %v8071 = vunpack.c.h.b16 %v7755
    %v8072 = vunpack.c.l.b16 %v7756
    %v8073 = vunpack.c.h.b16 %v7756
    %v8074 = vunpack.c.l.b16 %v7757
    %v8075 = vunpack.c.h.b16 %v7757
    %v8076 = vunpack.c.l.b16 %v7758
    %v8077 = vunpack.c.h.b16 %v7758
    %v8078 = vunpack.c.l.b16 %v7759
    %v8079 = vunpack.c.h.b16 %v7759
    %v8080 = vpack.c.b16 %v7894, %v7888
    %v8081 = vpack.c.b16 %v7895, %v7889
    %v8082 = vpack.c.b16 %v7896, %v7890
    %v8083 = vpack.c.b16 %v7897, %v7891
    %v8084 = vpack.c.b16 %v7898, %v7892
    %v8085 = vpack.c.b16 %v7899, %v7893
    %v8086 = vpack.c.b16 %v7906, %v7900
    %v8087 = vpack.c.b16 %v7907, %v7901
    %v8088 = vpack.c.b16 %v7908, %v7902
    %v8089 = vpack.c.b16 %v7909, %v7903
    %v8090 = vpack.c.b16 %v7910, %v7904
    %v8091 = vpack.c.b16 %v7911, %v7905
    %v8092 = vpack.c.b16 %v7918, %v7912
    %v8093 = vpack.c.b16 %v7919, %v7913
    %v8094 = vpack.c.b16 %v7920, %v7914
    %v8095 = vpack.c.b16 %v7921, %v7915
    %v8096 = vpack.c.b16 %v7922, %v7916
    %v8097 = vpack.c.b16 %v7923, %v7917
    %v8098 = vpack.c.b16 %v7930, %v7924
    %v8099 = vpack.c.b16 %v7931, %v7925
    %v8100 = vpack.c.b16 %v7932, %v7926
    %v8101 = vpack.c.b16 %v7933, %v7927
    %v8102 = vpack.c.b16 %v7934, %v7928
    %v8103 = vpack.c.b16 %v7935, %v7929
    %v8104 = vpack.c.b16 %v7942, %v7936
    %v8105 = vpack.c.b16 %v7943, %v7937
    %v8106 = vpack.c.b16 %v7944, %v7938
    %v8107 = vpack.c.b16 %v7945, %v7939
    %v8108 = vpack.c.b16 %v7946, %v7940
    %v8109 = vpack.c.b16 %v7947, %v7941
    %v8110 = vpack.c.b16 %v7954, %v7948
    %v8111 = vpack.c.b16 %v7955, %v7949
    %v8112 = vpack.c.b16 %v7956, %v7950
    %v8113 = vpack.c.b16 %v7957, %v7951
    %v8114 = vpack.c.b16 %v7958, %v7952
    %v8115 = vpack.c.b16 %v7959, %v7953
    %v8116 = vpack.c.b16 %v7966, %v7960
    %v8117 = vpack.c.b16 %v7967, %v7961
    %v8118 = vpack.c.b16 %v7968, %v7962
    %v8119 = vpack.c.b16 %v7969, %v7963
    %v8120 = vpack.c.b16 %v7970, %v7964
    %v8121 = vpack.c.b16 %v7971, %v7965
    %v8122 = vpack.c.b16 %v7978, %v7972
    %v8123 = vpack.c.b16 %v7979, %v7973
    %v8124 = vpack.c.b16 %v7980, %v7974
    %v8125 = vpack.c.b16 %v7981, %v7975
    %v8126 = vpack.c.b16 %v7982, %v7976
    %v8127 = vpack.c.b16 %v7983, %v7977
    %v8128 = vpack.c.b16 %v7990, %v7984
    %v8129 = vpack.c.b16 %v7991, %v7985
    %v8130 = vpack.c.b16 %v7992, %v7986
    %v8131 = vpack.c.b16 %v7993, %v7987
    %v8132 = vpack.c.b16 %v7994, %v7988
    %v8133 = vpack.c.b16 %v7995, %v7989
    %v8134 = vpack.c.b16 %v8002, %v7996
    %v8135 = vpack.c.b16 %v8003, %v7997
    %v8136 = vpack.c.b16 %v8004, %v7998
    %v8137 = vpack.c.b16 %v8005, %v7999
    %v8138 = vpack.c.b16 %v8006, %v8000
    %v8139 = vpack.c.b16 %v8007, %v8001
    %v8140 = vpack.c.b16 %v8014, %v8008
    %v8141 = vpack.c.b16 %v8015, %v8009
    %v8142 = vpack.c.b16 %v8016, %v8010
    %v8143 = vpack.c.b16 %v8017, %v8011
    %v8144 = vpack.c.b16 %v8018, %v8012
    %v8145 = vpack.c.b16 %v8019, %v8013
    %v8146 = vpack.c.b16 %v8026, %v8020
    %v8147 = vpack.c.b16 %v8027, %v8021
    %v8148 = vpack.c.b16 %v8028, %v8022
    %v8149 = vpack.c.b16 %v8029, %v8023
    %v8150 = vpack.c.b16 %v8030, %v8024
    %v8151 = vpack.c.b16 %v8031, %v8025
    %v8152 = vpack.c.b16 %v8038, %v8032
    %v8153 = vpack.c.b16 %v8039, %v8033
    %v8154 = vpack.c.b16 %v8040, %v8034
    %v8155 = vpack.c.b16 %v8041, %v8035
    %v8156 = vpack.c.b16 %v8042, %v8036
    %v8157 = vpack.c.b16 %v8043, %v8037
    %v8158 = vpack.c.b16 %v8050, %v8044
    %v8159 = vpack.c.b16 %v8051, %v8045
    %v8160 = vpack.c.b16 %v8052, %v8046
    %v8161 = vpack.c.b16 %v8053, %v8047
    %v8162 = vpack.c.b16 %v8054, %v8048
    %v8163 = vpack.c.b16 %v8055, %v8049
    %v8164 = vpack.c.b16 %v8062, %v8056
    %v8165 = vpack.c.b16 %v8063, %v8057
    %v8166 = vpack.c.b16 %v8064, %v8058
    %v8167 = vpack.c.b16 %v8065, %v8059
    %v8168 = vpack.c.b16 %v8066, %v8060
    %v8169 = vpack.c.b16 %v8067, %v8061
    %v8170 = vpack.c.b16 %v8074, %v8068
    %v8171 = vpack.c.b16 %v8075, %v8069
    %v8172 = vpack.c.b16 %v8076, %v8070
    %v8173 = vpack.c.b16 %v8077, %v8071
    %v8174 = vpack.c.b16 %v8078, %v8072
    %v8175 = vpack.c.b16 %v8079, %v8073
    %8272 = vmatprep.subr.bf16.mxu0 %v8081
    %8273 = vmatpush1.bf16.msra.mxu0 %v8080
    %8274 = vmatprep.subr.bf16.mxu0 %v8087
    %8275 = vmatpush1.bf16.msra.mxu0 %v8086
    %8276 = vmatprep.subr.bf16.mxu0 %v8093
    %8277 = vmatpush1.bf16.msra.mxu0 %v8092
    %8278 = vmatprep.subr.bf16.mxu0 %v8099
    %8279 = vmatpush1.bf16.msra.mxu0 %v8098
    %8280 = vmatprep.subr.bf16.mxu0 %v8105
    %8281 = vmatpush1.bf16.msra.mxu0 %v8104
    %8282 = vmatprep.subr.bf16.mxu0 %v8111
    %8283 = vmatpush1.bf16.msra.mxu0 %v8110
    %8284 = vmatprep.subr.bf16.mxu0 %v8117
    %8285 = vmatpush1.bf16.msra.mxu0 %v8116
    %8286 = vmatprep.subr.bf16.mxu0 %v8123
    %8287 = vmatpush1.bf16.msra.mxu0 %v8122
    %8288 = vmatprep.subr.bf16.mxu0 %v8129
    %8289 = vmatpush1.bf16.msra.mxu0 %v8128
    %8290 = vmatprep.subr.bf16.mxu0 %v8135
    %8291 = vmatpush1.bf16.msra.mxu0 %v8134
    %8292 = vmatprep.subr.bf16.mxu0 %v8141
    %8293 = vmatpush1.bf16.msra.mxu0 %v8140
    %8294 = vmatprep.subr.bf16.mxu0 %v8147
    %8295 = vmatpush1.bf16.msra.mxu0 %v8146
    %8296 = vmatprep.subr.bf16.mxu0 %v8153
    %8297 = vmatpush1.bf16.msra.mxu0 %v8152
    %8298 = vmatprep.subr.bf16.mxu0 %v8159
    %8299 = vmatpush1.bf16.msra.mxu0 %v8158
    %8300 = vmatprep.subr.bf16.mxu0 %v8165
    %8301 = vmatpush1.bf16.msra.mxu0 %v8164
    %8302 = vmatprep.subr.bf16.mxu0 %v8171
    %8303 = vmatpush1.bf16.msra.mxu0 %v8170
    %8304 = vmatprep.mubr.bf16.mxu0 %v7649
    %8305 = vmatmul.mubr.bf16.gmra.mrb[0].mxu0 %v7648
    %v8306 = vpop.f32.mrb[0].mxu0
    %v8307 = vadd.f32 %v7765, %v8306
    %v8308 = vpop.f32.mrb[0].mxu0
    %v8309 = vadd.f32 %v7769, %v8308
    %v8310 = vpop.f32.mrb[0].mxu0
    %v8311 = vadd.f32 %v7765, %v8310
    %v8312 = vpop.f32.mrb[0].mxu0
    %v8313 = vadd.f32 %v7769, %v8312
    %8314 = vmatprep.mubr.bf16.mxu0 %v7651
    %8315 = vmatmul.mubr.bf16.gmra.mrb[0].mxu0 %v7650
    %v8316 = vpop.f32.mrb[0].mxu0
    %v8317 = vadd.f32 %v7765, %v8316
    %v8318 = vpop.f32.mrb[0].mxu0
    %v8319 = vadd.f32 %v7769, %v8318
    %v8320 = vpop.f32.mrb[0].mxu0
    %v8321 = vadd.f32 %v7765, %v8320
    %v8322 = vpop.f32.mrb[0].mxu0
    %v8323 = vadd.f32 %v7769, %v8322
    %8324 = vmatprep.mubr.bf16.mxu0 %v7653
    %8325 = vmatmul.mubr.bf16.gmra.mrb[0].mxu0 %v7652
    %v8326 = vpop.f32.mrb[0].mxu0
    %v8327 = vadd.f32 %v7765, %v8326
    %v8328 = vpop.f32.mrb[0].mxu0
    %v8329 = vadd.f32 %v7769, %v8328
    %v8330 = vpop.f32.mrb[0].mxu0
    %v8331 = vadd.f32 %v7765, %v8330
    %v8332 = vpop.f32.mrb[0].mxu0
    %v8333 = vadd.f32 %v7769, %v8332
    %8334 = vmatprep.mubr.bf16.mxu0 %v7655
    %8335 = vmatmul.mubr.bf16.gmra.mrb[0].mxu0 %v7654
    %v8336 = vpop.f32.mrb[0].mxu0
    %v8337 = vadd.f32 %v7765, %v8336
    %v8338 = vpop.f32.mrb[0].mxu0
    %v8339 = vadd.f32 %v7769, %v8338
    %v8340 = vpop.f32.mrb[0].mxu0
    %v8341 = vadd.f32 %v7765, %v8340
    %v8342 = vpop.f32.mrb[0].mxu0
    %v8343 = vadd.f32 %v7769, %v8342
    %8344 = vmatprep.mubr.bf16.mxu0 %v7657
    %8345 = vmatmul.mubr.bf16.gmra.mrb[0].mxu0 %v7656
    %v8346 = vpop.f32.mrb[0].mxu0
    %v8347 = vadd.f32 %v7765, %v8346
    %v8348 = vpop.f32.mrb[0].mxu0
    %v8349 = vadd.f32 %v7769, %v8348
    %v8350 = vpop.f32.mrb[0].mxu0
    %v8351 = vadd.f32 %v7765, %v8350
    %v8352 = vpop.f32.mrb[0].mxu0
    %v8353 = vadd.f32 %v7769, %v8352
    %8354 = vmatprep.mubr.bf16.mxu0 %v7659
    %8355 = vmatmul.mubr.bf16.gmra.mrb[0].mxu0 %v7658
    %v8356 = vpop.f32.mrb[0].mxu0
    %v8357 = vadd.f32 %v7765, %v8356
    %v8358 = vpop.f32.mrb[0].mxu0
    %v8359 = vadd.f32 %v7769, %v8358
    %v8360 = vpop.f32.mrb[0].mxu0
    %v8361 = vadd.f32 %v7765, %v8360
    %v8362 = vpop.f32.mrb[0].mxu0
    %v8363 = vadd.f32 %v7769, %v8362
    %8364 = vmatprep.mubr.bf16.mxu0 %v7661
    %8365 = vmatmul.mubr.bf16.gmra.mrb[0].mxu0 %v7660
    %v8366 = vpop.f32.mrb[0].mxu0
    %v8367 = vadd.f32 %v7765, %v8366
    %v8368 = vpop.f32.mrb[0].mxu0
    %v8369 = vadd.f32 %v7769, %v8368
    %v8370 = vpop.f32.mrb[0].mxu0
    %v8371 = vadd.f32 %v7765, %v8370
    %v8372 = vpop.f32.mrb[0].mxu0
    %v8373 = vadd.f32 %v7769, %v8372
    %8374 = vmatprep.mubr.bf16.mxu0 %v7663
    %8375 = vmatmul.mubr.bf16.gmra.mrb[0].mxu0 %v7662
    %v8376 = vpop.f32.mrb[0].mxu0
    %v8377 = vadd.f32 %v7765, %v8376
    %v8378 = vpop.f32.mrb[0].mxu0
    %v8379 = vadd.f32 %v7769, %v8378
    %v8380 = vpop.f32.mrb[0].mxu0
    %v8381 = vadd.f32 %v7765, %v8380
    %v8382 = vpop.f32.mrb[0].mxu0
    %v8383 = vadd.f32 %v7769, %v8382
    %8384 = vdwg.mxu0
    %8385 = vmatprep.subr.bf16.mxu0 %v8083
    %8386 = vmatpush1.bf16.msra.mxu0 %v8082
    %8387 = vmatprep.subr.bf16.mxu0 %v8089
    %8388 = vmatpush1.bf16.msra.mxu0 %v8088
    %8389 = vmatprep.subr.bf16.mxu0 %v8095
    %8390 = vmatpush1.bf16.msra.mxu0 %v8094
    %8391 = vmatprep.subr.bf16.mxu0 %v8101
    %8392 = vmatpush1.bf16.msra.mxu0 %v8100
    %8393 = vmatprep.subr.bf16.mxu0 %v8107
    %8394 = vmatpush1.bf16.msra.mxu0 %v8106
    %8395 = vmatprep.subr.bf16.mxu0 %v8113
    %8396 = vmatpush1.bf16.msra.mxu0 %v8112
    %8397 = vmatprep.subr.bf16.mxu0 %v8119
    %8398 = vmatpush1.bf16.msra.mxu0 %v8118
    %8399 = vmatprep.subr.bf16.mxu0 %v8125
    %8400 = vmatpush1.bf16.msra.mxu0 %v8124
    %8401 = vmatprep.subr.bf16.mxu0 %v8131
    %8402 = vmatpush1.bf16.msra.mxu0 %v8130
    %8403 = vmatprep.subr.bf16.mxu0 %v8137
    %8404 = vmatpush1.bf16.msra.mxu0 %v8136
    %8405 = vmatprep.subr.bf16.mxu0 %v8143
    %8406 = vmatpush1.bf16.msra.mxu0 %v8142
    %8407 = vmatprep.subr.bf16.mxu0 %v8149
    %8408 = vmatpush1.bf16.msra.mxu0 %v8148
    %8409 = vmatprep.subr.bf16.mxu0 %v8155
    %8410 = vmatpush1.bf16.msra.mxu0 %v8154
    %8411 = vmatprep.subr.bf16.mxu0 %v8161
    %8412 = vmatpush1.bf16.msra.mxu0 %v8160
    %8413 = vmatprep.subr.bf16.mxu0 %v8167
    %8414 = vmatpush1.bf16.msra.mxu0 %v8166
    %8415 = vmatprep.subr.bf16.mxu0 %v8173
    %8416 = vmatpush1.bf16.msra.mxu0 %v8172
    %8417 = vmatprep.mubr.bf16.mxu0 %v7649
    %8418 = vmatmul.mubr.bf16.gmra.mrb[0].mxu0 %v7648
    %v8419 = vpop.f32.mrb[0].mxu0
    %v8420 = vadd.f32 %v7773, %v8419
    %v8421 = vpop.f32.mrb[0].mxu0
    %v8422 = vadd.f32 %v7777, %v8421
    %v8423 = vpop.f32.mrb[0].mxu0
    %v8424 = vadd.f32 %v7773, %v8423
    %v8425 = vpop.f32.mrb[0].mxu0
    %v8426 = vadd.f32 %v7777, %v8425
    %8427 = vmatprep.mubr.bf16.mxu0 %v7651
    %8428 = vmatmul.mubr.bf16.gmra.mrb[0].mxu0 %v7650
    %v8429 = vpop.f32.mrb[0].mxu0
    %v8430 = vadd.f32 %v7773, %v8429
    %v8431 = vpop.f32.mrb[0].mxu0
    %v8432 = vadd.f32 %v7777, %v8431
    %v8433 = vpop.f32.mrb[0].mxu0
    %v8434 = vadd.f32 %v7773, %v8433
    %v8435 = vpop.f32.mrb[0].mxu0
    %v8436 = vadd.f32 %v7777, %v8435
    %8437 = vmatprep.mubr.bf16.mxu0 %v7653
    %8438 = vmatmul.mubr.bf16.gmra.mrb[0].mxu0 %v7652
    %v8439 = vpop.f32.mrb[0].mxu0
    %v8440 = vadd.f32 %v7773, %v8439
    %v8441 = vpop.f32.mrb[0].mxu0
    %v8442 = vadd.f32 %v7777, %v8441
    %v8443 = vpop.f32.mrb[0].mxu0
    %v8444 = vadd.f32 %v7773, %v8443
    %v8445 = vpop.f32.mrb[0].mxu0
    %v8446 = vadd.f32 %v7777, %v8445
    %8447 = vmatprep.mubr.bf16.mxu0 %v7655
    %8448 = vmatmul.mubr.bf16.gmra.mrb[0].mxu0 %v7654
    %v8449 = vpop.f32.mrb[0].mxu0
    %v8450 = vadd.f32 %v7773, %v8449
    %v8451 = vpop.f32.mrb[0].mxu0
    %v8452 = vadd.f32 %v7777, %v8451
    %v8453 = vpop.f32.mrb[0].mxu0
    %v8454 = vadd.f32 %v7773, %v8453
    %v8455 = vpop.f32.mrb[0].mxu0
    %v8456 = vadd.f32 %v7777, %v8455
    %8457 = vmatprep.mubr.bf16.mxu0 %v7657
    %8458 = vmatmul.mubr.bf16.gmra.mrb[0].mxu0 %v7656
    %v8459 = vpop.f32.mrb[0].mxu0
    %v8460 = vadd.f32 %v7773, %v8459
    %v8461 = vpop.f32.mrb[0].mxu0
    %v8462 = vadd.f32 %v7777, %v8461
    %v8463 = vpop.f32.mrb[0].mxu0
    %v8464 = vadd.f32 %v7773, %v8463
    %v8465 = vpop.f32.mrb[0].mxu0
    %v8466 = vadd.f32 %v7777, %v8465
    %8467 = vmatprep.mubr.bf16.mxu0 %v7659
    %8468 = vmatmul.mubr.bf16.gmra.mrb[0].mxu0 %v7658
    %v8469 = vpop.f32.mrb[0].mxu0
    %v8470 = vadd.f32 %v7773, %v8469
    %v8471 = vpop.f32.mrb[0].mxu0
    %v8472 = vadd.f32 %v7777, %v8471
    %v8473 = vpop.f32.mrb[0].mxu0
    %v8474 = vadd.f32 %v7773, %v8473
    %v8475 = vpop.f32.mrb[0].mxu0
    %v8476 = vadd.f32 %v7777, %v8475
    %8477 = vmatprep.mubr.bf16.mxu0 %v7661
    %8478 = vmatmul.mubr.bf16.gmra.mrb[0].mxu0 %v7660
    %v8479 = vpop.f32.mrb[0].mxu0
    %v8480 = vadd.f32 %v7773, %v8479
    %v8481 = vpop.f32.mrb[0].mxu0
    %v8482 = vadd.f32 %v7777, %v8481
    %v8483 = vpop.f32.mrb[0].mxu0
    %v8484 = vadd.f32 %v7773, %v8483
    %v8485 = vpop.f32.mrb[0].mxu0
    %v8486 = vadd.f32 %v7777, %v8485
    %8487 = vmatprep.mubr.bf16.mxu0 %v7663
    %8488 = vmatmul.mubr.bf16.gmra.mrb[0].mxu0 %v7662
    %v8489 = vpop.f32.mrb[0].mxu0
    %v8490 = vadd.f32 %v7773, %v8489
    %v8491 = vpop.f32.mrb[0].mxu0
    %v8492 = vadd.f32 %v7777, %v8491
    %v8493 = vpop.f32.mrb[0].mxu0
    %v8494 = vadd.f32 %v7773, %v8493
    %v8495 = vpop.f32.mrb[0].mxu0
    %v8496 = vadd.f32 %v7777, %v8495
    %8497 = vdwg.mxu0
    %8498 = vmatprep.subr.bf16.mxu0 %v8085
    %8499 = vmatpush1.bf16.msra.mxu0 %v8084
    %8500 = vmatprep.subr.bf16.mxu0 %v8091
    %8501 = vmatpush1.bf16.msra.mxu0 %v8090
    %8502 = vmatprep.subr.bf16.mxu0 %v8097
    %8503 = vmatpush1.bf16.msra.mxu0 %v8096
    %8504 = vmatprep.subr.bf16.mxu0 %v8103
    %8505 = vmatpush1.bf16.msra.mxu0 %v8102
    %8506 = vmatprep.subr.bf16.mxu0 %v8109
    %8507 = vmatpush1.bf16.msra.mxu0 %v8108
    %8508 = vmatprep.subr.bf16.mxu0 %v8115
    %8509 = vmatpush1.bf16.msra.mxu0 %v8114
    %8510 = vmatprep.subr.bf16.mxu0 %v8121
    %8511 = vmatpush1.bf16.msra.mxu0 %v8120
    %8512 = vmatprep.subr.bf16.mxu0 %v8127
    %8513 = vmatpush1.bf16.msra.mxu0 %v8126
    %8514 = vmatprep.subr.bf16.mxu0 %v8133
    %8515 = vmatpush1.bf16.msra.mxu0 %v8132
    %8516 = vmatprep.subr.bf16.mxu0 %v8139
    %8517 = vmatpush1.bf16.msra.mxu0 %v8138
    %8518 = vmatprep.subr.bf16.mxu0 %v8145
    %8519 = vmatpush1.bf16.msra.mxu0 %v8144
    %8520 = vmatprep.subr.bf16.mxu0 %v8151
    %8521 = vmatpush1.bf16.msra.mxu0 %v8150
    %8522 = vmatprep.subr.bf16.mxu0 %v8157
    %8523 = vmatpush1.bf16.msra.mxu0 %v8156
    %8524 = vmatprep.subr.bf16.mxu0 %v8163
    %8525 = vmatpush1.bf16.msra.mxu0 %v8162
    %8526 = vmatprep.subr.bf16.mxu0 %v8169
    %8527 = vmatpush1.bf16.msra.mxu0 %v8168
    %8528 = vmatprep.subr.bf16.mxu0 %v8175
    %8529 = vmatpush1.bf16.msra.mxu0 %v8174
    %8530 = vmatprep.mubr.bf16.mxu0 %v7649
    %8531 = vmatmul.mubr.bf16.gmra.mrb[0].mxu0 %v7648
    %v8532 = vpop.f32.mrb[0].mxu0
    %v8533 = vadd.f32 %v7781, %v8532
    %v8534 = vpop.f32.mrb[0].mxu0
    %v8535 = vadd.f32 %v7785, %v8534
    %v8536 = vpop.f32.mrb[0].mxu0
    %v8537 = vadd.f32 %v7781, %v8536
    %v8538 = vpop.f32.mrb[0].mxu0
    %v8539 = vadd.f32 %v7785, %v8538
    %8540 = vmatprep.mubr.bf16.mxu0 %v7651
    %8541 = vmatmul.mubr.bf16.gmra.mrb[0].mxu0 %v7650
    %v8542 = vpop.f32.mrb[0].mxu0
    %v8543 = vadd.f32 %v7781, %v8542
    %v8544 = vpop.f32.mrb[0].mxu0
    %v8545 = vadd.f32 %v7785, %v8544
    %v8546 = vpop.f32.mrb[0].mxu0
    %v8547 = vadd.f32 %v7781, %v8546
    %v8548 = vpop.f32.mrb[0].mxu0
    %v8549 = vadd.f32 %v7785, %v8548
    %8550 = vmatprep.mubr.bf16.mxu0 %v7653
    %8551 = vmatmul.mubr.bf16.gmra.mrb[0].mxu0 %v7652
    %v8552 = vpop.f32.mrb[0].mxu0
    %v8553 = vadd.f32 %v7781, %v8552
    %v8554 = vpop.f32.mrb[0].mxu0
    %v8555 = vadd.f32 %v7785, %v8554
    %v8556 = vpop.f32.mrb[0].mxu0
    %v8557 = vadd.f32 %v7781, %v8556
    %v8558 = vpop.f32.mrb[0].mxu0
    %v8559 = vadd.f32 %v7785, %v8558
    %8560 = vmatprep.mubr.bf16.mxu0 %v7655
    %8561 = vmatmul.mubr.bf16.gmra.mrb[0].mxu0 %v7654
    %v8562 = vpop.f32.mrb[0].mxu0
    %v8563 = vadd.f32 %v7781, %v8562
    %v8564 = vpop.f32.mrb[0].mxu0
    %v8565 = vadd.f32 %v7785, %v8564
    %v8566 = vpop.f32.mrb[0].mxu0
    %v8567 = vadd.f32 %v7781, %v8566
    %v8568 = vpop.f32.mrb[0].mxu0
    %v8569 = vadd.f32 %v7785, %v8568
    %8570 = vmatprep.mubr.bf16.mxu0 %v7657
    %8571 = vmatmul.mubr.bf16.gmra.mrb[0].mxu0 %v7656
    %v8572 = vpop.f32.mrb[0].mxu0
    %v8573 = vadd.f32 %v7781, %v8572
    %v8574 = vpop.f32.mrb[0].mxu0
    %v8575 = vadd.f32 %v7785, %v8574
    %v8576 = vpop.f32.mrb[0].mxu0
    %v8577 = vadd.f32 %v7781, %v8576
    %v8578 = vpop.f32.mrb[0].mxu0
    %v8579 = vadd.f32 %v7785, %v8578
    %8580 = vmatprep.mubr.bf16.mxu0 %v7659
    %8581 = vmatmul.mubr.bf16.gmra.mrb[0].mxu0 %v7658
    %v8582 = vpop.f32.mrb[0].mxu0
    %v8583 = vadd.f32 %v7781, %v8582
    %v8584 = vpop.f32.mrb[0].mxu0
    %v8585 = vadd.f32 %v7785, %v8584
    %v8586 = vpop.f32.mrb[0].mxu0
    %v8587 = vadd.f32 %v7781, %v8586
    %v8588 = vpop.f32.mrb[0].mxu0
    %v8589 = vadd.f32 %v7785, %v8588
    %8590 = vmatprep.mubr.bf16.mxu0 %v7661
    %8591 = vmatmul.mubr.bf16.gmra.mrb[0].mxu0 %v7660
    %v8592 = vpop.f32.mrb[0].mxu0
    %v8593 = vadd.f32 %v7781, %v8592
    %v8594 = vpop.f32.mrb[0].mxu0
    %v8595 = vadd.f32 %v7785, %v8594
    %v8596 = vpop.f32.mrb[0].mxu0
    %v8597 = vadd.f32 %v7781, %v8596
    %v8598 = vpop.f32.mrb[0].mxu0
    %v8599 = vadd.f32 %v7785, %v8598
    %8600 = vmatprep.mubr.bf16.mxu0 %v7663
    %8601 = vmatmul.mubr.bf16.gmra.mrb[0].mxu0 %v7662
    %v8602 = vpop.f32.mrb[0].mxu0
    %v8603 = vadd.f32 %v7781, %v8602
    %v8604 = vpop.f32.mrb[0].mxu0
    %v8605 = vadd.f32 %v7785, %v8604
    %v8606 = vpop.f32.mrb[0].mxu0
    %v8607 = vadd.f32 %v7781, %v8606
    %v8608 = vpop.f32.mrb[0].mxu0
    %v8609 = vadd.f32 %v7785, %v8608
    %8610 = vdwg.mxu0
    %8611 = vst [vmem:[#allocation2] sm:$0xff] %v8307
    %8612 = vst [vmem:[#allocation2 + $0x8] sm:$0xff] %v8309
    %8613 = vst [vmem:[#allocation2 + $0x10] sm:$0xff] %v8420
    %8614 = vst [vmem:[#allocation2 + $0x18] sm:$0xff] %v8422
    %8615 = vst [vmem:[#allocation2 + $0x20] sm:$0xff] %v8533
    %8616 = vst [vmem:[#allocation2 + $0x28] sm:$0xff] %v8535
    %8617 = vst [vmem:[#allocation2 + $0x30] sm:$0xff] %v8311
    %8618 = vst [vmem:[#allocation2 + $0x38] sm:$0xff] %v8313
    %8619 = vst [vmem:[#allocation2 + $0x40] sm:$0xff] %v8424
    %8620 = vst [vmem:[#allocation2 + $0x48] sm:$0xff] %v8426
    %8621 = vst [vmem:[#allocation2 + $0x50] sm:$0xff] %v8537
    %8622 = vst [vmem:[#allocation2 + $0x58] sm:$0xff] %v8539
    %8623 = vst [vmem:[#allocation2 + $0x60] sm:$0xff] %v8317
    %8624 = vst [vmem:[#allocation2 + $0x68] sm:$0xff] %v8319
    %8625 = vst [vmem:[#allocation2 + $0x70] sm:$0xff] %v8430
    %8626 = vst [vmem:[#allocation2 + $0x78] sm:$0xff] %v8432
    %8627 = vst [vmem:[#allocation2 + $0x80] sm:$0xff] %v8543
    %8628 = vst [vmem:[#allocation2 + $0x88] sm:$0xff] %v8545
    %8629 = vst [vmem:[#allocation2 + $0x90] sm:$0xff] %v8321
    %8630 = vst [vmem:[#allocation2 + $0x98] sm:$0xff] %v8323
    %8631 = vst [vmem:[#allocation2 + $0xa0] sm:$0xff] %v8434
    %8632 = vst [vmem:[#allocation2 + $0xa8] sm:$0xff] %v8436
    %8633 = vst [vmem:[#allocation2 + $0xb0] sm:$0xff] %v8547
    %8634 = vst [vmem:[#allocation2 + $0xb8] sm:$0xff] %v8549
    %8635 = vst [vmem:[#allocation2 + $0xc0] sm:$0xff] %v8327
    %8636 = vst [vmem:[#allocation2 + $0xc8] sm:$0xff] %v8329
    %8637 = vst [vmem:[#allocation2 + $0xd0] sm:$0xff] %v8440
    %8638 = vst [vmem:[#allocation2 + $0xd8] sm:$0xff] %v8442
    %8639 = vst [vmem:[#allocation2 + $0xe0] sm:$0xff] %v8553
    %8640 = vst [vmem:[#allocation2 + $0xe8] sm:$0xff] %v8555
    %8641 = vst [vmem:[#allocation2 + $0xf0] sm:$0xff] %v8331
    %8642 = vst [vmem:[#allocation2 + $0xf8] sm:$0xff] %v8333
    %8643 = vst [vmem:[#allocation2 + $0x100] sm:$0xff] %v8444
    %8644 = vst [vmem:[#allocation2 + $0x108] sm:$0xff] %v8446
    %8645 = vst [vmem:[#allocation2 + $0x110] sm:$0xff] %v8557
    %8646 = vst [vmem:[#allocation2 + $0x118] sm:$0xff] %v8559
    %8647 = vst [vmem:[#allocation2 + $0x120] sm:$0xff] %v8337
    %8648 = vst [vmem:[#allocation2 + $0x128] sm:$0xff] %v8339
    %8649 = vst [vmem:[#allocation2 + $0x130] sm:$0xff] %v8450
    %8650 = vst [vmem:[#allocation2 + $0x138] sm:$0xff] %v8452
    %8651 = vst [vmem:[#allocation2 + $0x140] sm:$0xff] %v8563
    %8652 = vst [vmem:[#allocation2 + $0x148] sm:$0xff] %v8565
    %8653 = vst [vmem:[#allocation2 + $0x150] sm:$0xff] %v8341
    %8654 = vst [vmem:[#allocation2 + $0x158] sm:$0xff] %v8343
    %8655 = vst [vmem:[#allocation2 + $0x160] sm:$0xff] %v8454
    %8656 = vst [vmem:[#allocation2 + $0x168] sm:$0xff] %v8456
    %8657 = vst [vmem:[#allocation2 + $0x170] sm:$0xff] %v8567
    %8658 = vst [vmem:[#allocation2 + $0x178] sm:$0xff] %v8569
    %8659 = vst [vmem:[#allocation2 + $0x180] sm:$0xff] %v8347
    %8660 = vst [vmem:[#allocation2 + $0x188] sm:$0xff] %v8349
    %8661 = vst [vmem:[#allocation2 + $0x190] sm:$0xff] %v8460
    %8662 = vst [vmem:[#allocation2 + $0x198] sm:$0xff] %v8462
    %8663 = vst [vmem:[#allocation2 + $0x1a0] sm:$0xff] %v8573
    %8664 = vst [vmem:[#allocation2 + $0x1a8] sm:$0xff] %v8575
    %8665 = vst [vmem:[#allocation2 + $0x1b0] sm:$0xff] %v8351
    %8666 = vst [vmem:[#allocation2 + $0x1b8] sm:$0xff] %v8353
    %8667 = vst [vmem:[#allocation2 + $0x1c0] sm:$0xff] %v8464
    %8668 = vst [vmem:[#allocation2 + $0x1c8] sm:$0xff] %v8466
    %8669 = vst [vmem:[#allocation2 + $0x1d0] sm:$0xff] %v8577
    %8670 = vst [vmem:[#allocation2 + $0x1d8] sm:$0xff] %v8579
    %8671 = vst [vmem:[#allocation2 + $0x1e0] sm:$0xff] %v8357
    %8672 = vst [vmem:[#allocation2 + $0x1e8] sm:$0xff] %v8359
    %8673 = vst [vmem:[#allocation2 + $0x1f0] sm:$0xff] %v8470
    %8674 = vst [vmem:[#allocation2 + $0x1f8] sm:$0xff] %v8472
    %8675 = vst [vmem:[#allocation2 + $0x200] sm:$0xff] %v8583
    %8676 = vst [vmem:[#allocation2 + $0x208] sm:$0xff] %v8585
    %8677 = vst [vmem:[#allocation2 + $0x210] sm:$0xff] %v8361
    %8678 = vst [vmem:[#allocation2 + $0x218] sm:$0xff] %v8363
    %8679 = vst [vmem:[#allocation2 + $0x220] sm:$0xff] %v8474
    %8680 = vst [vmem:[#allocation2 + $0x228] sm:$0xff] %v8476
    %8681 = vst [vmem:[#allocation2 + $0x230] sm:$0xff] %v8587
    %8682 = vst [vmem:[#allocation2 + $0x238] sm:$0xff] %v8589
    %8683 = vst [vmem:[#allocation2 + $0x240] sm:$0xff] %v8367
    %8684 = vst [vmem:[#allocation2 + $0x248] sm:$0xff] %v8369
    %8685 = vst [vmem:[#allocation2 + $0x250] sm:$0xff] %v8480
    %8686 = vst [vmem:[#allocation2 + $0x258] sm:$0xff] %v8482
    %8687 = vst [vmem:[#allocation2 + $0x260] sm:$0xff] %v8593
    %8688 = vst [vmem:[#allocation2 + $0x268] sm:$0xff] %v8595
    %8689 = vst [vmem:[#allocation2 + $0x270] sm:$0xff] %v8371
    %8690 = vst [vmem:[#allocation2 + $0x278] sm:$0xff] %v8373
    %8691 = vst [vmem:[#allocation2 + $0x280] sm:$0xff] %v8484
    %8692 = vst [vmem:[#allocation2 + $0x288] sm:$0xff] %v8486
    %8693 = vst [vmem:[#allocation2 + $0x290] sm:$0xff] %v8597
    %8694 = vst [vmem:[#allocation2 + $0x298] sm:$0xff] %v8599
    %8695 = vst [vmem:[#allocation2 + $0x2a0] sm:$0xff] %v8377
    %8696 = vst [vmem:[#allocation2 + $0x2a8] sm:$0xff] %v8379
    %8697 = vst [vmem:[#allocation2 + $0x2b0] sm:$0xff] %v8490
    %8698 = vst [vmem:[#allocation2 + $0x2b8] sm:$0xff] %v8492
    %8699 = vst [vmem:[#allocation2 + $0x2c0] sm:$0xff] %v8603
    %8700 = vst [vmem:[#allocation2 + $0x2c8] sm:$0xff] %v8605
    %8701 = vst [vmem:[#allocation2 + $0x2d0] sm:$0xff] %v8381
    %8702 = vst [vmem:[#allocation2 + $0x2d8] sm:$0xff] %v8383
    %8703 = vst [vmem:[#allocation2 + $0x2e0] sm:$0xff] %v8494
    %8704 = vst [vmem:[#allocation2 + $0x2e8] sm:$0xff] %v8496
    %8705 = vst [vmem:[#allocation2 + $0x2f0] sm:$0xff] %v8607
    %8706 = vst [vmem:[#allocation2 + $0x2f8] sm:$0xff] %v8609
    %v8707 = vld [vmem:[%s9] sm:$0x3]
    %v8709 = vlaneseq
    %v8710 = vshrl.u32 %v8709, 7
    %v8711 = vsub.s32 0, %v8710
    %v8712 = vrot.slane %v8707, %v8711
    %v8713 = vlaneseq
    %v8714 = vshrl.u32 %v8713, 7
    %v8715 = vsub.s32 1, %v8714
    %v8716 = vrot.slane %v8707, %v8715
    %v8719 = vld [vmem:[#allocation2] sm:$0xff]
    %v8720 = vld [vmem:[#allocation2 + $0x8] sm:$0xff]
    %v8721 = vld [vmem:[#allocation2 + $0x10] sm:$0xff]
    %v8722 = vld [vmem:[#allocation2 + $0x18] sm:$0xff]
    %v8723 = vld [vmem:[#allocation2 + $0x20] sm:$0xff]
    %v8724 = vld [vmem:[#allocation2 + $0x28] sm:$0xff]
    %v8725 = vld [vmem:[#allocation2 + $0x30] sm:$0xff]
    %v8726 = vld [vmem:[#allocation2 + $0x38] sm:$0xff]
    %v8727 = vld [vmem:[#allocation2 + $0x40] sm:$0xff]
    %v8728 = vld [vmem:[#allocation2 + $0x48] sm:$0xff]
    %v8729 = vld [vmem:[#allocation2 + $0x50] sm:$0xff]
    %v8730 = vld [vmem:[#allocation2 + $0x58] sm:$0xff]
    %v8731 = vld [vmem:[#allocation10] sm:$0xff]
    %v8732 = vld [vmem:[#allocation10 + $0x8] sm:$0xff]
    %v8733 = vld [vmem:[#allocation10 + $0x10] sm:$0xff]
    %v8734 = vld [vmem:[#allocation10 + $0x18] sm:$0xff]
    %v8735 = vld [vmem:[#allocation10 + $0x20] sm:$0xff]
    %v8736 = vld [vmem:[#allocation10 + $0x28] sm:$0xff]
    %v8737 = vld [vmem:[#allocation10 + $0x30] sm:$0xff]
    %v8738 = vld [vmem:[#allocation10 + $0x38] sm:$0xff]
    %v8739 = vld [vmem:[#allocation10 + $0x40] sm:$0xff]
    %v8740 = vld [vmem:[#allocation10 + $0x48] sm:$0xff]
    %v8741 = vld [vmem:[#allocation10 + $0x50] sm:$0xff]
    %v8742 = vld [vmem:[#allocation10 + $0x58] sm:$0xff]
    %v8743 = vld [vmem:[#allocation10 + $0x60] sm:$0xff]
    %v8744 = vld [vmem:[#allocation10 + $0x68] sm:$0xff]
    %v8745 = vld [vmem:[#allocation10 + $0x70] sm:$0xff]
    %v8746 = vld [vmem:[#allocation10 + $0x78] sm:$0xff]
    %v8747 = vld [vmem:[#allocation10 + $0x80] sm:$0xff]
    %v8748 = vld [vmem:[#allocation10 + $0x88] sm:$0xff]
    %v8749 = vld [vmem:[#allocation10 + $0x90] sm:$0xff]
    %v8750 = vld [vmem:[#allocation10 + $0x98] sm:$0xff]
    %v8751 = vld [vmem:[#allocation10 + $0xa0] sm:$0xff]
    %v8752 = vld [vmem:[#allocation10 + $0xa8] sm:$0xff]
    %v8753 = vld [vmem:[#allocation10 + $0xb0] sm:$0xff]
    %v8754 = vld [vmem:[#allocation10 + $0xb8] sm:$0xff]
    %v8755 = vld [vmem:[#allocation10 + $0xc0] sm:$0xff]
    %v8756 = vld [vmem:[#allocation10 + $0xc8] sm:$0xff]
    %v8757 = vld [vmem:[#allocation10 + $0xd0] sm:$0xff]
    %v8758 = vld [vmem:[#allocation10 + $0xd8] sm:$0xff]
    %v8759 = vld [vmem:[#allocation10 + $0xe0] sm:$0xff]
    %v8760 = vld [vmem:[#allocation10 + $0xe8] sm:$0xff]
    %v8761 = vld [vmem:[#allocation10 + $0xf0] sm:$0xff]
    %v8762 = vld [vmem:[#allocation10 + $0xf8] sm:$0xff]
    %v8763 = vld [vmem:[#allocation10 + $0x100] sm:$0xff]
    %v8764 = vld [vmem:[#allocation10 + $0x108] sm:$0xff]
    %v8765 = vld [vmem:[#allocation10 + $0x110] sm:$0xff]
    %v8766 = vld [vmem:[#allocation10 + $0x118] sm:$0xff]
    %v8767 = vld [vmem:[#allocation10 + $0x120] sm:$0xff]
    %v8768 = vld [vmem:[#allocation10 + $0x128] sm:$0xff]
    %v8769 = vld [vmem:[#allocation10 + $0x130] sm:$0xff]
    %v8770 = vld [vmem:[#allocation10 + $0x138] sm:$0xff]
    %v8771 = vld [vmem:[#allocation10 + $0x140] sm:$0xff]
    %v8772 = vld [vmem:[#allocation10 + $0x148] sm:$0xff]
    %v8773 = vld [vmem:[#allocation10 + $0x150] sm:$0xff]
    %v8774 = vld [vmem:[#allocation10 + $0x158] sm:$0xff]
    %v8775 = vld [vmem:[#allocation10 + $0x160] sm:$0xff]
    %v8776 = vld [vmem:[#allocation10 + $0x168] sm:$0xff]
    %v8777 = vld [vmem:[#allocation10 + $0x170] sm:$0xff]
    %v8778 = vld [vmem:[#allocation10 + $0x178] sm:$0xff]
    %v8779 = vld [vmem:[#allocation10 + $0x180] sm:$0xff]
    %v8780 = vld [vmem:[#allocation10 + $0x188] sm:$0xff]
    %v8781 = vld [vmem:[#allocation10 + $0x190] sm:$0xff]
    %v8782 = vld [vmem:[#allocation10 + $0x198] sm:$0xff]
    %v8783 = vld [vmem:[#allocation10 + $0x1a0] sm:$0xff]
    %v8784 = vld [vmem:[#allocation10 + $0x1a8] sm:$0xff]
    %v8785 = vld [vmem:[#allocation10 + $0x1b0] sm:$0xff]
    %v8786 = vld [vmem:[#allocation10 + $0x1b8] sm:$0xff]
    %v8787 = vld [vmem:[#allocation10 + $0x1c0] sm:$0xff]
    %v8788 = vld [vmem:[#allocation10 + $0x1c8] sm:$0xff]
    %v8789 = vld [vmem:[#allocation10 + $0x1d0] sm:$0xff]
    %v8790 = vld [vmem:[#allocation10 + $0x1d8] sm:$0xff]
    %v8791 = vld [vmem:[#allocation10 + $0x1e0] sm:$0xff]
    %v8792 = vld [vmem:[#allocation10 + $0x1e8] sm:$0xff]
    %v8793 = vld [vmem:[#allocation10 + $0x1f0] sm:$0xff]
    %v8794 = vld [vmem:[#allocation10 + $0x1f8] sm:$0xff]
    %v8795 = vld [vmem:[#allocation10 + $0x200] sm:$0xff]
    %v8796 = vld [vmem:[#allocation10 + $0x208] sm:$0xff]
    %v8797 = vld [vmem:[#allocation10 + $0x210] sm:$0xff]
    %v8798 = vld [vmem:[#allocation10 + $0x218] sm:$0xff]
    %v8799 = vld [vmem:[#allocation10 + $0x220] sm:$0xff]
    %v8800 = vld [vmem:[#allocation10 + $0x228] sm:$0xff]
    %v8801 = vld [vmem:[#allocation10 + $0x230] sm:$0xff]
    %v8802 = vld [vmem:[#allocation10 + $0x238] sm:$0xff]
    %v8803 = vld [vmem:[#allocation10 + $0x240] sm:$0xff]
    %v8804 = vld [vmem:[#allocation10 + $0x248] sm:$0xff]
    %v8805 = vld [vmem:[#allocation10 + $0x250] sm:$0xff]
    %v8806 = vld [vmem:[#allocation10 + $0x258] sm:$0xff]
    %v8807 = vld [vmem:[#allocation10 + $0x260] sm:$0xff]
    %v8808 = vld [vmem:[#allocation10 + $0x268] sm:$0xff]
    %v8809 = vld [vmem:[#allocation10 + $0x270] sm:$0xff]
    %v8810 = vld [vmem:[#allocation10 + $0x278] sm:$0xff]
    %v8811 = vld [vmem:[#allocation10 + $0x280] sm:$0xff]
    %v8812 = vld [vmem:[#allocation10 + $0x288] sm:$0xff]
    %v8813 = vld [vmem:[#allocation10 + $0x290] sm:$0xff]
    %v8814 = vld [vmem:[#allocation10 + $0x298] sm:$0xff]
    %v8815 = vld [vmem:[#allocation10 + $0x2a0] sm:$0xff]
    %v8816 = vld [vmem:[#allocation10 + $0x2a8] sm:$0xff]
    %v8817 = vld [vmem:[#allocation10 + $0x2b0] sm:$0xff]
    %v8818 = vld [vmem:[#allocation10 + $0x2b8] sm:$0xff]
    %v8819 = vld [vmem:[#allocation10 + $0x2c0] sm:$0xff]
    %v8820 = vld [vmem:[#allocation10 + $0x2c8] sm:$0xff]
    %v8821 = vld [vmem:[#allocation10 + $0x2d0] sm:$0xff]
    %v8822 = vld [vmem:[#allocation10 + $0x2d8] sm:$0xff]
    %v8823 = vld [vmem:[#allocation10 + $0x2e0] sm:$0xff]
    %v8824 = vld [vmem:[#allocation10 + $0x2e8] sm:$0xff]
    %v8825 = vld [vmem:[#allocation10 + $0x2f0] sm:$0xff]
    %v8826 = vld [vmem:[#allocation10 + $0x2f8] sm:$0xff]
    %v8923 = vunpack.c.l.b16 %v8731
    %v8924 = vunpack.c.h.b16 %v8731
    %v8925 = vunpack.c.l.b16 %v8732
    %v8926 = vunpack.c.h.b16 %v8732
    %v8927 = vunpack.c.l.b16 %v8733
    %v8928 = vunpack.c.h.b16 %v8733
    %v8929 = vunpack.c.l.b16 %v8734
    %v8930 = vunpack.c.h.b16 %v8734
    %v8931 = vunpack.c.l.b16 %v8735
    %v8932 = vunpack.c.h.b16 %v8735
    %v8933 = vunpack.c.l.b16 %v8736
    %v8934 = vunpack.c.h.b16 %v8736
    %v8935 = vunpack.c.l.b16 %v8737
    %v8936 = vunpack.c.h.b16 %v8737
    %v8937 = vunpack.c.l.b16 %v8738
    %v8938 = vunpack.c.h.b16 %v8738
    %v8939 = vunpack.c.l.b16 %v8739
    %v8940 = vunpack.c.h.b16 %v8739
    %v8941 = vunpack.c.l.b16 %v8740
    %v8942 = vunpack.c.h.b16 %v8740
    %v8943 = vunpack.c.l.b16 %v8741
    %v8944 = vunpack.c.h.b16 %v8741
    %v8945 = vunpack.c.l.b16 %v8742
    %v8946 = vunpack.c.h.b16 %v8742
    %v8947 = vunpack.c.l.b16 %v8743
    %v8948 = vunpack.c.h.b16 %v8743
    %v8949 = vunpack.c.l.b16 %v8744
    %v8950 = vunpack.c.h.b16 %v8744
    %v8951 = vunpack.c.l.b16 %v8745
    %v8952 = vunpack.c.h.b16 %v8745
    %v8953 = vunpack.c.l.b16 %v8746
    %v8954 = vunpack.c.h.b16 %v8746
    %v8955 = vunpack.c.l.b16 %v8747
    %v8956 = vunpack.c.h.b16 %v8747
    %v8957 = vunpack.c.l.b16 %v8748
    %v8958 = vunpack.c.h.b16 %v8748
    %v8959 = vunpack.c.l.b16 %v8749
    %v8960 = vunpack.c.h.b16 %v8749
    %v8961 = vunpack.c.l.b16 %v8750
    %v8962 = vunpack.c.h.b16 %v8750
    %v8963 = vunpack.c.l.b16 %v8751
    %v8964 = vunpack.c.h.b16 %v8751
    %v8965 = vunpack.c.l.b16 %v8752
    %v8966 = vunpack.c.h.b16 %v8752
    %v8967 = vunpack.c.l.b16 %v8753
    %v8968 = vunpack.c.h.b16 %v8753
    %v8969 = vunpack.c.l.b16 %v8754
    %v8970 = vunpack.c.h.b16 %v8754
    %v8971 = vunpack.c.l.b16 %v8755
    %v8972 = vunpack.c.h.b16 %v8755
    %v8973 = vunpack.c.l.b16 %v8756
    %v8974 = vunpack.c.h.b16 %v8756
    %v8975 = vunpack.c.l.b16 %v8757
    %v8976 = vunpack.c.h.b16 %v8757
    %v8977 = vunpack.c.l.b16 %v8758
    %v8978 = vunpack.c.h.b16 %v8758
    %v8979 = vunpack.c.l.b16 %v8759
    %v8980 = vunpack.c.h.b16 %v8759
    %v8981 = vunpack.c.l.b16 %v8760
    %v8982 = vunpack.c.h.b16 %v8760
    %v8983 = vunpack.c.l.b16 %v8761
    %v8984 = vunpack.c.h.b16 %v8761
    %v8985 = vunpack.c.l.b16 %v8762
    %v8986 = vunpack.c.h.b16 %v8762
    %v8987 = vunpack.c.l.b16 %v8763
    %v8988 = vunpack.c.h.b16 %v8763
    %v8989 = vunpack.c.l.b16 %v8764
    %v8990 = vunpack.c.h.b16 %v8764
    %v8991 = vunpack.c.l.b16 %v8765
    %v8992 = vunpack.c.h.b16 %v8765
    %v8993 = vunpack.c.l.b16 %v8766
    %v8994 = vunpack.c.h.b16 %v8766
    %v8995 = vunpack.c.l.b16 %v8767
    %v8996 = vunpack.c.h.b16 %v8767
    %v8997 = vunpack.c.l.b16 %v8768
    %v8998 = vunpack.c.h.b16 %v8768
    %v8999 = vunpack.c.l.b16 %v8769
    %v9000 = vunpack.c.h.b16 %v8769
    %v9001 = vunpack.c.l.b16 %v8770
    %v9002 = vunpack.c.h.b16 %v8770
    %v9003 = vunpack.c.l.b16 %v8771
    %v9004 = vunpack.c.h.b16 %v8771
    %v9005 = vunpack.c.l.b16 %v8772
    %v9006 = vunpack.c.h.b16 %v8772
    %v9007 = vunpack.c.l.b16 %v8773
    %v9008 = vunpack.c.h.b16 %v8773
    %v9009 = vunpack.c.l.b16 %v8774
    %v9010 = vunpack.c.h.b16 %v8774
    %v9011 = vunpack.c.l.b16 %v8775
    %v9012 = vunpack.c.h.b16 %v8775
    %v9013 = vunpack.c.l.b16 %v8776
    %v9014 = vunpack.c.h.b16 %v8776
    %v9015 = vunpack.c.l.b16 %v8777
    %v9016 = vunpack.c.h.b16 %v8777
    %v9017 = vunpack.c.l.b16 %v8778
    %v9018 = vunpack.c.h.b16 %v8778
    %v9019 = vunpack.c.l.b16 %v8779
    %v9020 = vunpack.c.h.b16 %v8779
    %v9021 = vunpack.c.l.b16 %v8780
    %v9022 = vunpack.c.h.b16 %v8780
    %v9023 = vunpack.c.l.b16 %v8781
    %v9024 = vunpack.c.h.b16 %v8781
    %v9025 = vunpack.c.l.b16 %v8782
    %v9026 = vunpack.c.h.b16 %v8782
    %v9027 = vunpack.c.l.b16 %v8783
    %v9028 = vunpack.c.h.b16 %v8783
    %v9029 = vunpack.c.l.b16 %v8784
    %v9030 = vunpack.c.h.b16 %v8784
    %v9031 = vunpack.c.l.b16 %v8785
    %v9032 = vunpack.c.h.b16 %v8785
    %v9033 = vunpack.c.l.b16 %v8786
    %v9034 = vunpack.c.h.b16 %v8786
    %v9035 = vunpack.c.l.b16 %v8787
    %v9036 = vunpack.c.h.b16 %v8787
    %v9037 = vunpack.c.l.b16 %v8788
    %v9038 = vunpack.c.h.b16 %v8788
    %v9039 = vunpack.c.l.b16 %v8789
    %v9040 = vunpack.c.h.b16 %v8789
    %v9041 = vunpack.c.l.b16 %v8790
    %v9042 = vunpack.c.h.b16 %v8790
    %v9043 = vunpack.c.l.b16 %v8791
    %v9044 = vunpack.c.h.b16 %v8791
    %v9045 = vunpack.c.l.b16 %v8792
    %v9046 = vunpack.c.h.b16 %v8792
    %v9047 = vunpack.c.l.b16 %v8793
    %v9048 = vunpack.c.h.b16 %v8793
    %v9049 = vunpack.c.l.b16 %v8794
    %v9050 = vunpack.c.h.b16 %v8794
    %v9051 = vunpack.c.l.b16 %v8795
    %v9052 = vunpack.c.h.b16 %v8795
    %v9053 = vunpack.c.l.b16 %v8796
    %v9054 = vunpack.c.h.b16 %v8796
    %v9055 = vunpack.c.l.b16 %v8797
    %v9056 = vunpack.c.h.b16 %v8797
    %v9057 = vunpack.c.l.b16 %v8798
    %v9058 = vunpack.c.h.b16 %v8798
    %v9059 = vunpack.c.l.b16 %v8799
    %v9060 = vunpack.c.h.b16 %v8799
    %v9061 = vunpack.c.l.b16 %v8800
    %v9062 = vunpack.c.h.b16 %v8800
    %v9063 = vunpack.c.l.b16 %v8801
    %v9064 = vunpack.c.h.b16 %v8801
    %v9065 = vunpack.c.l.b16 %v8802
    %v9066 = vunpack.c.h.b16 %v8802
    %v9067 = vunpack.c.l.b16 %v8803
    %v9068 = vunpack.c.h.b16 %v8803
    %v9069 = vunpack.c.l.b16 %v8804
    %v9070 = vunpack.c.h.b16 %v8804
    %v9071 = vunpack.c.l.b16 %v8805
    %v9072 = vunpack.c.h.b16 %v8805
    %v9073 = vunpack.c.l.b16 %v8806
    %v9074 = vunpack.c.h.b16 %v8806
    %v9075 = vunpack.c.l.b16 %v8807
    %v9076 = vunpack.c.h.b16 %v8807
    %v9077 = vunpack.c.l.b16 %v8808
    %v9078 = vunpack.c.h.b16 %v8808
    %v9079 = vunpack.c.l.b16 %v8809
    %v9080 = vunpack.c.h.b16 %v8809
    %v9081 = vunpack.c.l.b16 %v8810
    %v9082 = vunpack.c.h.b16 %v8810
    %v9083 = vunpack.c.l.b16 %v8811
    %v9084 = vunpack.c.h.b16 %v8811
    %v9085 = vunpack.c.l.b16 %v8812
    %v9086 = vunpack.c.h.b16 %v8812
    %v9087 = vunpack.c.l.b16 %v8813
    %v9088 = vunpack.c.h.b16 %v8813
    %v9089 = vunpack.c.l.b16 %v8814
    %v9090 = vunpack.c.h.b16 %v8814
    %v9091 = vunpack.c.l.b16 %v8815
    %v9092 = vunpack.c.h.b16 %v8815
    %v9093 = vunpack.c.l.b16 %v8816
    %v9094 = vunpack.c.h.b16 %v8816
    %v9095 = vunpack.c.l.b16 %v8817
    %v9096 = vunpack.c.h.b16 %v8817
    %v9097 = vunpack.c.l.b16 %v8818
    %v9098 = vunpack.c.h.b16 %v8818
    %v9099 = vunpack.c.l.b16 %v8819
    %v9100 = vunpack.c.h.b16 %v8819
    %v9101 = vunpack.c.l.b16 %v8820
    %v9102 = vunpack.c.h.b16 %v8820
    %v9103 = vunpack.c.l.b16 %v8821
    %v9104 = vunpack.c.h.b16 %v8821
    %v9105 = vunpack.c.l.b16 %v8822
    %v9106 = vunpack.c.h.b16 %v8822
    %v9107 = vunpack.c.l.b16 %v8823
    %v9108 = vunpack.c.h.b16 %v8823
    %v9109 = vunpack.c.l.b16 %v8824
    %v9110 = vunpack.c.h.b16 %v8824
    %v9111 = vunpack.c.l.b16 %v8825
    %v9112 = vunpack.c.h.b16 %v8825
    %v9113 = vunpack.c.l.b16 %v8826
    %v9114 = vunpack.c.h.b16 %v8826
    %v9115 = vpack.c.b16 %v8929, %v8923
    %v9116 = vpack.c.b16 %v8930, %v8924
    %v9117 = vpack.c.b16 %v8931, %v8925
    %v9118 = vpack.c.b16 %v8932, %v8926
    %v9119 = vpack.c.b16 %v8933, %v8927
    %v9120 = vpack.c.b16 %v8934, %v8928
    %v9121 = vpack.c.b16 %v8941, %v8935
    %v9122 = vpack.c.b16 %v8942, %v8936
    %v9123 = vpack.c.b16 %v8943, %v8937
    %v9124 = vpack.c.b16 %v8944, %v8938
    %v9125 = vpack.c.b16 %v8945, %v8939
    %v9126 = vpack.c.b16 %v8946, %v8940
    %v9127 = vpack.c.b16 %v8953, %v8947
    %v9128 = vpack.c.b16 %v8954, %v8948
    %v9129 = vpack.c.b16 %v8955, %v8949
    %v9130 = vpack.c.b16 %v8956, %v8950
    %v9131 = vpack.c.b16 %v8957, %v8951
    %v9132 = vpack.c.b16 %v8958, %v8952
    %v9133 = vpack.c.b16 %v8965, %v8959
    %v9134 = vpack.c.b16 %v8966, %v8960
    %v9135 = vpack.c.b16 %v8967, %v8961
    %v9136 = vpack.c.b16 %v8968, %v8962
    %v9137 = vpack.c.b16 %v8969, %v8963
    %v9138 = vpack.c.b16 %v8970, %v8964
    %v9139 = vpack.c.b16 %v8977, %v8971
    %v9140 = vpack.c.b16 %v8978, %v8972
    %v9141 = vpack.c.b16 %v8979, %v8973
    %v9142 = vpack.c.b16 %v8980, %v8974
    %v9143 = vpack.c.b16 %v8981, %v8975
    %v9144 = vpack.c.b16 %v8982, %v8976
    %v9145 = vpack.c.b16 %v8989, %v8983
    %v9146 = vpack.c.b16 %v8990, %v8984
    %v9147 = vpack.c.b16 %v8991, %v8985
    %v9148 = vpack.c.b16 %v8992, %v8986
    %v9149 = vpack.c.b16 %v8993, %v8987
    %v9150 = vpack.c.b16 %v8994, %v8988
    %v9151 = vpack.c.b16 %v9001, %v8995
    %v9152 = vpack.c.b16 %v9002, %v8996
    %v9153 = vpack.c.b16 %v9003, %v8997
    %v9154 = vpack.c.b16 %v9004, %v8998
    %v9155 = vpack.c.b16 %v9005, %v8999
    %v9156 = vpack.c.b16 %v9006, %v9000
    %v9157 = vpack.c.b16 %v9013, %v9007
    %v9158 = vpack.c.b16 %v9014, %v9008
    %v9159 = vpack.c.b16 %v9015, %v9009
    %v9160 = vpack.c.b16 %v9016, %v9010
    %v9161 = vpack.c.b16 %v9017, %v9011
    %v9162 = vpack.c.b16 %v9018, %v9012
    %v9163 = vpack.c.b16 %v9025, %v9019
    %v9164 = vpack.c.b16 %v9026, %v9020
    %v9165 = vpack.c.b16 %v9027, %v9021
    %v9166 = vpack.c.b16 %v9028, %v9022
    %v9167 = vpack.c.b16 %v9029, %v9023
    %v9168 = vpack.c.b16 %v9030, %v9024
    %v9169 = vpack.c.b16 %v9037, %v9031
    %v9170 = vpack.c.b16 %v9038, %v9032
    %v9171 = vpack.c.b16 %v9039, %v9033
    %v9172 = vpack.c.b16 %v9040, %v9034
    %v9173 = vpack.c.b16 %v9041, %v9035
    %v9174 = vpack.c.b16 %v9042, %v9036
    %v9175 = vpack.c.b16 %v9049, %v9043
    %v9176 = vpack.c.b16 %v9050, %v9044
    %v9177 = vpack.c.b16 %v9051, %v9045
    %v9178 = vpack.c.b16 %v9052, %v9046
    %v9179 = vpack.c.b16 %v9053, %v9047
    %v9180 = vpack.c.b16 %v9054, %v9048
    %v9181 = vpack.c.b16 %v9061, %v9055
    %v9182 = vpack.c.b16 %v9062, %v9056
    %v9183 = vpack.c.b16 %v9063, %v9057
    %v9184 = vpack.c.b16 %v9064, %v9058
    %v9185 = vpack.c.b16 %v9065, %v9059
    %v9186 = vpack.c.b16 %v9066, %v9060
    %v9187 = vpack.c.b16 %v9073, %v9067
    %v9188 = vpack.c.b16 %v9074, %v9068
    %v9189 = vpack.c.b16 %v9075, %v9069
    %v9190 = vpack.c.b16 %v9076, %v9070
    %v9191 = vpack.c.b16 %v9077, %v9071
    %v9192 = vpack.c.b16 %v9078, %v9072
    %v9193 = vpack.c.b16 %v9085, %v9079
    %v9194 = vpack.c.b16 %v9086, %v9080
    %v9195 = vpack.c.b16 %v9087, %v9081
    %v9196 = vpack.c.b16 %v9088, %v9082
    %v9197 = vpack.c.b16 %v9089, %v9083
    %v9198 = vpack.c.b16 %v9090, %v9084
    %v9199 = vpack.c.b16 %v9097, %v9091
    %v9200 = vpack.c.b16 %v9098, %v9092
    %v9201 = vpack.c.b16 %v9099, %v9093
    %v9202 = vpack.c.b16 %v9100, %v9094
    %v9203 = vpack.c.b16 %v9101, %v9095
    %v9204 = vpack.c.b16 %v9102, %v9096
    %v9205 = vpack.c.b16 %v9109, %v9103
    %v9206 = vpack.c.b16 %v9110, %v9104
    %v9207 = vpack.c.b16 %v9111, %v9105
    %v9208 = vpack.c.b16 %v9112, %v9106
    %v9209 = vpack.c.b16 %v9113, %v9107
    %v9210 = vpack.c.b16 %v9114, %v9108
    %9307 = vmatprep.subr.bf16.mxu0 %v9116
    %9308 = vmatpush1.bf16.msra.mxu0 %v9115
    %9309 = vmatprep.subr.bf16.mxu0 %v9122
    %9310 = vmatpush1.bf16.msra.mxu0 %v9121
    %9311 = vmatprep.subr.bf16.mxu0 %v9128
    %9312 = vmatpush1.bf16.msra.mxu0 %v9127
    %9313 = vmatprep.subr.bf16.mxu0 %v9134
    %9314 = vmatpush1.bf16.msra.mxu0 %v9133
    %9315 = vmatprep.subr.bf16.mxu0 %v9140
    %9316 = vmatpush1.bf16.msra.mxu0 %v9139
    %9317 = vmatprep.subr.bf16.mxu0 %v9146
    %9318 = vmatpush1.bf16.msra.mxu0 %v9145
    %9319 = vmatprep.subr.bf16.mxu0 %v9152
    %9320 = vmatpush1.bf16.msra.mxu0 %v9151
    %9321 = vmatprep.subr.bf16.mxu0 %v9158
    %9322 = vmatpush1.bf16.msra.mxu0 %v9157
    %9323 = vmatprep.subr.bf16.mxu0 %v9164
    %9324 = vmatpush1.bf16.msra.mxu0 %v9163
    %9325 = vmatprep.subr.bf16.mxu0 %v9170
    %9326 = vmatpush1.bf16.msra.mxu0 %v9169
    %9327 = vmatprep.subr.bf16.mxu0 %v9176
    %9328 = vmatpush1.bf16.msra.mxu0 %v9175
    %9329 = vmatprep.subr.bf16.mxu0 %v9182
    %9330 = vmatpush1.bf16.msra.mxu0 %v9181
    %9331 = vmatprep.subr.bf16.mxu0 %v9188
    %9332 = vmatpush1.bf16.msra.mxu0 %v9187
    %9333 = vmatprep.subr.bf16.mxu0 %v9194
    %9334 = vmatpush1.bf16.msra.mxu0 %v9193
    %9335 = vmatprep.subr.bf16.mxu0 %v9200
    %9336 = vmatpush1.bf16.msra.mxu0 %v9199
    %9337 = vmatprep.subr.bf16.mxu0 %v9206
    %9338 = vmatpush1.bf16.msra.mxu0 %v9205
    %9339 = vmatprep.mubr.bf16.mxu0 0
    %9340 = vmatmul.mubr.bf16.gmra.mrb[0].mxu0 0
    %v9341 = vpop.f32.mrb[0].mxu0
    %v9342 = vadd.f32 0.0, %v9341
    %v9343 = vpop.f32.mrb[0].mxu0
    %v9344 = vadd.f32 0.0, %v9343
    %v9345 = vpop.f32.mrb[0].mxu0
    %v9346 = vadd.f32 0.0, %v9345
    %v9347 = vpop.f32.mrb[0].mxu0
    %v9348 = vadd.f32 0.0, %v9347
    %9349 = vdwg.mxu0
    %9350 = vmatprep.subr.bf16.mxu0 %v9118
    %9351 = vmatpush1.bf16.msra.mxu0 %v9117
    %9352 = vmatprep.subr.bf16.mxu0 %v9124
    %9353 = vmatpush1.bf16.msra.mxu0 %v9123
    %9354 = vmatprep.subr.bf16.mxu0 %v9130
    %9355 = vmatpush1.bf16.msra.mxu0 %v9129
    %9356 = vmatprep.subr.bf16.mxu0 %v9136
    %9357 = vmatpush1.bf16.msra.mxu0 %v9135
    %9358 = vmatprep.subr.bf16.mxu0 %v9142
    %9359 = vmatpush1.bf16.msra.mxu0 %v9141
    %9360 = vmatprep.subr.bf16.mxu0 %v9148
    %9361 = vmatpush1.bf16.msra.mxu0 %v9147
    %9362 = vmatprep.subr.bf16.mxu0 %v9154
    %9363 = vmatpush1.bf16.msra.mxu0 %v9153
    %9364 = vmatprep.subr.bf16.mxu0 %v9160
    %9365 = vmatpush1.bf16.msra.mxu0 %v9159
    %9366 = vmatprep.subr.bf16.mxu0 %v9166
    %9367 = vmatpush1.bf16.msra.mxu0 %v9165
    %9368 = vmatprep.subr.bf16.mxu0 %v9172
    %9369 = vmatpush1.bf16.msra.mxu0 %v9171
    %9370 = vmatprep.subr.bf16.mxu0 %v9178
    %9371 = vmatpush1.bf16.msra.mxu0 %v9177
    %9372 = vmatprep.subr.bf16.mxu0 %v9184
    %9373 = vmatpush1.bf16.msra.mxu0 %v9183
    %9374 = vmatprep.subr.bf16.mxu0 %v9190
    %9375 = vmatpush1.bf16.msra.mxu0 %v9189
    %9376 = vmatprep.subr.bf16.mxu0 %v9196
    %9377 = vmatpush1.bf16.msra.mxu0 %v9195
    %9378 = vmatprep.subr.bf16.mxu0 %v9202
    %9379 = vmatpush1.bf16.msra.mxu0 %v9201
    %9380 = vmatprep.subr.bf16.mxu0 %v9208
    %9381 = vmatpush1.bf16.msra.mxu0 %v9207
    %9382 = vmatprep.mubr.bf16.mxu0 0
    %9383 = vmatmul.mubr.bf16.gmra.mrb[0].mxu0 0
    %v9384 = vpop.f32.mrb[0].mxu0
    %v9385 = vadd.f32 0.0, %v9384
    %v9386 = vpop.f32.mrb[0].mxu0
    %v9387 = vadd.f32 0.0, %v9386
    %v9388 = vpop.f32.mrb[0].mxu0
    %v9389 = vadd.f32 0.0, %v9388
    %v9390 = vpop.f32.mrb[0].mxu0
    %v9391 = vadd.f32 0.0, %v9390
    %9392 = vdwg.mxu0
    %9393 = vmatprep.subr.bf16.mxu0 %v9120
    %9394 = vmatpush1.bf16.msra.mxu0 %v9119
    %9395 = vmatprep.subr.bf16.mxu0 %v9126
    %9396 = vmatpush1.bf16.msra.mxu0 %v9125
    %9397 = vmatprep.subr.bf16.mxu0 %v9132
    %9398 = vmatpush1.bf16.msra.mxu0 %v9131
    %9399 = vmatprep.subr.bf16.mxu0 %v9138
    %9400 = vmatpush1.bf16.msra.mxu0 %v9137
    %9401 = vmatprep.subr.bf16.mxu0 %v9144
    %9402 = vmatpush1.bf16.msra.mxu0 %v9143
    %9403 = vmatprep.subr.bf16.mxu0 %v9150
    %9404 = vmatpush1.bf16.msra.mxu0 %v9149
    %9405 = vmatprep.subr.bf16.mxu0 %v9156
    %9406 = vmatpush1.bf16.msra.mxu0 %v9155
    %9407 = vmatprep.subr.bf16.mxu0 %v9162
    %9408 = vmatpush1.bf16.msra.mxu0 %v9161
    %9409 = vmatprep.subr.bf16.mxu0 %v9168
    %9410 = vmatpush1.bf16.msra.mxu0 %v9167
    %9411 = vmatprep.subr.bf16.mxu0 %v9174
    %9412 = vmatpush1.bf16.msra.mxu0 %v9173
    %9413 = vmatprep.subr.bf16.mxu0 %v9180
    %9414 = vmatpush1.bf16.msra.mxu0 %v9179
    %9415 = vmatprep.subr.bf16.mxu0 %v9186
    %9416 = vmatpush1.bf16.msra.mxu0 %v9185
    %9417 = vmatprep.subr.bf16.mxu0 %v9192
    %9418 = vmatpush1.bf16.msra.mxu0 %v9191
    %9419 = vmatprep.subr.bf16.mxu0 %v9198
    %9420 = vmatpush1.bf16.msra.mxu0 %v9197
    %9421 = vmatprep.subr.bf16.mxu0 %v9204
    %9422 = vmatpush1.bf16.msra.mxu0 %v9203
    %9423 = vmatprep.subr.bf16.mxu0 %v9210
    %9424 = vmatpush1.bf16.msra.mxu0 %v9209
    %9425 = vmatprep.mubr.bf16.mxu0 0
    %9426 = vmatmul.mubr.bf16.gmra.mrb[0].mxu0 0
    %v9427 = vpop.f32.mrb[0].mxu0
    %v9428 = vadd.f32 0.0, %v9427
    %v9429 = vpop.f32.mrb[0].mxu0
    %v9430 = vadd.f32 0.0, %v9429
    %v9431 = vpop.f32.mrb[0].mxu0
    %v9432 = vadd.f32 0.0, %v9431
    %v9433 = vpop.f32.mrb[0].mxu0
    %v9434 = vadd.f32 0.0, %v9433
    %9435 = vdwg.mxu0
    %v9436 = vadd.f32 %v8719, %v9342
    %v9437 = vadd.f32 %v8720, %v9344
    %v9438 = vadd.f32 %v8725, %v9346
    %v9439 = vadd.f32 %v8726, %v9348
    %v9440 = vxor.u32 %v9436, 2147483648
    %v9441 = vxor.u32 %v9437, 2147483648
    %v9442 = vxor.u32 %v9438, 2147483648
    %v9443 = vxor.u32 %v9439, 2147483648
    %v9444 = vmul.f32 %v9440, 1.442695
    %v9445 = vpow.pop %v9444
    %v9446 = vmul.f32 %v9441, 1.442695
    %v9447 = vpow.pop %v9446
    %v9448 = vmul.f32 %v9442, 1.442695
    %v9449 = vpow.pop %v9448
    %v9450 = vmul.f32 %v9443, 1.442695
    %v9451 = vpow.pop %v9450
    %v9452 = vadd.f32 %v9445, 1.0
    %v9453 = vadd.f32 %v9447, 1.0
    %v9454 = vadd.f32 %v9449, 1.0
    %v9455 = vadd.f32 %v9451, 1.0
    %v9456 = vrcp.pop %v9452
    %v9457 = vmul.f32 1.0, %v9456
    %v9458 = vrcp.pop %v9453
    %v9459 = vmul.f32 1.0, %v9458
    %v9460 = vrcp.pop %v9454
    %v9461 = vmul.f32 1.0, %v9460
    %v9462 = vrcp.pop %v9455
    %v9463 = vmul.f32 1.0, %v9462
    %v9464 = vadd.f32 %v8721, %v9385
    %v9465 = vadd.f32 %v8722, %v9387
    %v9466 = vadd.f32 %v8727, %v9389
    %v9467 = vadd.f32 %v8728, %v9391
    %v9468 = vxor.u32 %v9464, 2147483648
    %v9469 = vxor.u32 %v9465, 2147483648
    %v9470 = vxor.u32 %v9466, 2147483648
    %v9471 = vxor.u32 %v9467, 2147483648
    %v9472 = vmul.f32 %v9468, 1.442695
    %v9473 = vpow.pop %v9472
    %v9474 = vmul.f32 %v9469, 1.442695
    %v9475 = vpow.pop %v9474
    %v9476 = vmul.f32 %v9470, 1.442695
    %v9477 = vpow.pop %v9476
    %v9478 = vmul.f32 %v9471, 1.442695
    %v9479 = vpow.pop %v9478
    %v9480 = vadd.f32 %v9473, 1.0
    %v9481 = vadd.f32 %v9475, 1.0
    %v9482 = vadd.f32 %v9477, 1.0
    %v9483 = vadd.f32 %v9479, 1.0
    %v9484 = vrcp.pop %v9480
    %v9485 = vmul.f32 1.0, %v9484
    %v9486 = vrcp.pop %v9481
    %v9487 = vmul.f32 1.0, %v9486
    %v9488 = vrcp.pop %v9482
    %v9489 = vmul.f32 1.0, %v9488
    %v9490 = vrcp.pop %v9483
    %v9491 = vmul.f32 1.0, %v9490
    %v9492 = vadd.f32 %v9428, %v8712
    %v9493 = vadd.f32 %v9430, %v8716
    %v9494 = vadd.f32 %v9432, %v8712
    %v9495 = vadd.f32 %v9434, %v8716
    %v9496 = vmul.f32 %v9457, %v9492
    %v9497 = vmul.f32 %v9459, %v9493
    %v9498 = vmul.f32 %v9461, %v9494
    %v9499 = vmul.f32 %v9463, %v9495
    %v9500 = vadd.f32 %v8723, %v9496
    %v9501 = vadd.f32 %v8724, %v9497
    %v9502 = vadd.f32 %v8729, %v9498
    %v9503 = vadd.f32 %v8730, %v9499
    %v9504 = vtanh.pop %v9500
    %v9505 = vtanh.pop %v9501
    %v9506 = vtanh.pop %v9502
    %v9507 = vtanh.pop %v9503
    %v9508 = vsub.f32 1.0, %v9485
    %v9509 = vsub.f32 1.0, %v9487
    %v9510 = vsub.f32 1.0, %v9489
    %v9511 = vsub.f32 1.0, %v9491
    %v9512 = vmul.f32 %v9508, %v9504
    %v9513 = vmul.f32 %v9509, %v9505
    %v9514 = vmul.f32 %v9510, %v9506
    %v9515 = vmul.f32 %v9511, %v9507
    %v9516 = vmul.f32 %v9485, 0.0
    %v9517 = vmul.f32 %v9487, 0.0
    %v9518 = vmul.f32 %v9489, 0.0
    %v9519 = vmul.f32 %v9491, 0.0
    %v9520 = vadd.f32 %v9512, %v9516
    %v9521 = vadd.f32 %v9513, %v9517
    %v9522 = vadd.f32 %v9514, %v9518
    %v9523 = vadd.f32 %v9515, %v9519
    %v9524 = vld [vmem:[#allocation2 + $0x60] sm:$0xff]
    %v9525 = vld [vmem:[#allocation2 + $0x68] sm:$0xff]
    %v9526 = vld [vmem:[#allocation2 + $0x70] sm:$0xff]
    %v9527 = vld [vmem:[#allocation2 + $0x78] sm:$0xff]
    %v9528 = vld [vmem:[#allocation2 + $0x80] sm:$0xff]
    %v9529 = vld [vmem:[#allocation2 + $0x88] sm:$0xff]
    %v9530 = vld [vmem:[#allocation2 + $0x90] sm:$0xff]
    %v9531 = vld [vmem:[#allocation2 + $0x98] sm:$0xff]
    %v9532 = vld [vmem:[#allocation2 + $0xa0] sm:$0xff]
    %v9533 = vld [vmem:[#allocation2 + $0xa8] sm:$0xff]
    %v9534 = vld [vmem:[#allocation2 + $0xb0] sm:$0xff]
    %v9535 = vld [vmem:[#allocation2 + $0xb8] sm:$0xff]
    %v9536 = vpack.c.bf16 %v9522, %v9520
    %v9537 = vpack.c.bf16 %v9523, %v9521
    %9538 = vmatprep.subr.bf16.mxu0 %v9116
    %9539 = vmatpush1.bf16.msra.mxu0 %v9115
    %9540 = vmatprep.subr.bf16.mxu0 %v9122
    %9541 = vmatpush1.bf16.msra.mxu0 %v9121
    %9542 = vmatprep.subr.bf16.mxu0 %v9128
    %9543 = vmatpush1.bf16.msra.mxu0 %v9127
    %9544 = vmatprep.subr.bf16.mxu0 %v9134
    %9545 = vmatpush1.bf16.msra.mxu0 %v9133
    %9546 = vmatprep.subr.bf16.mxu0 %v9140
    %9547 = vmatpush1.bf16.msra.mxu0 %v9139
    %9548 = vmatprep.subr.bf16.mxu0 %v9146
    %9549 = vmatpush1.bf16.msra.mxu0 %v9145
    %9550 = vmatprep.subr.bf16.mxu0 %v9152
    %9551 = vmatpush1.bf16.msra.mxu0 %v9151
    %9552 = vmatprep.subr.bf16.mxu0 %v9158
    %9553 = vmatpush1.bf16.msra.mxu0 %v9157
    %9554 = vmatprep.subr.bf16.mxu0 %v9164
    %9555 = vmatpush1.bf16.msra.mxu0 %v9163
    %9556 = vmatprep.subr.bf16.mxu0 %v9170
    %9557 = vmatpush1.bf16.msra.mxu0 %v9169
    %9558 = vmatprep.subr.bf16.mxu0 %v9176
    %9559 = vmatpush1.bf16.msra.mxu0 %v9175
    %9560 = vmatprep.subr.bf16.mxu0 %v9182
    %9561 = vmatpush1.bf16.msra.mxu0 %v9181
    %9562 = vmatprep.subr.bf16.mxu0 %v9188
    %9563 = vmatpush1.bf16.msra.mxu0 %v9187
    %9564 = vmatprep.subr.bf16.mxu0 %v9194
    %9565 = vmatpush1.bf16.msra.mxu0 %v9193
    %9566 = vmatprep.subr.bf16.mxu0 %v9200
    %9567 = vmatpush1.bf16.msra.mxu0 %v9199
    %9568 = vmatprep.subr.bf16.mxu0 %v9206
    %9569 = vmatpush1.bf16.msra.mxu0 %v9205
    %9570 = vmatprep.mubr.bf16.mxu0 %v9537
    %9571 = vmatmul.mubr.bf16.gmra.mrb[0].mxu0 %v9536
    %v9572 = vpop.f32.mrb[0].mxu0
    %v9573 = vadd.f32 0.0, %v9572
    %v9574 = vpop.f32.mrb[0].mxu0
    %v9575 = vadd.f32 0.0, %v9574
    %v9576 = vpop.f32.mrb[0].mxu0
    %v9577 = vadd.f32 0.0, %v9576
    %v9578 = vpop.f32.mrb[0].mxu0
    %v9579 = vadd.f32 0.0, %v9578
    %9580 = vdwg.mxu0
    %9581 = vmatprep.subr.bf16.mxu0 %v9118
    %9582 = vmatpush1.bf16.msra.mxu0 %v9117
    %9583 = vmatprep.subr.bf16.mxu0 %v9124
    %9584 = vmatpush1.bf16.msra.mxu0 %v9123
    %9585 = vmatprep.subr.bf16.mxu0 %v9130
    %9586 = vmatpush1.bf16.msra.mxu0 %v9129
    %9587 = vmatprep.subr.bf16.mxu0 %v9136
    %9588 = vmatpush1.bf16.msra.mxu0 %v9135
    %9589 = vmatprep.subr.bf16.mxu0 %v9142
    %9590 = vmatpush1.bf16.msra.mxu0 %v9141
    %9591 = vmatprep.subr.bf16.mxu0 %v9148
    %9592 = vmatpush1.bf16.msra.mxu0 %v9147
    %9593 = vmatprep.subr.bf16.mxu0 %v9154
    %9594 = vmatpush1.bf16.msra.mxu0 %v9153
    %9595 = vmatprep.subr.bf16.mxu0 %v9160
    %9596 = vmatpush1.bf16.msra.mxu0 %v9159
    %9597 = vmatprep.subr.bf16.mxu0 %v9166
    %9598 = vmatpush1.bf16.msra.mxu0 %v9165
    %9599 = vmatprep.subr.bf16.mxu0 %v9172
    %9600 = vmatpush1.bf16.msra.mxu0 %v9171
    %9601 = vmatprep.subr.bf16.mxu0 %v9178
    %9602 = vmatpush1.bf16.msra.mxu0 %v9177
    %9603 = vmatprep.subr.bf16.mxu0 %v9184
    %9604 = vmatpush1.bf16.msra.mxu0 %v9183
    %9605 = vmatprep.subr.bf16.mxu0 %v9190
    %9606 = vmatpush1.bf16.msra.mxu0 %v9189
    %9607 = vmatprep.subr.bf16.mxu0 %v9196
    %9608 = vmatpush1.bf16.msra.mxu0 %v9195
    %9609 = vmatprep.subr.bf16.mxu0 %v9202
    %9610 = vmatpush1.bf16.msra.mxu0 %v9201
    %9611 = vmatprep.subr.bf16.mxu0 %v9208
    %9612 = vmatpush1.bf16.msra.mxu0 %v9207
    %9613 = vmatprep.mubr.bf16.mxu0 %v9537
    %9614 = vmatmul.mubr.bf16.gmra.mrb[0].mxu0 %v9536
    %v9615 = vpop.f32.mrb[0].mxu0
    %v9616 = vadd.f32 0.0, %v9615
    %v9617 = vpop.f32.mrb[0].mxu0
    %v9618 = vadd.f32 0.0, %v9617
    %v9619 = vpop.f32.mrb[0].mxu0
    %v9620 = vadd.f32 0.0, %v9619
    %v9621 = vpop.f32.mrb[0].mxu0
    %v9622 = vadd.f32 0.0, %v9621
    %9623 = vdwg.mxu0
    %9624 = vmatprep.subr.bf16.mxu0 %v9120
    %9625 = vmatpush1.bf16.msra.mxu0 %v9119
    %9626 = vmatprep.subr.bf16.mxu0 %v9126
    %9627 = vmatpush1.bf16.msra.mxu0 %v9125
    %9628 = vmatprep.subr.bf16.mxu0 %v9132
    %9629 = vmatpush1.bf16.msra.mxu0 %v9131
    %9630 = vmatprep.subr.bf16.mxu0 %v9138
    %9631 = vmatpush1.bf16.msra.mxu0 %v9137
    %9632 = vmatprep.subr.bf16.mxu0 %v9144
    %9633 = vmatpush1.bf16.msra.mxu0 %v9143
    %9634 = vmatprep.subr.bf16.mxu0 %v9150
    %9635 = vmatpush1.bf16.msra.mxu0 %v9149
    %9636 = vmatprep.subr.bf16.mxu0 %v9156
    %9637 = vmatpush1.bf16.msra.mxu0 %v9155
    %9638 = vmatprep.subr.bf16.mxu0 %v9162
    %9639 = vmatpush1.bf16.msra.mxu0 %v9161
    %9640 = vmatprep.subr.bf16.mxu0 %v9168
    %9641 = vmatpush1.bf16.msra.mxu0 %v9167
    %9642 = vmatprep.subr.bf16.mxu0 %v9174
    %9643 = vmatpush1.bf16.msra.mxu0 %v9173
    %9644 = vmatprep.subr.bf16.mxu0 %v9180
    %9645 = vmatpush1.bf16.msra.mxu0 %v9179
    %9646 = vmatprep.subr.bf16.mxu0 %v9186
    %9647 = vmatpush1.bf16.msra.mxu0 %v9185
    %9648 = vmatprep.subr.bf16.mxu0 %v9192
    %9649 = vmatpush1.bf16.msra.mxu0 %v9191
    %9650 = vmatprep.subr.bf16.mxu0 %v9198
    %9651 = vmatpush1.bf16.msra.mxu0 %v9197
    %9652 = vmatprep.subr.bf16.mxu0 %v9204
    %9653 = vmatpush1.bf16.msra.mxu0 %v9203
    %9654 = vmatprep.subr.bf16.mxu0 %v9210
    %9655 = vmatpush1.bf16.msra.mxu0 %v9209
    %9656 = vmatprep.mubr.bf16.mxu0 %v9537
    %9657 = vmatmul.mubr.bf16.gmra.mrb[0].mxu0 %v9536
    %v9658 = vpop.f32.mrb[0].mxu0
    %v9659 = vadd.f32 0.0, %v9658
    %v9660 = vpop.f32.mrb[0].mxu0
    %v9661 = vadd.f32 0.0, %v9660
    %v9662 = vpop.f32.mrb[0].mxu0
    %v9663 = vadd.f32 0.0, %v9662
    %v9664 = vpop.f32.mrb[0].mxu0
    %v9665 = vadd.f32 0.0, %v9664
    %9666 = vdwg.mxu0
    %v9667 = vadd.f32 %v9524, %v9573
    %v9668 = vadd.f32 %v9525, %v9575
    %v9669 = vadd.f32 %v9530, %v9577
    %v9670 = vadd.f32 %v9531, %v9579
    %v9671 = vxor.u32 %v9667, 2147483648
    %v9672 = vxor.u32 %v9668, 2147483648
    %v9673 = vxor.u32 %v9669, 2147483648
    %v9674 = vxor.u32 %v9670, 2147483648
    %v9675 = vmul.f32 %v9671, 1.442695
    %v9676 = vpow.pop %v9675
    %v9677 = vmul.f32 %v9672, 1.442695
    %v9678 = vpow.pop %v9677
    %v9679 = vmul.f32 %v9673, 1.442695
    %v9680 = vpow.pop %v9679
    %v9681 = vmul.f32 %v9674, 1.442695
    %v9682 = vpow.pop %v9681
    %v9683 = vadd.f32 %v9676, 1.0
    %v9684 = vadd.f32 %v9678, 1.0
    %v9685 = vadd.f32 %v9680, 1.0
    %v9686 = vadd.f32 %v9682, 1.0
    %v9687 = vrcp.pop %v9683
    %v9688 = vmul.f32 1.0, %v9687
    %v9689 = vrcp.pop %v9684
    %v9690 = vmul.f32 1.0, %v9689
    %v9691 = vrcp.pop %v9685
    %v9692 = vmul.f32 1.0, %v9691
    %v9693 = vrcp.pop %v9686
    %v9694 = vmul.f32 1.0, %v9693
    %v9695 = vadd.f32 %v9526, %v9616
    %v9696 = vadd.f32 %v9527, %v9618
    %v9697 = vadd.f32 %v9532, %v9620
    %v9698 = vadd.f32 %v9533, %v9622
    %v9699 = vxor.u32 %v9695, 2147483648
    %v9700 = vxor.u32 %v9696, 2147483648
    %v9701 = vxor.u32 %v9697, 2147483648
    %v9702 = vxor.u32 %v9698, 2147483648
    %v9703 = vmul.f32 %v9699, 1.442695
    %v9704 = vpow.pop %v9703
    %v9705 = vmul.f32 %v9700, 1.442695
    %v9706 = vpow.pop %v9705
    %v9707 = vmul.f32 %v9701, 1.442695
    %v9708 = vpow.pop %v9707
    %v9709 = vmul.f32 %v9702, 1.442695
    %v9710 = vpow.pop %v9709
    %v9711 = vadd.f32 %v9704, 1.0
    %v9712 = vadd.f32 %v9706, 1.0
    %v9713 = vadd.f32 %v9708, 1.0
    %v9714 = vadd.f32 %v9710, 1.0
    %v9715 = vrcp.pop %v9711
    %v9716 = vmul.f32 1.0, %v9715
    %v9717 = vrcp.pop %v9712
    %v9718 = vmul.f32 1.0, %v9717
    %v9719 = vrcp.pop %v9713
    %v9720 = vmul.f32 1.0, %v9719
    %v9721 = vrcp.pop %v9714
    %v9722 = vmul.f32 1.0, %v9721
    %v9723 = vadd.f32 %v9659, %v8712
    %v9724 = vadd.f32 %v9661, %v8716
    %v9725 = vadd.f32 %v9663, %v8712
    %v9726 = vadd.f32 %v9665, %v8716
    %v9727 = vmul.f32 %v9688, %v9723
    %v9728 = vmul.f32 %v9690, %v9724
    %v9729 = vmul.f32 %v9692, %v9725
    %v9730 = vmul.f32 %v9694, %v9726
    %v9731 = vadd.f32 %v9528, %v9727
    %v9732 = vadd.f32 %v9529, %v9728
    %v9733 = vadd.f32 %v9534, %v9729
    %v9734 = vadd.f32 %v9535, %v9730
    %v9735 = vtanh.pop %v9731
    %v9736 = vtanh.pop %v9732
    %v9737 = vtanh.pop %v9733
    %v9738 = vtanh.pop %v9734
    %v9739 = vsub.f32 1.0, %v9716
    %v9740 = vsub.f32 1.0, %v9718
    %v9741 = vsub.f32 1.0, %v9720
    %v9742 = vsub.f32 1.0, %v9722
    %v9743 = vmul.f32 %v9739, %v9735
    %v9744 = vmul.f32 %v9740, %v9736
    %v9745 = vmul.f32 %v9741, %v9737
    %v9746 = vmul.f32 %v9742, %v9738
    %v9747 = vmul.f32 %v9716, %v9520
    %v9748 = vmul.f32 %v9718, %v9521
    %v9749 = vmul.f32 %v9720, %v9522
    %v9750 = vmul.f32 %v9722, %v9523
    %v9751 = vadd.f32 %v9743, %v9747
    %v9752 = vadd.f32 %v9744, %v9748
    %v9753 = vadd.f32 %v9745, %v9749
    %v9754 = vadd.f32 %v9746, %v9750
    %v9755 = vld [vmem:[#allocation2 + $0xc0] sm:$0xff]
    %v9756 = vld [vmem:[#allocation2 + $0xc8] sm:$0xff]
    %v9757 = vld [vmem:[#allocation2 + $0xd0] sm:$0xff]
    %v9758 = vld [vmem:[#allocation2 + $0xd8] sm:$0xff]
    %v9759 = vld [vmem:[#allocation2 + $0xe0] sm:$0xff]
    %v9760 = vld [vmem:[#allocation2 + $0xe8] sm:$0xff]
    %v9761 = vld [vmem:[#allocation2 + $0xf0] sm:$0xff]
    %v9762 = vld [vmem:[#allocation2 + $0xf8] sm:$0xff]
    %v9763 = vld [vmem:[#allocation2 + $0x100] sm:$0xff]
    %v9764 = vld [vmem:[#allocation2 + $0x108] sm:$0xff]
    %v9765 = vld [vmem:[#allocation2 + $0x110] sm:$0xff]
    %v9766 = vld [vmem:[#allocation2 + $0x118] sm:$0xff]
    %v9767 = vpack.c.bf16 %v9753, %v9751
    %v9768 = vpack.c.bf16 %v9754, %v9752
    %9769 = vmatprep.subr.bf16.mxu0 %v9116
    %9770 = vmatpush1.bf16.msra.mxu0 %v9115
    %9771 = vmatprep.subr.bf16.mxu0 %v9122
    %9772 = vmatpush1.bf16.msra.mxu0 %v9121
    %9773 = vmatprep.subr.bf16.mxu0 %v9128
    %9774 = vmatpush1.bf16.msra.mxu0 %v9127
    %9775 = vmatprep.subr.bf16.mxu0 %v9134
    %9776 = vmatpush1.bf16.msra.mxu0 %v9133
    %9777 = vmatprep.subr.bf16.mxu0 %v9140
    %9778 = vmatpush1.bf16.msra.mxu0 %v9139
    %9779 = vmatprep.subr.bf16.mxu0 %v9146
    %9780 = vmatpush1.bf16.msra.mxu0 %v9145
    %9781 = vmatprep.subr.bf16.mxu0 %v9152
    %9782 = vmatpush1.bf16.msra.mxu0 %v9151
    %9783 = vmatprep.subr.bf16.mxu0 %v9158
    %9784 = vmatpush1.bf16.msra.mxu0 %v9157
    %9785 = vmatprep.subr.bf16.mxu0 %v9164
    %9786 = vmatpush1.bf16.msra.mxu0 %v9163
    %9787 = vmatprep.subr.bf16.mxu0 %v9170
    %9788 = vmatpush1.bf16.msra.mxu0 %v9169
    %9789 = vmatprep.subr.bf16.mxu0 %v9176
    %9790 = vmatpush1.bf16.msra.mxu0 %v9175
    %9791 = vmatprep.subr.bf16.mxu0 %v9182
    %9792 = vmatpush1.bf16.msra.mxu0 %v9181
    %9793 = vmatprep.subr.bf16.mxu0 %v9188
    %9794 = vmatpush1.bf16.msra.mxu0 %v9187
    %9795 = vmatprep.subr.bf16.mxu0 %v9194
    %9796 = vmatpush1.bf16.msra.mxu0 %v9193
    %9797 = vmatprep.subr.bf16.mxu0 %v9200
    %9798 = vmatpush1.bf16.msra.mxu0 %v9199
    %9799 = vmatprep.subr.bf16.mxu0 %v9206
    %9800 = vmatpush1.bf16.msra.mxu0 %v9205
    %9801 = vmatprep.mubr.bf16.mxu0 %v9768
    %9802 = vmatmul.mubr.bf16.gmra.mrb[0].mxu0 %v9767
    %v9803 = vpop.f32.mrb[0].mxu0
    %v9804 = vadd.f32 0.0, %v9803
    %v9805 = vpop.f32.mrb[0].mxu0
    %v9806 = vadd.f32 0.0, %v9805
    %v9807 = vpop.f32.mrb[0].mxu0
    %v9808 = vadd.f32 0.0, %v9807
    %v9809 = vpop.f32.mrb[0].mxu0
    %v9810 = vadd.f32 0.0, %v9809
    %9811 = vdwg.mxu0
    %9812 = vmatprep.subr.bf16.mxu0 %v9118
    %9813 = vmatpush1.bf16.msra.mxu0 %v9117
    %9814 = vmatprep.subr.bf16.mxu0 %v9124
    %9815 = vmatpush1.bf16.msra.mxu0 %v9123
    %9816 = vmatprep.subr.bf16.mxu0 %v9130
    %9817 = vmatpush1.bf16.msra.mxu0 %v9129
    %9818 = vmatprep.subr.bf16.mxu0 %v9136
    %9819 = vmatpush1.bf16.msra.mxu0 %v9135
    %9820 = vmatprep.subr.bf16.mxu0 %v9142
    %9821 = vmatpush1.bf16.msra.mxu0 %v9141
    %9822 = vmatprep.subr.bf16.mxu0 %v9148
    %9823 = vmatpush1.bf16.msra.mxu0 %v9147
    %9824 = vmatprep.subr.bf16.mxu0 %v9154
    %9825 = vmatpush1.bf16.msra.mxu0 %v9153
    %9826 = vmatprep.subr.bf16.mxu0 %v9160
    %9827 = vmatpush1.bf16.msra.mxu0 %v9159
    %9828 = vmatprep.subr.bf16.mxu0 %v9166
    %9829 = vmatpush1.bf16.msra.mxu0 %v9165
    %9830 = vmatprep.subr.bf16.mxu0 %v9172
    %9831 = vmatpush1.bf16.msra.mxu0 %v9171
    %9832 = vmatprep.subr.bf16.mxu0 %v9178
    %9833 = vmatpush1.bf16.msra.mxu0 %v9177
    %9834 = vmatprep.subr.bf16.mxu0 %v9184
    %9835 = vmatpush1.bf16.msra.mxu0 %v9183
    %9836 = vmatprep.subr.bf16.mxu0 %v9190
    %9837 = vmatpush1.bf16.msra.mxu0 %v9189
    %9838 = vmatprep.subr.bf16.mxu0 %v9196
    %9839 = vmatpush1.bf16.msra.mxu0 %v9195
    %9840 = vmatprep.subr.bf16.mxu0 %v9202
    %9841 = vmatpush1.bf16.msra.mxu0 %v9201
    %9842 = vmatprep.subr.bf16.mxu0 %v9208
    %9843 = vmatpush1.bf16.msra.mxu0 %v9207
    %9844 = vmatprep.mubr.bf16.mxu0 %v9768
    %9845 = vmatmul.mubr.bf16.gmra.mrb[0].mxu0 %v9767
    %v9846 = vpop.f32.mrb[0].mxu0
    %v9847 = vadd.f32 0.0, %v9846
    %v9848 = vpop.f32.mrb[0].mxu0
    %v9849 = vadd.f32 0.0, %v9848
    %v9850 = vpop.f32.mrb[0].mxu0
    %v9851 = vadd.f32 0.0, %v9850
    %v9852 = vpop.f32.mrb[0].mxu0
    %v9853 = vadd.f32 0.0, %v9852
    %9854 = vdwg.mxu0
    %9855 = vmatprep.subr.bf16.mxu0 %v9120
    %9856 = vmatpush1.bf16.msra.mxu0 %v9119
    %9857 = vmatprep.subr.bf16.mxu0 %v9126
    %9858 = vmatpush1.bf16.msra.mxu0 %v9125
    %9859 = vmatprep.subr.bf16.mxu0 %v9132
    %9860 = vmatpush1.bf16.msra.mxu0 %v9131
    %9861 = vmatprep.subr.bf16.mxu0 %v9138
    %9862 = vmatpush1.bf16.msra.mxu0 %v9137
    %9863 = vmatprep.subr.bf16.mxu0 %v9144
    %9864 = vmatpush1.bf16.msra.mxu0 %v9143
    %9865 = vmatprep.subr.bf16.mxu0 %v9150
    %9866 = vmatpush1.bf16.msra.mxu0 %v9149
    %9867 = vmatprep.subr.bf16.mxu0 %v9156
    %9868 = vmatpush1.bf16.msra.mxu0 %v9155
    %9869 = vmatprep.subr.bf16.mxu0 %v9162
    %9870 = vmatpush1.bf16.msra.mxu0 %v9161
    %9871 = vmatprep.subr.bf16.mxu0 %v9168
    %9872 = vmatpush1.bf16.msra.mxu0 %v9167
    %9873 = vmatprep.subr.bf16.mxu0 %v9174
    %9874 = vmatpush1.bf16.msra.mxu0 %v9173
    %9875 = vmatprep.subr.bf16.mxu0 %v9180
    %9876 = vmatpush1.bf16.msra.mxu0 %v9179
    %9877 = vmatprep.subr.bf16.mxu0 %v9186
    %9878 = vmatpush1.bf16.msra.mxu0 %v9185
    %9879 = vmatprep.subr.bf16.mxu0 %v9192
    %9880 = vmatpush1.bf16.msra.mxu0 %v9191
    %9881 = vmatprep.subr.bf16.mxu0 %v9198
    %9882 = vmatpush1.bf16.msra.mxu0 %v9197
    %9883 = vmatprep.subr.bf16.mxu0 %v9204
    %9884 = vmatpush1.bf16.msra.mxu0 %v9203
    %9885 = vmatprep.subr.bf16.mxu0 %v9210
    %9886 = vmatpush1.bf16.msra.mxu0 %v9209
    %9887 = vmatprep.mubr.bf16.mxu0 %v9768
    %9888 = vmatmul.mubr.bf16.gmra.mrb[0].mxu0 %v9767
    %v9889 = vpop.f32.mrb[0].mxu0
    %v9890 = vadd.f32 0.0, %v9889
    %v9891 = vpop.f32.mrb[0].mxu0
    %v9892 = vadd.f32 0.0, %v9891
    %v9893 = vpop.f32.mrb[0].mxu0
    %v9894 = vadd.f32 0.0, %v9893
    %v9895 = vpop.f32.mrb[0].mxu0
    %v9896 = vadd.f32 0.0, %v9895
    %9897 = vdwg.mxu0
    %v9898 = vadd.f32 %v9755, %v9804
    %v9899 = vadd.f32 %v9756, %v9806
    %v9900 = vadd.f32 %v9761, %v9808
    %v9901 = vadd.f32 %v9762, %v9810
    %v9902 = vxor.u32 %v9898, 2147483648
    %v9903 = vxor.u32 %v9899, 2147483648
    %v9904 = vxor.u32 %v9900, 2147483648
    %v9905 = vxor.u32 %v9901, 2147483648
    %v9906 = vmul.f32 %v9902, 1.442695
    %v9907 = vpow.pop %v9906
    %v9908 = vmul.f32 %v9903, 1.442695
    %v9909 = vpow.pop %v9908
    %v9910 = vmul.f32 %v9904, 1.442695
    %v9911 = vpow.pop %v9910
    %v9912 = vmul.f32 %v9905, 1.442695
    %v9913 = vpow.pop %v9912
    %v9914 = vadd.f32 %v9907, 1.0
    %v9915 = vadd.f32 %v9909, 1.0
    %v9916 = vadd.f32 %v9911, 1.0
    %v9917 = vadd.f32 %v9913, 1.0
    %v9918 = vrcp.pop %v9914
    %v9919 = vmul.f32 1.0, %v9918
    %v9920 = vrcp.pop %v9915
    %v9921 = vmul.f32 1.0, %v9920
    %v9922 = vrcp.pop %v9916
    %v9923 = vmul.f32 1.0, %v9922
    %v9924 = vrcp.pop %v9917
    %v9925 = vmul.f32 1.0, %v9924
    %v9926 = vadd.f32 %v9757, %v9847
    %v9927 = vadd.f32 %v9758, %v9849
    %v9928 = vadd.f32 %v9763, %v9851
    %v9929 = vadd.f32 %v9764, %v9853
    %v9930 = vxor.u32 %v9926, 2147483648
    %v9931 = vxor.u32 %v9927, 2147483648
    %v9932 = vxor.u32 %v9928, 2147483648
    %v9933 = vxor.u32 %v9929, 2147483648
    %v9934 = vmul.f32 %v9930, 1.442695
    %v9935 = vpow.pop %v9934
    %v9936 = vmul.f32 %v9931, 1.442695
    %v9937 = vpow.pop %v9936
    %v9938 = vmul.f32 %v9932, 1.442695
    %v9939 = vpow.pop %v9938
    %v9940 = vmul.f32 %v9933, 1.442695
    %v9941 = vpow.pop %v9940
    %v9942 = vadd.f32 %v9935, 1.0
    %v9943 = vadd.f32 %v9937, 1.0
    %v9944 = vadd.f32 %v9939, 1.0
    %v9945 = vadd.f32 %v9941, 1.0
    %v9946 = vrcp.pop %v9942
    %v9947 = vmul.f32 1.0, %v9946
    %v9948 = vrcp.pop %v9943
    %v9949 = vmul.f32 1.0, %v9948
    %v9950 = vrcp.pop %v9944
    %v9951 = vmul.f32 1.0, %v9950
    %v9952 = vrcp.pop %v9945
    %v9953 = vmul.f32 1.0, %v9952
    %v9954 = vadd.f32 %v9890, %v8712
    %v9955 = vadd.f32 %v9892, %v8716
    %v9956 = vadd.f32 %v9894, %v8712
    %v9957 = vadd.f32 %v9896, %v8716
    %v9958 = vmul.f32 %v9919, %v9954
    %v9959 = vmul.f32 %v9921, %v9955
    %v9960 = vmul.f32 %v9923, %v9956
    %v9961 = vmul.f32 %v9925, %v9957
    %v9962 = vadd.f32 %v9759, %v9958
    %v9963 = vadd.f32 %v9760, %v9959
    %v9964 = vadd.f32 %v9765, %v9960
    %v9965 = vadd.f32 %v9766, %v9961
    %v9966 = vtanh.pop %v9962
    %v9967 = vtanh.pop %v9963
    %v9968 = vtanh.pop %v9964
    %v9969 = vtanh.pop %v9965
    %v9970 = vsub.f32 1.0, %v9947
    %v9971 = vsub.f32 1.0, %v9949
    %v9972 = vsub.f32 1.0, %v9951
    %v9973 = vsub.f32 1.0, %v9953
    %v9974 = vmul.f32 %v9970, %v9966
    %v9975 = vmul.f32 %v9971, %v9967
    %v9976 = vmul.f32 %v9972, %v9968
    %v9977 = vmul.f32 %v9973, %v9969
    %v9978 = vmul.f32 %v9947, %v9751
    %v9979 = vmul.f32 %v9949, %v9752
    %v9980 = vmul.f32 %v9951, %v9753
    %v9981 = vmul.f32 %v9953, %v9754
    %v9982 = vadd.f32 %v9974, %v9978
    %v9983 = vadd.f32 %v9975, %v9979
    %v9984 = vadd.f32 %v9976, %v9980
    %v9985 = vadd.f32 %v9977, %v9981
    %v9986 = vld [vmem:[#allocation2 + $0x120] sm:$0xff]
    %v9987 = vld [vmem:[#allocation2 + $0x128] sm:$0xff]
    %v9988 = vld [vmem:[#allocation2 + $0x130] sm:$0xff]
    %v9989 = vld [vmem:[#allocation2 + $0x138] sm:$0xff]
    %v9990 = vld [vmem:[#allocation2 + $0x140] sm:$0xff]
    %v9991 = vld [vmem:[#allocation2 + $0x148] sm:$0xff]
    %v9992 = vld [vmem:[#allocation2 + $0x150] sm:$0xff]
    %v9993 = vld [vmem:[#allocation2 + $0x158] sm:$0xff]
    %v9994 = vld [vmem:[#allocation2 + $0x160] sm:$0xff]
    %v9995 = vld [vmem:[#allocation2 + $0x168] sm:$0xff]
    %v9996 = vld [vmem:[#allocation2 + $0x170] sm:$0xff]
    %v9997 = vld [vmem:[#allocation2 + $0x178] sm:$0xff]
    %v9998 = vpack.c.bf16 %v9984, %v9982
    %v9999 = vpack.c.bf16 %v9985, %v9983
    %10000 = vmatprep.subr.bf16.mxu0 %v9116
    %10001 = vmatpush1.bf16.msra.mxu0 %v9115
    %10002 = vmatprep.subr.bf16.mxu0 %v9122
    %10003 = vmatpush1.bf16.msra.mxu0 %v9121
    %10004 = vmatprep.subr.bf16.mxu0 %v9128
    %10005 = vmatpush1.bf16.msra.mxu0 %v9127
    %10006 = vmatprep.subr.bf16.mxu0 %v9134
    %10007 = vmatpush1.bf16.msra.mxu0 %v9133
    %10008 = vmatprep.subr.bf16.mxu0 %v9140
    %10009 = vmatpush1.bf16.msra.mxu0 %v9139
    %10010 = vmatprep.subr.bf16.mxu0 %v9146
    %10011 = vmatpush1.bf16.msra.mxu0 %v9145
    %10012 = vmatprep.subr.bf16.mxu0 %v9152
    %10013 = vmatpush1.bf16.msra.mxu0 %v9151
    %10014 = vmatprep.subr.bf16.mxu0 %v9158
    %10015 = vmatpush1.bf16.msra.mxu0 %v9157
    %10016 = vmatprep.subr.bf16.mxu0 %v9164
    %10017 = vmatpush1.bf16.msra.mxu0 %v9163
    %10018 = vmatprep.subr.bf16.mxu0 %v9170
    %10019 = vmatpush1.bf16.msra.mxu0 %v9169
    %10020 = vmatprep.subr.bf16.mxu0 %v9176
    %10021 = vmatpush1.bf16.msra.mxu0 %v9175
    %10022 = vmatprep.subr.bf16.mxu0 %v9182
    %10023 = vmatpush1.bf16.msra.mxu0 %v9181
    %10024 = vmatprep.subr.bf16.mxu0 %v9188
    %10025 = vmatpush1.bf16.msra.mxu0 %v9187
    %10026 = vmatprep.subr.bf16.mxu0 %v9194
    %10027 = vmatpush1.bf16.msra.mxu0 %v9193
    %10028 = vmatprep.subr.bf16.mxu0 %v9200
    %10029 = vmatpush1.bf16.msra.mxu0 %v9199
    %10030 = vmatprep.subr.bf16.mxu0 %v9206
    %10031 = vmatpush1.bf16.msra.mxu0 %v9205
    %10032 = vmatprep.mubr.bf16.mxu0 %v9999
    %10033 = vmatmul.mubr.bf16.gmra.mrb[0].mxu0 %v9998
    %v10034 = vpop.f32.mrb[0].mxu0
    %v10035 = vadd.f32 0.0, %v10034
    %v10036 = vpop.f32.mrb[0].mxu0
    %v10037 = vadd.f32 0.0, %v10036
    %v10038 = vpop.f32.mrb[0].mxu0
    %v10039 = vadd.f32 0.0, %v10038
    %v10040 = vpop.f32.mrb[0].mxu0
    %v10041 = vadd.f32 0.0, %v10040
    %10042 = vdwg.mxu0
    %10043 = vmatprep.subr.bf16.mxu0 %v9118
    %10044 = vmatpush1.bf16.msra.mxu0 %v9117
    %10045 = vmatprep.subr.bf16.mxu0 %v9124
    %10046 = vmatpush1.bf16.msra.mxu0 %v9123
    %10047 = vmatprep.subr.bf16.mxu0 %v9130
    %10048 = vmatpush1.bf16.msra.mxu0 %v9129
    %10049 = vmatprep.subr.bf16.mxu0 %v9136
    %10050 = vmatpush1.bf16.msra.mxu0 %v9135
    %10051 = vmatprep.subr.bf16.mxu0 %v9142
    %10052 = vmatpush1.bf16.msra.mxu0 %v9141
    %10053 = vmatprep.subr.bf16.mxu0 %v9148
    %10054 = vmatpush1.bf16.msra.mxu0 %v9147
    %10055 = vmatprep.subr.bf16.mxu0 %v9154
    %10056 = vmatpush1.bf16.msra.mxu0 %v9153
    %10057 = vmatprep.subr.bf16.mxu0 %v9160
    %10058 = vmatpush1.bf16.msra.mxu0 %v9159
    %10059 = vmatprep.subr.bf16.mxu0 %v9166
    %10060 = vmatpush1.bf16.msra.mxu0 %v9165
    %10061 = vmatprep.subr.bf16.mxu0 %v9172
    %10062 = vmatpush1.bf16.msra.mxu0 %v9171
    %10063 = vmatprep.subr.bf16.mxu0 %v9178
    %10064 = vmatpush1.bf16.msra.mxu0 %v9177
    %10065 = vmatprep.subr.bf16.mxu0 %v9184
    %10066 = vmatpush1.bf16.msra.mxu0 %v9183
    %10067 = vmatprep.subr.bf16.mxu0 %v9190
    %10068 = vmatpush1.bf16.msra.mxu0 %v9189
    %10069 = vmatprep.subr.bf16.mxu0 %v9196
    %10070 = vmatpush1.bf16.msra.mxu0 %v9195
    %10071 = vmatprep.subr.bf16.mxu0 %v9202
    %10072 = vmatpush1.bf16.msra.mxu0 %v9201
    %10073 = vmatprep.subr.bf16.mxu0 %v9208
    %10074 = vmatpush1.bf16.msra.mxu0 %v9207
    %10075 = vmatprep.mubr.bf16.mxu0 %v9999
    %10076 = vmatmul.mubr.bf16.gmra.mrb[0].mxu0 %v9998
    %v10077 = vpop.f32.mrb[0].mxu0
    %v10078 = vadd.f32 0.0, %v10077
    %v10079 = vpop.f32.mrb[0].mxu0
    %v10080 = vadd.f32 0.0, %v10079
    %v10081 = vpop.f32.mrb[0].mxu0
    %v10082 = vadd.f32 0.0, %v10081
    %v10083 = vpop.f32.mrb[0].mxu0
    %v10084 = vadd.f32 0.0, %v10083
    %10085 = vdwg.mxu0
    %10086 = vmatprep.subr.bf16.mxu0 %v9120
    %10087 = vmatpush1.bf16.msra.mxu0 %v9119
    %10088 = vmatprep.subr.bf16.mxu0 %v9126
    %10089 = vmatpush1.bf16.msra.mxu0 %v9125
    %10090 = vmatprep.subr.bf16.mxu0 %v9132
    %10091 = vmatpush1.bf16.msra.mxu0 %v9131
    %10092 = vmatprep.subr.bf16.mxu0 %v9138
    %10093 = vmatpush1.bf16.msra.mxu0 %v9137
    %10094 = vmatprep.subr.bf16.mxu0 %v9144
    %10095 = vmatpush1.bf16.msra.mxu0 %v9143
    %10096 = vmatprep.subr.bf16.mxu0 %v9150
    %10097 = vmatpush1.bf16.msra.mxu0 %v9149
    %10098 = vmatprep.subr.bf16.mxu0 %v9156
    %10099 = vmatpush1.bf16.msra.mxu0 %v9155
    %10100 = vmatprep.subr.bf16.mxu0 %v9162
    %10101 = vmatpush1.bf16.msra.mxu0 %v9161
    %10102 = vmatprep.subr.bf16.mxu0 %v9168
    %10103 = vmatpush1.bf16.msra.mxu0 %v9167
    %10104 = vmatprep.subr.bf16.mxu0 %v9174
    %10105 = vmatpush1.bf16.msra.mxu0 %v9173
    %10106 = vmatprep.subr.bf16.mxu0 %v9180
    %10107 = vmatpush1.bf16.msra.mxu0 %v9179
    %10108 = vmatprep.subr.bf16.mxu0 %v9186
    %10109 = vmatpush1.bf16.msra.mxu0 %v9185
    %10110 = vmatprep.subr.bf16.mxu0 %v9192
    %10111 = vmatpush1.bf16.msra.mxu0 %v9191
    %10112 = vmatprep.subr.bf16.mxu0 %v9198
    %10113 = vmatpush1.bf16.msra.mxu0 %v9197
    %10114 = vmatprep.subr.bf16.mxu0 %v9204
    %10115 = vmatpush1.bf16.msra.mxu0 %v9203
    %10116 = vmatprep.subr.bf16.mxu0 %v9210
    %10117 = vmatpush1.bf16.msra.mxu0 %v9209
    %10118 = vmatprep.mubr.bf16.mxu0 %v9999
    %10119 = vmatmul.mubr.bf16.gmra.mrb[0].mxu0 %v9998
    %v10120 = vpop.f32.mrb[0].mxu0
    %v10121 = vadd.f32 0.0, %v10120
    %v10122 = vpop.f32.mrb[0].mxu0
    %v10123 = vadd.f32 0.0, %v10122
    %v10124 = vpop.f32.mrb[0].mxu0
    %v10125 = vadd.f32 0.0, %v10124
    %v10126 = vpop.f32.mrb[0].mxu0
    %v10127 = vadd.f32 0.0, %v10126
    %10128 = vdwg.mxu0
    %v10129 = vadd.f32 %v9986, %v10035
    %v10130 = vadd.f32 %v9987, %v10037
    %v10131 = vadd.f32 %v9992, %v10039
    %v10132 = vadd.f32 %v9993, %v10041
    %v10133 = vxor.u32 %v10129, 2147483648
    %v10134 = vxor.u32 %v10130, 2147483648
    %v10135 = vxor.u32 %v10131, 2147483648
    %v10136 = vxor.u32 %v10132, 2147483648
    %v10137 = vmul.f32 %v10133, 1.442695
    %v10138 = vpow.pop %v10137
    %v10139 = vmul.f32 %v10134, 1.442695
    %v10140 = vpow.pop %v10139
    %v10141 = vmul.f32 %v10135, 1.442695
    %v10142 = vpow.pop %v10141
    %v10143 = vmul.f32 %v10136, 1.442695
    %v10144 = vpow.pop %v10143
    %v10145 = vadd.f32 %v10138, 1.0
    %v10146 = vadd.f32 %v10140, 1.0
    %v10147 = vadd.f32 %v10142, 1.0
    %v10148 = vadd.f32 %v10144, 1.0
    %v10149 = vrcp.pop %v10145
    %v10150 = vmul.f32 1.0, %v10149
    %v10151 = vrcp.pop %v10146
    %v10152 = vmul.f32 1.0, %v10151
    %v10153 = vrcp.pop %v10147
    %v10154 = vmul.f32 1.0, %v10153
    %v10155 = vrcp.pop %v10148
    %v10156 = vmul.f32 1.0, %v10155
    %v10157 = vadd.f32 %v9988, %v10078
    %v10158 = vadd.f32 %v9989, %v10080
    %v10159 = vadd.f32 %v9994, %v10082
    %v10160 = vadd.f32 %v9995, %v10084
    %v10161 = vxor.u32 %v10157, 2147483648
    %v10162 = vxor.u32 %v10158, 2147483648
    %v10163 = vxor.u32 %v10159, 2147483648
    %v10164 = vxor.u32 %v10160, 2147483648
    %v10165 = vmul.f32 %v10161, 1.442695
    %v10166 = vpow.pop %v10165
    %v10167 = vmul.f32 %v10162, 1.442695
    %v10168 = vpow.pop %v10167
    %v10169 = vmul.f32 %v10163, 1.442695
    %v10170 = vpow.pop %v10169
    %v10171 = vmul.f32 %v10164, 1.442695
    %v10172 = vpow.pop %v10171
    %v10173 = vadd.f32 %v10166, 1.0
    %v10174 = vadd.f32 %v10168, 1.0
    %v10175 = vadd.f32 %v10170, 1.0
    %v10176 = vadd.f32 %v10172, 1.0
    %v10177 = vrcp.pop %v10173
    %v10178 = vmul.f32 1.0, %v10177
    %v10179 = vrcp.pop %v10174
    %v10180 = vmul.f32 1.0, %v10179
    %v10181 = vrcp.pop %v10175
    %v10182 = vmul.f32 1.0, %v10181
    %v10183 = vrcp.pop %v10176
    %v10184 = vmul.f32 1.0, %v10183
    %v10185 = vadd.f32 %v10121, %v8712
    %v10186 = vadd.f32 %v10123, %v8716
    %v10187 = vadd.f32 %v10125, %v8712
    %v10188 = vadd.f32 %v10127, %v8716
    %v10189 = vmul.f32 %v10150, %v10185
    %v10190 = vmul.f32 %v10152, %v10186
    %v10191 = vmul.f32 %v10154, %v10187
    %v10192 = vmul.f32 %v10156, %v10188
    %v10193 = vadd.f32 %v9990, %v10189
    %v10194 = vadd.f32 %v9991, %v10190
    %v10195 = vadd.f32 %v9996, %v10191
    %v10196 = vadd.f32 %v9997, %v10192
    %v10197 = vtanh.pop %v10193
    %v10198 = vtanh.pop %v10194
    %v10199 = vtanh.pop %v10195
    %v10200 = vtanh.pop %v10196
    %v10201 = vsub.f32 1.0, %v10178
    %v10202 = vsub.f32 1.0, %v10180
    %v10203 = vsub.f32 1.0, %v10182
    %v10204 = vsub.f32 1.0, %v10184
    %v10205 = vmul.f32 %v10201, %v10197
    %v10206 = vmul.f32 %v10202, %v10198
    %v10207 = vmul.f32 %v10203, %v10199
    %v10208 = vmul.f32 %v10204, %v10200
    %v10209 = vmul.f32 %v10178, %v9982
    %v10210 = vmul.f32 %v10180, %v9983
    %v10211 = vmul.f32 %v10182, %v9984
    %v10212 = vmul.f32 %v10184, %v9985
    %v10213 = vadd.f32 %v10205, %v10209
    %v10214 = vadd.f32 %v10206, %v10210
    %v10215 = vadd.f32 %v10207, %v10211
    %v10216 = vadd.f32 %v10208, %v10212
    %v10217 = vld [vmem:[#allocation2 + $0x180] sm:$0xff]
    %v10218 = vld [vmem:[#allocation2 + $0x188] sm:$0xff]
    %v10219 = vld [vmem:[#allocation2 + $0x190] sm:$0xff]
    %v10220 = vld [vmem:[#allocation2 + $0x198] sm:$0xff]
    %v10221 = vld [vmem:[#allocation2 + $0x1a0] sm:$0xff]
    %v10222 = vld [vmem:[#allocation2 + $0x1a8] sm:$0xff]
    %v10223 = vld [vmem:[#allocation2 + $0x1b0] sm:$0xff]
    %v10224 = vld [vmem:[#allocation2 + $0x1b8] sm:$0xff]
    %v10225 = vld [vmem:[#allocation2 + $0x1c0] sm:$0xff]
    %v10226 = vld [vmem:[#allocation2 + $0x1c8] sm:$0xff]
    %v10227 = vld [vmem:[#allocation2 + $0x1d0] sm:$0xff]
    %v10228 = vld [vmem:[#allocation2 + $0x1d8] sm:$0xff]
    %v10229 = vpack.c.bf16 %v10215, %v10213
    %v10230 = vpack.c.bf16 %v10216, %v10214
    %10231 = vmatprep.subr.bf16.mxu0 %v9116
    %10232 = vmatpush1.bf16.msra.mxu0 %v9115
    %10233 = vmatprep.subr.bf16.mxu0 %v9122
    %10234 = vmatpush1.bf16.msra.mxu0 %v9121
    %10235 = vmatprep.subr.bf16.mxu0 %v9128
    %10236 = vmatpush1.bf16.msra.mxu0 %v9127
    %10237 = vmatprep.subr.bf16.mxu0 %v9134
    %10238 = vmatpush1.bf16.msra.mxu0 %v9133
    %10239 = vmatprep.subr.bf16.mxu0 %v9140
    %10240 = vmatpush1.bf16.msra.mxu0 %v9139
    %10241 = vmatprep.subr.bf16.mxu0 %v9146
    %10242 = vmatpush1.bf16.msra.mxu0 %v9145
    %10243 = vmatprep.subr.bf16.mxu0 %v9152
    %10244 = vmatpush1.bf16.msra.mxu0 %v9151
    %10245 = vmatprep.subr.bf16.mxu0 %v9158
    %10246 = vmatpush1.bf16.msra.mxu0 %v9157
    %10247 = vmatprep.subr.bf16.mxu0 %v9164
    %10248 = vmatpush1.bf16.msra.mxu0 %v9163
    %10249 = vmatprep.subr.bf16.mxu0 %v9170
    %10250 = vmatpush1.bf16.msra.mxu0 %v9169
    %10251 = vmatprep.subr.bf16.mxu0 %v9176
    %10252 = vmatpush1.bf16.msra.mxu0 %v9175
    %10253 = vmatprep.subr.bf16.mxu0 %v9182
    %10254 = vmatpush1.bf16.msra.mxu0 %v9181
    %10255 = vmatprep.subr.bf16.mxu0 %v9188
    %10256 = vmatpush1.bf16.msra.mxu0 %v9187
    %10257 = vmatprep.subr.bf16.mxu0 %v9194
    %10258 = vmatpush1.bf16.msra.mxu0 %v9193
    %10259 = vmatprep.subr.bf16.mxu0 %v9200
    %10260 = vmatpush1.bf16.msra.mxu0 %v9199
    %10261 = vmatprep.subr.bf16.mxu0 %v9206
    %10262 = vmatpush1.bf16.msra.mxu0 %v9205
    %10263 = vmatprep.mubr.bf16.mxu0 %v10230
    %10264 = vmatmul.mubr.bf16.gmra.mrb[0].mxu0 %v10229
    %v10265 = vpop.f32.mrb[0].mxu0
    %v10266 = vadd.f32 0.0, %v10265
    %v10267 = vpop.f32.mrb[0].mxu0
    %v10268 = vadd.f32 0.0, %v10267
    %v10269 = vpop.f32.mrb[0].mxu0
    %v10270 = vadd.f32 0.0, %v10269
    %v10271 = vpop.f32.mrb[0].mxu0
    %v10272 = vadd.f32 0.0, %v10271
    %10273 = vdwg.mxu0
    %10274 = vmatprep.subr.bf16.mxu0 %v9118
    %10275 = vmatpush1.bf16.msra.mxu0 %v9117
    %10276 = vmatprep.subr.bf16.mxu0 %v9124
    %10277 = vmatpush1.bf16.msra.mxu0 %v9123
    %10278 = vmatprep.subr.bf16.mxu0 %v9130
    %10279 = vmatpush1.bf16.msra.mxu0 %v9129
    %10280 = vmatprep.subr.bf16.mxu0 %v9136
    %10281 = vmatpush1.bf16.msra.mxu0 %v9135
    %10282 = vmatprep.subr.bf16.mxu0 %v9142
    %10283 = vmatpush1.bf16.msra.mxu0 %v9141
    %10284 = vmatprep.subr.bf16.mxu0 %v9148
    %10285 = vmatpush1.bf16.msra.mxu0 %v9147
    %10286 = vmatprep.subr.bf16.mxu0 %v9154
    %10287 = vmatpush1.bf16.msra.mxu0 %v9153
    %10288 = vmatprep.subr.bf16.mxu0 %v9160
    %10289 = vmatpush1.bf16.msra.mxu0 %v9159
    %10290 = vmatprep.subr.bf16.mxu0 %v9166
    %10291 = vmatpush1.bf16.msra.mxu0 %v9165
    %10292 = vmatprep.subr.bf16.mxu0 %v9172
    %10293 = vmatpush1.bf16.msra.mxu0 %v9171
    %10294 = vmatprep.subr.bf16.mxu0 %v9178
    %10295 = vmatpush1.bf16.msra.mxu0 %v9177
    %10296 = vmatprep.subr.bf16.mxu0 %v9184
    %10297 = vmatpush1.bf16.msra.mxu0 %v9183
    %10298 = vmatprep.subr.bf16.mxu0 %v9190
    %10299 = vmatpush1.bf16.msra.mxu0 %v9189
    %10300 = vmatprep.subr.bf16.mxu0 %v9196
    %10301 = vmatpush1.bf16.msra.mxu0 %v9195
    %10302 = vmatprep.subr.bf16.mxu0 %v9202
    %10303 = vmatpush1.bf16.msra.mxu0 %v9201
    %10304 = vmatprep.subr.bf16.mxu0 %v9208
    %10305 = vmatpush1.bf16.msra.mxu0 %v9207
    %10306 = vmatprep.mubr.bf16.mxu0 %v10230
    %10307 = vmatmul.mubr.bf16.gmra.mrb[0].mxu0 %v10229
    %v10308 = vpop.f32.mrb[0].mxu0
    %v10309 = vadd.f32 0.0, %v10308
    %v10310 = vpop.f32.mrb[0].mxu0
    %v10311 = vadd.f32 0.0, %v10310
    %v10312 = vpop.f32.mrb[0].mxu0
    %v10313 = vadd.f32 0.0, %v10312
    %v10314 = vpop.f32.mrb[0].mxu0
    %v10315 = vadd.f32 0.0, %v10314
    %10316 = vdwg.mxu0
    %10317 = vmatprep.subr.bf16.mxu0 %v9120
    %10318 = vmatpush1.bf16.msra.mxu0 %v9119
    %10319 = vmatprep.subr.bf16.mxu0 %v9126
    %10320 = vmatpush1.bf16.msra.mxu0 %v9125
    %10321 = vmatprep.subr.bf16.mxu0 %v9132
    %10322 = vmatpush1.bf16.msra.mxu0 %v9131
    %10323 = vmatprep.subr.bf16.mxu0 %v9138
    %10324 = vmatpush1.bf16.msra.mxu0 %v9137
    %10325 = vmatprep.subr.bf16.mxu0 %v9144
    %10326 = vmatpush1.bf16.msra.mxu0 %v9143
    %10327 = vmatprep.subr.bf16.mxu0 %v9150
    %10328 = vmatpush1.bf16.msra.mxu0 %v9149
    %10329 = vmatprep.subr.bf16.mxu0 %v9156
    %10330 = vmatpush1.bf16.msra.mxu0 %v9155
    %10331 = vmatprep.subr.bf16.mxu0 %v9162
    %10332 = vmatpush1.bf16.msra.mxu0 %v9161
    %10333 = vmatprep.subr.bf16.mxu0 %v9168
    %10334 = vmatpush1.bf16.msra.mxu0 %v9167
    %10335 = vmatprep.subr.bf16.mxu0 %v9174
    %10336 = vmatpush1.bf16.msra.mxu0 %v9173
    %10337 = vmatprep.subr.bf16.mxu0 %v9180
    %10338 = vmatpush1.bf16.msra.mxu0 %v9179
    %10339 = vmatprep.subr.bf16.mxu0 %v9186
    %10340 = vmatpush1.bf16.msra.mxu0 %v9185
    %10341 = vmatprep.subr.bf16.mxu0 %v9192
    %10342 = vmatpush1.bf16.msra.mxu0 %v9191
    %10343 = vmatprep.subr.bf16.mxu0 %v9198
    %10344 = vmatpush1.bf16.msra.mxu0 %v9197
    %10345 = vmatprep.subr.bf16.mxu0 %v9204
    %10346 = vmatpush1.bf16.msra.mxu0 %v9203
    %10347 = vmatprep.subr.bf16.mxu0 %v9210
    %10348 = vmatpush1.bf16.msra.mxu0 %v9209
    %10349 = vmatprep.mubr.bf16.mxu0 %v10230
    %10350 = vmatmul.mubr.bf16.gmra.mrb[0].mxu0 %v10229
    %v10351 = vpop.f32.mrb[0].mxu0
    %v10352 = vadd.f32 0.0, %v10351
    %v10353 = vpop.f32.mrb[0].mxu0
    %v10354 = vadd.f32 0.0, %v10353
    %v10355 = vpop.f32.mrb[0].mxu0
    %v10356 = vadd.f32 0.0, %v10355
    %v10357 = vpop.f32.mrb[0].mxu0
    %v10358 = vadd.f32 0.0, %v10357
    %10359 = vdwg.mxu0
    %v10360 = vadd.f32 %v10217, %v10266
    %v10361 = vadd.f32 %v10218, %v10268
    %v10362 = vadd.f32 %v10223, %v10270
    %v10363 = vadd.f32 %v10224, %v10272
    %v10364 = vxor.u32 %v10360, 2147483648
    %v10365 = vxor.u32 %v10361, 2147483648
    %v10366 = vxor.u32 %v10362, 2147483648
    %v10367 = vxor.u32 %v10363, 2147483648
    %v10368 = vmul.f32 %v10364, 1.442695
    %v10369 = vpow.pop %v10368
    %v10370 = vmul.f32 %v10365, 1.442695
    %v10371 = vpow.pop %v10370
    %v10372 = vmul.f32 %v10366, 1.442695
    %v10373 = vpow.pop %v10372
    %v10374 = vmul.f32 %v10367, 1.442695
    %v10375 = vpow.pop %v10374
    %v10376 = vadd.f32 %v10369, 1.0
    %v10377 = vadd.f32 %v10371, 1.0
    %v10378 = vadd.f32 %v10373, 1.0
    %v10379 = vadd.f32 %v10375, 1.0
    %v10380 = vrcp.pop %v10376
    %v10381 = vmul.f32 1.0, %v10380
    %v10382 = vrcp.pop %v10377
    %v10383 = vmul.f32 1.0, %v10382
    %v10384 = vrcp.pop %v10378
    %v10385 = vmul.f32 1.0, %v10384
    %v10386 = vrcp.pop %v10379
    %v10387 = vmul.f32 1.0, %v10386
    %v10388 = vadd.f32 %v10219, %v10309
    %v10389 = vadd.f32 %v10220, %v10311
    %v10390 = vadd.f32 %v10225, %v10313
    %v10391 = vadd.f32 %v10226, %v10315
    %v10392 = vxor.u32 %v10388, 2147483648
    %v10393 = vxor.u32 %v10389, 2147483648
    %v10394 = vxor.u32 %v10390, 2147483648
    %v10395 = vxor.u32 %v10391, 2147483648
    %v10396 = vmul.f32 %v10392, 1.442695
    %v10397 = vpow.pop %v10396
    %v10398 = vmul.f32 %v10393, 1.442695
    %v10399 = vpow.pop %v10398
    %v10400 = vmul.f32 %v10394, 1.442695
    %v10401 = vpow.pop %v10400
    %v10402 = vmul.f32 %v10395, 1.442695
    %v10403 = vpow.pop %v10402
    %v10404 = vadd.f32 %v10397, 1.0
    %v10405 = vadd.f32 %v10399, 1.0
    %v10406 = vadd.f32 %v10401, 1.0
    %v10407 = vadd.f32 %v10403, 1.0
    %v10408 = vrcp.pop %v10404
    %v10409 = vmul.f32 1.0, %v10408
    %v10410 = vrcp.pop %v10405
    %v10411 = vmul.f32 1.0, %v10410
    %v10412 = vrcp.pop %v10406
    %v10413 = vmul.f32 1.0, %v10412
    %v10414 = vrcp.pop %v10407
    %v10415 = vmul.f32 1.0, %v10414
    %v10416 = vadd.f32 %v10352, %v8712
    %v10417 = vadd.f32 %v10354, %v8716
    %v10418 = vadd.f32 %v10356, %v8712
    %v10419 = vadd.f32 %v10358, %v8716
    %v10420 = vmul.f32 %v10381, %v10416
    %v10421 = vmul.f32 %v10383, %v10417
    %v10422 = vmul.f32 %v10385, %v10418
    %v10423 = vmul.f32 %v10387, %v10419
    %v10424 = vadd.f32 %v10221, %v10420
    %v10425 = vadd.f32 %v10222, %v10421
    %v10426 = vadd.f32 %v10227, %v10422
    %v10427 = vadd.f32 %v10228, %v10423
    %v10428 = vtanh.pop %v10424
    %v10429 = vtanh.pop %v10425
    %v10430 = vtanh.pop %v10426
    %v10431 = vtanh.pop %v10427
    %v10432 = vsub.f32 1.0, %v10409
    %v10433 = vsub.f32 1.0, %v10411
    %v10434 = vsub.f32 1.0, %v10413
    %v10435 = vsub.f32 1.0, %v10415
    %v10436 = vmul.f32 %v10432, %v10428
    %v10437 = vmul.f32 %v10433, %v10429
    %v10438 = vmul.f32 %v10434, %v10430
    %v10439 = vmul.f32 %v10435, %v10431
    %v10440 = vmul.f32 %v10409, %v10213
    %v10441 = vmul.f32 %v10411, %v10214
    %v10442 = vmul.f32 %v10413, %v10215
    %v10443 = vmul.f32 %v10415, %v10216
    %v10444 = vadd.f32 %v10436, %v10440
    %v10445 = vadd.f32 %v10437, %v10441
    %v10446 = vadd.f32 %v10438, %v10442
    %v10447 = vadd.f32 %v10439, %v10443
    %v10448 = vld [vmem:[#allocation2 + $0x1e0] sm:$0xff]
    %v10449 = vld [vmem:[#allocation2 + $0x1e8] sm:$0xff]
    %v10450 = vld [vmem:[#allocation2 + $0x1f0] sm:$0xff]
    %v10451 = vld [vmem:[#allocation2 + $0x1f8] sm:$0xff]
    %v10452 = vld [vmem:[#allocation2 + $0x200] sm:$0xff]
    %v10453 = vld [vmem:[#allocation2 + $0x208] sm:$0xff]
    %v10454 = vld [vmem:[#allocation2 + $0x210] sm:$0xff]
    %v10455 = vld [vmem:[#allocation2 + $0x218] sm:$0xff]
    %v10456 = vld [vmem:[#allocation2 + $0x220] sm:$0xff]
    %v10457 = vld [vmem:[#allocation2 + $0x228] sm:$0xff]
    %v10458 = vld [vmem:[#allocation2 + $0x230] sm:$0xff]
    %v10459 = vld [vmem:[#allocation2 + $0x238] sm:$0xff]
    %v10460 = vpack.c.bf16 %v10446, %v10444
    %v10461 = vpack.c.bf16 %v10447, %v10445
    %10462 = vmatprep.subr.bf16.mxu0 %v9116
    %10463 = vmatpush1.bf16.msra.mxu0 %v9115
    %10464 = vmatprep.subr.bf16.mxu0 %v9122
    %10465 = vmatpush1.bf16.msra.mxu0 %v9121
    %10466 = vmatprep.subr.bf16.mxu0 %v9128
    %10467 = vmatpush1.bf16.msra.mxu0 %v9127
    %10468 = vmatprep.subr.bf16.mxu0 %v9134
    %10469 = vmatpush1.bf16.msra.mxu0 %v9133
    %10470 = vmatprep.subr.bf16.mxu0 %v9140
    %10471 = vmatpush1.bf16.msra.mxu0 %v9139
    %10472 = vmatprep.subr.bf16.mxu0 %v9146
    %10473 = vmatpush1.bf16.msra.mxu0 %v9145
    %10474 = vmatprep.subr.bf16.mxu0 %v9152
    %10475 = vmatpush1.bf16.msra.mxu0 %v9151
    %10476 = vmatprep.subr.bf16.mxu0 %v9158
    %10477 = vmatpush1.bf16.msra.mxu0 %v9157
    %10478 = vmatprep.subr.bf16.mxu0 %v9164
    %10479 = vmatpush1.bf16.msra.mxu0 %v9163
    %10480 = vmatprep.subr.bf16.mxu0 %v9170
    %10481 = vmatpush1.bf16.msra.mxu0 %v9169
    %10482 = vmatprep.subr.bf16.mxu0 %v9176
    %10483 = vmatpush1.bf16.msra.mxu0 %v9175
    %10484 = vmatprep.subr.bf16.mxu0 %v9182
    %10485 = vmatpush1.bf16.msra.mxu0 %v9181
    %10486 = vmatprep.subr.bf16.mxu0 %v9188
    %10487 = vmatpush1.bf16.msra.mxu0 %v9187
    %10488 = vmatprep.subr.bf16.mxu0 %v9194
    %10489 = vmatpush1.bf16.msra.mxu0 %v9193
    %10490 = vmatprep.subr.bf16.mxu0 %v9200
    %10491 = vmatpush1.bf16.msra.mxu0 %v9199
    %10492 = vmatprep.subr.bf16.mxu0 %v9206
    %10493 = vmatpush1.bf16.msra.mxu0 %v9205
    %10494 = vmatprep.mubr.bf16.mxu0 %v10461
    %10495 = vmatmul.mubr.bf16.gmra.mrb[0].mxu0 %v10460
    %v10496 = vpop.f32.mrb[0].mxu0
    %v10497 = vadd.f32 0.0, %v10496
    %v10498 = vpop.f32.mrb[0].mxu0
    %v10499 = vadd.f32 0.0, %v10498
    %v10500 = vpop.f32.mrb[0].mxu0
    %v10501 = vadd.f32 0.0, %v10500
    %v10502 = vpop.f32.mrb[0].mxu0
    %v10503 = vadd.f32 0.0, %v10502
    %10504 = vdwg.mxu0
    %10505 = vmatprep.subr.bf16.mxu0 %v9118
    %10506 = vmatpush1.bf16.msra.mxu0 %v9117
    %10507 = vmatprep.subr.bf16.mxu0 %v9124
    %10508 = vmatpush1.bf16.msra.mxu0 %v9123
    %10509 = vmatprep.subr.bf16.mxu0 %v9130
    %10510 = vmatpush1.bf16.msra.mxu0 %v9129
    %10511 = vmatprep.subr.bf16.mxu0 %v9136
    %10512 = vmatpush1.bf16.msra.mxu0 %v9135
    %10513 = vmatprep.subr.bf16.mxu0 %v9142
    %10514 = vmatpush1.bf16.msra.mxu0 %v9141
    %10515 = vmatprep.subr.bf16.mxu0 %v9148
    %10516 = vmatpush1.bf16.msra.mxu0 %v9147
    %10517 = vmatprep.subr.bf16.mxu0 %v9154
    %10518 = vmatpush1.bf16.msra.mxu0 %v9153
    %10519 = vmatprep.subr.bf16.mxu0 %v9160
    %10520 = vmatpush1.bf16.msra.mxu0 %v9159
    %10521 = vmatprep.subr.bf16.mxu0 %v9166
    %10522 = vmatpush1.bf16.msra.mxu0 %v9165
    %10523 = vmatprep.subr.bf16.mxu0 %v9172
    %10524 = vmatpush1.bf16.msra.mxu0 %v9171
    %10525 = vmatprep.subr.bf16.mxu0 %v9178
    %10526 = vmatpush1.bf16.msra.mxu0 %v9177
    %10527 = vmatprep.subr.bf16.mxu0 %v9184
    %10528 = vmatpush1.bf16.msra.mxu0 %v9183
    %10529 = vmatprep.subr.bf16.mxu0 %v9190
    %10530 = vmatpush1.bf16.msra.mxu0 %v9189
    %10531 = vmatprep.subr.bf16.mxu0 %v9196
    %10532 = vmatpush1.bf16.msra.mxu0 %v9195
    %10533 = vmatprep.subr.bf16.mxu0 %v9202
    %10534 = vmatpush1.bf16.msra.mxu0 %v9201
    %10535 = vmatprep.subr.bf16.mxu0 %v9208
    %10536 = vmatpush1.bf16.msra.mxu0 %v9207
    %10537 = vmatprep.mubr.bf16.mxu0 %v10461
    %10538 = vmatmul.mubr.bf16.gmra.mrb[0].mxu0 %v10460
    %v10539 = vpop.f32.mrb[0].mxu0
    %v10540 = vadd.f32 0.0, %v10539
    %v10541 = vpop.f32.mrb[0].mxu0
    %v10542 = vadd.f32 0.0, %v10541
    %v10543 = vpop.f32.mrb[0].mxu0
    %v10544 = vadd.f32 0.0, %v10543
    %v10545 = vpop.f32.mrb[0].mxu0
    %v10546 = vadd.f32 0.0, %v10545
    %10547 = vdwg.mxu0
    %10548 = vmatprep.subr.bf16.mxu0 %v9120
    %10549 = vmatpush1.bf16.msra.mxu0 %v9119
    %10550 = vmatprep.subr.bf16.mxu0 %v9126
    %10551 = vmatpush1.bf16.msra.mxu0 %v9125
    %10552 = vmatprep.subr.bf16.mxu0 %v9132
    %10553 = vmatpush1.bf16.msra.mxu0 %v9131
    %10554 = vmatprep.subr.bf16.mxu0 %v9138
    %10555 = vmatpush1.bf16.msra.mxu0 %v9137
    %10556 = vmatprep.subr.bf16.mxu0 %v9144
    %10557 = vmatpush1.bf16.msra.mxu0 %v9143
    %10558 = vmatprep.subr.bf16.mxu0 %v9150
    %10559 = vmatpush1.bf16.msra.mxu0 %v9149
    %10560 = vmatprep.subr.bf16.mxu0 %v9156
    %10561 = vmatpush1.bf16.msra.mxu0 %v9155
    %10562 = vmatprep.subr.bf16.mxu0 %v9162
    %10563 = vmatpush1.bf16.msra.mxu0 %v9161
    %10564 = vmatprep.subr.bf16.mxu0 %v9168
    %10565 = vmatpush1.bf16.msra.mxu0 %v9167
    %10566 = vmatprep.subr.bf16.mxu0 %v9174
    %10567 = vmatpush1.bf16.msra.mxu0 %v9173
    %10568 = vmatprep.subr.bf16.mxu0 %v9180
    %10569 = vmatpush1.bf16.msra.mxu0 %v9179
    %10570 = vmatprep.subr.bf16.mxu0 %v9186
    %10571 = vmatpush1.bf16.msra.mxu0 %v9185
    %10572 = vmatprep.subr.bf16.mxu0 %v9192
    %10573 = vmatpush1.bf16.msra.mxu0 %v9191
    %10574 = vmatprep.subr.bf16.mxu0 %v9198
    %10575 = vmatpush1.bf16.msra.mxu0 %v9197
    %10576 = vmatprep.subr.bf16.mxu0 %v9204
    %10577 = vmatpush1.bf16.msra.mxu0 %v9203
    %10578 = vmatprep.subr.bf16.mxu0 %v9210
    %10579 = vmatpush1.bf16.msra.mxu0 %v9209
    %10580 = vmatprep.mubr.bf16.mxu0 %v10461
    %10581 = vmatmul.mubr.bf16.gmra.mrb[0].mxu0 %v10460
    %v10582 = vpop.f32.mrb[0].mxu0
    %v10583 = vadd.f32 0.0, %v10582
    %v10584 = vpop.f32.mrb[0].mxu0
    %v10585 = vadd.f32 0.0, %v10584
    %v10586 = vpop.f32.mrb[0].mxu0
    %v10587 = vadd.f32 0.0, %v10586
    %v10588 = vpop.f32.mrb[0].mxu0
    %v10589 = vadd.f32 0.0, %v10588
    %10590 = vdwg.mxu0
    %v10591 = vadd.f32 %v10448, %v10497
    %v10592 = vadd.f32 %v10449, %v10499
    %v10593 = vadd.f32 %v10454, %v10501
    %v10594 = vadd.f32 %v10455, %v10503
    %v10595 = vxor.u32 %v10591, 2147483648
    %v10596 = vxor.u32 %v10592, 2147483648
    %v10597 = vxor.u32 %v10593, 2147483648
    %v10598 = vxor.u32 %v10594, 2147483648
    %v10599 = vmul.f32 %v10595, 1.442695
    %v10600 = vpow.pop %v10599
    %v10601 = vmul.f32 %v10596, 1.442695
    %v10602 = vpow.pop %v10601
    %v10603 = vmul.f32 %v10597, 1.442695
    %v10604 = vpow.pop %v10603
    %v10605 = vmul.f32 %v10598, 1.442695
    %v10606 = vpow.pop %v10605
    %v10607 = vadd.f32 %v10600, 1.0
    %v10608 = vadd.f32 %v10602, 1.0
    %v10609 = vadd.f32 %v10604, 1.0
    %v10610 = vadd.f32 %v10606, 1.0
    %v10611 = vrcp.pop %v10607
    %v10612 = vmul.f32 1.0, %v10611
    %v10613 = vrcp.pop %v10608
    %v10614 = vmul.f32 1.0, %v10613
    %v10615 = vrcp.pop %v10609
    %v10616 = vmul.f32 1.0, %v10615
    %v10617 = vrcp.pop %v10610
    %v10618 = vmul.f32 1.0, %v10617
    %v10619 = vadd.f32 %v10450, %v10540
    %v10620 = vadd.f32 %v10451, %v10542
    %v10621 = vadd.f32 %v10456, %v10544
    %v10622 = vadd.f32 %v10457, %v10546
    %v10623 = vxor.u32 %v10619, 2147483648
    %v10624 = vxor.u32 %v10620, 2147483648
    %v10625 = vxor.u32 %v10621, 2147483648
    %v10626 = vxor.u32 %v10622, 2147483648
    %v10627 = vmul.f32 %v10623, 1.442695
    %v10628 = vpow.pop %v10627
    %v10629 = vmul.f32 %v10624, 1.442695
    %v10630 = vpow.pop %v10629
    %v10631 = vmul.f32 %v10625, 1.442695
    %v10632 = vpow.pop %v10631
    %v10633 = vmul.f32 %v10626, 1.442695
    %v10634 = vpow.pop %v10633
    %v10635 = vadd.f32 %v10628, 1.0
    %v10636 = vadd.f32 %v10630, 1.0
    %v10637 = vadd.f32 %v10632, 1.0
    %v10638 = vadd.f32 %v10634, 1.0
    %v10639 = vrcp.pop %v10635
    %v10640 = vmul.f32 1.0, %v10639
    %v10641 = vrcp.pop %v10636
    %v10642 = vmul.f32 1.0, %v10641
    %v10643 = vrcp.pop %v10637
    %v10644 = vmul.f32 1.0, %v10643
    %v10645 = vrcp.pop %v10638
    %v10646 = vmul.f32 1.0, %v10645
    %v10647 = vadd.f32 %v10583, %v8712
    %v10648 = vadd.f32 %v10585, %v8716
    %v10649 = vadd.f32 %v10587, %v8712
    %v10650 = vadd.f32 %v10589, %v8716
    %v10651 = vmul.f32 %v10612, %v10647
    %v10652 = vmul.f32 %v10614, %v10648
    %v10653 = vmul.f32 %v10616, %v10649
    %v10654 = vmul.f32 %v10618, %v10650
    %v10655 = vadd.f32 %v10452, %v10651
    %v10656 = vadd.f32 %v10453, %v10652
    %v10657 = vadd.f32 %v10458, %v10653
    %v10658 = vadd.f32 %v10459, %v10654
    %v10659 = vtanh.pop %v10655
    %v10660 = vtanh.pop %v10656
    %v10661 = vtanh.pop %v10657
    %v10662 = vtanh.pop %v10658
    %v10663 = vsub.f32 1.0, %v10640
    %v10664 = vsub.f32 1.0, %v10642
    %v10665 = vsub.f32 1.0, %v10644
    %v10666 = vsub.f32 1.0, %v10646
    %v10667 = vmul.f32 %v10663, %v10659
    %v10668 = vmul.f32 %v10664, %v10660
    %v10669 = vmul.f32 %v10665, %v10661
    %v10670 = vmul.f32 %v10666, %v10662
    %v10671 = vmul.f32 %v10640, %v10444
    %v10672 = vmul.f32 %v10642, %v10445
    %v10673 = vmul.f32 %v10644, %v10446
    %v10674 = vmul.f32 %v10646, %v10447
    %v10675 = vadd.f32 %v10667, %v10671
    %v10676 = vadd.f32 %v10668, %v10672
    %v10677 = vadd.f32 %v10669, %v10673
    %v10678 = vadd.f32 %v10670, %v10674
    %v10679 = vld [vmem:[#allocation2 + $0x240] sm:$0xff]
    %v10680 = vld [vmem:[#allocation2 + $0x248] sm:$0xff]
    %v10681 = vld [vmem:[#allocation2 + $0x250] sm:$0xff]
    %v10682 = vld [vmem:[#allocation2 + $0x258] sm:$0xff]
    %v10683 = vld [vmem:[#allocation2 + $0x260] sm:$0xff]
    %v10684 = vld [vmem:[#allocation2 + $0x268] sm:$0xff]
    %v10685 = vld [vmem:[#allocation2 + $0x270] sm:$0xff]
    %v10686 = vld [vmem:[#allocation2 + $0x278] sm:$0xff]
    %v10687 = vld [vmem:[#allocation2 + $0x280] sm:$0xff]
    %v10688 = vld [vmem:[#allocation2 + $0x288] sm:$0xff]
    %v10689 = vld [vmem:[#allocation2 + $0x290] sm:$0xff]
    %v10690 = vld [vmem:[#allocation2 + $0x298] sm:$0xff]
    %v10691 = vpack.c.bf16 %v10677, %v10675
    %v10692 = vpack.c.bf16 %v10678, %v10676
    %10693 = vmatprep.subr.bf16.mxu0 %v9116
    %10694 = vmatpush1.bf16.msra.mxu0 %v9115
    %10695 = vmatprep.subr.bf16.mxu0 %v9122
    %10696 = vmatpush1.bf16.msra.mxu0 %v9121
    %10697 = vmatprep.subr.bf16.mxu0 %v9128
    %10698 = vmatpush1.bf16.msra.mxu0 %v9127
    %10699 = vmatprep.subr.bf16.mxu0 %v9134
    %10700 = vmatpush1.bf16.msra.mxu0 %v9133
    %10701 = vmatprep.subr.bf16.mxu0 %v9140
    %10702 = vmatpush1.bf16.msra.mxu0 %v9139
    %10703 = vmatprep.subr.bf16.mxu0 %v9146
    %10704 = vmatpush1.bf16.msra.mxu0 %v9145
    %10705 = vmatprep.subr.bf16.mxu0 %v9152
    %10706 = vmatpush1.bf16.msra.mxu0 %v9151
    %10707 = vmatprep.subr.bf16.mxu0 %v9158
    %10708 = vmatpush1.bf16.msra.mxu0 %v9157
    %10709 = vmatprep.subr.bf16.mxu0 %v9164
    %10710 = vmatpush1.bf16.msra.mxu0 %v9163
    %10711 = vmatprep.subr.bf16.mxu0 %v9170
    %10712 = vmatpush1.bf16.msra.mxu0 %v9169
    %10713 = vmatprep.subr.bf16.mxu0 %v9176
    %10714 = vmatpush1.bf16.msra.mxu0 %v9175
    %10715 = vmatprep.subr.bf16.mxu0 %v9182
    %10716 = vmatpush1.bf16.msra.mxu0 %v9181
    %10717 = vmatprep.subr.bf16.mxu0 %v9188
    %10718 = vmatpush1.bf16.msra.mxu0 %v9187
    %10719 = vmatprep.subr.bf16.mxu0 %v9194
    %10720 = vmatpush1.bf16.msra.mxu0 %v9193
    %10721 = vmatprep.subr.bf16.mxu0 %v9200
    %10722 = vmatpush1.bf16.msra.mxu0 %v9199
    %10723 = vmatprep.subr.bf16.mxu0 %v9206
    %10724 = vmatpush1.bf16.msra.mxu0 %v9205
    %10725 = vmatprep.mubr.bf16.mxu0 %v10692
    %10726 = vmatmul.mubr.bf16.gmra.mrb[0].mxu0 %v10691
    %v10727 = vpop.f32.mrb[0].mxu0
    %v10728 = vadd.f32 0.0, %v10727
    %v10729 = vpop.f32.mrb[0].mxu0
    %v10730 = vadd.f32 0.0, %v10729
    %v10731 = vpop.f32.mrb[0].mxu0
    %v10732 = vadd.f32 0.0, %v10731
    %v10733 = vpop.f32.mrb[0].mxu0
    %v10734 = vadd.f32 0.0, %v10733
    %10735 = vdwg.mxu0
    %10736 = vmatprep.subr.bf16.mxu0 %v9118
    %10737 = vmatpush1.bf16.msra.mxu0 %v9117
    %10738 = vmatprep.subr.bf16.mxu0 %v9124
    %10739 = vmatpush1.bf16.msra.mxu0 %v9123
    %10740 = vmatprep.subr.bf16.mxu0 %v9130
    %10741 = vmatpush1.bf16.msra.mxu0 %v9129
    %10742 = vmatprep.subr.bf16.mxu0 %v9136
    %10743 = vmatpush1.bf16.msra.mxu0 %v9135
    %10744 = vmatprep.subr.bf16.mxu0 %v9142
    %10745 = vmatpush1.bf16.msra.mxu0 %v9141
    %10746 = vmatprep.subr.bf16.mxu0 %v9148
    %10747 = vmatpush1.bf16.msra.mxu0 %v9147
    %10748 = vmatprep.subr.bf16.mxu0 %v9154
    %10749 = vmatpush1.bf16.msra.mxu0 %v9153
    %10750 = vmatprep.subr.bf16.mxu0 %v9160
    %10751 = vmatpush1.bf16.msra.mxu0 %v9159
    %10752 = vmatprep.subr.bf16.mxu0 %v9166
    %10753 = vmatpush1.bf16.msra.mxu0 %v9165
    %10754 = vmatprep.subr.bf16.mxu0 %v9172
    %10755 = vmatpush1.bf16.msra.mxu0 %v9171
    %10756 = vmatprep.subr.bf16.mxu0 %v9178
    %10757 = vmatpush1.bf16.msra.mxu0 %v9177
    %10758 = vmatprep.subr.bf16.mxu0 %v9184
    %10759 = vmatpush1.bf16.msra.mxu0 %v9183
    %10760 = vmatprep.subr.bf16.mxu0 %v9190
    %10761 = vmatpush1.bf16.msra.mxu0 %v9189
    %10762 = vmatprep.subr.bf16.mxu0 %v9196
    %10763 = vmatpush1.bf16.msra.mxu0 %v9195
    %10764 = vmatprep.subr.bf16.mxu0 %v9202
    %10765 = vmatpush1.bf16.msra.mxu0 %v9201
    %10766 = vmatprep.subr.bf16.mxu0 %v9208
    %10767 = vmatpush1.bf16.msra.mxu0 %v9207
    %10768 = vmatprep.mubr.bf16.mxu0 %v10692
    %10769 = vmatmul.mubr.bf16.gmra.mrb[0].mxu0 %v10691
    %v10770 = vpop.f32.mrb[0].mxu0
    %v10771 = vadd.f32 0.0, %v10770
    %v10772 = vpop.f32.mrb[0].mxu0
    %v10773 = vadd.f32 0.0, %v10772
    %v10774 = vpop.f32.mrb[0].mxu0
    %v10775 = vadd.f32 0.0, %v10774
    %v10776 = vpop.f32.mrb[0].mxu0
    %v10777 = vadd.f32 0.0, %v10776
    %10778 = vdwg.mxu0
    %10779 = vmatprep.subr.bf16.mxu0 %v9120
    %10780 = vmatpush1.bf16.msra.mxu0 %v9119
    %10781 = vmatprep.subr.bf16.mxu0 %v9126
    %10782 = vmatpush1.bf16.msra.mxu0 %v9125
    %10783 = vmatprep.subr.bf16.mxu0 %v9132
    %10784 = vmatpush1.bf16.msra.mxu0 %v9131
    %10785 = vmatprep.subr.bf16.mxu0 %v9138
    %10786 = vmatpush1.bf16.msra.mxu0 %v9137
    %10787 = vmatprep.subr.bf16.mxu0 %v9144
    %10788 = vmatpush1.bf16.msra.mxu0 %v9143
    %10789 = vmatprep.subr.bf16.mxu0 %v9150
    %10790 = vmatpush1.bf16.msra.mxu0 %v9149
    %10791 = vmatprep.subr.bf16.mxu0 %v9156
    %10792 = vmatpush1.bf16.msra.mxu0 %v9155
    %10793 = vmatprep.subr.bf16.mxu0 %v9162
    %10794 = vmatpush1.bf16.msra.mxu0 %v9161
    %10795 = vmatprep.subr.bf16.mxu0 %v9168
    %10796 = vmatpush1.bf16.msra.mxu0 %v9167
    %10797 = vmatprep.subr.bf16.mxu0 %v9174
    %10798 = vmatpush1.bf16.msra.mxu0 %v9173
    %10799 = vmatprep.subr.bf16.mxu0 %v9180
    %10800 = vmatpush1.bf16.msra.mxu0 %v9179
    %10801 = vmatprep.subr.bf16.mxu0 %v9186
    %10802 = vmatpush1.bf16.msra.mxu0 %v9185
    %10803 = vmatprep.subr.bf16.mxu0 %v9192
    %10804 = vmatpush1.bf16.msra.mxu0 %v9191
    %10805 = vmatprep.subr.bf16.mxu0 %v9198
    %10806 = vmatpush1.bf16.msra.mxu0 %v9197
    %10807 = vmatprep.subr.bf16.mxu0 %v9204
    %10808 = vmatpush1.bf16.msra.mxu0 %v9203
    %10809 = vmatprep.subr.bf16.mxu0 %v9210
    %10810 = vmatpush1.bf16.msra.mxu0 %v9209
    %10811 = vmatprep.mubr.bf16.mxu0 %v10692
    %10812 = vmatmul.mubr.bf16.gmra.mrb[0].mxu0 %v10691
    %v10813 = vpop.f32.mrb[0].mxu0
    %v10814 = vadd.f32 0.0, %v10813
    %v10815 = vpop.f32.mrb[0].mxu0
    %v10816 = vadd.f32 0.0, %v10815
    %v10817 = vpop.f32.mrb[0].mxu0
    %v10818 = vadd.f32 0.0, %v10817
    %v10819 = vpop.f32.mrb[0].mxu0
    %v10820 = vadd.f32 0.0, %v10819
    %10821 = vdwg.mxu0
    %v10822 = vadd.f32 %v10679, %v10728
    %v10823 = vadd.f32 %v10680, %v10730
    %v10824 = vadd.f32 %v10685, %v10732
    %v10825 = vadd.f32 %v10686, %v10734
    %v10826 = vxor.u32 %v10822, 2147483648
    %v10827 = vxor.u32 %v10823, 2147483648
    %v10828 = vxor.u32 %v10824, 2147483648
    %v10829 = vxor.u32 %v10825, 2147483648
    %v10830 = vmul.f32 %v10826, 1.442695
    %v10831 = vpow.pop %v10830
    %v10832 = vmul.f32 %v10827, 1.442695
    %v10833 = vpow.pop %v10832
    %v10834 = vmul.f32 %v10828, 1.442695
    %v10835 = vpow.pop %v10834
    %v10836 = vmul.f32 %v10829, 1.442695
    %v10837 = vpow.pop %v10836
    %v10838 = vadd.f32 %v10831, 1.0
    %v10839 = vadd.f32 %v10833, 1.0
    %v10840 = vadd.f32 %v10835, 1.0
    %v10841 = vadd.f32 %v10837, 1.0
    %v10842 = vrcp.pop %v10838
    %v10843 = vmul.f32 1.0, %v10842
    %v10844 = vrcp.pop %v10839
    %v10845 = vmul.f32 1.0, %v10844
    %v10846 = vrcp.pop %v10840
    %v10847 = vmul.f32 1.0, %v10846
    %v10848 = vrcp.pop %v10841
    %v10849 = vmul.f32 1.0, %v10848
    %v10850 = vadd.f32 %v10681, %v10771
    %v10851 = vadd.f32 %v10682, %v10773
    %v10852 = vadd.f32 %v10687, %v10775
    %v10853 = vadd.f32 %v10688, %v10777
    %v10854 = vxor.u32 %v10850, 2147483648
    %v10855 = vxor.u32 %v10851, 2147483648
    %v10856 = vxor.u32 %v10852, 2147483648
    %v10857 = vxor.u32 %v10853, 2147483648
    %v10858 = vmul.f32 %v10854, 1.442695
    %v10859 = vpow.pop %v10858
    %v10860 = vmul.f32 %v10855, 1.442695
    %v10861 = vpow.pop %v10860
    %v10862 = vmul.f32 %v10856, 1.442695
    %v10863 = vpow.pop %v10862
    %v10864 = vmul.f32 %v10857, 1.442695
    %v10865 = vpow.pop %v10864
    %v10866 = vadd.f32 %v10859, 1.0
    %v10867 = vadd.f32 %v10861, 1.0
    %v10868 = vadd.f32 %v10863, 1.0
    %v10869 = vadd.f32 %v10865, 1.0
    %v10870 = vrcp.pop %v10866
    %v10871 = vmul.f32 1.0, %v10870
    %v10872 = vrcp.pop %v10867
    %v10873 = vmul.f32 1.0, %v10872
    %v10874 = vrcp.pop %v10868
    %v10875 = vmul.f32 1.0, %v10874
    %v10876 = vrcp.pop %v10869
    %v10877 = vmul.f32 1.0, %v10876
    %v10878 = vadd.f32 %v10814, %v8712
    %v10879 = vadd.f32 %v10816, %v8716
    %v10880 = vadd.f32 %v10818, %v8712
    %v10881 = vadd.f32 %v10820, %v8716
    %v10882 = vmul.f32 %v10843, %v10878
    %v10883 = vmul.f32 %v10845, %v10879
    %v10884 = vmul.f32 %v10847, %v10880
    %v10885 = vmul.f32 %v10849, %v10881
    %v10886 = vadd.f32 %v10683, %v10882
    %v10887 = vadd.f32 %v10684, %v10883
    %v10888 = vadd.f32 %v10689, %v10884
    %v10889 = vadd.f32 %v10690, %v10885
    %v10890 = vtanh.pop %v10886
    %v10891 = vtanh.pop %v10887
    %v10892 = vtanh.pop %v10888
    %v10893 = vtanh.pop %v10889
    %v10894 = vsub.f32 1.0, %v10871
    %v10895 = vsub.f32 1.0, %v10873
    %v10896 = vsub.f32 1.0, %v10875
    %v10897 = vsub.f32 1.0, %v10877
    %v10898 = vmul.f32 %v10894, %v10890
    %v10899 = vmul.f32 %v10895, %v10891
    %v10900 = vmul.f32 %v10896, %v10892
    %v10901 = vmul.f32 %v10897, %v10893
    %v10902 = vmul.f32 %v10871, %v10675
    %v10903 = vmul.f32 %v10873, %v10676
    %v10904 = vmul.f32 %v10875, %v10677
    %v10905 = vmul.f32 %v10877, %v10678
    %v10906 = vadd.f32 %v10898, %v10902
    %v10907 = vadd.f32 %v10899, %v10903
    %v10908 = vadd.f32 %v10900, %v10904
    %v10909 = vadd.f32 %v10901, %v10905
    %v10910 = vld [vmem:[#allocation2 + $0x2a0] sm:$0xff]
    %v10911 = vld [vmem:[#allocation2 + $0x2a8] sm:$0xff]
    %v10912 = vld [vmem:[#allocation2 + $0x2b0] sm:$0xff]
    %v10913 = vld [vmem:[#allocation2 + $0x2b8] sm:$0xff]
    %v10914 = vld [vmem:[#allocation2 + $0x2c0] sm:$0xff]
    %v10915 = vld [vmem:[#allocation2 + $0x2c8] sm:$0xff]
    %v10916 = vld [vmem:[#allocation2 + $0x2d0] sm:$0xff]
    %v10917 = vld [vmem:[#allocation2 + $0x2d8] sm:$0xff]
    %v10918 = vld [vmem:[#allocation2 + $0x2e0] sm:$0xff]
    %v10919 = vld [vmem:[#allocation2 + $0x2e8] sm:$0xff]
    %v10920 = vld [vmem:[#allocation2 + $0x2f0] sm:$0xff]
    %v10921 = vld [vmem:[#allocation2 + $0x2f8] sm:$0xff]
    %v10922 = vpack.c.bf16 %v10908, %v10906
    %v10923 = vpack.c.bf16 %v10909, %v10907
    %10924 = vmatprep.subr.bf16.mxu0 %v9116
    %10925 = vmatpush1.bf16.msra.mxu0 %v9115
    %10926 = vmatprep.subr.bf16.mxu0 %v9122
    %10927 = vmatpush1.bf16.msra.mxu0 %v9121
    %10928 = vmatprep.subr.bf16.mxu0 %v9128
    %10929 = vmatpush1.bf16.msra.mxu0 %v9127
    %10930 = vmatprep.subr.bf16.mxu0 %v9134
    %10931 = vmatpush1.bf16.msra.mxu0 %v9133
    %10932 = vmatprep.subr.bf16.mxu0 %v9140
    %10933 = vmatpush1.bf16.msra.mxu0 %v9139
    %10934 = vmatprep.subr.bf16.mxu0 %v9146
    %10935 = vmatpush1.bf16.msra.mxu0 %v9145
    %10936 = vmatprep.subr.bf16.mxu0 %v9152
    %10937 = vmatpush1.bf16.msra.mxu0 %v9151
    %10938 = vmatprep.subr.bf16.mxu0 %v9158
    %10939 = vmatpush1.bf16.msra.mxu0 %v9157
    %10940 = vmatprep.subr.bf16.mxu0 %v9164
    %10941 = vmatpush1.bf16.msra.mxu0 %v9163
    %10942 = vmatprep.subr.bf16.mxu0 %v9170
    %10943 = vmatpush1.bf16.msra.mxu0 %v9169
    %10944 = vmatprep.subr.bf16.mxu0 %v9176
    %10945 = vmatpush1.bf16.msra.mxu0 %v9175
    %10946 = vmatprep.subr.bf16.mxu0 %v9182
    %10947 = vmatpush1.bf16.msra.mxu0 %v9181
    %10948 = vmatprep.subr.bf16.mxu0 %v9188
    %10949 = vmatpush1.bf16.msra.mxu0 %v9187
    %10950 = vmatprep.subr.bf16.mxu0 %v9194
    %10951 = vmatpush1.bf16.msra.mxu0 %v9193
    %10952 = vmatprep.subr.bf16.mxu0 %v9200
    %10953 = vmatpush1.bf16.msra.mxu0 %v9199
    %10954 = vmatprep.subr.bf16.mxu0 %v9206
    %10955 = vmatpush1.bf16.msra.mxu0 %v9205
    %10956 = vmatprep.mubr.bf16.mxu0 %v10923
    %10957 = vmatmul.mubr.bf16.gmra.mrb[0].mxu0 %v10922
    %v10958 = vpop.f32.mrb[0].mxu0
    %v10959 = vadd.f32 0.0, %v10958
    %v10960 = vpop.f32.mrb[0].mxu0
    %v10961 = vadd.f32 0.0, %v10960
    %v10962 = vpop.f32.mrb[0].mxu0
    %v10963 = vadd.f32 0.0, %v10962
    %v10964 = vpop.f32.mrb[0].mxu0
    %v10965 = vadd.f32 0.0, %v10964
    %10966 = vdwg.mxu0
    %10967 = vmatprep.subr.bf16.mxu0 %v9118
    %10968 = vmatpush1.bf16.msra.mxu0 %v9117
    %10969 = vmatprep.subr.bf16.mxu0 %v9124
    %10970 = vmatpush1.bf16.msra.mxu0 %v9123
    %10971 = vmatprep.subr.bf16.mxu0 %v9130
    %10972 = vmatpush1.bf16.msra.mxu0 %v9129
    %10973 = vmatprep.subr.bf16.mxu0 %v9136
    %10974 = vmatpush1.bf16.msra.mxu0 %v9135
    %10975 = vmatprep.subr.bf16.mxu0 %v9142
    %10976 = vmatpush1.bf16.msra.mxu0 %v9141
    %10977 = vmatprep.subr.bf16.mxu0 %v9148
    %10978 = vmatpush1.bf16.msra.mxu0 %v9147
    %10979 = vmatprep.subr.bf16.mxu0 %v9154
    %10980 = vmatpush1.bf16.msra.mxu0 %v9153
    %10981 = vmatprep.subr.bf16.mxu0 %v9160
    %10982 = vmatpush1.bf16.msra.mxu0 %v9159
    %10983 = vmatprep.subr.bf16.mxu0 %v9166
    %10984 = vmatpush1.bf16.msra.mxu0 %v9165
    %10985 = vmatprep.subr.bf16.mxu0 %v9172
    %10986 = vmatpush1.bf16.msra.mxu0 %v9171
    %10987 = vmatprep.subr.bf16.mxu0 %v9178
    %10988 = vmatpush1.bf16.msra.mxu0 %v9177
    %10989 = vmatprep.subr.bf16.mxu0 %v9184
    %10990 = vmatpush1.bf16.msra.mxu0 %v9183
    %10991 = vmatprep.subr.bf16.mxu0 %v9190
    %10992 = vmatpush1.bf16.msra.mxu0 %v9189
    %10993 = vmatprep.subr.bf16.mxu0 %v9196
    %10994 = vmatpush1.bf16.msra.mxu0 %v9195
    %10995 = vmatprep.subr.bf16.mxu0 %v9202
    %10996 = vmatpush1.bf16.msra.mxu0 %v9201
    %10997 = vmatprep.subr.bf16.mxu0 %v9208
    %10998 = vmatpush1.bf16.msra.mxu0 %v9207
    %10999 = vmatprep.mubr.bf16.mxu0 %v10923
    %11000 = vmatmul.mubr.bf16.gmra.mrb[0].mxu0 %v10922
    %v11001 = vpop.f32.mrb[0].mxu0
    %v11002 = vadd.f32 0.0, %v11001
    %v11003 = vpop.f32.mrb[0].mxu0
    %v11004 = vadd.f32 0.0, %v11003
    %v11005 = vpop.f32.mrb[0].mxu0
    %v11006 = vadd.f32 0.0, %v11005
    %v11007 = vpop.f32.mrb[0].mxu0
    %v11008 = vadd.f32 0.0, %v11007
    %11009 = vdwg.mxu0
    %11010 = vmatprep.subr.bf16.mxu0 %v9120
    %11011 = vmatpush1.bf16.msra.mxu0 %v9119
    %11012 = vmatprep.subr.bf16.mxu0 %v9126
    %11013 = vmatpush1.bf16.msra.mxu0 %v9125
    %11014 = vmatprep.subr.bf16.mxu0 %v9132
    %11015 = vmatpush1.bf16.msra.mxu0 %v9131
    %11016 = vmatprep.subr.bf16.mxu0 %v9138
    %11017 = vmatpush1.bf16.msra.mxu0 %v9137
    %11018 = vmatprep.subr.bf16.mxu0 %v9144
    %11019 = vmatpush1.bf16.msra.mxu0 %v9143
    %11020 = vmatprep.subr.bf16.mxu0 %v9150
    %11021 = vmatpush1.bf16.msra.mxu0 %v9149
    %11022 = vmatprep.subr.bf16.mxu0 %v9156
    %11023 = vmatpush1.bf16.msra.mxu0 %v9155
    %11024 = vmatprep.subr.bf16.mxu0 %v9162
    %11025 = vmatpush1.bf16.msra.mxu0 %v9161
    %11026 = vmatprep.subr.bf16.mxu0 %v9168
    %11027 = vmatpush1.bf16.msra.mxu0 %v9167
    %11028 = vmatprep.subr.bf16.mxu0 %v9174
    %11029 = vmatpush1.bf16.msra.mxu0 %v9173
    %11030 = vmatprep.subr.bf16.mxu0 %v9180
    %11031 = vmatpush1.bf16.msra.mxu0 %v9179
    %11032 = vmatprep.subr.bf16.mxu0 %v9186
    %11033 = vmatpush1.bf16.msra.mxu0 %v9185
    %11034 = vmatprep.subr.bf16.mxu0 %v9192
    %11035 = vmatpush1.bf16.msra.mxu0 %v9191
    %11036 = vmatprep.subr.bf16.mxu0 %v9198
    %11037 = vmatpush1.bf16.msra.mxu0 %v9197
    %11038 = vmatprep.subr.bf16.mxu0 %v9204
    %11039 = vmatpush1.bf16.msra.mxu0 %v9203
    %11040 = vmatprep.subr.bf16.mxu0 %v9210
    %11041 = vmatpush1.bf16.msra.mxu0 %v9209
    %11042 = vmatprep.mubr.bf16.mxu0 %v10923
    %11043 = vmatmul.mubr.bf16.gmra.mrb[0].mxu0 %v10922
    %v11044 = vpop.f32.mrb[0].mxu0
    %v11045 = vadd.f32 0.0, %v11044
    %v11046 = vpop.f32.mrb[0].mxu0
    %v11047 = vadd.f32 0.0, %v11046
    %v11048 = vpop.f32.mrb[0].mxu0
    %v11049 = vadd.f32 0.0, %v11048
    %v11050 = vpop.f32.mrb[0].mxu0
    %v11051 = vadd.f32 0.0, %v11050
    %11052 = vdwg.mxu0
    %v11053 = vadd.f32 %v10910, %v10959
    %v11054 = vadd.f32 %v10911, %v10961
    %v11055 = vadd.f32 %v10916, %v10963
    %v11056 = vadd.f32 %v10917, %v10965
    %v11057 = vxor.u32 %v11053, 2147483648
    %v11058 = vxor.u32 %v11054, 2147483648
    %v11059 = vxor.u32 %v11055, 2147483648
    %v11060 = vxor.u32 %v11056, 2147483648
    %v11061 = vmul.f32 %v11057, 1.442695
    %v11062 = vpow.pop %v11061
    %v11063 = vmul.f32 %v11058, 1.442695
    %v11064 = vpow.pop %v11063
    %v11065 = vmul.f32 %v11059, 1.442695
    %v11066 = vpow.pop %v11065
    %v11067 = vmul.f32 %v11060, 1.442695
    %v11068 = vpow.pop %v11067
    %v11069 = vadd.f32 %v11062, 1.0
    %v11070 = vadd.f32 %v11064, 1.0
    %v11071 = vadd.f32 %v11066, 1.0
    %v11072 = vadd.f32 %v11068, 1.0
    %v11073 = vrcp.pop %v11069
    %v11074 = vmul.f32 1.0, %v11073
    %v11075 = vrcp.pop %v11070
    %v11076 = vmul.f32 1.0, %v11075
    %v11077 = vrcp.pop %v11071
    %v11078 = vmul.f32 1.0, %v11077
    %v11079 = vrcp.pop %v11072
    %v11080 = vmul.f32 1.0, %v11079
    %v11081 = vadd.f32 %v10912, %v11002
    %v11082 = vadd.f32 %v10913, %v11004
    %v11083 = vadd.f32 %v10918, %v11006
    %v11084 = vadd.f32 %v10919, %v11008
    %v11085 = vxor.u32 %v11081, 2147483648
    %v11086 = vxor.u32 %v11082, 2147483648
    %v11087 = vxor.u32 %v11083, 2147483648
    %v11088 = vxor.u32 %v11084, 2147483648
    %v11089 = vmul.f32 %v11085, 1.442695
    %v11090 = vpow.pop %v11089
    %v11091 = vmul.f32 %v11086, 1.442695
    %v11092 = vpow.pop %v11091
    %v11093 = vmul.f32 %v11087, 1.442695
    %v11094 = vpow.pop %v11093
    %v11095 = vmul.f32 %v11088, 1.442695
    %v11096 = vpow.pop %v11095
    %v11097 = vadd.f32 %v11090, 1.0
    %v11098 = vadd.f32 %v11092, 1.0
    %v11099 = vadd.f32 %v11094, 1.0
    %v11100 = vadd.f32 %v11096, 1.0
    %v11101 = vrcp.pop %v11097
    %v11102 = vmul.f32 1.0, %v11101
    %v11103 = vrcp.pop %v11098
    %v11104 = vmul.f32 1.0, %v11103
    %v11105 = vrcp.pop %v11099
    %v11106 = vmul.f32 1.0, %v11105
    %v11107 = vrcp.pop %v11100
    %v11108 = vmul.f32 1.0, %v11107
    %v11109 = vadd.f32 %v11045, %v8712
    %v11110 = vadd.f32 %v11047, %v8716
    %v11111 = vadd.f32 %v11049, %v8712
    %v11112 = vadd.f32 %v11051, %v8716
    %v11113 = vmul.f32 %v11074, %v11109
    %v11114 = vmul.f32 %v11076, %v11110
    %v11115 = vmul.f32 %v11078, %v11111
    %v11116 = vmul.f32 %v11080, %v11112
    %v11117 = vadd.f32 %v10914, %v11113
    %v11118 = vadd.f32 %v10915, %v11114
    %v11119 = vadd.f32 %v10920, %v11115
    %v11120 = vadd.f32 %v10921, %v11116
    %v11121 = vtanh.pop %v11117
    %v11122 = vtanh.pop %v11118
    %v11123 = vtanh.pop %v11119
    %v11124 = vtanh.pop %v11120
    %v11125 = vsub.f32 1.0, %v11102
    %v11126 = vsub.f32 1.0, %v11104
    %v11127 = vsub.f32 1.0, %v11106
    %v11128 = vsub.f32 1.0, %v11108
    %v11129 = vmul.f32 %v11125, %v11121
    %v11130 = vmul.f32 %v11126, %v11122
    %v11131 = vmul.f32 %v11127, %v11123
    %v11132 = vmul.f32 %v11128, %v11124
    %v11133 = vmul.f32 %v11102, %v10906
    %v11134 = vmul.f32 %v11104, %v10907
    %v11135 = vmul.f32 %v11106, %v10908
    %v11136 = vmul.f32 %v11108, %v10909
    %v11137 = vadd.f32 %v11129, %v11133
    %v11138 = vadd.f32 %v11130, %v11134
    %v11139 = vadd.f32 %v11131, %v11135
    %v11140 = vadd.f32 %v11132, %v11136
    %v11141 = vpack.c.bf16 %v11139, %v11137
    %v11142 = vpack.c.bf16 %v11140, %v11138
    %v11143 = vld [vmem:[#allocation12] sm:$0xff]
    %v11144 = vld [vmem:[#allocation12 + $0x8] sm:$0xff]
    %v11145 = vld [vmem:[#allocation12 + $0x10] sm:$0xff]
    %v11146 = vld [vmem:[#allocation12 + $0x18] sm:$0xff]
    %v11147 = vld [vmem:[#allocation12 + $0x20] sm:$0xff]
    %v11148 = vld [vmem:[#allocation12 + $0x28] sm:$0xff]
    %v11149 = vld [vmem:[#allocation12 + $0x30] sm:$0xff]
    %v11150 = vld [vmem:[#allocation12 + $0x38] sm:$0xff]
    %v11151 = vld [vmem:[#allocation12 + $0x40] sm:$0xff]
    %v11152 = vld [vmem:[#allocation12 + $0x48] sm:$0xff]
    %v11153 = vld [vmem:[#allocation12 + $0x50] sm:$0xff]
    %v11154 = vld [vmem:[#allocation12 + $0x58] sm:$0xff]
    %v11155 = vld [vmem:[#allocation12 + $0x60] sm:$0xff]
    %v11156 = vld [vmem:[#allocation12 + $0x68] sm:$0xff]
    %v11157 = vld [vmem:[#allocation12 + $0x70] sm:$0xff]
    %v11158 = vld [vmem:[#allocation12 + $0x78] sm:$0xff]
    %v11159 = vld [vmem:[#allocation12 + $0x80] sm:$0xff]
    %v11160 = vld [vmem:[#allocation12 + $0x88] sm:$0xff]
    %v11161 = vld [vmem:[#allocation12 + $0x90] sm:$0xff]
    %v11162 = vld [vmem:[#allocation12 + $0x98] sm:$0xff]
    %v11163 = vld [vmem:[#allocation12 + $0xa0] sm:$0xff]
    %v11164 = vld [vmem:[#allocation12 + $0xa8] sm:$0xff]
    %v11165 = vld [vmem:[#allocation12 + $0xb0] sm:$0xff]
    %v11166 = vld [vmem:[#allocation12 + $0xb8] sm:$0xff]
    %v11167 = vld [vmem:[#allocation12 + $0xc0] sm:$0xff]
    %v11168 = vld [vmem:[#allocation12 + $0xc8] sm:$0xff]
    %v11169 = vld [vmem:[#allocation12 + $0xd0] sm:$0xff]
    %v11170 = vld [vmem:[#allocation12 + $0xd8] sm:$0xff]
    %v11171 = vld [vmem:[#allocation12 + $0xe0] sm:$0xff]
    %v11172 = vld [vmem:[#allocation12 + $0xe8] sm:$0xff]
    %v11173 = vld [vmem:[#allocation12 + $0xf0] sm:$0xff]
    %v11174 = vld [vmem:[#allocation12 + $0xf8] sm:$0xff]
    %v11175 = vld [vmem:[%s11] sm:$0x3]
    %v11177 = vlaneseq
    %v11178 = vshrl.u32 %v11177, 7
    %v11179 = vsub.s32 0, %v11178
    %v11180 = vrot.slane %v11175, %v11179
    %v11181 = vlaneseq
    %v11182 = vshrl.u32 %v11181, 7
    %v11183 = vsub.s32 1, %v11182
    %v11184 = vrot.slane %v11175, %v11183
    %v11219 = vunpack.c.l.b16 %v11143
    %v11220 = vunpack.c.h.b16 %v11143
    %v11221 = vunpack.c.l.b16 %v11144
    %v11222 = vunpack.c.h.b16 %v11144
    %v11223 = vunpack.c.l.b16 %v11145
    %v11224 = vunpack.c.h.b16 %v11145
    %v11225 = vunpack.c.l.b16 %v11146
    %v11226 = vunpack.c.h.b16 %v11146
    %v11227 = vunpack.c.l.b16 %v11147
    %v11228 = vunpack.c.h.b16 %v11147
    %v11229 = vunpack.c.l.b16 %v11148
    %v11230 = vunpack.c.h.b16 %v11148
    %v11231 = vunpack.c.l.b16 %v11149
    %v11232 = vunpack.c.h.b16 %v11149
    %v11233 = vunpack.c.l.b16 %v11150
    %v11234 = vunpack.c.h.b16 %v11150
    %v11235 = vunpack.c.l.b16 %v11151
    %v11236 = vunpack.c.h.b16 %v11151
    %v11237 = vunpack.c.l.b16 %v11152
    %v11238 = vunpack.c.h.b16 %v11152
    %v11239 = vunpack.c.l.b16 %v11153
    %v11240 = vunpack.c.h.b16 %v11153
    %v11241 = vunpack.c.l.b16 %v11154
    %v11242 = vunpack.c.h.b16 %v11154
    %v11243 = vunpack.c.l.b16 %v11155
    %v11244 = vunpack.c.h.b16 %v11155
    %v11245 = vunpack.c.l.b16 %v11156
    %v11246 = vunpack.c.h.b16 %v11156
    %v11247 = vunpack.c.l.b16 %v11157
    %v11248 = vunpack.c.h.b16 %v11157
    %v11249 = vunpack.c.l.b16 %v11158
    %v11250 = vunpack.c.h.b16 %v11158
    %v11251 = vunpack.c.l.b16 %v11159
    %v11252 = vunpack.c.h.b16 %v11159
    %v11253 = vunpack.c.l.b16 %v11160
    %v11254 = vunpack.c.h.b16 %v11160
    %v11255 = vunpack.c.l.b16 %v11161
    %v11256 = vunpack.c.h.b16 %v11161
    %v11257 = vunpack.c.l.b16 %v11162
    %v11258 = vunpack.c.h.b16 %v11162
    %v11259 = vunpack.c.l.b16 %v11163
    %v11260 = vunpack.c.h.b16 %v11163
    %v11261 = vunpack.c.l.b16 %v11164
    %v11262 = vunpack.c.h.b16 %v11164
    %v11263 = vunpack.c.l.b16 %v11165
    %v11264 = vunpack.c.h.b16 %v11165
    %v11265 = vunpack.c.l.b16 %v11166
    %v11266 = vunpack.c.h.b16 %v11166
    %v11267 = vunpack.c.l.b16 %v11167
    %v11268 = vunpack.c.h.b16 %v11167
    %v11269 = vunpack.c.l.b16 %v11168
    %v11270 = vunpack.c.h.b16 %v11168
    %v11271 = vunpack.c.l.b16 %v11169
    %v11272 = vunpack.c.h.b16 %v11169
    %v11273 = vunpack.c.l.b16 %v11170
    %v11274 = vunpack.c.h.b16 %v11170
    %v11275 = vunpack.c.l.b16 %v11171
    %v11276 = vunpack.c.h.b16 %v11171
    %v11277 = vunpack.c.l.b16 %v11172
    %v11278 = vunpack.c.h.b16 %v11172
    %v11279 = vunpack.c.l.b16 %v11173
    %v11280 = vunpack.c.h.b16 %v11173
    %v11281 = vunpack.c.l.b16 %v11174
    %v11282 = vunpack.c.h.b16 %v11174
    %v11283 = vpack.c.b16 %v11221, %v11219
    %v11284 = vpack.c.b16 %v11222, %v11220
    %v11285 = vpack.c.b16 %v11225, %v11223
    %v11286 = vpack.c.b16 %v11226, %v11224
    %v11287 = vpack.c.b16 %v11229, %v11227
    %v11288 = vpack.c.b16 %v11230, %v11228
    %v11289 = vpack.c.b16 %v11233, %v11231
    %v11290 = vpack.c.b16 %v11234, %v11232
    %v11291 = vpack.c.b16 %v11237, %v11235
    %v11292 = vpack.c.b16 %v11238, %v11236
    %v11293 = vpack.c.b16 %v11241, %v11239
    %v11294 = vpack.c.b16 %v11242, %v11240
    %v11295 = vpack.c.b16 %v11245, %v11243
    %v11296 = vpack.c.b16 %v11246, %v11244
    %v11297 = vpack.c.b16 %v11249, %v11247
    %v11298 = vpack.c.b16 %v11250, %v11248
    %v11299 = vpack.c.b16 %v11253, %v11251
    %v11300 = vpack.c.b16 %v11254, %v11252
    %v11301 = vpack.c.b16 %v11257, %v11255
    %v11302 = vpack.c.b16 %v11258, %v11256
    %v11303 = vpack.c.b16 %v11261, %v11259
    %v11304 = vpack.c.b16 %v11262, %v11260
    %v11305 = vpack.c.b16 %v11265, %v11263
    %v11306 = vpack.c.b16 %v11266, %v11264
    %v11307 = vpack.c.b16 %v11269, %v11267
    %v11308 = vpack.c.b16 %v11270, %v11268
    %v11309 = vpack.c.b16 %v11273, %v11271
    %v11310 = vpack.c.b16 %v11274, %v11272
    %v11311 = vpack.c.b16 %v11277, %v11275
    %v11312 = vpack.c.b16 %v11278, %v11276
    %v11313 = vpack.c.b16 %v11281, %v11279
    %v11314 = vpack.c.b16 %v11282, %v11280
    %11347 = vmatprep.subr.bf16.mxu0 %v11284
    %11348 = vmatpush1.bf16.msra.mxu0 %v11283
    %11349 = vmatprep.subr.bf16.mxu0 %v11286
    %11350 = vmatpush1.bf16.msra.mxu0 %v11285
    %11351 = vmatprep.subr.bf16.mxu0 %v11288
    %11352 = vmatpush1.bf16.msra.mxu0 %v11287
    %11353 = vmatprep.subr.bf16.mxu0 %v11290
    %11354 = vmatpush1.bf16.msra.mxu0 %v11289
    %11355 = vmatprep.subr.bf16.mxu0 %v11292
    %11356 = vmatpush1.bf16.msra.mxu0 %v11291
    %11357 = vmatprep.subr.bf16.mxu0 %v11294
    %11358 = vmatpush1.bf16.msra.mxu0 %v11293
    %11359 = vmatprep.subr.bf16.mxu0 %v11296
    %11360 = vmatpush1.bf16.msra.mxu0 %v11295
    %11361 = vmatprep.subr.bf16.mxu0 %v11298
    %11362 = vmatpush1.bf16.msra.mxu0 %v11297
    %11363 = vmatprep.subr.bf16.mxu0 %v11300
    %11364 = vmatpush1.bf16.msra.mxu0 %v11299
    %11365 = vmatprep.subr.bf16.mxu0 %v11302
    %11366 = vmatpush1.bf16.msra.mxu0 %v11301
    %11367 = vmatprep.subr.bf16.mxu0 %v11304
    %11368 = vmatpush1.bf16.msra.mxu0 %v11303
    %11369 = vmatprep.subr.bf16.mxu0 %v11306
    %11370 = vmatpush1.bf16.msra.mxu0 %v11305
    %11371 = vmatprep.subr.bf16.mxu0 %v11308
    %11372 = vmatpush1.bf16.msra.mxu0 %v11307
    %11373 = vmatprep.subr.bf16.mxu0 %v11310
    %11374 = vmatpush1.bf16.msra.mxu0 %v11309
    %11375 = vmatprep.subr.bf16.mxu0 %v11312
    %11376 = vmatpush1.bf16.msra.mxu0 %v11311
    %11377 = vmatprep.subr.bf16.mxu0 %v11314
    %11378 = vmatpush1.bf16.msra.mxu0 %v11313
    %11379 = vmatprep.mubr.bf16.mxu0 %v11142
    %11380 = vmatmul.mubr.bf16.gmra.mrb[0].mxu0 %v11141
    %v11381 = vpop.f32.mrb[0].mxu0
    %v11382 = vadd.f32 %v11180, %v11381
    %v11383 = vpop.f32.mrb[0].mxu0
    %v11384 = vadd.f32 %v11184, %v11383
    %v11385 = vpop.f32.mrb[0].mxu0
    %v11386 = vadd.f32 %v11180, %v11385
    %v11387 = vpop.f32.mrb[0].mxu0
    %v11388 = vadd.f32 %v11184, %v11387
    %11389 = vdwg.mxu0
    %v11390 = vxor.u32 %v11382, 2147483648
    %v11391 = vxor.u32 %v11384, 2147483648
    %v11392 = vxor.u32 %v11386, 2147483648
    %v11393 = vxor.u32 %v11388, 2147483648
    %v11394 = vmul.f32 %v11390, 1.442695
    %v11395 = vpow.pop %v11394
    %v11396 = vmul.f32 %v11391, 1.442695
    %v11397 = vpow.pop %v11396
    %v11398 = vmul.f32 %v11392, 1.442695
    %v11399 = vpow.pop %v11398
    %v11400 = vmul.f32 %v11393, 1.442695
    %v11401 = vpow.pop %v11400
    %v11402 = vadd.f32 %v11395, 1.0
    %v11403 = vadd.f32 %v11397, 1.0
    %v11404 = vadd.f32 %v11399, 1.0
    %v11405 = vadd.f32 %v11401, 1.0
    %v11406 = vrcp.pop %v11402
    %v11407 = vmul.f32 1.0, %v11406
    %v11408 = vrcp.pop %v11403
    %v11409 = vmul.f32 1.0, %v11408
    %v11410 = vrcp.pop %v11404
    %v11411 = vmul.f32 1.0, %v11410
    %v11412 = vrcp.pop %v11405
    %v11413 = vmul.f32 1.0, %v11412
    %v11414 = vld [vmem:[%s12] sm:$0x3]
    %v11416 = vlaneseq
    %v11417 = vshrl.u32 %v11416, 7
    %v11418 = vsub.s32 0, %v11417
    %v11419 = vrot.slane %v11414, %v11418
    %v11420 = vlaneseq
    %v11421 = vshrl.u32 %v11420, 7
    %v11422 = vsub.s32 1, %v11421
    %v11423 = vrot.slane %v11414, %v11422
    %v11426 = vmul.f32 %v11407, %v11419
    %v11427 = vmul.f32 %v11409, %v11423
    %v11428 = vmul.f32 %v11411, %v11419
    %v11429 = vmul.f32 %v11413, %v11423
    %v11430 = vadd.f32 %v11426, %v11427
    %11431 = vadd.xlane.f32.xlu0 %v11430
    %v11432 = vpop.xlane.xlu0 %11431
    %v11433 = vadd.f32 %v11428, %v11429
    %11434 = vadd.xlane.f32.xlu0 %v11433
    %v11435 = vpop.xlane.xlu0 %11434
    %v11436 = vld [vmem:[#allocation4] sm:$0x1]
    %v11438 = vlaneseq
    %v11439 = vshrl.u32 %v11438, 7
    %v11440 = vsub.s32 0, %v11439
    %v11441 = vrot.slane %v11436, %v11440
    %v11443 = vadd.f32 %v11432, %v11441
    %v11444 = vadd.f32 %v11435, %v11441
    %v11445 = vxor.u32 %v11443, 2147483648
    %v11446 = vxor.u32 %v11444, 2147483648
    %v11447 = vmul.f32 %v11445, 1.442695
    %v11448 = vpow.pop %v11447
    %v11449 = vmul.f32 %v11446, 1.442695
    %v11450 = vpow.pop %v11449
    %v11451 = vadd.f32 %v11448, 1.0
    %v11452 = vadd.f32 %v11450, 1.0
    %v11453 = vrcp.pop %v11451
    %v11454 = vmul.f32 1.0, %v11453
    %v11455 = vrcp.pop %v11452
    %v11456 = vmul.f32 1.0, %v11455
    %vm11457 = vcmask 7168
    %11458 = vst.msk [vmem:[%s14] sm:$0xff] %vm11457, %v11454
    %11459 = vst.msk [vmem:[%s14 + $0x8] sm:$0xff] %vm11457, %v11456
    // Predicated region
    $region78: #{gru_net_forward.1} parent=1 // pred_check
      _
    $region79: #{gru_net_forward.1} parent=1 // pred_check_branch
      %11461 = sbr.rel (0) target = $region81
    $region80: #{gru_net_forward.1} parent=1 // pred_region
      _
    $region81: #{gru_net_forward.1} parent=1 // pred_fallthru
      _
    // Predicated region
    $region82: #{gru_net_forward.1} parent=1 // pred_check
      _
    $region83: #{gru_net_forward.1} parent=1 // pred_check_branch
      %11463 = sbr.rel (0) target = $region85
    $region84: #{gru_net_forward.1} parent=1 // pred_region
      _
    $region85: #{gru_net_forward.1} parent=1 // pred_fallthru
      _
    %11464 = vsyncpa [#allocation6], 1
    %11465 = vsyncpa [#allocation8], 1
    %11466 = vsyncpa [#allocation11], 1

</llo_original>
